<compile_context>
chip_gen: v6e
topology: v6e:2x2x1
jax: 0.10.0
libtpu: 0.0.40
codegen_flags: <defaults>
</compile_context>

<pallas_src>
import jax
import jax.numpy as jnp
from jax.experimental import pallas as pl
from jax.experimental.pallas import tpu as pltpu

EPS = 1e-5
D_PAD = 8          # input_dim (3) padded up to one sublane group
N_TILE_MAX = 2048  # VMEM-safe tile ceiling on every generation (incl. v7x 64 MiB)


# ----------------------------------------------------------------------------
# Kernel 1: PointNet trunk (4 folded conv+BN layers) + running max over points
# ----------------------------------------------------------------------------
def trunk_kernel(x_ref,
                 w1, t1, w2, t2, w3, t3, w4, t4,   # bias + eval-BN folded
                 pooled_ref, acc_ref):
    n = pl.program_id(2)

    @pl.when(n == 0)
    def _():
        acc_ref[...] = jnp.full(acc_ref.shape, -jnp.inf, jnp.float32)

    # Layer 1 stays f32 (K=8 -> negligible FLOPs, tightens accuracy).
    x = x_ref[0]                                            # (n_tile, D_PAD) f32
    h = jnp.dot(x, w1[...], preferred_element_type=jnp.float32) + t1[...]
    h = jnp.maximum(h, 0.0)

    def layer(h, w, t, relu):
        # bf16 MXU matmul, f32 accumulation; BN shift / ReLU in f32.
        y = jnp.dot(h.astype(jnp.bfloat16), w[...],
                    preferred_element_type=jnp.float32) + t[...]
        return jnp.maximum(y, 0.0) if relu else y

    h = layer(h, w2, t2, True)      # (n_tile, 128)
    h = layer(h, w3, t3, True)      # (n_tile, 256)
    h = layer(h, w4, t4, False)     # (n_tile, 512)  BN, no ReLU

    # Running max (torch.max(x, 2)[0]): keep 8 sublane-group partials so the
    # per-step update is pure VPU vmax; the final 8->1 collapse is outside.
    h8 = h.reshape(-1, 8, h.shape[-1])                      # (n_tile//8, 8, 512)
    acc_ref[...] = jnp.maximum(acc_ref[...], jnp.max(h8, axis=0))

    @pl.when(n == pl.num_programs(2) - 1)
    def _():
        pooled_ref[0, 0] = acc_ref[...]                     # (8, 512)


# ----------------------------------------------------------------------------
# Kernel 2: batched MLP head (512 -> 256 -> 128 -> zdim_pad), whole batch at once
# ----------------------------------------------------------------------------
def head_kernel(f_ref, hw1, ht1, hw2, ht2, hw3, hb3, out_ref):
    g = f_ref[...]                                          # (B, 512) f32
    g = jnp.maximum(jnp.dot(g, hw1[...],
                            preferred_element_type=jnp.float32) + ht1[...], 0.0)
    g = jnp.maximum(jnp.dot(g, hw2[...],
                            preferred_element_type=jnp.float32) + ht2[...], 0.0)
    out_ref[...] = jnp.dot(g, hw3[...],
                           preferred_element_type=jnp.float32) + hb3[...]


# ----------------------------------------------------------------------------
# Parameter folding (bias + eval-mode BatchNorm into the weight / shift)
# ----------------------------------------------------------------------------
def _fold_conv_bn(w, b, gamma, beta, mean, var):
    scale = gamma / jnp.sqrt(var + EPS)
    return w * scale[None, :], (b - mean) * scale + beta


# ----------------------------------------------------------------------------
# Trunk pallas_call builder (single- or double-buffered resident weights)
# ----------------------------------------------------------------------------
def _run_trunk(x, weights, B, p_split, n_steps, n_tile, single_buffer_weights):
    def x_map(b, p, n):
        return (b, p * n_steps + n, 0)

    def const_map(b, p, n):
        return (0, 0)

    if single_buffer_weights:
        w_specs = [pl.BlockSpec(a.shape, const_map, pipeline_mode=pl.Buffered(1))
                   for a in weights]
    else:
        w_specs = [pl.BlockSpec(a.shape, const_map) for a in weights]

    n_padded = p_split * n_steps * n_tile
    flops = 2 * B * n_padded * (D_PAD * 128 + 128 * 128 + 128 * 256 + 256 * 512)
    bytes_accessed = int(x.size * x.dtype.itemsize
                         + sum(int(a.size) * a.dtype.itemsize for a in weights)
                         + B * p_split * 8 * 512 * 4)

    return pl.pallas_call(
        trunk_kernel,
        out_shape=jax.ShapeDtypeStruct((B, p_split, 8, 512), jnp.float32),
        grid_spec=pltpu.PrefetchScalarGridSpec(
            num_scalar_prefetch=0,
            grid=(B, p_split, n_steps),
            in_specs=[pl.BlockSpec((1, n_tile, D_PAD), x_map)] + w_specs,
            out_specs=pl.BlockSpec((1, 1, 8, 512), lambda b, p, n: (b, p, 0, 0)),
            scratch_shapes=[pltpu.VMEM((8, 512), jnp.float32)],   # running max
        ),
        compiler_params=pltpu.CompilerParams(
            dimension_semantics=("parallel", "parallel", "arbitrary"),
            vmem_limit_bytes=48 * 1024 * 1024,
        ),
        cost_estimate=pl.CostEstimate(
            flops=flops, transcendentals=0, bytes_accessed=bytes_accessed),
    )(x, *weights)


# ----------------------------------------------------------------------------
# Wrapper
# ----------------------------------------------------------------------------
def encoder_forward(x, params, *, n_tile=1024, p_split=None):
    """x: (B, N, D_in) float32.  Returns (m, v) with v == 0 (deterministic)."""
    B, N, D_in = x.shape
    zdim = params["head_final"][0].shape[1]

    # ---- fold + pack trunk parameters --------------------------------------
    trunk_w, trunk_t = [], []
    for (w, b, g, bt, mu, var) in params["trunk"]:
        wf, tf = _fold_conv_bn(w, b, g, bt, mu, var)
        trunk_w.append(wf)
        trunk_t.append(tf)
    # zero-pad first conv's input channels (D_in -> D_PAD); keep it f32
    w1p = jnp.zeros((D_PAD, trunk_w[0].shape[1]), jnp.float32)
    trunk_w[0] = w1p.at[:D_in].set(trunk_w[0])

    trunk_weights = [trunk_w[0].astype(jnp.float32)] + \
                    [w.astype(jnp.bfloat16) for w in trunk_w[1:]]
    trunk_shifts = [t.reshape(1, -1).astype(jnp.float32) for t in trunk_t]
    trunk_args = []
    for w, t in zip(trunk_weights, trunk_shifts):
        trunk_args += [w, t]

    # ---- fold + pack head parameters (f32, tiny) ----------------------------
    head_w, head_t = [], []
    for (w, b, g, bt, mu, var) in params["head_bn"]:
        wf, tf = _fold_conv_bn(w, b, g, bt, mu, var)
        head_w.append(wf)
        head_t.append(tf)
    w3, b3 = params["head_final"]
    zpad = max(128, ((zdim + 127) // 128) * 128)      # lane-dense output
    head_w.append(jnp.zeros((w3.shape[0], zpad), jnp.float32).at[:, :zdim].set(w3))
    head_t.append(jnp.zeros((zpad,), jnp.float32).at[:zdim].set(b3))
    head_args = []
    for w, t in zip(head_w, head_t):
        head_args += [w.astype(jnp.float32), t.reshape(1, -1).astype(jnp.float32)]

    # ---- tiling of the points axis ------------------------------------------
    if p_split is None:
        p_split = 2 if B == 1 else 1      # keep both v7x TensorCores busy at B==1
    n_tile = int(min(n_tile, N_TILE_MAX))
    n_tile = max(16, (min(n_tile, N) // 16) * 16)
    chunk = p_split * n_tile
    n_padded = ((N + chunk - 1) // chunk) * chunk
    n_steps = n_padded // chunk

    x = jnp.pad(x, ((0, 0), (0, 0), (0, D_PAD - D_in)))
    if n_padded != N:
        # replicate the last (real) point; the max-reduction is unaffected
        x = jnp.concatenate(
            [x, jnp.broadcast_to(x[:, -1:, :], (B, n_padded - N, D_PAD))], axis=1)
    x = x.astype(jnp.float32)

    # ---- trunk + max-pool (fused kernel) ------------------------------------
    try:
        pooled4 = _run_trunk(x, trunk_args, B, p_split, n_steps, n_tile, True)
    except Exception:
        # pipeline_mode=Buffered(1) unsupported on this JAX -> default buffering
        pooled4 = _run_trunk(x, trunk_args, B, p_split, n_steps, n_tile, False)
    pooled = jnp.max(pooled4, axis=(1, 2))                 # (B, 512) f32

    # ---- batched MLP head (one tiny kernel over the whole batch) ------------
    out = pl.pallas_call(
        head_kernel,
        out_shape=jax.ShapeDtypeStruct((B, zpad), jnp.float32),
    )(pooled, *head_args)

    m = out[:, :zdim]
    return m, jnp.zeros((), jnp.float32)   # (m, v=0) like the PyTorch module


# ----------------------------------------------------------------------------
# Deterministic parameter construction
# ----------------------------------------------------------------------------
def make_params(key, input_dim, zdim):
    dim_list = [input_dim, 128, 128, 256, 512]
    dim_list2 = [512, 256, 128, zdim]

    def conv_like(key, cin, cout):
        kw, kb, kg, kbt, km, kv = jax.random.split(key, 6)
        w = jax.random.normal(kw, (cin, cout), jnp.float32) * (1.0 / jnp.sqrt(cin))
        b = jax.random.normal(kb, (cout,), jnp.float32) * 0.05
        gamma = 1.0 + 0.1 * jax.random.normal(kg, (cout,), jnp.float32)
        beta = 0.1 * jax.random.normal(kbt, (cout,), jnp.float32)
        mean = 0.1 * jax.random.normal(km, (cout,), jnp.float32)
        var = 1.0 + 0.1 * jnp.abs(jax.random.normal(kv, (cout,), jnp.float32))
        return (w, b, gamma, beta, mean, var)

    keys = jax.random.split(key, 8)
    trunk = [conv_like(keys[i], dim_list[i], dim_list[i + 1]) for i in range(4)]
    head_bn = [conv_like(keys[4 + i], dim_list2[i], dim_list2[i + 1])
               for i in range(2)]
    kw, kb = jax.random.split(keys[7])
    w3 = jax.random.normal(kw, (dim_list2[2], dim_list2[3]), jnp.float32) \
        * (1.0 / jnp.sqrt(dim_list2[2]))
    b3 = jax.random.normal(kb, (dim_list2[3],), jnp.float32) * 0.05
    return {"trunk": trunk, "head_bn": head_bn, "head_final": (w3, b3)}


# ----------------------------------------------------------------------------
# Pure-JAX f32 reference (correctness sanity check)
# ----------------------------------------------------------------------------
def reference_forward(x, params):
    h = x
    for i, (w, b, g, bt, mu, var) in enumerate(params["trunk"]):
        scale = g / jnp.sqrt(var + EPS)
        shift = bt - mu * scale
        h = jnp.einsum("bnd,dc->bnc", h, w) + b
        h = h * scale + shift
        if i < 3:
            h = jnp.maximum(h, 0.0)
    h = jnp.max(h, axis=1)
    for (w, b, g, bt, mu, var) in params["head_bn"]:
        scale = g / jnp.sqrt(var + EPS)
        shift = bt - mu * scale
        h = jnp.maximum((h @ w + b) * scale + shift, 0.0)
    w3, b3 = params["head_final"]
    return h @ w3 + b3


if __name__ == "__main__":
    B, N, INPUT_DIM, ZDIM = 2, 512, 3, 32

    key = jax.random.PRNGKey(0)
    kx, kp = jax.random.split(key)
    x = jax.random.normal(kx, (B, N, INPUT_DIM), jnp.float32)
    params = make_params(kp, INPUT_DIM, ZDIM)

    m, v = encoder_forward(x, params)
    m = jax.block_until_ready(m)
    v = jax.block_until_ready(v)

    m_ref = reference_forward(x, params)
    assert m.shape == (B, ZDIM)
    # bf16 MXU path on the big layers -> relaxed tolerance vs f32 reference
    rel_err = float(jnp.max(jnp.abs(m - m_ref)) /
                    (jnp.max(jnp.abs(m_ref)) + 1e-6))
    assert rel_err < 5e-2, f"mismatch vs reference (rel err {rel_err})"

    print("KERNEL_OK")
</pallas_src>

<mosaic_0001>
module attributes {stable_mosaic.version = 11 : i64} {
  func.func @trunk_kernel(%arg0: i32, %arg1: i32, %arg2: i32, %arg3: memref<1x512x8xf32, #tpu.memory_space<vmem>>, %arg4: memref<8x128xf32, #tpu.memory_space<vmem>>, %arg5: memref<1x128xf32, #tpu.memory_space<vmem>>, %arg6: memref<128x128xbf16, #tpu.memory_space<vmem>>, %arg7: memref<1x128xf32, #tpu.memory_space<vmem>>, %arg8: memref<128x256xbf16, #tpu.memory_space<vmem>>, %arg9: memref<1x256xf32, #tpu.memory_space<vmem>>, %arg10: memref<256x512xbf16, #tpu.memory_space<vmem>>, %arg11: memref<1x512xf32, #tpu.memory_space<vmem>>, %arg12: memref<1x1x8x512xf32, #tpu.memory_space<vmem>>, %arg13: memref<8x512xf32, #tpu.memory_space<vmem>>) attributes {dimension_semantics = [#tpu.dimension_semantics<parallel>, #tpu.dimension_semantics<parallel>, #tpu.dimension_semantics<arbitrary>], iteration_bounds = array<i64: 2, 1, 1>, scalar_prefetch = 0 : i64, scratch_operands = 1 : i64, tpu.core_type = #tpu.core_type<tc>, window_params = [{transform_indices = @transform_0, window_bounds = array<i64: 1, 512, 8>}, {pipeline_mode = #tpu.pipeline_mode<synchronous>, transform_indices = @transform_1, window_bounds = array<i64: 8, 128>}, {pipeline_mode = #tpu.pipeline_mode<synchronous>, transform_indices = @transform_2, window_bounds = array<i64: 1, 128>}, {pipeline_mode = #tpu.pipeline_mode<synchronous>, transform_indices = @transform_3, window_bounds = array<i64: 128, 128>}, {pipeline_mode = #tpu.pipeline_mode<synchronous>, transform_indices = @transform_4, window_bounds = array<i64: 1, 128>}, {pipeline_mode = #tpu.pipeline_mode<synchronous>, transform_indices = @transform_5, window_bounds = array<i64: 128, 256>}, {pipeline_mode = #tpu.pipeline_mode<synchronous>, transform_indices = @transform_6, window_bounds = array<i64: 1, 256>}, {pipeline_mode = #tpu.pipeline_mode<synchronous>, transform_indices = @transform_7, window_bounds = array<i64: 256, 512>}, {pipeline_mode = #tpu.pipeline_mode<synchronous>, transform_indices = @transform_8, window_bounds = array<i64: 1, 512>}, {transform_indices = @transform_9, window_bounds = array<i64: 1, 1, 8, 512>}]} {
    %c0_i32 = arith.constant 0 : i32
    %0 = arith.cmpi eq, %arg2, %c0_i32 : i32
    %1 = arith.extui %0 : i1 to i32
    %c0_i32_0 = arith.constant 0 : i32
    %2 = arith.cmpi ne, %1, %c0_i32_0 : i32
    scf.if %2 {
      %cst_32 = arith.constant 0xFF800000 : f32
      %42 = vector.broadcast %cst_32 : f32 to vector<8x512xf32>
      %c0_33 = arith.constant 0 : index
      %c0_34 = arith.constant 0 : index
      %43 = vector.load %arg13[%c0_33, %c0_34] : memref<8x512xf32, #tpu.memory_space<vmem>>, vector<8x512xf32>
      tpu.vector_store %arg13[%c0_33, %c0_34], %42 {strides = array<i32>} : memref<8x512xf32, #tpu.memory_space<vmem>>, vector<8x512xf32>,
    } else {
    }
    %c0 = arith.constant 0 : index
    %c0_1 = arith.constant 0 : index
    %c0_2 = arith.constant 0 : index
    %3 = vector.load %arg3[%c0, %c0_1, %c0_2] : memref<1x512x8xf32, #tpu.memory_space<vmem>>, vector<1x512x8xf32>
    %4 = vector.shape_cast %3 : vector<1x512x8xf32> to vector<512x8xf32>
    %c0_3 = arith.constant 0 : index
    %c0_4 = arith.constant 0 : index
    %5 = vector.load %arg4[%c0_3, %c0_4] : memref<8x128xf32, #tpu.memory_space<vmem>>, vector<8x128xf32>
    %cst = arith.constant dense<0.000000e+00> : vector<512x128xf32>
    %6 = tpu.matmul %4, %5, %cst {dimension_numbers = #tpu.dot_dimension_numbers<[1], [0], [0], [1], [0, 0, 1, 1], [], []>} : vector<512x8xf32>, vector<8x128xf32>, vector<512x128xf32> -> vector<512x128xf32>
    %c0_5 = arith.constant 0 : index
    %c0_6 = arith.constant 0 : index
    %7 = vector.load %arg5[%c0_5, %c0_6] : memref<1x128xf32, #tpu.memory_space<vmem>>, vector<1x128xf32>
    %8 = vector.broadcast %7 : vector<1x128xf32> to vector<512x128xf32>
    %9 = arith.addf %6, %8 : vector<512x128xf32>
    %cst_7 = arith.constant 0.000000e+00 : f32
    %10 = vector.broadcast %cst_7 : f32 to vector<512x128xf32>
    %11 = arith.maximumf %9, %10 : vector<512x128xf32>
    %12 = arith.truncf %11 : vector<512x128xf32> to vector<512x128xbf16>
    %c0_8 = arith.constant 0 : index
    %c0_9 = arith.constant 0 : index
    %13 = vector.load %arg6[%c0_8, %c0_9] : memref<128x128xbf16, #tpu.memory_space<vmem>>, vector<128x128xbf16>
    %cst_10 = arith.constant dense<0.000000e+00> : vector<512x128xf32>
    %14 = tpu.matmul %12, %13, %cst_10 {dimension_numbers = #tpu.dot_dimension_numbers<[1], [0], [0], [1], [0, 0, 1, 1], [], []>} : vector<512x128xbf16>, vector<128x128xbf16>, vector<512x128xf32> -> vector<512x128xf32>
    %c0_11 = arith.constant 0 : index
    %c0_12 = arith.constant 0 : index
    %15 = vector.load %arg7[%c0_11, %c0_12] : memref<1x128xf32, #tpu.memory_space<vmem>>, vector<1x128xf32>
    %16 = vector.broadcast %15 : vector<1x128xf32> to vector<512x128xf32>
    %17 = arith.addf %14, %16 : vector<512x128xf32>
    %cst_13 = arith.constant 0.000000e+00 : f32
    %18 = vector.broadcast %cst_13 : f32 to vector<512x128xf32>
    %19 = arith.maximumf %17, %18 : vector<512x128xf32>
    %20 = arith.truncf %19 : vector<512x128xf32> to vector<512x128xbf16>
    %c0_14 = arith.constant 0 : index
    %c0_15 = arith.constant 0 : index
    %21 = vector.load %arg8[%c0_14, %c0_15] : memref<128x256xbf16, #tpu.memory_space<vmem>>, vector<128x256xbf16>
    %cst_16 = arith.constant dense<0.000000e+00> : vector<512x256xf32>
    %22 = tpu.matmul %20, %21, %cst_16 {dimension_numbers = #tpu.dot_dimension_numbers<[1], [0], [0], [1], [0, 0, 1, 1], [], []>} : vector<512x128xbf16>, vector<128x256xbf16>, vector<512x256xf32> -> vector<512x256xf32>
    %c0_17 = arith.constant 0 : index
    %c0_18 = arith.constant 0 : index
    %23 = vector.load %arg9[%c0_17, %c0_18] : memref<1x256xf32, #tpu.memory_space<vmem>>, vector<1x256xf32>
    %24 = vector.broadcast %23 : vector<1x256xf32> to vector<512x256xf32>
    %25 = arith.addf %22, %24 : vector<512x256xf32>
    %cst_19 = arith.constant 0.000000e+00 : f32
    %26 = vector.broadcast %cst_19 : f32 to vector<512x256xf32>
    %27 = arith.maximumf %25, %26 : vector<512x256xf32>
    %28 = arith.truncf %27 : vector<512x256xf32> to vector<512x256xbf16>
    %c0_20 = arith.constant 0 : index
    %c0_21 = arith.constant 0 : index
    %29 = vector.load %arg10[%c0_20, %c0_21] : memref<256x512xbf16, #tpu.memory_space<vmem>>, vector<256x512xbf16>
    %cst_22 = arith.constant dense<0.000000e+00> : vector<512x512xf32>
    %30 = tpu.matmul %28, %29, %cst_22 {dimension_numbers = #tpu.dot_dimension_numbers<[1], [0], [0], [1], [0, 0, 1, 1], [], []>} : vector<512x256xbf16>, vector<256x512xbf16>, vector<512x512xf32> -> vector<512x512xf32>
    %c0_23 = arith.constant 0 : index
    %c0_24 = arith.constant 0 : index
    %31 = vector.load %arg11[%c0_23, %c0_24] : memref<1x512xf32, #tpu.memory_space<vmem>>, vector<1x512xf32>
    %32 = vector.broadcast %31 : vector<1x512xf32> to vector<512x512xf32>
    %33 = arith.addf %30, %32 : vector<512x512xf32>
    %34 = vector.shape_cast %33 : vector<512x512xf32> to vector<64x8x512xf32>
    %c0_25 = arith.constant 0 : index
    %c0_26 = arith.constant 0 : index
    %35 = vector.load %arg13[%c0_25, %c0_26] : memref<8x512xf32, #tpu.memory_space<vmem>>, vector<8x512xf32>
    %cst_27 = arith.constant dense<0xFF800000> : vector<8x512xf32>
    %36 = vector.multi_reduction <maximumf>, %34, %cst_27 [0] : vector<64x8x512xf32> to vector<8x512xf32>
    %37 = arith.maximumf %35, %36 : vector<8x512xf32>
    %c0_28 = arith.constant 0 : index
    %c0_29 = arith.constant 0 : index
    %38 = vector.load %arg13[%c0_28, %c0_29] : memref<8x512xf32, #tpu.memory_space<vmem>>, vector<8x512xf32>
    tpu.vector_store %arg13[%c0_28, %c0_29], %37 {strides = array<i32>} : memref<8x512xf32, #tpu.memory_space<vmem>>, vector<8x512xf32>,
    %c0_i32_30 = arith.constant 0 : i32
    %39 = arith.cmpi eq, %arg2, %c0_i32_30 : i32
    %40 = arith.extui %39 : i1 to i32
    %c0_i32_31 = arith.constant 0 : i32
    %41 = arith.cmpi ne, %40, %c0_i32_31 : i32
    scf.if %41 {
      %c0_32 = arith.constant 0 : index
      %c0_33 = arith.constant 0 : index
      %42 = vector.load %arg13[%c0_32, %c0_33] : memref<8x512xf32, #tpu.memory_space<vmem>>, vector<8x512xf32>
      %c0_34 = arith.constant 0 : index
      %c0_35 = arith.constant 0 : index
      %c0_36 = arith.constant 0 : index
      %c0_37 = arith.constant 0 : index
      %43 = vector.load %arg12[%c0_34, %c0_35, %c0_36, %c0_37] : memref<1x1x8x512xf32, #tpu.memory_space<vmem>>, vector<1x1x8x512xf32>
      %44 = vector.shape_cast %43 : vector<1x1x8x512xf32> to vector<8x512xf32>
      %45 = vector.shape_cast %42 : vector<8x512xf32> to vector<1x1x8x512xf32>
      tpu.vector_store %arg12[%c0_34, %c0_35, %c0_36, %c0_37], %45 {strides = array<i32>} : memref<1x1x8x512xf32, #tpu.memory_space<vmem>>, vector<1x1x8x512xf32>,
    } else {
    }
    return
  }
  func.func @transform_0(%arg0: i32, %arg1: i32, %arg2: i32) -> (i32, i32, i32) {
    %c1_i32 = arith.constant 1 : i32
    %0 = arith.muli %arg1, %c1_i32 : i32
    %1 = arith.addi %0, %arg2 : i32
    %c0_i32 = arith.constant 0 : i32
    %c0_i32_0 = arith.constant 0 : i32
    return %arg0, %1, %c0_i32 : i32, i32, i32
  }
  func.func @transform_1(%arg0: i32, %arg1: i32, %arg2: i32) -> (i32, i32) {
    %c0_i32 = arith.constant 0 : i32
    %c0_i32_0 = arith.constant 0 : i32
    %c0_i32_1 = arith.constant 0 : i32
    return %c0_i32, %c0_i32_0 : i32, i32
  }
  func.func @transform_2(%arg0: i32, %arg1: i32, %arg2: i32) -> (i32, i32) {
    %c0_i32 = arith.constant 0 : i32
    %c0_i32_0 = arith.constant 0 : i32
    %c0_i32_1 = arith.constant 0 : i32
    return %c0_i32, %c0_i32_0 : i32, i32
  }
  func.func @transform_3(%arg0: i32, %arg1: i32, %arg2: i32) -> (i32, i32) {
    %c0_i32 = arith.constant 0 : i32
    %c0_i32_0 = arith.constant 0 : i32
    %c0_i32_1 = arith.constant 0 : i32
    return %c0_i32, %c0_i32_0 : i32, i32
  }
  func.func @transform_4(%arg0: i32, %arg1: i32, %arg2: i32) -> (i32, i32) {
    %c0_i32 = arith.constant 0 : i32
    %c0_i32_0 = arith.constant 0 : i32
    %c0_i32_1 = arith.constant 0 : i32
    return %c0_i32, %c0_i32_0 : i32, i32
  }
  func.func @transform_5(%arg0: i32, %arg1: i32, %arg2: i32) -> (i32, i32) {
    %c0_i32 = arith.constant 0 : i32
    %c0_i32_0 = arith.constant 0 : i32
    %c0_i32_1 = arith.constant 0 : i32
    return %c0_i32, %c0_i32_0 : i32, i32
  }
  func.func @transform_6(%arg0: i32, %arg1: i32, %arg2: i32) -> (i32, i32) {
    %c0_i32 = arith.constant 0 : i32
    %c0_i32_0 = arith.constant 0 : i32
    %c0_i32_1 = arith.constant 0 : i32
    return %c0_i32, %c0_i32_0 : i32, i32
  }
  func.func @transform_7(%arg0: i32, %arg1: i32, %arg2: i32) -> (i32, i32) {
    %c0_i32 = arith.constant 0 : i32
    %c0_i32_0 = arith.constant 0 : i32
    %c0_i32_1 = arith.constant 0 : i32
    return %c0_i32, %c0_i32_0 : i32, i32
  }
  func.func @transform_8(%arg0: i32, %arg1: i32, %arg2: i32) -> (i32, i32) {
    %c0_i32 = arith.constant 0 : i32
    %c0_i32_0 = arith.constant 0 : i32
    %c0_i32_1 = arith.constant 0 : i32
    return %c0_i32, %c0_i32_0 : i32, i32
  }
  func.func @transform_9(%arg0: i32, %arg1: i32, %arg2: i32) -> (i32, i32, i32, i32) {
    %c0_i32 = arith.constant 0 : i32
    %c0_i32_0 = arith.constant 0 : i32
    %c0_i32_1 = arith.constant 0 : i32
    return %arg0, %arg1, %c0_i32, %c0_i32_0 : i32, i32, i32, i32
  }
}

module attributes {stable_mosaic.version = 11 : i64} {
  func.func @trunk_kernel(%arg0: i32, %arg1: i32, %arg2: i32, %arg3: memref<1x512x8xf32, #tpu.memory_space<vmem>>, %arg4: memref<8x128xf32, #tpu.memory_space<vmem>>, %arg5: memref<1x128xf32, #tpu.memory_space<vmem>>, %arg6: memref<128x128xbf16, #tpu.memory_space<vmem>>, %arg7: memref<1x128xf32, #tpu.memory_space<vmem>>, %arg8: memref<128x256xbf16, #tpu.memory_space<vmem>>, %arg9: memref<1x256xf32, #tpu.memory_space<vmem>>, %arg10: memref<256x512xbf16, #tpu.memory_space<vmem>>, %arg11: memref<1x512xf32, #tpu.memory_space<vmem>>, %arg12: memref<1x1x8x512xf32, #tpu.memory_space<vmem>>, %arg13: memref<8x512xf32, #tpu.memory_space<vmem>>) attributes {dimension_semantics = [#tpu.dimension_semantics<parallel>, #tpu.dimension_semantics<parallel>, #tpu.dimension_semantics<arbitrary>], iteration_bounds = array<i64: 2, 1, 1>, scalar_prefetch = 0 : i64, scratch_operands = 1 : i64, tpu.core_type = #tpu.core_type<tc>, window_params = [{transform_indices = @transform_0, window_bounds = array<i64: 1, 512, 8>}, {pipeline_mode = #tpu.pipeline_mode<synchronous>, transform_indices = @transform_1, window_bounds = array<i64: 8, 128>}, {pipeline_mode = #tpu.pipeline_mode<synchronous>, transform_indices = @transform_2, window_bounds = array<i64: 1, 128>}, {pipeline_mode = #tpu.pipeline_mode<synchronous>, transform_indices = @transform_3, window_bounds = array<i64: 128, 128>}, {pipeline_mode = #tpu.pipeline_mode<synchronous>, transform_indices = @transform_4, window_bounds = array<i64: 1, 128>}, {pipeline_mode = #tpu.pipeline_mode<synchronous>, transform_indices = @transform_5, window_bounds = array<i64: 128, 256>}, {pipeline_mode = #tpu.pipeline_mode<synchronous>, transform_indices = @transform_6, window_bounds = array<i64: 1, 256>}, {pipeline_mode = #tpu.pipeline_mode<synchronous>, transform_indices = @transform_7, window_bounds = array<i64: 256, 512>}, {pipeline_mode = #tpu.pipeline_mode<synchronous>, transform_indices = @transform_8, window_bounds = array<i64: 1, 512>}, {transform_indices = @transform_9, window_bounds = array<i64: 1, 1, 8, 512>}]} {
    %c0_i32 = arith.constant 0 : i32
    %0 = arith.cmpi eq, %arg2, %c0_i32 : i32
    %1 = arith.extui %0 : i1 to i32
    %c0_i32_0 = arith.constant 0 : i32
    %2 = arith.cmpi ne, %1, %c0_i32_0 : i32
    scf.if %2 {
      %cst_32 = arith.constant 0xFF800000 : f32
      %42 = vector.broadcast %cst_32 : f32 to vector<8x512xf32>
      %c0_33 = arith.constant 0 : index
      %c0_34 = arith.constant 0 : index
      %43 = vector.load %arg13[%c0_33, %c0_34] : memref<8x512xf32, #tpu.memory_space<vmem>>, vector<8x512xf32>
      tpu.vector_store %arg13[%c0_33, %c0_34], %42 {strides = array<i32>} : memref<8x512xf32, #tpu.memory_space<vmem>>, vector<8x512xf32>,
    } else {
    }
    %c0 = arith.constant 0 : index
    %c0_1 = arith.constant 0 : index
    %c0_2 = arith.constant 0 : index
    %3 = vector.load %arg3[%c0, %c0_1, %c0_2] : memref<1x512x8xf32, #tpu.memory_space<vmem>>, vector<1x512x8xf32>
    %4 = vector.shape_cast %3 : vector<1x512x8xf32> to vector<512x8xf32>
    %c0_3 = arith.constant 0 : index
    %c0_4 = arith.constant 0 : index
    %5 = vector.load %arg4[%c0_3, %c0_4] : memref<8x128xf32, #tpu.memory_space<vmem>>, vector<8x128xf32>
    %cst = arith.constant dense<0.000000e+00> : vector<512x128xf32>
    %6 = tpu.matmul %4, %5, %cst {dimension_numbers = #tpu.dot_dimension_numbers<[1], [0], [0], [1], [0, 0, 1, 1], [], []>} : vector<512x8xf32>, vector<8x128xf32>, vector<512x128xf32> -> vector<512x128xf32>
    %c0_5 = arith.constant 0 : index
    %c0_6 = arith.constant 0 : index
    %7 = vector.load %arg5[%c0_5, %c0_6] : memref<1x128xf32, #tpu.memory_space<vmem>>, vector<1x128xf32>
    %8 = vector.broadcast %7 : vector<1x128xf32> to vector<512x128xf32>
    %9 = arith.addf %6, %8 : vector<512x128xf32>
    %cst_7 = arith.constant 0.000000e+00 : f32
    %10 = vector.broadcast %cst_7 : f32 to vector<512x128xf32>
    %11 = arith.maximumf %9, %10 : vector<512x128xf32>
    %12 = arith.truncf %11 : vector<512x128xf32> to vector<512x128xbf16>
    %c0_8 = arith.constant 0 : index
    %c0_9 = arith.constant 0 : index
    %13 = vector.load %arg6[%c0_8, %c0_9] : memref<128x128xbf16, #tpu.memory_space<vmem>>, vector<128x128xbf16>
    %cst_10 = arith.constant dense<0.000000e+00> : vector<512x128xf32>
    %14 = tpu.matmul %12, %13, %cst_10 {dimension_numbers = #tpu.dot_dimension_numbers<[1], [0], [0], [1], [0, 0, 1, 1], [], []>} : vector<512x128xbf16>, vector<128x128xbf16>, vector<512x128xf32> -> vector<512x128xf32>
    %c0_11 = arith.constant 0 : index
    %c0_12 = arith.constant 0 : index
    %15 = vector.load %arg7[%c0_11, %c0_12] : memref<1x128xf32, #tpu.memory_space<vmem>>, vector<1x128xf32>
    %16 = vector.broadcast %15 : vector<1x128xf32> to vector<512x128xf32>
    %17 = arith.addf %14, %16 : vector<512x128xf32>
    %cst_13 = arith.constant 0.000000e+00 : f32
    %18 = vector.broadcast %cst_13 : f32 to vector<512x128xf32>
    %19 = arith.maximumf %17, %18 : vector<512x128xf32>
    %20 = arith.truncf %19 : vector<512x128xf32> to vector<512x128xbf16>
    %c0_14 = arith.constant 0 : index
    %c0_15 = arith.constant 0 : index
    %21 = vector.load %arg8[%c0_14, %c0_15] : memref<128x256xbf16, #tpu.memory_space<vmem>>, vector<128x256xbf16>
    %cst_16 = arith.constant dense<0.000000e+00> : vector<512x256xf32>
    %22 = tpu.matmul %20, %21, %cst_16 {dimension_numbers = #tpu.dot_dimension_numbers<[1], [0], [0], [1], [0, 0, 1, 1], [], []>} : vector<512x128xbf16>, vector<128x256xbf16>, vector<512x256xf32> -> vector<512x256xf32>
    %c0_17 = arith.constant 0 : index
    %c0_18 = arith.constant 0 : index
    %23 = vector.load %arg9[%c0_17, %c0_18] : memref<1x256xf32, #tpu.memory_space<vmem>>, vector<1x256xf32>
    %24 = vector.broadcast %23 : vector<1x256xf32> to vector<512x256xf32>
    %25 = arith.addf %22, %24 : vector<512x256xf32>
    %cst_19 = arith.constant 0.000000e+00 : f32
    %26 = vector.broadcast %cst_19 : f32 to vector<512x256xf32>
    %27 = arith.maximumf %25, %26 : vector<512x256xf32>
    %28 = arith.truncf %27 : vector<512x256xf32> to vector<512x256xbf16>
    %c0_20 = arith.constant 0 : index
    %c0_21 = arith.constant 0 : index
    %29 = vector.load %arg10[%c0_20, %c0_21] : memref<256x512xbf16, #tpu.memory_space<vmem>>, vector<256x512xbf16>
    %cst_22 = arith.constant dense<0.000000e+00> : vector<512x512xf32>
    %30 = tpu.matmul %28, %29, %cst_22 {dimension_numbers = #tpu.dot_dimension_numbers<[1], [0], [0], [1], [0, 0, 1, 1], [], []>} : vector<512x256xbf16>, vector<256x512xbf16>, vector<512x512xf32> -> vector<512x512xf32>
    %c0_23 = arith.constant 0 : index
    %c0_24 = arith.constant 0 : index
    %31 = vector.load %arg11[%c0_23, %c0_24] : memref<1x512xf32, #tpu.memory_space<vmem>>, vector<1x512xf32>
    %32 = vector.broadcast %31 : vector<1x512xf32> to vector<512x512xf32>
    %33 = arith.addf %30, %32 : vector<512x512xf32>
    %34 = vector.shape_cast %33 : vector<512x512xf32> to vector<64x8x512xf32>
    %c0_25 = arith.constant 0 : index
    %c0_26 = arith.constant 0 : index
    %35 = vector.load %arg13[%c0_25, %c0_26] : memref<8x512xf32, #tpu.memory_space<vmem>>, vector<8x512xf32>
    %cst_27 = arith.constant dense<0xFF800000> : vector<8x512xf32>
    %36 = vector.multi_reduction <maximumf>, %34, %cst_27 [0] : vector<64x8x512xf32> to vector<8x512xf32>
    %37 = arith.maximumf %35, %36 : vector<8x512xf32>
    %c0_28 = arith.constant 0 : index
    %c0_29 = arith.constant 0 : index
    %38 = vector.load %arg13[%c0_28, %c0_29] : memref<8x512xf32, #tpu.memory_space<vmem>>, vector<8x512xf32>
    tpu.vector_store %arg13[%c0_28, %c0_29], %37 {strides = array<i32>} : memref<8x512xf32, #tpu.memory_space<vmem>>, vector<8x512xf32>,
    %c0_i32_30 = arith.constant 0 : i32
    %39 = arith.cmpi eq, %arg2, %c0_i32_30 : i32
    %40 = arith.extui %39 : i1 to i32
    %c0_i32_31 = arith.constant 0 : i32
    %41 = arith.cmpi ne, %40, %c0_i32_31 : i32
    scf.if %41 {
      %c0_32 = arith.constant 0 : index
      %c0_33 = arith.constant 0 : index
      %42 = vector.load %arg13[%c0_32, %c0_33] : memref<8x512xf32, #tpu.memory_space<vmem>>, vector<8x512xf32>
      %c0_34 = arith.constant 0 : index
      %c0_35 = arith.constant 0 : index
      %c0_36 = arith.constant 0 : index
      %c0_37 = arith.constant 0 : index
      %43 = vector.load %arg12[%c0_34, %c0_35, %c0_36, %c0_37] : memref<1x1x8x512xf32, #tpu.memory_space<vmem>>, vector<1x1x8x512xf32>
      %44 = vector.shape_cast %43 : vector<1x1x8x512xf32> to vector<8x512xf32>
      %45 = vector.shape_cast %42 : vector<8x512xf32> to vector<1x1x8x512xf32>
      tpu.vector_store %arg12[%c0_34, %c0_35, %c0_36, %c0_37], %45 {strides = array<i32>} : memref<1x1x8x512xf32, #tpu.memory_space<vmem>>, vector<1x1x8x512xf32>,
    } else {
    }
    return
  }
  func.func @transform_0(%arg0: i32, %arg1: i32, %arg2: i32) -> (i32, i32, i32) {
    %c1_i32 = arith.constant 1 : i32
    %0 = arith.muli %arg1, %c1_i32 : i32
    %1 = arith.addi %0, %arg2 : i32
    %c0_i32 = arith.constant 0 : i32
    %c0_i32_0 = arith.constant 0 : i32
    return %arg0, %1, %c0_i32 : i32, i32, i32
  }
  func.func @transform_1(%arg0: i32, %arg1: i32, %arg2: i32) -> (i32, i32) {
    %c0_i32 = arith.constant 0 : i32
    %c0_i32_0 = arith.constant 0 : i32
    %c0_i32_1 = arith.constant 0 : i32
    return %c0_i32, %c0_i32_0 : i32, i32
  }
  func.func @transform_2(%arg0: i32, %arg1: i32, %arg2: i32) -> (i32, i32) {
    %c0_i32 = arith.constant 0 : i32
    %c0_i32_0 = arith.constant 0 : i32
    %c0_i32_1 = arith.constant 0 : i32
    return %c0_i32, %c0_i32_0 : i32, i32
  }
  func.func @transform_3(%arg0: i32, %arg1: i32, %arg2: i32) -> (i32, i32) {
    %c0_i32 = arith.constant 0 : i32
    %c0_i32_0 = arith.constant 0 : i32
    %c0_i32_1 = arith.constant 0 : i32
    return %c0_i32, %c0_i32_0 : i32, i32
  }
  func.func @transform_4(%arg0: i32, %arg1: i32, %arg2: i32) -> (i32, i32) {
    %c0_i32 = arith.constant 0 : i32
    %c0_i32_0 = arith.constant 0 : i32
    %c0_i32_1 = arith.constant 0 : i32
    return %c0_i32, %c0_i32_0 : i32, i32
  }
  func.func @transform_5(%arg0: i32, %arg1: i32, %arg2: i32) -> (i32, i32) {
    %c0_i32 = arith.constant 0 : i32
    %c0_i32_0 = arith.constant 0 : i32
    %c0_i32_1 = arith.constant 0 : i32
    return %c0_i32, %c0_i32_0 : i32, i32
  }
  func.func @transform_6(%arg0: i32, %arg1: i32, %arg2: i32) -> (i32, i32) {
    %c0_i32 = arith.constant 0 : i32
    %c0_i32_0 = arith.constant 0 : i32
    %c0_i32_1 = arith.constant 0 : i32
    return %c0_i32, %c0_i32_0 : i32, i32
  }
  func.func @transform_7(%arg0: i32, %arg1: i32, %arg2: i32) -> (i32, i32) {
    %c0_i32 = arith.constant 0 : i32
    %c0_i32_0 = arith.constant 0 : i32
    %c0_i32_1 = arith.constant 0 : i32
    return %c0_i32, %c0_i32_0 : i32, i32
  }
  func.func @transform_8(%arg0: i32, %arg1: i32, %arg2: i32) -> (i32, i32) {
    %c0_i32 = arith.constant 0 : i32
    %c0_i32_0 = arith.constant 0 : i32
    %c0_i32_1 = arith.constant 0 : i32
    return %c0_i32, %c0_i32_0 : i32, i32
  }
  func.func @transform_9(%arg0: i32, %arg1: i32, %arg2: i32) -> (i32, i32, i32, i32) {
    %c0_i32 = arith.constant 0 : i32
    %c0_i32_0 = arith.constant 0 : i32
    %c0_i32_1 = arith.constant 0 : i32
    return %arg0, %arg1, %c0_i32, %c0_i32_0 : i32, i32, i32, i32
  }
}

</mosaic_0001>

<llo_original>
// kernel: tpu_custom_call.1
$region0: #{tpu_custom_call.1}
  #allocation0 [shape = 'u32[]', space=smem, size = 0x4, offset = 0x4, fixed_abs, tag = 'smem constant byte address 0x4 - core index']
  #allocation1 [shape = 'u32[144,128]{1,0:T(1,128)}', space=vmem, size = 0x12000, scoped, tag = 'internal scratch']
  #allocation2 [shape = 'f32[8,512]{1,0:T(8,128)}', space=vmem, size = 0x4000, scoped, tag = 'scratch operand']
  %s0 = inlined_call_operand.vmem [shape: f32[2,512,8], index: 0, kind: input, shape index: {}]
  %s1 = inlined_call_operand.vmem [shape: f32[8,128], index: 1, kind: input, shape index: {}]
  %s2 = inlined_call_operand.vmem [shape: f32[1,128], index: 2, kind: input, shape index: {}]
  %s3 = inlined_call_operand.vmem [shape: bf16[128,128], index: 3, kind: input, shape index: {}]
  %s4 = inlined_call_operand.vmem [shape: f32[1,128], index: 4, kind: input, shape index: {}]
  %s5 = inlined_call_operand.vmem [shape: bf16[128,256], index: 5, kind: input, shape index: {}]
  %s6 = inlined_call_operand.vmem [shape: f32[1,256], index: 6, kind: input, shape index: {}]
  %s7 = inlined_call_operand.vmem [shape: bf16[256,512], index: 7, kind: input, shape index: {}]
  %s8 = inlined_call_operand.vmem [shape: f32[1,512], index: 8, kind: input, shape index: {}]
  %s9 = inlined_call_operand.hbm [shape: f32[2,1,8,512], index: 9, kind: output, shape index: {}]
  %s10 = sld [smem:[#allocation0]]
  $region77: #{tpu_custom_call.1} parent=0
    _
  %s12 = ssub.s32 1, %s10
  %s13 = scalar_select 0, %s12, %s10
  $region1: #{tpu_custom_call.1} parent=0
    #allocation3 [shape = 'u8[32768]{0}', space=vmem, size = 0x8000, scoped, tag = 'output window, operand 0']
    #allocation4 [shape = 's32[2]{0}', space=sflag, size = 0x8, scoped, tag = 'scoped memory for tpu_custom_call.1']
    %14 = vsyncpa [#allocation4], 0
    %s15 = scalar_lea.sflag [#allocation4], 1
    %16 = vsyncpa %s15, 0
    loop: start=0, step=1, limit=4
    $region2: #{tpu_custom_call.1} parent=1 // loop_pre_header
      _
    $region3: #{tpu_custom_call.1} parent=1 // loop_header
      %s18 = sphi 0, %s22
      %p19 = scmp.ge.s32.totalorder %s18, 4
      %s25 = sphi 0, %s44
      %s26 = sphi 0, %s40
      %s27 = sphi 0, %s36
      %s28 = sphi 0, %s25
      %s29 = sphi 0, %s26
      %s30 = sphi 0, %s27
      %s31 = sphi 0, %s28
      %s32 = sphi 0, %s29
      %s33 = sphi 0, %s30
      %s51 = sphi 0, %s53
      %s54 = sphi 0, %s51
      %s55 = sphi 0, %s54
      %s71 = sphi 0, %s55
      %s75 = sphi 0, %s75
      %s77 = sphi 0, %s75
      %s78 = sphi 0, %s77
      %s92 = sphi 0, %s78
      %s96 = sphi 0, %s96
      %s98 = sphi 0, %s96
      %s99 = sphi 0, %s98
      %s113 = sphi 0, %s99
      %s117 = sphi 0, %s117
      %s119 = sphi 0, %s117
      %s120 = sphi 0, %s119
      %s134 = sphi 0, %s120
      %s138 = sphi 0, %s138
      %s140 = sphi 0, %s138
      %s141 = sphi 0, %s140
      %s155 = sphi 0, %s141
      %s159 = sphi 0, %s159
      %s161 = sphi 0, %s159
      %s162 = sphi 0, %s161
      %s176 = sphi 0, %s162
      %s180 = sphi 0, %s180
      %s182 = sphi 0, %s180
      %s183 = sphi 0, %s182
      %s197 = sphi 0, %s183
      %s201 = sphi 0, %s201
      %s203 = sphi 0, %s201
      %s204 = sphi 0, %s203
      %s218 = sphi 0, %s204
      %s222 = sphi 0, %s222
      %s224 = sphi 0, %s222
      %s225 = sphi 0, %s224
      %s239 = sphi 0, %s225
      %s247 = sphi 0, %s249
      %s250 = sphi 0, %s247
      %s251 = sphi 0, %s250
      %s267 = sphi 0, %s251
    $region4: #{tpu_custom_call.1} parent=1 // loop_header_branch
      %21 = sbr.rel (%p19) target = $region8
    $region5: #{tpu_custom_call.1} parent=1 // loop_body
      %s23 = ssub.s32 %s18, 1
      %s24 = ssub.s32 %s18, 2
      %s34 = sadd.s32 1, %s27
      %p35 = scmp.ge.s32.totalorder %s34, 1
      %s36 = scalar_select %p35, 0, %s34
      %s37 = sadd.s32 1, %s26
      %s38 = scalar_select %p35, %s37, %s26
      %p39 = scmp.ge.s32.totalorder %s38, 1
      %s40 = scalar_select %p39, 0, %s38
      %s41 = sadd.s32 1, %s25
      %s42 = scalar_select %p39, %s41, %s25
      %p43 = scmp.ge.s32.totalorder %s42, 2
      %s44 = scalar_select %p43, 0, %s42
      %s45 = sadd.s32 %s26, %s27
      %s46 = sadd.s32 %s40, %s36
      %s47 = ssub.s32 %s25, %s44
      %s48 = ssub.s32 %s45, %s46
      %s49 = sor.u32 %s47, %s48
      %p50 = scmp.eq.s32.totalorder %s49, 0
      %s52 = sadd.s32 %s51, 1
      %s53 = scalar_select %p50, %s51, %s52
      %p56 = pneg %p50
      %p57 = scmp.eq.s32.totalorder %s18, 1
      %p58 = por %p56, %p57
      %p59 = scmp.ne.s32.totalorder %s51, %s54
      %p60 = scmp.eq.s32.totalorder %s18, 0
      %p61 = por %p59, %p60
      %p62 = scmp.ne.s32.totalorder %s51, %s54
      %p63 = scmp.eq.s32.totalorder %s23, 1
      %p64 = por %p62, %p63
      %p65 = scmp.ne.s32.totalorder %s54, %s55
      %p66 = scmp.eq.s32.totalorder %s23, 0
      %p67 = por %p65, %p66
      %p68 = scmp.ne.s32.totalorder %s54, %s55
      %p69 = scmp.eq.s32.totalorder %s24, 1
      %p70 = por %p68, %p69
      %p72 = scmp.ne.s32.totalorder %s55, %s71
      %p73 = scmp.eq.s32.totalorder %s24, 0
      %p74 = por %p72, %p73
      %s76 = sadd.s32 %s75, 1
      %p79 = scmp.eq.s32.totalorder %s18, 1
      %p80 = scmp.ne.s32.totalorder %s75, %s77
      %p81 = scmp.eq.s32.totalorder %s18, 0
      %p82 = por %p80, %p81
      %p83 = scmp.ne.s32.totalorder %s75, %s77
      %p84 = scmp.eq.s32.totalorder %s23, 1
      %p85 = por %p83, %p84
      %p86 = scmp.ne.s32.totalorder %s77, %s78
      %p87 = scmp.eq.s32.totalorder %s23, 0
      %p88 = por %p86, %p87
      %p89 = scmp.ne.s32.totalorder %s77, %s78
      %p90 = scmp.eq.s32.totalorder %s24, 1
      %p91 = por %p89, %p90
      %p93 = scmp.ne.s32.totalorder %s78, %s92
      %p94 = scmp.eq.s32.totalorder %s24, 0
      %p95 = por %p93, %p94
      %s97 = sadd.s32 %s96, 1
      %p100 = scmp.eq.s32.totalorder %s18, 1
      %p101 = scmp.ne.s32.totalorder %s96, %s98
      %p102 = scmp.eq.s32.totalorder %s18, 0
      %p103 = por %p101, %p102
      %p104 = scmp.ne.s32.totalorder %s96, %s98
      %p105 = scmp.eq.s32.totalorder %s23, 1
      %p106 = por %p104, %p105
      %p107 = scmp.ne.s32.totalorder %s98, %s99
      %p108 = scmp.eq.s32.totalorder %s23, 0
      %p109 = por %p107, %p108
      %p110 = scmp.ne.s32.totalorder %s98, %s99
      %p111 = scmp.eq.s32.totalorder %s24, 1
      %p112 = por %p110, %p111
      %p114 = scmp.ne.s32.totalorder %s99, %s113
      %p115 = scmp.eq.s32.totalorder %s24, 0
      %p116 = por %p114, %p115
      %s118 = sadd.s32 %s117, 1
      %p121 = scmp.eq.s32.totalorder %s18, 1
      %p122 = scmp.ne.s32.totalorder %s117, %s119
      %p123 = scmp.eq.s32.totalorder %s18, 0
      %p124 = por %p122, %p123
      %p125 = scmp.ne.s32.totalorder %s117, %s119
      %p126 = scmp.eq.s32.totalorder %s23, 1
      %p127 = por %p125, %p126
      %p128 = scmp.ne.s32.totalorder %s119, %s120
      %p129 = scmp.eq.s32.totalorder %s23, 0
      %p130 = por %p128, %p129
      %p131 = scmp.ne.s32.totalorder %s119, %s120
      %p132 = scmp.eq.s32.totalorder %s24, 1
      %p133 = por %p131, %p132
      %p135 = scmp.ne.s32.totalorder %s120, %s134
      %p136 = scmp.eq.s32.totalorder %s24, 0
      %p137 = por %p135, %p136
      %s139 = sadd.s32 %s138, 1
      %p142 = scmp.eq.s32.totalorder %s18, 1
      %p143 = scmp.ne.s32.totalorder %s138, %s140
      %p144 = scmp.eq.s32.totalorder %s18, 0
      %p145 = por %p143, %p144
      %p146 = scmp.ne.s32.totalorder %s138, %s140
      %p147 = scmp.eq.s32.totalorder %s23, 1
      %p148 = por %p146, %p147
      %p149 = scmp.ne.s32.totalorder %s140, %s141
      %p150 = scmp.eq.s32.totalorder %s23, 0
      %p151 = por %p149, %p150
      %p152 = scmp.ne.s32.totalorder %s140, %s141
      %p153 = scmp.eq.s32.totalorder %s24, 1
      %p154 = por %p152, %p153
      %p156 = scmp.ne.s32.totalorder %s141, %s155
      %p157 = scmp.eq.s32.totalorder %s24, 0
      %p158 = por %p156, %p157
      %s160 = sadd.s32 %s159, 1
      %p163 = scmp.eq.s32.totalorder %s18, 1
      %p164 = scmp.ne.s32.totalorder %s159, %s161
      %p165 = scmp.eq.s32.totalorder %s18, 0
      %p166 = por %p164, %p165
      %p167 = scmp.ne.s32.totalorder %s159, %s161
      %p168 = scmp.eq.s32.totalorder %s23, 1
      %p169 = por %p167, %p168
      %p170 = scmp.ne.s32.totalorder %s161, %s162
      %p171 = scmp.eq.s32.totalorder %s23, 0
      %p172 = por %p170, %p171
      %p173 = scmp.ne.s32.totalorder %s161, %s162
      %p174 = scmp.eq.s32.totalorder %s24, 1
      %p175 = por %p173, %p174
      %p177 = scmp.ne.s32.totalorder %s162, %s176
      %p178 = scmp.eq.s32.totalorder %s24, 0
      %p179 = por %p177, %p178
      %s181 = sadd.s32 %s180, 1
      %p184 = scmp.eq.s32.totalorder %s18, 1
      %p185 = scmp.ne.s32.totalorder %s180, %s182
      %p186 = scmp.eq.s32.totalorder %s18, 0
      %p187 = por %p185, %p186
      %p188 = scmp.ne.s32.totalorder %s180, %s182
      %p189 = scmp.eq.s32.totalorder %s23, 1
      %p190 = por %p188, %p189
      %p191 = scmp.ne.s32.totalorder %s182, %s183
      %p192 = scmp.eq.s32.totalorder %s23, 0
      %p193 = por %p191, %p192
      %p194 = scmp.ne.s32.totalorder %s182, %s183
      %p195 = scmp.eq.s32.totalorder %s24, 1
      %p196 = por %p194, %p195
      %p198 = scmp.ne.s32.totalorder %s183, %s197
      %p199 = scmp.eq.s32.totalorder %s24, 0
      %p200 = por %p198, %p199
      %s202 = sadd.s32 %s201, 1
      %p205 = scmp.eq.s32.totalorder %s18, 1
      %p206 = scmp.ne.s32.totalorder %s201, %s203
      %p207 = scmp.eq.s32.totalorder %s18, 0
      %p208 = por %p206, %p207
      %p209 = scmp.ne.s32.totalorder %s201, %s203
      %p210 = scmp.eq.s32.totalorder %s23, 1
      %p211 = por %p209, %p210
      %p212 = scmp.ne.s32.totalorder %s203, %s204
      %p213 = scmp.eq.s32.totalorder %s23, 0
      %p214 = por %p212, %p213
      %p215 = scmp.ne.s32.totalorder %s203, %s204
      %p216 = scmp.eq.s32.totalorder %s24, 1
      %p217 = por %p215, %p216
      %p219 = scmp.ne.s32.totalorder %s204, %s218
      %p220 = scmp.eq.s32.totalorder %s24, 0
      %p221 = por %p219, %p220
      %s223 = sadd.s32 %s222, 1
      %p226 = scmp.eq.s32.totalorder %s18, 1
      %p227 = scmp.ne.s32.totalorder %s222, %s224
      %p228 = scmp.eq.s32.totalorder %s18, 0
      %p229 = por %p227, %p228
      %p230 = scmp.ne.s32.totalorder %s222, %s224
      %p231 = scmp.eq.s32.totalorder %s23, 1
      %p232 = por %p230, %p231
      %p233 = scmp.ne.s32.totalorder %s224, %s225
      %p234 = scmp.eq.s32.totalorder %s23, 0
      %p235 = por %p233, %p234
      %p236 = scmp.ne.s32.totalorder %s224, %s225
      %p237 = scmp.eq.s32.totalorder %s24, 1
      %p238 = por %p236, %p237
      %p240 = scmp.ne.s32.totalorder %s225, %s239
      %p241 = scmp.eq.s32.totalorder %s24, 0
      %p242 = por %p240, %p241
      %s243 = ssub.s32 %s25, %s44
      %s244 = ssub.s32 %s26, %s40
      %s245 = sor.u32 %s243, %s244
      %p246 = scmp.eq.s32.totalorder %s245, 0
      %s248 = sadd.s32 %s247, 1
      %s249 = scalar_select %p246, %s247, %s248
      %p252 = pneg %p246
      %p253 = scmp.eq.s32.totalorder %s18, 1
      %p254 = por %p252, %p253
      %p255 = scmp.ne.s32.totalorder %s247, %s250
      %p256 = scmp.eq.s32.totalorder %s18, 0
      %p257 = por %p255, %p256
      %p258 = scmp.ne.s32.totalorder %s247, %s250
      %p259 = scmp.eq.s32.totalorder %s23, 1
      %p260 = por %p258, %p259
      %p261 = scmp.ne.s32.totalorder %s250, %s251
      %p262 = scmp.eq.s32.totalorder %s23, 0
      %p263 = por %p261, %p262
      %p264 = scmp.ne.s32.totalorder %s250, %s251
      %p265 = scmp.eq.s32.totalorder %s24, 1
      %p266 = por %p264, %p265
      %p268 = scmp.ne.s32.totalorder %s251, %s267
      %p269 = scmp.eq.s32.totalorder %s24, 0
      %p270 = por %p268, %p269
      %p271 = scmp.le.s32.totalorder 1, %s18
      %p272 = scmp.lt.s32.totalorder %s18, 3
      %p273 = pnand %p271, %p272
      %p274 = pneg %p273
      // Predicated region
      $region9: #{tpu_custom_call.1} parent=5 // pred_check
        _
      $region10: #{tpu_custom_call.1} parent=5 // pred_check_branch
        %276 = sbr.rel (%p273) target = $region12
      $region11: #{tpu_custom_call.1} parent=5 // pred_region
        %s277 = ssub.s32 %s18, 1
        // Predicated region
        $region13: #{tpu_custom_call.1} parent=11 // pred_check
          %p278 = pneg %p88
        $region14: #{tpu_custom_call.1} parent=11 // pred_check_branch
          %280 = sbr.rel (%p278) target = $region16
        $region15: #{tpu_custom_call.1} parent=11 // pred_region
          _
        $region16: #{tpu_custom_call.1} parent=11 // pred_fallthru
          _
        // Predicated region
        $region17: #{tpu_custom_call.1} parent=11 // pred_check
          %p281 = pneg %p109
        $region18: #{tpu_custom_call.1} parent=11 // pred_check_branch
          %283 = sbr.rel (%p281) target = $region20
        $region19: #{tpu_custom_call.1} parent=11 // pred_region
          _
        $region20: #{tpu_custom_call.1} parent=11 // pred_fallthru
          _
        // Predicated region
        $region21: #{tpu_custom_call.1} parent=11 // pred_check
          %p284 = pneg %p130
        $region22: #{tpu_custom_call.1} parent=11 // pred_check_branch
          %286 = sbr.rel (%p284) target = $region24
        $region23: #{tpu_custom_call.1} parent=11 // pred_region
          _
        $region24: #{tpu_custom_call.1} parent=11 // pred_fallthru
          _
        // Predicated region
        $region25: #{tpu_custom_call.1} parent=11 // pred_check
          %p287 = pneg %p151
        $region26: #{tpu_custom_call.1} parent=11 // pred_check_branch
          %289 = sbr.rel (%p287) target = $region28
        $region27: #{tpu_custom_call.1} parent=11 // pred_region
          _
        $region28: #{tpu_custom_call.1} parent=11 // pred_fallthru
          _
        // Predicated region
        $region29: #{tpu_custom_call.1} parent=11 // pred_check
          %p290 = pneg %p172
        $region30: #{tpu_custom_call.1} parent=11 // pred_check_branch
          %292 = sbr.rel (%p290) target = $region32
        $region31: #{tpu_custom_call.1} parent=11 // pred_region
          _
        $region32: #{tpu_custom_call.1} parent=11 // pred_fallthru
          _
        // Predicated region
        $region33: #{tpu_custom_call.1} parent=11 // pred_check
          %p293 = pneg %p193
        $region34: #{tpu_custom_call.1} parent=11 // pred_check_branch
          %295 = sbr.rel (%p293) target = $region36
        $region35: #{tpu_custom_call.1} parent=11 // pred_region
          _
        $region36: #{tpu_custom_call.1} parent=11 // pred_fallthru
          _
        // Predicated region
        $region37: #{tpu_custom_call.1} parent=11 // pred_check
          %p296 = pneg %p214
        $region38: #{tpu_custom_call.1} parent=11 // pred_check_branch
          %298 = sbr.rel (%p296) target = $region40
        $region39: #{tpu_custom_call.1} parent=11 // pred_region
          _
        $region40: #{tpu_custom_call.1} parent=11 // pred_fallthru
          _
        // Predicated region
        $region41: #{tpu_custom_call.1} parent=11 // pred_check
          %p299 = pneg %p235
        $region42: #{tpu_custom_call.1} parent=11 // pred_check_branch
          %301 = sbr.rel (%p299) target = $region44
        $region43: #{tpu_custom_call.1} parent=11 // pred_region
          _
        $region44: #{tpu_custom_call.1} parent=11 // pred_fallthru
          _
      $region12: #{tpu_custom_call.1} parent=5 // pred_fallthru
        _
      %p302 = scmp.lt.s32.totalorder %s18, 2
      // Predicated region
      $region45: #{tpu_custom_call.1} parent=5 // pred_check
        %p303 = pneg %p302
      $region46: #{tpu_custom_call.1} parent=5 // pred_check_branch
        %305 = sbr.rel (%p303) target = $region48
      $region47: #{tpu_custom_call.1} parent=5 // pred_region
        // Predicated region
        $region49: #{tpu_custom_call.1} parent=47 // pred_check
          %p306 = pneg %p61
        $region50: #{tpu_custom_call.1} parent=47 // pred_check_branch
          %308 = sbr.rel (%p306) target = $region52
        $region51: #{tpu_custom_call.1} parent=47 // pred_region
          %s309 = sadd.s32 %s26, %s27
          %s310 = smul.u32 64, %s309
          %p311 = scmp.lt.s32.totalorder %s25, 1
          %s312 = scalar_select %p311, %s25, 1
          %p313 = scmp.lt.s32.totalorder %s310, 63
          %s314 = scalar_select %p313, %s310, 63
          %s315 = smul.addr %s312, 64
          %s316 = sadd.s32 %s314, %s315
          %s317 = smul.addr %s316, 8
          %s318 = scalar_lea.vmem %s0, %s317
          %s319 = sadd.s32 %s26, %s27
          %s320 = smul.u32 64, %s319
        $region52: #{tpu_custom_call.1} parent=47 // pred_fallthru
          _
      $region48: #{tpu_custom_call.1} parent=5 // pred_fallthru
        _
      %p321 = scmp.le.s32.totalorder 1, %s18
      %p322 = scmp.lt.s32.totalorder %s18, 3
      %p323 = pnand %p321, %p322
      %p324 = pneg %p323
      // Predicated region
      $region53: #{tpu_custom_call.1} parent=5 // pred_check
        _
      $region54: #{tpu_custom_call.1} parent=5 // pred_check_branch
        %326 = sbr.rel (%p323) target = $region56
      $region55: #{tpu_custom_call.1} parent=5 // pred_region
        %s327 = ssub.s32 %s18, 1
        %s328 = sadd.s32 %s29, %s30
        %s329 = smul.u32 64, %s328
        %p330 = scmp.lt.s32.totalorder %s28, 1
        %s331 = scalar_select %p330, %s28, 1
        %p332 = scmp.lt.s32.totalorder %s329, 63
        %s333 = scalar_select %p332, %s329, 63
        %s334 = smul.addr %s331, 64
        %s335 = sadd.s32 %s333, %s334
        %s336 = smul.addr %s335, 8
        %s337 = scalar_lea.vmem %s0, %s336
        %p338 = pneg %p67
        %p339 = pneg %p64
        %p340 = pneg %p88
        %p341 = pneg %p85
        %p342 = pneg %p109
        %p343 = pneg %p106
        %p344 = pneg %p130
        %p345 = pneg %p127
        %p346 = pneg %p151
        %p347 = pneg %p148
        %p348 = pneg %p172
        %p349 = pneg %p169
        %p350 = pneg %p193
        %p351 = pneg %p190
        %p352 = pneg %p214
        %p353 = pneg %p211
        %p354 = pneg %p235
        %p355 = pneg %p232
        %p356 = pneg %p263
        %p357 = pneg %p260
        %s358 = sand.u32 %s250, 1
        %s359 = scalar_lea.sflag [#allocation4], %s358
        %s360 = sand.u32 %s250, 1
        %s361 = smul.addr %s360, 32
        %s362 = scalar_lea.vmem [#allocation3], %s361
        %s363 = sadd.s32 %s29, %s30
        %s364 = smul.u32 64, %s363
        %p365 = scmp.lt.s32.totalorder %s28, 1
        %s366 = scalar_select %p365, %s28, 1
        %p367 = scmp.lt.s32.totalorder %s364, 63
        %s368 = scalar_select %p367, %s364, 63
        %s369 = smul.addr %s366, 64
        %s370 = sadd.s32 %s368, %s369
        %s371 = smul.addr %s370, 8
        %s372 = scalar_lea.vmem %s0, %s371
        %s373 = sadd.s32 %s29, %s30
        %s374 = smul.u32 64, %s373
        %p376 = scmp.eq.s32.totalorder %s30, 0
        // Predicated region
        $region57: #{tpu_custom_call.1} parent=55 // pred_check
          %p377 = pneg %p376
        $region58: #{tpu_custom_call.1} parent=55 // pred_check_branch
          %379 = sbr.rel (%p377) target = $region60
        $region59: #{tpu_custom_call.1} parent=55 // pred_region
          %380 = vst [vmem:[#allocation2] sm:$0xff] -inf
          %381 = vst [vmem:[#allocation2 + $0x8] sm:$0xff] -inf
          %382 = vst [vmem:[#allocation2 + $0x10] sm:$0xff] -inf
          %383 = vst [vmem:[#allocation2 + $0x18] sm:$0xff] -inf
        $region60: #{tpu_custom_call.1} parent=55 // pred_fallthru
          _
        %v384 = vld [vmem:[%s372] sm:$0xff]
        %v385 = vld [vmem:[%s372 + $0x8] sm:$0xff]
        %v386 = vld [vmem:[%s372 + $0x10] sm:$0xff]
        %v387 = vld [vmem:[%s372 + $0x18] sm:$0xff]
        %v388 = vld [vmem:[%s372 + $0x20] sm:$0xff]
        %v389 = vld [vmem:[%s372 + $0x28] sm:$0xff]
        %v390 = vld [vmem:[%s372 + $0x30] sm:$0xff]
        %v391 = vld [vmem:[%s372 + $0x38] sm:$0xff]
        %v392 = vld [vmem:[%s372 + $0x40] sm:$0xff]
        %v393 = vld [vmem:[%s372 + $0x48] sm:$0xff]
        %v394 = vld [vmem:[%s372 + $0x50] sm:$0xff]
        %v395 = vld [vmem:[%s372 + $0x58] sm:$0xff]
        %v396 = vld [vmem:[%s372 + $0x60] sm:$0xff]
        %v397 = vld [vmem:[%s372 + $0x68] sm:$0xff]
        %v398 = vld [vmem:[%s372 + $0x70] sm:$0xff]
        %v399 = vld [vmem:[%s372 + $0x78] sm:$0xff]
        %v400 = vld [vmem:[%s372 + $0x80] sm:$0xff]
        %v401 = vld [vmem:[%s372 + $0x88] sm:$0xff]
        %v402 = vld [vmem:[%s372 + $0x90] sm:$0xff]
        %v403 = vld [vmem:[%s372 + $0x98] sm:$0xff]
        %v404 = vld [vmem:[%s372 + $0xa0] sm:$0xff]
        %v405 = vld [vmem:[%s372 + $0xa8] sm:$0xff]
        %v406 = vld [vmem:[%s372 + $0xb0] sm:$0xff]
        %v407 = vld [vmem:[%s372 + $0xb8] sm:$0xff]
        %v408 = vld [vmem:[%s372 + $0xc0] sm:$0xff]
        %v409 = vld [vmem:[%s372 + $0xc8] sm:$0xff]
        %v410 = vld [vmem:[%s372 + $0xd0] sm:$0xff]
        %v411 = vld [vmem:[%s372 + $0xd8] sm:$0xff]
        %v412 = vld [vmem:[%s372 + $0xe0] sm:$0xff]
        %v413 = vld [vmem:[%s372 + $0xe8] sm:$0xff]
        %v414 = vld [vmem:[%s372 + $0xf0] sm:$0xff]
        %v415 = vld [vmem:[%s372 + $0xf8] sm:$0xff]
        %v416 = vld [vmem:[%s372 + $0x100] sm:$0xff]
        %v417 = vld [vmem:[%s372 + $0x108] sm:$0xff]
        %v418 = vld [vmem:[%s372 + $0x110] sm:$0xff]
        %v419 = vld [vmem:[%s372 + $0x118] sm:$0xff]
        %v420 = vld [vmem:[%s372 + $0x120] sm:$0xff]
        %v421 = vld [vmem:[%s372 + $0x128] sm:$0xff]
        %v422 = vld [vmem:[%s372 + $0x130] sm:$0xff]
        %v423 = vld [vmem:[%s372 + $0x138] sm:$0xff]
        %v424 = vld [vmem:[%s372 + $0x140] sm:$0xff]
        %v425 = vld [vmem:[%s372 + $0x148] sm:$0xff]
        %v426 = vld [vmem:[%s372 + $0x150] sm:$0xff]
        %v427 = vld [vmem:[%s372 + $0x158] sm:$0xff]
        %v428 = vld [vmem:[%s372 + $0x160] sm:$0xff]
        %v429 = vld [vmem:[%s372 + $0x168] sm:$0xff]
        %v430 = vld [vmem:[%s372 + $0x170] sm:$0xff]
        %v431 = vld [vmem:[%s372 + $0x178] sm:$0xff]
        %v432 = vld [vmem:[%s372 + $0x180] sm:$0xff]
        %v433 = vld [vmem:[%s372 + $0x188] sm:$0xff]
        %v434 = vld [vmem:[%s372 + $0x190] sm:$0xff]
        %v435 = vld [vmem:[%s372 + $0x198] sm:$0xff]
        %v436 = vld [vmem:[%s372 + $0x1a0] sm:$0xff]
        %v437 = vld [vmem:[%s372 + $0x1a8] sm:$0xff]
        %v438 = vld [vmem:[%s372 + $0x1b0] sm:$0xff]
        %v439 = vld [vmem:[%s372 + $0x1b8] sm:$0xff]
        %v440 = vld [vmem:[%s372 + $0x1c0] sm:$0xff]
        %v441 = vld [vmem:[%s372 + $0x1c8] sm:$0xff]
        %v442 = vld [vmem:[%s372 + $0x1d0] sm:$0xff]
        %v443 = vld [vmem:[%s372 + $0x1d8] sm:$0xff]
        %v444 = vld [vmem:[%s372 + $0x1e0] sm:$0xff]
        %v445 = vld [vmem:[%s372 + $0x1e8] sm:$0xff]
        %v446 = vld [vmem:[%s372 + $0x1f0] sm:$0xff]
        %v447 = vld [vmem:[%s372 + $0x1f8] sm:$0xff]
        %v448 = vld [vmem:[%s1] sm:$0xff]
        %v449 = vld [vmem:[%s2] sm:$0x1]
        %v451 = vlaneseq
        %v452 = vshrl.u32 %v451, 7
        %v453 = vsub.s32 0, %v452
        %v454 = vrot.slane %v449, %v453
        %vm456 = vcmask 64512
        %v458 = vsel %vm456, %v384, 0
        %v461 = vsel %vm456, %v385, 0
        %v464 = vsel %vm456, %v386, 0
        %v467 = vsel %vm456, %v387, 0
        %v470 = vsel %vm456, %v388, 0
        %v473 = vsel %vm456, %v389, 0
        %v476 = vsel %vm456, %v390, 0
        %v479 = vsel %vm456, %v391, 0
        %v482 = vsel %vm456, %v392, 0
        %v485 = vsel %vm456, %v393, 0
        %v488 = vsel %vm456, %v394, 0
        %v491 = vsel %vm456, %v395, 0
        %v494 = vsel %vm456, %v396, 0
        %v497 = vsel %vm456, %v397, 0
        %v500 = vsel %vm456, %v398, 0
        %v503 = vsel %vm456, %v399, 0
        %v506 = vsel %vm456, %v400, 0
        %v509 = vsel %vm456, %v401, 0
        %v512 = vsel %vm456, %v402, 0
        %v515 = vsel %vm456, %v403, 0
        %v518 = vsel %vm456, %v404, 0
        %v521 = vsel %vm456, %v405, 0
        %v524 = vsel %vm456, %v406, 0
        %v527 = vsel %vm456, %v407, 0
        %v530 = vsel %vm456, %v408, 0
        %v533 = vsel %vm456, %v409, 0
        %v536 = vsel %vm456, %v410, 0
        %v539 = vsel %vm456, %v411, 0
        %v542 = vsel %vm456, %v412, 0
        %v545 = vsel %vm456, %v413, 0
        %v548 = vsel %vm456, %v414, 0
        %v551 = vsel %vm456, %v415, 0
        %v554 = vsel %vm456, %v416, 0
        %v557 = vsel %vm456, %v417, 0
        %v560 = vsel %vm456, %v418, 0
        %v563 = vsel %vm456, %v419, 0
        %v566 = vsel %vm456, %v420, 0
        %v569 = vsel %vm456, %v421, 0
        %v572 = vsel %vm456, %v422, 0
        %v575 = vsel %vm456, %v423, 0
        %v578 = vsel %vm456, %v424, 0
        %v581 = vsel %vm456, %v425, 0
        %v584 = vsel %vm456, %v426, 0
        %v587 = vsel %vm456, %v427, 0
        %v590 = vsel %vm456, %v428, 0
        %v593 = vsel %vm456, %v429, 0
        %v596 = vsel %vm456, %v430, 0
        %v599 = vsel %vm456, %v431, 0
        %v602 = vsel %vm456, %v432, 0
        %v605 = vsel %vm456, %v433, 0
        %v608 = vsel %vm456, %v434, 0
        %v611 = vsel %vm456, %v435, 0
        %v614 = vsel %vm456, %v436, 0
        %v617 = vsel %vm456, %v437, 0
        %v620 = vsel %vm456, %v438, 0
        %v623 = vsel %vm456, %v439, 0
        %v626 = vsel %vm456, %v440, 0
        %v629 = vsel %vm456, %v441, 0
        %v632 = vsel %vm456, %v442, 0
        %v635 = vsel %vm456, %v443, 0
        %v638 = vsel %vm456, %v444, 0
        %v641 = vsel %vm456, %v445, 0
        %v644 = vsel %vm456, %v446, 0
        %v647 = vsel %vm456, %v447, 0
        %649 = vmatprep.subr.mxu0 0.0
        %650 = vmatpush1.msra.mxu0 0.0
        %651 = vmatprep.subr.mxu0 0.0
        %652 = vmatpush1.msra.mxu0 0.0
        %653 = vmatprep.subr.mxu0 0.0
        %654 = vmatpush1.msra.mxu0 0.0
        %655 = vmatprep.subr.mxu0 0.0
        %656 = vmatpush1.msra.mxu0 0.0
        %657 = vmatprep.subr.mxu0 0.0
        %658 = vmatpush1.msra.mxu0 0.0
        %659 = vmatprep.subr.mxu0 0.0
        %660 = vmatpush1.msra.mxu0 0.0
        %661 = vmatprep.subr.mxu0 0.0
        %662 = vmatpush1.msra.mxu0 0.0
        %663 = vmatprep.subr.mxu0 0.0
        %664 = vmatpush1.msra.mxu0 0.0
        %665 = vmatprep.subr.mxu0 0.0
        %666 = vmatpush1.msra.mxu0 0.0
        %667 = vmatprep.subr.mxu0 0.0
        %668 = vmatpush1.msra.mxu0 0.0
        %669 = vmatprep.subr.mxu0 0.0
        %670 = vmatpush1.msra.mxu0 0.0
        %671 = vmatprep.subr.mxu0 0.0
        %672 = vmatpush1.msra.mxu0 0.0
        %673 = vmatprep.subr.mxu0 0.0
        %674 = vmatpush1.msra.mxu0 0.0
        %675 = vmatprep.subr.mxu0 0.0
        %676 = vmatpush1.msra.mxu0 0.0
        %677 = vmatprep.subr.mxu0 0.0
        %678 = vmatpush1.msra.mxu0 0.0
        %679 = vmatprep.subr.mxu0 0.0
        %680 = vmatpush1.msra.mxu0 %v448
        %681 = vmatprep.subr.mxu0 0.0
        %682 = vmatpush2.msra.mxu0 0.0
        %683 = vmatprep.subr.mxu0 0.0
        %684 = vmatpush2.msra.mxu0 0.0
        %685 = vmatprep.subr.mxu0 0.0
        %686 = vmatpush2.msra.mxu0 0.0
        %687 = vmatprep.subr.mxu0 0.0
        %688 = vmatpush2.msra.mxu0 0.0
        %689 = vmatprep.subr.mxu0 0.0
        %690 = vmatpush2.msra.mxu0 0.0
        %691 = vmatprep.subr.mxu0 0.0
        %692 = vmatpush2.msra.mxu0 0.0
        %693 = vmatprep.subr.mxu0 0.0
        %694 = vmatpush2.msra.mxu0 0.0
        %695 = vmatprep.subr.mxu0 0.0
        %696 = vmatpush2.msra.mxu0 0.0
        %697 = vmatprep.subr.mxu0 0.0
        %698 = vmatpush2.msra.mxu0 0.0
        %699 = vmatprep.subr.mxu0 0.0
        %700 = vmatpush2.msra.mxu0 0.0
        %701 = vmatprep.subr.mxu0 0.0
        %702 = vmatpush2.msra.mxu0 0.0
        %703 = vmatprep.subr.mxu0 0.0
        %704 = vmatpush2.msra.mxu0 0.0
        %705 = vmatprep.subr.mxu0 0.0
        %706 = vmatpush2.msra.mxu0 0.0
        %707 = vmatprep.subr.mxu0 0.0
        %708 = vmatpush2.msra.mxu0 0.0
        %709 = vmatprep.subr.mxu0 0.0
        %710 = vmatpush2.msra.mxu0 0.0
        %711 = vmatprep.subr.mxu0 0.0
        %712 = vmatpush2.msra.mxu0 0.0
        %713 = vmatprep.mubr.f32.mxu0 0.0
        %714 = vmatmul.mubr.f32.gmra.mxu0 %v458
        %v715 = vpop.f32.mrf.mxu0
        %v716 = vadd.f32 %v454, %v715
        %v717 = vpop.f32.mrf.mxu0
        %718 = vmatprep.mubr.f32.mxu0 0.0
        %719 = vmatmul.mubr.f32.gmra.mxu0 %v461
        %v720 = vpop.f32.mrf.mxu0
        %v721 = vadd.f32 %v454, %v720
        %v722 = vpop.f32.mrf.mxu0
        %723 = vmatprep.mubr.f32.mxu0 0.0
        %724 = vmatmul.mubr.f32.gmra.mxu0 %v464
        %v725 = vpop.f32.mrf.mxu0
        %v726 = vadd.f32 %v454, %v725
        %v727 = vpop.f32.mrf.mxu0
        %728 = vmatprep.mubr.f32.mxu0 0.0
        %729 = vmatmul.mubr.f32.gmra.mxu0 %v467
        %v730 = vpop.f32.mrf.mxu0
        %v731 = vadd.f32 %v454, %v730
        %v732 = vpop.f32.mrf.mxu0
        %733 = vmatprep.mubr.f32.mxu0 0.0
        %734 = vmatmul.mubr.f32.gmra.mxu0 %v470
        %v735 = vpop.f32.mrf.mxu0
        %v736 = vadd.f32 %v454, %v735
        %v737 = vpop.f32.mrf.mxu0
        %738 = vmatprep.mubr.f32.mxu0 0.0
        %739 = vmatmul.mubr.f32.gmra.mxu0 %v473
        %v740 = vpop.f32.mrf.mxu0
        %v741 = vadd.f32 %v454, %v740
        %v742 = vpop.f32.mrf.mxu0
        %743 = vmatprep.mubr.f32.mxu0 0.0
        %744 = vmatmul.mubr.f32.gmra.mxu0 %v476
        %v745 = vpop.f32.mrf.mxu0
        %v746 = vadd.f32 %v454, %v745
        %v747 = vpop.f32.mrf.mxu0
        %748 = vmatprep.mubr.f32.mxu0 0.0
        %749 = vmatmul.mubr.f32.gmra.mxu0 %v479
        %v750 = vpop.f32.mrf.mxu0
        %v751 = vadd.f32 %v454, %v750
        %v752 = vpop.f32.mrf.mxu0
        %753 = vmatprep.mubr.f32.mxu0 0.0
        %754 = vmatmul.mubr.f32.gmra.mxu0 %v482
        %v755 = vpop.f32.mrf.mxu0
        %v756 = vadd.f32 %v454, %v755
        %v757 = vpop.f32.mrf.mxu0
        %758 = vmatprep.mubr.f32.mxu0 0.0
        %759 = vmatmul.mubr.f32.gmra.mxu0 %v485
        %v760 = vpop.f32.mrf.mxu0
        %v761 = vadd.f32 %v454, %v760
        %v762 = vpop.f32.mrf.mxu0
        %763 = vmatprep.mubr.f32.mxu0 0.0
        %764 = vmatmul.mubr.f32.gmra.mxu0 %v488
        %v765 = vpop.f32.mrf.mxu0
        %v766 = vadd.f32 %v454, %v765
        %v767 = vpop.f32.mrf.mxu0
        %768 = vmatprep.mubr.f32.mxu0 0.0
        %769 = vmatmul.mubr.f32.gmra.mxu0 %v491
        %v770 = vpop.f32.mrf.mxu0
        %v771 = vadd.f32 %v454, %v770
        %v772 = vpop.f32.mrf.mxu0
        %773 = vmatprep.mubr.f32.mxu0 0.0
        %774 = vmatmul.mubr.f32.gmra.mxu0 %v494
        %v775 = vpop.f32.mrf.mxu0
        %v776 = vadd.f32 %v454, %v775
        %v777 = vpop.f32.mrf.mxu0
        %778 = vmatprep.mubr.f32.mxu0 0.0
        %779 = vmatmul.mubr.f32.gmra.mxu0 %v497
        %v780 = vpop.f32.mrf.mxu0
        %v781 = vadd.f32 %v454, %v780
        %v782 = vpop.f32.mrf.mxu0
        %783 = vmatprep.mubr.f32.mxu0 0.0
        %784 = vmatmul.mubr.f32.gmra.mxu0 %v500
        %v785 = vpop.f32.mrf.mxu0
        %v786 = vadd.f32 %v454, %v785
        %v787 = vpop.f32.mrf.mxu0
        %788 = vmatprep.mubr.f32.mxu0 0.0
        %789 = vmatmul.mubr.f32.gmra.mxu0 %v503
        %v790 = vpop.f32.mrf.mxu0
        %v791 = vadd.f32 %v454, %v790
        %v792 = vpop.f32.mrf.mxu0
        %793 = vmatprep.mubr.f32.mxu0 0.0
        %794 = vmatmul.mubr.f32.gmra.mxu0 %v506
        %v795 = vpop.f32.mrf.mxu0
        %v796 = vadd.f32 %v454, %v795
        %v797 = vpop.f32.mrf.mxu0
        %798 = vmatprep.mubr.f32.mxu0 0.0
        %799 = vmatmul.mubr.f32.gmra.mxu0 %v509
        %v800 = vpop.f32.mrf.mxu0
        %v801 = vadd.f32 %v454, %v800
        %v802 = vpop.f32.mrf.mxu0
        %803 = vmatprep.mubr.f32.mxu0 0.0
        %804 = vmatmul.mubr.f32.gmra.mxu0 %v512
        %v805 = vpop.f32.mrf.mxu0
        %v806 = vadd.f32 %v454, %v805
        %v807 = vpop.f32.mrf.mxu0
        %808 = vmatprep.mubr.f32.mxu0 0.0
        %809 = vmatmul.mubr.f32.gmra.mxu0 %v515
        %v810 = vpop.f32.mrf.mxu0
        %v811 = vadd.f32 %v454, %v810
        %v812 = vpop.f32.mrf.mxu0
        %813 = vmatprep.mubr.f32.mxu0 0.0
        %814 = vmatmul.mubr.f32.gmra.mxu0 %v518
        %v815 = vpop.f32.mrf.mxu0
        %v816 = vadd.f32 %v454, %v815
        %v817 = vpop.f32.mrf.mxu0
        %818 = vmatprep.mubr.f32.mxu0 0.0
        %819 = vmatmul.mubr.f32.gmra.mxu0 %v521
        %v820 = vpop.f32.mrf.mxu0
        %v821 = vadd.f32 %v454, %v820
        %v822 = vpop.f32.mrf.mxu0
        %823 = vmatprep.mubr.f32.mxu0 0.0
        %824 = vmatmul.mubr.f32.gmra.mxu0 %v524
        %v825 = vpop.f32.mrf.mxu0
        %v826 = vadd.f32 %v454, %v825
        %v827 = vpop.f32.mrf.mxu0
        %828 = vmatprep.mubr.f32.mxu0 0.0
        %829 = vmatmul.mubr.f32.gmra.mxu0 %v527
        %v830 = vpop.f32.mrf.mxu0
        %v831 = vadd.f32 %v454, %v830
        %v832 = vpop.f32.mrf.mxu0
        %833 = vmatprep.mubr.f32.mxu0 0.0
        %834 = vmatmul.mubr.f32.gmra.mxu0 %v530
        %v835 = vpop.f32.mrf.mxu0
        %v836 = vadd.f32 %v454, %v835
        %v837 = vpop.f32.mrf.mxu0
        %838 = vmatprep.mubr.f32.mxu0 0.0
        %839 = vmatmul.mubr.f32.gmra.mxu0 %v533
        %v840 = vpop.f32.mrf.mxu0
        %v841 = vadd.f32 %v454, %v840
        %v842 = vpop.f32.mrf.mxu0
        %843 = vmatprep.mubr.f32.mxu0 0.0
        %844 = vmatmul.mubr.f32.gmra.mxu0 %v536
        %v845 = vpop.f32.mrf.mxu0
        %v846 = vadd.f32 %v454, %v845
        %v847 = vpop.f32.mrf.mxu0
        %848 = vmatprep.mubr.f32.mxu0 0.0
        %849 = vmatmul.mubr.f32.gmra.mxu0 %v539
        %v850 = vpop.f32.mrf.mxu0
        %v851 = vadd.f32 %v454, %v850
        %v852 = vpop.f32.mrf.mxu0
        %853 = vmatprep.mubr.f32.mxu0 0.0
        %854 = vmatmul.mubr.f32.gmra.mxu0 %v542
        %v855 = vpop.f32.mrf.mxu0
        %v856 = vadd.f32 %v454, %v855
        %v857 = vpop.f32.mrf.mxu0
        %858 = vmatprep.mubr.f32.mxu0 0.0
        %859 = vmatmul.mubr.f32.gmra.mxu0 %v545
        %v860 = vpop.f32.mrf.mxu0
        %v861 = vadd.f32 %v454, %v860
        %v862 = vpop.f32.mrf.mxu0
        %863 = vmatprep.mubr.f32.mxu0 0.0
        %864 = vmatmul.mubr.f32.gmra.mxu0 %v548
        %v865 = vpop.f32.mrf.mxu0
        %v866 = vadd.f32 %v454, %v865
        %v867 = vpop.f32.mrf.mxu0
        %868 = vmatprep.mubr.f32.mxu0 0.0
        %869 = vmatmul.mubr.f32.gmra.mxu0 %v551
        %v870 = vpop.f32.mrf.mxu0
        %v871 = vadd.f32 %v454, %v870
        %v872 = vpop.f32.mrf.mxu0
        %873 = vmatprep.mubr.f32.mxu0 0.0
        %874 = vmatmul.mubr.f32.gmra.mxu0 %v554
        %v875 = vpop.f32.mrf.mxu0
        %v876 = vadd.f32 %v454, %v875
        %v877 = vpop.f32.mrf.mxu0
        %878 = vmatprep.mubr.f32.mxu0 0.0
        %879 = vmatmul.mubr.f32.gmra.mxu0 %v557
        %v880 = vpop.f32.mrf.mxu0
        %v881 = vadd.f32 %v454, %v880
        %v882 = vpop.f32.mrf.mxu0
        %883 = vmatprep.mubr.f32.mxu0 0.0
        %884 = vmatmul.mubr.f32.gmra.mxu0 %v560
        %v885 = vpop.f32.mrf.mxu0
        %v886 = vadd.f32 %v454, %v885
        %v887 = vpop.f32.mrf.mxu0
        %888 = vmatprep.mubr.f32.mxu0 0.0
        %889 = vmatmul.mubr.f32.gmra.mxu0 %v563
        %v890 = vpop.f32.mrf.mxu0
        %v891 = vadd.f32 %v454, %v890
        %v892 = vpop.f32.mrf.mxu0
        %893 = vmatprep.mubr.f32.mxu0 0.0
        %894 = vmatmul.mubr.f32.gmra.mxu0 %v566
        %v895 = vpop.f32.mrf.mxu0
        %v896 = vadd.f32 %v454, %v895
        %v897 = vpop.f32.mrf.mxu0
        %898 = vmatprep.mubr.f32.mxu0 0.0
        %899 = vmatmul.mubr.f32.gmra.mxu0 %v569
        %v900 = vpop.f32.mrf.mxu0
        %v901 = vadd.f32 %v454, %v900
        %v902 = vpop.f32.mrf.mxu0
        %903 = vmatprep.mubr.f32.mxu0 0.0
        %904 = vmatmul.mubr.f32.gmra.mxu0 %v572
        %v905 = vpop.f32.mrf.mxu0
        %v906 = vadd.f32 %v454, %v905
        %v907 = vpop.f32.mrf.mxu0
        %908 = vmatprep.mubr.f32.mxu0 0.0
        %909 = vmatmul.mubr.f32.gmra.mxu0 %v575
        %v910 = vpop.f32.mrf.mxu0
        %v911 = vadd.f32 %v454, %v910
        %v912 = vpop.f32.mrf.mxu0
        %913 = vmatprep.mubr.f32.mxu0 0.0
        %914 = vmatmul.mubr.f32.gmra.mxu0 %v578
        %v915 = vpop.f32.mrf.mxu0
        %v916 = vadd.f32 %v454, %v915
        %v917 = vpop.f32.mrf.mxu0
        %918 = vmatprep.mubr.f32.mxu0 0.0
        %919 = vmatmul.mubr.f32.gmra.mxu0 %v581
        %v920 = vpop.f32.mrf.mxu0
        %v921 = vadd.f32 %v454, %v920
        %v922 = vpop.f32.mrf.mxu0
        %923 = vmatprep.mubr.f32.mxu0 0.0
        %924 = vmatmul.mubr.f32.gmra.mxu0 %v584
        %v925 = vpop.f32.mrf.mxu0
        %v926 = vadd.f32 %v454, %v925
        %v927 = vpop.f32.mrf.mxu0
        %928 = vmatprep.mubr.f32.mxu0 0.0
        %929 = vmatmul.mubr.f32.gmra.mxu0 %v587
        %v930 = vpop.f32.mrf.mxu0
        %v931 = vadd.f32 %v454, %v930
        %v932 = vpop.f32.mrf.mxu0
        %933 = vmatprep.mubr.f32.mxu0 0.0
        %934 = vmatmul.mubr.f32.gmra.mxu0 %v590
        %v935 = vpop.f32.mrf.mxu0
        %v936 = vadd.f32 %v454, %v935
        %v937 = vpop.f32.mrf.mxu0
        %938 = vmatprep.mubr.f32.mxu0 0.0
        %939 = vmatmul.mubr.f32.gmra.mxu0 %v593
        %v940 = vpop.f32.mrf.mxu0
        %v941 = vadd.f32 %v454, %v940
        %v942 = vpop.f32.mrf.mxu0
        %943 = vmatprep.mubr.f32.mxu0 0.0
        %944 = vmatmul.mubr.f32.gmra.mxu0 %v596
        %v945 = vpop.f32.mrf.mxu0
        %v946 = vadd.f32 %v454, %v945
        %v947 = vpop.f32.mrf.mxu0
        %948 = vmatprep.mubr.f32.mxu0 0.0
        %949 = vmatmul.mubr.f32.gmra.mxu0 %v599
        %v950 = vpop.f32.mrf.mxu0
        %v951 = vadd.f32 %v454, %v950
        %v952 = vpop.f32.mrf.mxu0
        %953 = vmatprep.mubr.f32.mxu0 0.0
        %954 = vmatmul.mubr.f32.gmra.mxu0 %v602
        %v955 = vpop.f32.mrf.mxu0
        %v956 = vadd.f32 %v454, %v955
        %v957 = vpop.f32.mrf.mxu0
        %958 = vmatprep.mubr.f32.mxu0 0.0
        %959 = vmatmul.mubr.f32.gmra.mxu0 %v605
        %v960 = vpop.f32.mrf.mxu0
        %v961 = vadd.f32 %v454, %v960
        %v962 = vpop.f32.mrf.mxu0
        %963 = vmatprep.mubr.f32.mxu0 0.0
        %964 = vmatmul.mubr.f32.gmra.mxu0 %v608
        %v965 = vpop.f32.mrf.mxu0
        %v966 = vadd.f32 %v454, %v965
        %v967 = vpop.f32.mrf.mxu0
        %968 = vmatprep.mubr.f32.mxu0 0.0
        %969 = vmatmul.mubr.f32.gmra.mxu0 %v611
        %v970 = vpop.f32.mrf.mxu0
        %v971 = vadd.f32 %v454, %v970
        %v972 = vpop.f32.mrf.mxu0
        %973 = vmatprep.mubr.f32.mxu0 0.0
        %974 = vmatmul.mubr.f32.gmra.mxu0 %v614
        %v975 = vpop.f32.mrf.mxu0
        %v976 = vadd.f32 %v454, %v975
        %v977 = vpop.f32.mrf.mxu0
        %978 = vmatprep.mubr.f32.mxu0 0.0
        %979 = vmatmul.mubr.f32.gmra.mxu0 %v617
        %v980 = vpop.f32.mrf.mxu0
        %v981 = vadd.f32 %v454, %v980
        %v982 = vpop.f32.mrf.mxu0
        %983 = vmatprep.mubr.f32.mxu0 0.0
        %984 = vmatmul.mubr.f32.gmra.mxu0 %v620
        %v985 = vpop.f32.mrf.mxu0
        %v986 = vadd.f32 %v454, %v985
        %v987 = vpop.f32.mrf.mxu0
        %988 = vmatprep.mubr.f32.mxu0 0.0
        %989 = vmatmul.mubr.f32.gmra.mxu0 %v623
        %v990 = vpop.f32.mrf.mxu0
        %v991 = vadd.f32 %v454, %v990
        %v992 = vpop.f32.mrf.mxu0
        %993 = vmatprep.mubr.f32.mxu0 0.0
        %994 = vmatmul.mubr.f32.gmra.mxu0 %v626
        %v995 = vpop.f32.mrf.mxu0
        %v996 = vadd.f32 %v454, %v995
        %v997 = vpop.f32.mrf.mxu0
        %998 = vmatprep.mubr.f32.mxu0 0.0
        %999 = vmatmul.mubr.f32.gmra.mxu0 %v629
        %v1000 = vpop.f32.mrf.mxu0
        %v1001 = vadd.f32 %v454, %v1000
        %v1002 = vpop.f32.mrf.mxu0
        %1003 = vmatprep.mubr.f32.mxu0 0.0
        %1004 = vmatmul.mubr.f32.gmra.mxu0 %v632
        %v1005 = vpop.f32.mrf.mxu0
        %v1006 = vadd.f32 %v454, %v1005
        %v1007 = vpop.f32.mrf.mxu0
        %1008 = vmatprep.mubr.f32.mxu0 0.0
        %1009 = vmatmul.mubr.f32.gmra.mxu0 %v635
        %v1010 = vpop.f32.mrf.mxu0
        %v1011 = vadd.f32 %v454, %v1010
        %v1012 = vpop.f32.mrf.mxu0
        %1013 = vmatprep.mubr.f32.mxu0 0.0
        %1014 = vmatmul.mubr.f32.gmra.mxu0 %v638
        %v1015 = vpop.f32.mrf.mxu0
        %v1016 = vadd.f32 %v454, %v1015
        %v1017 = vpop.f32.mrf.mxu0
        %1018 = vmatprep.mubr.f32.mxu0 0.0
        %1019 = vmatmul.mubr.f32.gmra.mxu0 %v641
        %v1020 = vpop.f32.mrf.mxu0
        %v1021 = vadd.f32 %v454, %v1020
        %v1022 = vpop.f32.mrf.mxu0
        %1023 = vmatprep.mubr.f32.mxu0 0.0
        %1024 = vmatmul.mubr.f32.gmra.mxu0 %v644
        %v1025 = vpop.f32.mrf.mxu0
        %v1026 = vadd.f32 %v454, %v1025
        %v1027 = vpop.f32.mrf.mxu0
        %1028 = vmatprep.mubr.f32.mxu0 0.0
        %1029 = vmatmul.mubr.f32.gmra.mxu0 %v647
        %v1030 = vpop.f32.mrf.mxu0
        %v1031 = vadd.f32 %v454, %v1030
        %v1032 = vpop.f32.mrf.mxu0
        %1033 = vdwg.mxu0
        %v1034 = vmax.f32 %v716, 0.0
        %v1035 = vmax.f32 %v721, 0.0
        %v1036 = vmax.f32 %v726, 0.0
        %v1037 = vmax.f32 %v731, 0.0
        %v1038 = vmax.f32 %v736, 0.0
        %v1039 = vmax.f32 %v741, 0.0
        %v1040 = vmax.f32 %v746, 0.0
        %v1041 = vmax.f32 %v751, 0.0
        %v1042 = vmax.f32 %v756, 0.0
        %v1043 = vmax.f32 %v761, 0.0
        %v1044 = vmax.f32 %v766, 0.0
        %v1045 = vmax.f32 %v771, 0.0
        %v1046 = vmax.f32 %v776, 0.0
        %v1047 = vmax.f32 %v781, 0.0
        %v1048 = vmax.f32 %v786, 0.0
        %v1049 = vmax.f32 %v791, 0.0
        %v1050 = vmax.f32 %v796, 0.0
        %v1051 = vmax.f32 %v801, 0.0
        %v1052 = vmax.f32 %v806, 0.0
        %v1053 = vmax.f32 %v811, 0.0
        %v1054 = vmax.f32 %v816, 0.0
        %v1055 = vmax.f32 %v821, 0.0
        %v1056 = vmax.f32 %v826, 0.0
        %v1057 = vmax.f32 %v831, 0.0
        %v1058 = vmax.f32 %v836, 0.0
        %v1059 = vmax.f32 %v841, 0.0
        %v1060 = vmax.f32 %v846, 0.0
        %v1061 = vmax.f32 %v851, 0.0
        %v1062 = vmax.f32 %v856, 0.0
        %v1063 = vmax.f32 %v861, 0.0
        %v1064 = vmax.f32 %v866, 0.0
        %v1065 = vmax.f32 %v871, 0.0
        %v1066 = vmax.f32 %v876, 0.0
        %v1067 = vmax.f32 %v881, 0.0
        %v1068 = vmax.f32 %v886, 0.0
        %v1069 = vmax.f32 %v891, 0.0
        %v1070 = vmax.f32 %v896, 0.0
        %v1071 = vmax.f32 %v901, 0.0
        %v1072 = vmax.f32 %v906, 0.0
        %v1073 = vmax.f32 %v911, 0.0
        %v1074 = vmax.f32 %v916, 0.0
        %v1075 = vmax.f32 %v921, 0.0
        %v1076 = vmax.f32 %v926, 0.0
        %v1077 = vmax.f32 %v931, 0.0
        %v1078 = vmax.f32 %v936, 0.0
        %v1079 = vmax.f32 %v941, 0.0
        %v1080 = vmax.f32 %v946, 0.0
        %v1081 = vmax.f32 %v951, 0.0
        %v1082 = vmax.f32 %v956, 0.0
        %v1083 = vmax.f32 %v961, 0.0
        %v1084 = vmax.f32 %v966, 0.0
        %v1085 = vmax.f32 %v971, 0.0
        %v1086 = vmax.f32 %v976, 0.0
        %v1087 = vmax.f32 %v981, 0.0
        %v1088 = vmax.f32 %v986, 0.0
        %v1089 = vmax.f32 %v991, 0.0
        %v1090 = vmax.f32 %v996, 0.0
        %v1091 = vmax.f32 %v1001, 0.0
        %v1092 = vmax.f32 %v1006, 0.0
        %v1093 = vmax.f32 %v1011, 0.0
        %v1094 = vmax.f32 %v1016, 0.0
        %v1095 = vmax.f32 %v1021, 0.0
        %v1096 = vmax.f32 %v1026, 0.0
        %v1097 = vmax.f32 %v1031, 0.0
        %v1098 = vpack.c.bf16 %v1035, %v1034
        %v1099 = vpack.c.bf16 %v1037, %v1036
        %v1100 = vpack.c.bf16 %v1039, %v1038
        %v1101 = vpack.c.bf16 %v1041, %v1040
        %v1102 = vpack.c.bf16 %v1043, %v1042
        %v1103 = vpack.c.bf16 %v1045, %v1044
        %v1104 = vpack.c.bf16 %v1047, %v1046
        %v1105 = vpack.c.bf16 %v1049, %v1048
        %v1106 = vpack.c.bf16 %v1051, %v1050
        %v1107 = vpack.c.bf16 %v1053, %v1052
        %v1108 = vpack.c.bf16 %v1055, %v1054
        %v1109 = vpack.c.bf16 %v1057, %v1056
        %v1110 = vpack.c.bf16 %v1059, %v1058
        %v1111 = vpack.c.bf16 %v1061, %v1060
        %v1112 = vpack.c.bf16 %v1063, %v1062
        %v1113 = vpack.c.bf16 %v1065, %v1064
        %v1114 = vpack.c.bf16 %v1067, %v1066
        %v1115 = vpack.c.bf16 %v1069, %v1068
        %v1116 = vpack.c.bf16 %v1071, %v1070
        %v1117 = vpack.c.bf16 %v1073, %v1072
        %v1118 = vpack.c.bf16 %v1075, %v1074
        %v1119 = vpack.c.bf16 %v1077, %v1076
        %v1120 = vpack.c.bf16 %v1079, %v1078
        %v1121 = vpack.c.bf16 %v1081, %v1080
        %v1122 = vpack.c.bf16 %v1083, %v1082
        %v1123 = vpack.c.bf16 %v1085, %v1084
        %v1124 = vpack.c.bf16 %v1087, %v1086
        %v1125 = vpack.c.bf16 %v1089, %v1088
        %v1126 = vpack.c.bf16 %v1091, %v1090
        %v1127 = vpack.c.bf16 %v1093, %v1092
        %v1128 = vpack.c.bf16 %v1095, %v1094
        %v1129 = vpack.c.bf16 %v1097, %v1096
        %v1130 = vld [vmem:[%s3] sm:$0xf]
        %v1131 = vld [vmem:[%s3 + $0x4] sm:$0xf]
        %v1132 = vld [vmem:[%s3 + $0x8] sm:$0xf]
        %v1133 = vld [vmem:[%s3 + $0xc] sm:$0xf]
        %v1134 = vld [vmem:[%s3 + $0x10] sm:$0xf]
        %v1135 = vld [vmem:[%s3 + $0x14] sm:$0xf]
        %v1136 = vld [vmem:[%s3 + $0x18] sm:$0xf]
        %v1137 = vld [vmem:[%s3 + $0x1c] sm:$0xf]
        %v1138 = vld [vmem:[%s3 + $0x20] sm:$0xf]
        %v1139 = vld [vmem:[%s3 + $0x24] sm:$0xf]
        %v1140 = vld [vmem:[%s3 + $0x28] sm:$0xf]
        %v1141 = vld [vmem:[%s3 + $0x2c] sm:$0xf]
        %v1142 = vld [vmem:[%s3 + $0x30] sm:$0xf]
        %v1143 = vld [vmem:[%s3 + $0x34] sm:$0xf]
        %v1144 = vld [vmem:[%s3 + $0x38] sm:$0xf]
        %v1145 = vld [vmem:[%s3 + $0x3c] sm:$0xf]
        %v1146 = vld [vmem:[%s4] sm:$0x1]
        %v1148 = vlaneseq
        %v1149 = vshrl.u32 %v1148, 7
        %v1150 = vsub.s32 0, %v1149
        %v1151 = vrot.slane %v1146, %v1150
        %v1169 = vunpack.c.l.b16 %v1130
        %v1170 = vunpack.c.l.b16 %v1131
        %v1171 = vunpack.c.l.b16 %v1132
        %v1172 = vunpack.c.l.b16 %v1133
        %v1173 = vunpack.c.l.b16 %v1134
        %v1174 = vunpack.c.l.b16 %v1135
        %v1175 = vunpack.c.l.b16 %v1136
        %v1176 = vunpack.c.l.b16 %v1137
        %v1177 = vunpack.c.l.b16 %v1138
        %v1178 = vunpack.c.l.b16 %v1139
        %v1179 = vunpack.c.l.b16 %v1140
        %v1180 = vunpack.c.l.b16 %v1141
        %v1181 = vunpack.c.l.b16 %v1142
        %v1182 = vunpack.c.l.b16 %v1143
        %v1183 = vunpack.c.l.b16 %v1144
        %v1184 = vunpack.c.l.b16 %v1145
        %v1185 = vpack.c.b16 %v1170, %v1169
        %v1186 = vpack.c.b16 %v1172, %v1171
        %v1187 = vpack.c.b16 %v1174, %v1173
        %v1188 = vpack.c.b16 %v1176, %v1175
        %v1189 = vpack.c.b16 %v1178, %v1177
        %v1190 = vpack.c.b16 %v1180, %v1179
        %v1191 = vpack.c.b16 %v1182, %v1181
        %v1192 = vpack.c.b16 %v1184, %v1183
        %1201 = vmatprep.subr.bf16.mxu0 0
        %1202 = vmatpush1.bf16.msra.mxu0 %v1192
        %1203 = vmatprep.subr.bf16.mxu0 0
        %1204 = vmatpush1.bf16.msra.mxu0 %v1191
        %1205 = vmatprep.subr.bf16.mxu0 0
        %1206 = vmatpush1.bf16.msra.mxu0 %v1190
        %1207 = vmatprep.subr.bf16.mxu0 0
        %1208 = vmatpush1.bf16.msra.mxu0 %v1189
        %1209 = vmatprep.subr.bf16.mxu0 0
        %1210 = vmatpush1.bf16.msra.mxu0 %v1188
        %1211 = vmatprep.subr.bf16.mxu0 0
        %1212 = vmatpush1.bf16.msra.mxu0 %v1187
        %1213 = vmatprep.subr.bf16.mxu0 0
        %1214 = vmatpush1.bf16.msra.mxu0 %v1186
        %1215 = vmatprep.subr.bf16.mxu0 0
        %1216 = vmatpush1.bf16.msra.mxu0 %v1185
        %1217 = vmatprep.subr.bf16.mxu0 0
        %1218 = vmatpush2.bf16.msra.mxu0 0
        %1219 = vmatprep.subr.bf16.mxu0 0
        %1220 = vmatpush2.bf16.msra.mxu0 0
        %1221 = vmatprep.subr.bf16.mxu0 0
        %1222 = vmatpush2.bf16.msra.mxu0 0
        %1223 = vmatprep.subr.bf16.mxu0 0
        %1224 = vmatpush2.bf16.msra.mxu0 0
        %1225 = vmatprep.subr.bf16.mxu0 0
        %1226 = vmatpush2.bf16.msra.mxu0 0
        %1227 = vmatprep.subr.bf16.mxu0 0
        %1228 = vmatpush2.bf16.msra.mxu0 0
        %1229 = vmatprep.subr.bf16.mxu0 0
        %1230 = vmatpush2.bf16.msra.mxu0 0
        %1231 = vmatprep.subr.bf16.mxu0 0
        %1232 = vmatpush2.bf16.msra.mxu0 0
        %1233 = vmatprep.mubr.bf16.mxu0 0
        %1234 = vmatmul.mubr.bf16.gmra.mxu0 %v1098
        %v1235 = vpop.f32.mrf.mxu0
        %v1236 = vadd.f32 %v1151, %v1235
        %v1237 = vpop.f32.mrf.mxu0
        %v1238 = vpop.f32.mrf.mxu0
        %v1239 = vadd.f32 %v1151, %v1238
        %v1240 = vpop.f32.mrf.mxu0
        %1241 = vmatprep.mubr.bf16.mxu0 0
        %1242 = vmatmul.mubr.bf16.gmra.mxu0 %v1099
        %v1243 = vpop.f32.mrf.mxu0
        %v1244 = vadd.f32 %v1151, %v1243
        %v1245 = vpop.f32.mrf.mxu0
        %v1246 = vpop.f32.mrf.mxu0
        %v1247 = vadd.f32 %v1151, %v1246
        %v1248 = vpop.f32.mrf.mxu0
        %1249 = vmatprep.mubr.bf16.mxu0 0
        %1250 = vmatmul.mubr.bf16.gmra.mxu0 %v1100
        %v1251 = vpop.f32.mrf.mxu0
        %v1252 = vadd.f32 %v1151, %v1251
        %v1253 = vpop.f32.mrf.mxu0
        %v1254 = vpop.f32.mrf.mxu0
        %v1255 = vadd.f32 %v1151, %v1254
        %v1256 = vpop.f32.mrf.mxu0
        %1257 = vmatprep.mubr.bf16.mxu0 0
        %1258 = vmatmul.mubr.bf16.gmra.mxu0 %v1101
        %v1259 = vpop.f32.mrf.mxu0
        %v1260 = vadd.f32 %v1151, %v1259
        %v1261 = vpop.f32.mrf.mxu0
        %v1262 = vpop.f32.mrf.mxu0
        %v1263 = vadd.f32 %v1151, %v1262
        %v1264 = vpop.f32.mrf.mxu0
        %1265 = vmatprep.mubr.bf16.mxu0 0
        %1266 = vmatmul.mubr.bf16.gmra.mxu0 %v1102
        %v1267 = vpop.f32.mrf.mxu0
        %v1268 = vadd.f32 %v1151, %v1267
        %v1269 = vpop.f32.mrf.mxu0
        %v1270 = vpop.f32.mrf.mxu0
        %v1271 = vadd.f32 %v1151, %v1270
        %v1272 = vpop.f32.mrf.mxu0
        %1273 = vmatprep.mubr.bf16.mxu0 0
        %1274 = vmatmul.mubr.bf16.gmra.mxu0 %v1103
        %v1275 = vpop.f32.mrf.mxu0
        %v1276 = vadd.f32 %v1151, %v1275
        %v1277 = vpop.f32.mrf.mxu0
        %v1278 = vpop.f32.mrf.mxu0
        %v1279 = vadd.f32 %v1151, %v1278
        %v1280 = vpop.f32.mrf.mxu0
        %1281 = vmatprep.mubr.bf16.mxu0 0
        %1282 = vmatmul.mubr.bf16.gmra.mxu0 %v1104
        %v1283 = vpop.f32.mrf.mxu0
        %v1284 = vadd.f32 %v1151, %v1283
        %v1285 = vpop.f32.mrf.mxu0
        %v1286 = vpop.f32.mrf.mxu0
        %v1287 = vadd.f32 %v1151, %v1286
        %v1288 = vpop.f32.mrf.mxu0
        %1289 = vmatprep.mubr.bf16.mxu0 0
        %1290 = vmatmul.mubr.bf16.gmra.mxu0 %v1105
        %v1291 = vpop.f32.mrf.mxu0
        %v1292 = vadd.f32 %v1151, %v1291
        %v1293 = vpop.f32.mrf.mxu0
        %v1294 = vpop.f32.mrf.mxu0
        %v1295 = vadd.f32 %v1151, %v1294
        %v1296 = vpop.f32.mrf.mxu0
        %1297 = vmatprep.mubr.bf16.mxu0 0
        %1298 = vmatmul.mubr.bf16.gmra.mxu0 %v1106
        %v1299 = vpop.f32.mrf.mxu0
        %v1300 = vadd.f32 %v1151, %v1299
        %v1301 = vpop.f32.mrf.mxu0
        %v1302 = vpop.f32.mrf.mxu0
        %v1303 = vadd.f32 %v1151, %v1302
        %v1304 = vpop.f32.mrf.mxu0
        %1305 = vmatprep.mubr.bf16.mxu0 0
        %1306 = vmatmul.mubr.bf16.gmra.mxu0 %v1107
        %v1307 = vpop.f32.mrf.mxu0
        %v1308 = vadd.f32 %v1151, %v1307
        %v1309 = vpop.f32.mrf.mxu0
        %v1310 = vpop.f32.mrf.mxu0
        %v1311 = vadd.f32 %v1151, %v1310
        %v1312 = vpop.f32.mrf.mxu0
        %1313 = vmatprep.mubr.bf16.mxu0 0
        %1314 = vmatmul.mubr.bf16.gmra.mxu0 %v1108
        %v1315 = vpop.f32.mrf.mxu0
        %v1316 = vadd.f32 %v1151, %v1315
        %v1317 = vpop.f32.mrf.mxu0
        %v1318 = vpop.f32.mrf.mxu0
        %v1319 = vadd.f32 %v1151, %v1318
        %v1320 = vpop.f32.mrf.mxu0
        %1321 = vmatprep.mubr.bf16.mxu0 0
        %1322 = vmatmul.mubr.bf16.gmra.mxu0 %v1109
        %v1323 = vpop.f32.mrf.mxu0
        %v1324 = vadd.f32 %v1151, %v1323
        %v1325 = vpop.f32.mrf.mxu0
        %v1326 = vpop.f32.mrf.mxu0
        %v1327 = vadd.f32 %v1151, %v1326
        %v1328 = vpop.f32.mrf.mxu0
        %1329 = vmatprep.mubr.bf16.mxu0 0
        %1330 = vmatmul.mubr.bf16.gmra.mxu0 %v1110
        %v1331 = vpop.f32.mrf.mxu0
        %v1332 = vadd.f32 %v1151, %v1331
        %v1333 = vpop.f32.mrf.mxu0
        %v1334 = vpop.f32.mrf.mxu0
        %v1335 = vadd.f32 %v1151, %v1334
        %v1336 = vpop.f32.mrf.mxu0
        %1337 = vmatprep.mubr.bf16.mxu0 0
        %1338 = vmatmul.mubr.bf16.gmra.mxu0 %v1111
        %v1339 = vpop.f32.mrf.mxu0
        %v1340 = vadd.f32 %v1151, %v1339
        %v1341 = vpop.f32.mrf.mxu0
        %v1342 = vpop.f32.mrf.mxu0
        %v1343 = vadd.f32 %v1151, %v1342
        %v1344 = vpop.f32.mrf.mxu0
        %1345 = vmatprep.mubr.bf16.mxu0 0
        %1346 = vmatmul.mubr.bf16.gmra.mxu0 %v1112
        %v1347 = vpop.f32.mrf.mxu0
        %v1348 = vadd.f32 %v1151, %v1347
        %v1349 = vpop.f32.mrf.mxu0
        %v1350 = vpop.f32.mrf.mxu0
        %v1351 = vadd.f32 %v1151, %v1350
        %v1352 = vpop.f32.mrf.mxu0
        %1353 = vmatprep.mubr.bf16.mxu0 0
        %1354 = vmatmul.mubr.bf16.gmra.mxu0 %v1113
        %v1355 = vpop.f32.mrf.mxu0
        %v1356 = vadd.f32 %v1151, %v1355
        %v1357 = vpop.f32.mrf.mxu0
        %v1358 = vpop.f32.mrf.mxu0
        %v1359 = vadd.f32 %v1151, %v1358
        %v1360 = vpop.f32.mrf.mxu0
        %1361 = vmatprep.mubr.bf16.mxu0 0
        %1362 = vmatmul.mubr.bf16.gmra.mxu0 %v1114
        %v1363 = vpop.f32.mrf.mxu0
        %v1364 = vadd.f32 %v1151, %v1363
        %v1365 = vpop.f32.mrf.mxu0
        %v1366 = vpop.f32.mrf.mxu0
        %v1367 = vadd.f32 %v1151, %v1366
        %v1368 = vpop.f32.mrf.mxu0
        %1369 = vmatprep.mubr.bf16.mxu0 0
        %1370 = vmatmul.mubr.bf16.gmra.mxu0 %v1115
        %v1371 = vpop.f32.mrf.mxu0
        %v1372 = vadd.f32 %v1151, %v1371
        %v1373 = vpop.f32.mrf.mxu0
        %v1374 = vpop.f32.mrf.mxu0
        %v1375 = vadd.f32 %v1151, %v1374
        %v1376 = vpop.f32.mrf.mxu0
        %1377 = vmatprep.mubr.bf16.mxu0 0
        %1378 = vmatmul.mubr.bf16.gmra.mxu0 %v1116
        %v1379 = vpop.f32.mrf.mxu0
        %v1380 = vadd.f32 %v1151, %v1379
        %v1381 = vpop.f32.mrf.mxu0
        %v1382 = vpop.f32.mrf.mxu0
        %v1383 = vadd.f32 %v1151, %v1382
        %v1384 = vpop.f32.mrf.mxu0
        %1385 = vmatprep.mubr.bf16.mxu0 0
        %1386 = vmatmul.mubr.bf16.gmra.mxu0 %v1117
        %v1387 = vpop.f32.mrf.mxu0
        %v1388 = vadd.f32 %v1151, %v1387
        %v1389 = vpop.f32.mrf.mxu0
        %v1390 = vpop.f32.mrf.mxu0
        %v1391 = vadd.f32 %v1151, %v1390
        %v1392 = vpop.f32.mrf.mxu0
        %1393 = vmatprep.mubr.bf16.mxu0 0
        %1394 = vmatmul.mubr.bf16.gmra.mxu0 %v1118
        %v1395 = vpop.f32.mrf.mxu0
        %v1396 = vadd.f32 %v1151, %v1395
        %v1397 = vpop.f32.mrf.mxu0
        %v1398 = vpop.f32.mrf.mxu0
        %v1399 = vadd.f32 %v1151, %v1398
        %v1400 = vpop.f32.mrf.mxu0
        %1401 = vmatprep.mubr.bf16.mxu0 0
        %1402 = vmatmul.mubr.bf16.gmra.mxu0 %v1119
        %v1403 = vpop.f32.mrf.mxu0
        %v1404 = vadd.f32 %v1151, %v1403
        %v1405 = vpop.f32.mrf.mxu0
        %v1406 = vpop.f32.mrf.mxu0
        %v1407 = vadd.f32 %v1151, %v1406
        %v1408 = vpop.f32.mrf.mxu0
        %1409 = vmatprep.mubr.bf16.mxu0 0
        %1410 = vmatmul.mubr.bf16.gmra.mxu0 %v1120
        %v1411 = vpop.f32.mrf.mxu0
        %v1412 = vadd.f32 %v1151, %v1411
        %v1413 = vpop.f32.mrf.mxu0
        %v1414 = vpop.f32.mrf.mxu0
        %v1415 = vadd.f32 %v1151, %v1414
        %v1416 = vpop.f32.mrf.mxu0
        %1417 = vmatprep.mubr.bf16.mxu0 0
        %1418 = vmatmul.mubr.bf16.gmra.mxu0 %v1121
        %v1419 = vpop.f32.mrf.mxu0
        %v1420 = vadd.f32 %v1151, %v1419
        %v1421 = vpop.f32.mrf.mxu0
        %v1422 = vpop.f32.mrf.mxu0
        %v1423 = vadd.f32 %v1151, %v1422
        %v1424 = vpop.f32.mrf.mxu0
        %1425 = vmatprep.mubr.bf16.mxu0 0
        %1426 = vmatmul.mubr.bf16.gmra.mxu0 %v1122
        %v1427 = vpop.f32.mrf.mxu0
        %v1428 = vadd.f32 %v1151, %v1427
        %v1429 = vpop.f32.mrf.mxu0
        %v1430 = vpop.f32.mrf.mxu0
        %v1431 = vadd.f32 %v1151, %v1430
        %v1432 = vpop.f32.mrf.mxu0
        %1433 = vmatprep.mubr.bf16.mxu0 0
        %1434 = vmatmul.mubr.bf16.gmra.mxu0 %v1123
        %v1435 = vpop.f32.mrf.mxu0
        %v1436 = vadd.f32 %v1151, %v1435
        %v1437 = vpop.f32.mrf.mxu0
        %v1438 = vpop.f32.mrf.mxu0
        %v1439 = vadd.f32 %v1151, %v1438
        %v1440 = vpop.f32.mrf.mxu0
        %1441 = vmatprep.mubr.bf16.mxu0 0
        %1442 = vmatmul.mubr.bf16.gmra.mxu0 %v1124
        %v1443 = vpop.f32.mrf.mxu0
        %v1444 = vadd.f32 %v1151, %v1443
        %v1445 = vpop.f32.mrf.mxu0
        %v1446 = vpop.f32.mrf.mxu0
        %v1447 = vadd.f32 %v1151, %v1446
        %v1448 = vpop.f32.mrf.mxu0
        %1449 = vmatprep.mubr.bf16.mxu0 0
        %1450 = vmatmul.mubr.bf16.gmra.mxu0 %v1125
        %v1451 = vpop.f32.mrf.mxu0
        %v1452 = vadd.f32 %v1151, %v1451
        %v1453 = vpop.f32.mrf.mxu0
        %v1454 = vpop.f32.mrf.mxu0
        %v1455 = vadd.f32 %v1151, %v1454
        %v1456 = vpop.f32.mrf.mxu0
        %1457 = vmatprep.mubr.bf16.mxu0 0
        %1458 = vmatmul.mubr.bf16.gmra.mxu0 %v1126
        %v1459 = vpop.f32.mrf.mxu0
        %v1460 = vadd.f32 %v1151, %v1459
        %v1461 = vpop.f32.mrf.mxu0
        %v1462 = vpop.f32.mrf.mxu0
        %v1463 = vadd.f32 %v1151, %v1462
        %v1464 = vpop.f32.mrf.mxu0
        %1465 = vmatprep.mubr.bf16.mxu0 0
        %1466 = vmatmul.mubr.bf16.gmra.mxu0 %v1127
        %v1467 = vpop.f32.mrf.mxu0
        %v1468 = vadd.f32 %v1151, %v1467
        %v1469 = vpop.f32.mrf.mxu0
        %v1470 = vpop.f32.mrf.mxu0
        %v1471 = vadd.f32 %v1151, %v1470
        %v1472 = vpop.f32.mrf.mxu0
        %1473 = vmatprep.mubr.bf16.mxu0 0
        %1474 = vmatmul.mubr.bf16.gmra.mxu0 %v1128
        %v1475 = vpop.f32.mrf.mxu0
        %v1476 = vadd.f32 %v1151, %v1475
        %v1477 = vpop.f32.mrf.mxu0
        %v1478 = vpop.f32.mrf.mxu0
        %v1479 = vadd.f32 %v1151, %v1478
        %v1480 = vpop.f32.mrf.mxu0
        %1481 = vmatprep.mubr.bf16.mxu0 0
        %1482 = vmatmul.mubr.bf16.gmra.mxu0 %v1129
        %v1483 = vpop.f32.mrf.mxu0
        %v1484 = vadd.f32 %v1151, %v1483
        %v1485 = vpop.f32.mrf.mxu0
        %v1486 = vpop.f32.mrf.mxu0
        %v1487 = vadd.f32 %v1151, %v1486
        %v1488 = vpop.f32.mrf.mxu0
        %1489 = vdwg.mxu0
        %v1490 = vmax.f32 %v1236, 0.0
        %v1491 = vmax.f32 %v1239, 0.0
        %v1492 = vmax.f32 %v1244, 0.0
        %v1493 = vmax.f32 %v1247, 0.0
        %v1494 = vmax.f32 %v1252, 0.0
        %v1495 = vmax.f32 %v1255, 0.0
        %v1496 = vmax.f32 %v1260, 0.0
        %v1497 = vmax.f32 %v1263, 0.0
        %v1498 = vmax.f32 %v1268, 0.0
        %v1499 = vmax.f32 %v1271, 0.0
        %v1500 = vmax.f32 %v1276, 0.0
        %v1501 = vmax.f32 %v1279, 0.0
        %v1502 = vmax.f32 %v1284, 0.0
        %v1503 = vmax.f32 %v1287, 0.0
        %v1504 = vmax.f32 %v1292, 0.0
        %v1505 = vmax.f32 %v1295, 0.0
        %v1506 = vmax.f32 %v1300, 0.0
        %v1507 = vmax.f32 %v1303, 0.0
        %v1508 = vmax.f32 %v1308, 0.0
        %v1509 = vmax.f32 %v1311, 0.0
        %v1510 = vmax.f32 %v1316, 0.0
        %v1511 = vmax.f32 %v1319, 0.0
        %v1512 = vmax.f32 %v1324, 0.0
        %v1513 = vmax.f32 %v1327, 0.0
        %v1514 = vmax.f32 %v1332, 0.0
        %v1515 = vmax.f32 %v1335, 0.0
        %v1516 = vmax.f32 %v1340, 0.0
        %v1517 = vmax.f32 %v1343, 0.0
        %v1518 = vmax.f32 %v1348, 0.0
        %v1519 = vmax.f32 %v1351, 0.0
        %v1520 = vmax.f32 %v1356, 0.0
        %v1521 = vmax.f32 %v1359, 0.0
        %v1522 = vmax.f32 %v1364, 0.0
        %v1523 = vmax.f32 %v1367, 0.0
        %v1524 = vmax.f32 %v1372, 0.0
        %v1525 = vmax.f32 %v1375, 0.0
        %v1526 = vmax.f32 %v1380, 0.0
        %v1527 = vmax.f32 %v1383, 0.0
        %v1528 = vmax.f32 %v1388, 0.0
        %v1529 = vmax.f32 %v1391, 0.0
        %v1530 = vmax.f32 %v1396, 0.0
        %v1531 = vmax.f32 %v1399, 0.0
        %v1532 = vmax.f32 %v1404, 0.0
        %v1533 = vmax.f32 %v1407, 0.0
        %v1534 = vmax.f32 %v1412, 0.0
        %v1535 = vmax.f32 %v1415, 0.0
        %v1536 = vmax.f32 %v1420, 0.0
        %v1537 = vmax.f32 %v1423, 0.0
        %v1538 = vmax.f32 %v1428, 0.0
        %v1539 = vmax.f32 %v1431, 0.0
        %v1540 = vmax.f32 %v1436, 0.0
        %v1541 = vmax.f32 %v1439, 0.0
        %v1542 = vmax.f32 %v1444, 0.0
        %v1543 = vmax.f32 %v1447, 0.0
        %v1544 = vmax.f32 %v1452, 0.0
        %v1545 = vmax.f32 %v1455, 0.0
        %v1546 = vmax.f32 %v1460, 0.0
        %v1547 = vmax.f32 %v1463, 0.0
        %v1548 = vmax.f32 %v1468, 0.0
        %v1549 = vmax.f32 %v1471, 0.0
        %v1550 = vmax.f32 %v1476, 0.0
        %v1551 = vmax.f32 %v1479, 0.0
        %v1552 = vmax.f32 %v1484, 0.0
        %v1553 = vmax.f32 %v1487, 0.0
        %v1554 = vpack.c.bf16 %v1491, %v1490
        %v1555 = vpack.c.bf16 %v1493, %v1492
        %v1556 = vpack.c.bf16 %v1495, %v1494
        %v1557 = vpack.c.bf16 %v1497, %v1496
        %v1558 = vpack.c.bf16 %v1499, %v1498
        %v1559 = vpack.c.bf16 %v1501, %v1500
        %v1560 = vpack.c.bf16 %v1503, %v1502
        %v1561 = vpack.c.bf16 %v1505, %v1504
        %v1562 = vpack.c.bf16 %v1507, %v1506
        %v1563 = vpack.c.bf16 %v1509, %v1508
        %v1564 = vpack.c.bf16 %v1511, %v1510
        %v1565 = vpack.c.bf16 %v1513, %v1512
        %v1566 = vpack.c.bf16 %v1515, %v1514
        %v1567 = vpack.c.bf16 %v1517, %v1516
        %v1568 = vpack.c.bf16 %v1519, %v1518
        %v1569 = vpack.c.bf16 %v1521, %v1520
        %v1570 = vpack.c.bf16 %v1523, %v1522
        %v1571 = vpack.c.bf16 %v1525, %v1524
        %v1572 = vpack.c.bf16 %v1527, %v1526
        %v1573 = vpack.c.bf16 %v1529, %v1528
        %v1574 = vpack.c.bf16 %v1531, %v1530
        %v1575 = vpack.c.bf16 %v1533, %v1532
        %v1576 = vpack.c.bf16 %v1535, %v1534
        %v1577 = vpack.c.bf16 %v1537, %v1536
        %v1578 = vpack.c.bf16 %v1539, %v1538
        %v1579 = vpack.c.bf16 %v1541, %v1540
        %v1580 = vpack.c.bf16 %v1543, %v1542
        %v1581 = vpack.c.bf16 %v1545, %v1544
        %v1582 = vpack.c.bf16 %v1547, %v1546
        %v1583 = vpack.c.bf16 %v1549, %v1548
        %v1584 = vpack.c.bf16 %v1551, %v1550
        %v1585 = vpack.c.bf16 %v1553, %v1552
        %v1586 = vld [vmem:[%s5] sm:$0xff]
        %v1587 = vld [vmem:[%s5 + $0x8] sm:$0xff]
        %v1588 = vld [vmem:[%s5 + $0x10] sm:$0xff]
        %v1589 = vld [vmem:[%s5 + $0x18] sm:$0xff]
        %v1590 = vld [vmem:[%s5 + $0x20] sm:$0xff]
        %v1591 = vld [vmem:[%s5 + $0x28] sm:$0xff]
        %v1592 = vld [vmem:[%s5 + $0x30] sm:$0xff]
        %v1593 = vld [vmem:[%s5 + $0x38] sm:$0xff]
        %v1594 = vld [vmem:[%s5 + $0x40] sm:$0xff]
        %v1595 = vld [vmem:[%s5 + $0x48] sm:$0xff]
        %v1596 = vld [vmem:[%s5 + $0x50] sm:$0xff]
        %v1597 = vld [vmem:[%s5 + $0x58] sm:$0xff]
        %v1598 = vld [vmem:[%s5 + $0x60] sm:$0xff]
        %v1599 = vld [vmem:[%s5 + $0x68] sm:$0xff]
        %v1600 = vld [vmem:[%s5 + $0x70] sm:$0xff]
        %v1601 = vld [vmem:[%s5 + $0x78] sm:$0xff]
        %v1602 = vld [vmem:[%s6] sm:$0x3]
        %v1604 = vlaneseq
        %v1605 = vshrl.u32 %v1604, 7
        %v1606 = vsub.s32 0, %v1605
        %v1607 = vrot.slane %v1602, %v1606
        %v1608 = vlaneseq
        %v1609 = vshrl.u32 %v1608, 7
        %v1610 = vsub.s32 1, %v1609
        %v1611 = vrot.slane %v1602, %v1610
        %v1630 = vunpack.c.l.b16 %v1586
        %v1631 = vunpack.c.h.b16 %v1586
        %v1632 = vunpack.c.l.b16 %v1587
        %v1633 = vunpack.c.h.b16 %v1587
        %v1634 = vunpack.c.l.b16 %v1588
        %v1635 = vunpack.c.h.b16 %v1588
        %v1636 = vunpack.c.l.b16 %v1589
        %v1637 = vunpack.c.h.b16 %v1589
        %v1638 = vunpack.c.l.b16 %v1590
        %v1639 = vunpack.c.h.b16 %v1590
        %v1640 = vunpack.c.l.b16 %v1591
        %v1641 = vunpack.c.h.b16 %v1591
        %v1642 = vunpack.c.l.b16 %v1592
        %v1643 = vunpack.c.h.b16 %v1592
        %v1644 = vunpack.c.l.b16 %v1593
        %v1645 = vunpack.c.h.b16 %v1593
        %v1646 = vunpack.c.l.b16 %v1594
        %v1647 = vunpack.c.h.b16 %v1594
        %v1648 = vunpack.c.l.b16 %v1595
        %v1649 = vunpack.c.h.b16 %v1595
        %v1650 = vunpack.c.l.b16 %v1596
        %v1651 = vunpack.c.h.b16 %v1596
        %v1652 = vunpack.c.l.b16 %v1597
        %v1653 = vunpack.c.h.b16 %v1597
        %v1654 = vunpack.c.l.b16 %v1598
        %v1655 = vunpack.c.h.b16 %v1598
        %v1656 = vunpack.c.l.b16 %v1599
        %v1657 = vunpack.c.h.b16 %v1599
        %v1658 = vunpack.c.l.b16 %v1600
        %v1659 = vunpack.c.h.b16 %v1600
        %v1660 = vunpack.c.l.b16 %v1601
        %v1661 = vunpack.c.h.b16 %v1601
        %v1662 = vpack.c.b16 %v1632, %v1630
        %v1663 = vpack.c.b16 %v1633, %v1631
        %v1664 = vpack.c.b16 %v1636, %v1634
        %v1665 = vpack.c.b16 %v1637, %v1635
        %v1666 = vpack.c.b16 %v1640, %v1638
        %v1667 = vpack.c.b16 %v1641, %v1639
        %v1668 = vpack.c.b16 %v1644, %v1642
        %v1669 = vpack.c.b16 %v1645, %v1643
        %v1670 = vpack.c.b16 %v1648, %v1646
        %v1671 = vpack.c.b16 %v1649, %v1647
        %v1672 = vpack.c.b16 %v1652, %v1650
        %v1673 = vpack.c.b16 %v1653, %v1651
        %v1674 = vpack.c.b16 %v1656, %v1654
        %v1675 = vpack.c.b16 %v1657, %v1655
        %v1676 = vpack.c.b16 %v1660, %v1658
        %v1677 = vpack.c.b16 %v1661, %v1659
        %1694 = vmatprep.subr.bf16.mxu0 %v1677
        %1695 = vmatpush1.bf16.msra.mxu0 %v1676
        %1696 = vmatprep.subr.bf16.mxu0 %v1675
        %1697 = vmatpush1.bf16.msra.mxu0 %v1674
        %1698 = vmatprep.subr.bf16.mxu0 %v1673
        %1699 = vmatpush1.bf16.msra.mxu0 %v1672
        %1700 = vmatprep.subr.bf16.mxu0 %v1671
        %1701 = vmatpush1.bf16.msra.mxu0 %v1670
        %1702 = vmatprep.subr.bf16.mxu0 %v1669
        %1703 = vmatpush1.bf16.msra.mxu0 %v1668
        %1704 = vmatprep.subr.bf16.mxu0 %v1667
        %1705 = vmatpush1.bf16.msra.mxu0 %v1666
        %1706 = vmatprep.subr.bf16.mxu0 %v1665
        %1707 = vmatpush1.bf16.msra.mxu0 %v1664
        %1708 = vmatprep.subr.bf16.mxu0 %v1663
        %1709 = vmatpush1.bf16.msra.mxu0 %v1662
        %1710 = vmatprep.subr.bf16.mxu0 0
        %1711 = vmatpush2.bf16.msra.mxu0 0
        %1712 = vmatprep.subr.bf16.mxu0 0
        %1713 = vmatpush2.bf16.msra.mxu0 0
        %1714 = vmatprep.subr.bf16.mxu0 0
        %1715 = vmatpush2.bf16.msra.mxu0 0
        %1716 = vmatprep.subr.bf16.mxu0 0
        %1717 = vmatpush2.bf16.msra.mxu0 0
        %1718 = vmatprep.subr.bf16.mxu0 0
        %1719 = vmatpush2.bf16.msra.mxu0 0
        %1720 = vmatprep.subr.bf16.mxu0 0
        %1721 = vmatpush2.bf16.msra.mxu0 0
        %1722 = vmatprep.subr.bf16.mxu0 0
        %1723 = vmatpush2.bf16.msra.mxu0 0
        %1724 = vmatprep.subr.bf16.mxu0 0
        %1725 = vmatpush2.bf16.msra.mxu0 0
        %1726 = vmatprep.mubr.bf16.mxu0 0
        %1727 = vmatmul.mubr.bf16.gmra.mxu0 %v1554
        %v1728 = vpop.f32.mrf.mxu0
        %v1729 = vadd.f32 %v1607, %v1728
        %v1730 = vpop.f32.mrf.mxu0
        %v1731 = vadd.f32 %v1611, %v1730
        %v1732 = vpop.f32.mrf.mxu0
        %v1733 = vadd.f32 %v1607, %v1732
        %v1734 = vpop.f32.mrf.mxu0
        %v1735 = vadd.f32 %v1611, %v1734
        %1736 = vmatprep.mubr.bf16.mxu0 0
        %1737 = vmatmul.mubr.bf16.gmra.mxu0 %v1555
        %v1738 = vpop.f32.mrf.mxu0
        %v1739 = vadd.f32 %v1607, %v1738
        %v1740 = vpop.f32.mrf.mxu0
        %v1741 = vadd.f32 %v1611, %v1740
        %v1742 = vpop.f32.mrf.mxu0
        %v1743 = vadd.f32 %v1607, %v1742
        %v1744 = vpop.f32.mrf.mxu0
        %v1745 = vadd.f32 %v1611, %v1744
        %1746 = vmatprep.mubr.bf16.mxu0 0
        %1747 = vmatmul.mubr.bf16.gmra.mxu0 %v1556
        %v1748 = vpop.f32.mrf.mxu0
        %v1749 = vadd.f32 %v1607, %v1748
        %v1750 = vpop.f32.mrf.mxu0
        %v1751 = vadd.f32 %v1611, %v1750
        %v1752 = vpop.f32.mrf.mxu0
        %v1753 = vadd.f32 %v1607, %v1752
        %v1754 = vpop.f32.mrf.mxu0
        %v1755 = vadd.f32 %v1611, %v1754
        %1756 = vmatprep.mubr.bf16.mxu0 0
        %1757 = vmatmul.mubr.bf16.gmra.mxu0 %v1557
        %v1758 = vpop.f32.mrf.mxu0
        %v1759 = vadd.f32 %v1607, %v1758
        %v1760 = vpop.f32.mrf.mxu0
        %v1761 = vadd.f32 %v1611, %v1760
        %v1762 = vpop.f32.mrf.mxu0
        %v1763 = vadd.f32 %v1607, %v1762
        %v1764 = vpop.f32.mrf.mxu0
        %v1765 = vadd.f32 %v1611, %v1764
        %1766 = vmatprep.mubr.bf16.mxu0 0
        %1767 = vmatmul.mubr.bf16.gmra.mxu0 %v1558
        %v1768 = vpop.f32.mrf.mxu0
        %v1769 = vadd.f32 %v1607, %v1768
        %v1770 = vpop.f32.mrf.mxu0
        %v1771 = vadd.f32 %v1611, %v1770
        %v1772 = vpop.f32.mrf.mxu0
        %v1773 = vadd.f32 %v1607, %v1772
        %v1774 = vpop.f32.mrf.mxu0
        %v1775 = vadd.f32 %v1611, %v1774
        %1776 = vmatprep.mubr.bf16.mxu0 0
        %1777 = vmatmul.mubr.bf16.gmra.mxu0 %v1559
        %v1778 = vpop.f32.mrf.mxu0
        %v1779 = vadd.f32 %v1607, %v1778
        %v1780 = vpop.f32.mrf.mxu0
        %v1781 = vadd.f32 %v1611, %v1780
        %v1782 = vpop.f32.mrf.mxu0
        %v1783 = vadd.f32 %v1607, %v1782
        %v1784 = vpop.f32.mrf.mxu0
        %v1785 = vadd.f32 %v1611, %v1784
        %1786 = vmatprep.mubr.bf16.mxu0 0
        %1787 = vmatmul.mubr.bf16.gmra.mxu0 %v1560
        %v1788 = vpop.f32.mrf.mxu0
        %v1789 = vadd.f32 %v1607, %v1788
        %v1790 = vpop.f32.mrf.mxu0
        %v1791 = vadd.f32 %v1611, %v1790
        %v1792 = vpop.f32.mrf.mxu0
        %v1793 = vadd.f32 %v1607, %v1792
        %v1794 = vpop.f32.mrf.mxu0
        %v1795 = vadd.f32 %v1611, %v1794
        %1796 = vmatprep.mubr.bf16.mxu0 0
        %1797 = vmatmul.mubr.bf16.gmra.mxu0 %v1561
        %v1798 = vpop.f32.mrf.mxu0
        %v1799 = vadd.f32 %v1607, %v1798
        %v1800 = vpop.f32.mrf.mxu0
        %v1801 = vadd.f32 %v1611, %v1800
        %v1802 = vpop.f32.mrf.mxu0
        %v1803 = vadd.f32 %v1607, %v1802
        %v1804 = vpop.f32.mrf.mxu0
        %v1805 = vadd.f32 %v1611, %v1804
        %1806 = vmatprep.mubr.bf16.mxu0 0
        %1807 = vmatmul.mubr.bf16.gmra.mxu0 %v1562
        %v1808 = vpop.f32.mrf.mxu0
        %v1809 = vadd.f32 %v1607, %v1808
        %v1810 = vpop.f32.mrf.mxu0
        %v1811 = vadd.f32 %v1611, %v1810
        %v1812 = vpop.f32.mrf.mxu0
        %v1813 = vadd.f32 %v1607, %v1812
        %v1814 = vpop.f32.mrf.mxu0
        %v1815 = vadd.f32 %v1611, %v1814
        %1816 = vmatprep.mubr.bf16.mxu0 0
        %1817 = vmatmul.mubr.bf16.gmra.mxu0 %v1563
        %v1818 = vpop.f32.mrf.mxu0
        %v1819 = vadd.f32 %v1607, %v1818
        %v1820 = vpop.f32.mrf.mxu0
        %v1821 = vadd.f32 %v1611, %v1820
        %v1822 = vpop.f32.mrf.mxu0
        %v1823 = vadd.f32 %v1607, %v1822
        %v1824 = vpop.f32.mrf.mxu0
        %v1825 = vadd.f32 %v1611, %v1824
        %1826 = vmatprep.mubr.bf16.mxu0 0
        %1827 = vmatmul.mubr.bf16.gmra.mxu0 %v1564
        %v1828 = vpop.f32.mrf.mxu0
        %v1829 = vadd.f32 %v1607, %v1828
        %v1830 = vpop.f32.mrf.mxu0
        %v1831 = vadd.f32 %v1611, %v1830
        %v1832 = vpop.f32.mrf.mxu0
        %v1833 = vadd.f32 %v1607, %v1832
        %v1834 = vpop.f32.mrf.mxu0
        %v1835 = vadd.f32 %v1611, %v1834
        %1836 = vmatprep.mubr.bf16.mxu0 0
        %1837 = vmatmul.mubr.bf16.gmra.mxu0 %v1565
        %v1838 = vpop.f32.mrf.mxu0
        %v1839 = vadd.f32 %v1607, %v1838
        %v1840 = vpop.f32.mrf.mxu0
        %v1841 = vadd.f32 %v1611, %v1840
        %v1842 = vpop.f32.mrf.mxu0
        %v1843 = vadd.f32 %v1607, %v1842
        %v1844 = vpop.f32.mrf.mxu0
        %v1845 = vadd.f32 %v1611, %v1844
        %1846 = vmatprep.mubr.bf16.mxu0 0
        %1847 = vmatmul.mubr.bf16.gmra.mxu0 %v1566
        %v1848 = vpop.f32.mrf.mxu0
        %v1849 = vadd.f32 %v1607, %v1848
        %v1850 = vpop.f32.mrf.mxu0
        %v1851 = vadd.f32 %v1611, %v1850
        %v1852 = vpop.f32.mrf.mxu0
        %v1853 = vadd.f32 %v1607, %v1852
        %v1854 = vpop.f32.mrf.mxu0
        %v1855 = vadd.f32 %v1611, %v1854
        %1856 = vmatprep.mubr.bf16.mxu0 0
        %1857 = vmatmul.mubr.bf16.gmra.mxu0 %v1567
        %v1858 = vpop.f32.mrf.mxu0
        %v1859 = vadd.f32 %v1607, %v1858
        %v1860 = vpop.f32.mrf.mxu0
        %v1861 = vadd.f32 %v1611, %v1860
        %v1862 = vpop.f32.mrf.mxu0
        %v1863 = vadd.f32 %v1607, %v1862
        %v1864 = vpop.f32.mrf.mxu0
        %v1865 = vadd.f32 %v1611, %v1864
        %1866 = vmatprep.mubr.bf16.mxu0 0
        %1867 = vmatmul.mubr.bf16.gmra.mxu0 %v1568
        %v1868 = vpop.f32.mrf.mxu0
        %v1869 = vadd.f32 %v1607, %v1868
        %v1870 = vpop.f32.mrf.mxu0
        %v1871 = vadd.f32 %v1611, %v1870
        %v1872 = vpop.f32.mrf.mxu0
        %v1873 = vadd.f32 %v1607, %v1872
        %v1874 = vpop.f32.mrf.mxu0
        %v1875 = vadd.f32 %v1611, %v1874
        %1876 = vmatprep.mubr.bf16.mxu0 0
        %1877 = vmatmul.mubr.bf16.gmra.mxu0 %v1569
        %v1878 = vpop.f32.mrf.mxu0
        %v1879 = vadd.f32 %v1607, %v1878
        %v1880 = vpop.f32.mrf.mxu0
        %v1881 = vadd.f32 %v1611, %v1880
        %v1882 = vpop.f32.mrf.mxu0
        %v1883 = vadd.f32 %v1607, %v1882
        %v1884 = vpop.f32.mrf.mxu0
        %v1885 = vadd.f32 %v1611, %v1884
        %1886 = vmatprep.mubr.bf16.mxu0 0
        %1887 = vmatmul.mubr.bf16.gmra.mxu0 %v1570
        %v1888 = vpop.f32.mrf.mxu0
        %v1889 = vadd.f32 %v1607, %v1888
        %v1890 = vpop.f32.mrf.mxu0
        %v1891 = vadd.f32 %v1611, %v1890
        %v1892 = vpop.f32.mrf.mxu0
        %v1893 = vadd.f32 %v1607, %v1892
        %v1894 = vpop.f32.mrf.mxu0
        %v1895 = vadd.f32 %v1611, %v1894
        %1896 = vmatprep.mubr.bf16.mxu0 0
        %1897 = vmatmul.mubr.bf16.gmra.mxu0 %v1571
        %v1898 = vpop.f32.mrf.mxu0
        %v1899 = vadd.f32 %v1607, %v1898
        %v1900 = vpop.f32.mrf.mxu0
        %v1901 = vadd.f32 %v1611, %v1900
        %v1902 = vpop.f32.mrf.mxu0
        %v1903 = vadd.f32 %v1607, %v1902
        %v1904 = vpop.f32.mrf.mxu0
        %v1905 = vadd.f32 %v1611, %v1904
        %1906 = vmatprep.mubr.bf16.mxu0 0
        %1907 = vmatmul.mubr.bf16.gmra.mxu0 %v1572
        %v1908 = vpop.f32.mrf.mxu0
        %v1909 = vadd.f32 %v1607, %v1908
        %v1910 = vpop.f32.mrf.mxu0
        %v1911 = vadd.f32 %v1611, %v1910
        %v1912 = vpop.f32.mrf.mxu0
        %v1913 = vadd.f32 %v1607, %v1912
        %v1914 = vpop.f32.mrf.mxu0
        %v1915 = vadd.f32 %v1611, %v1914
        %1916 = vmatprep.mubr.bf16.mxu0 0
        %1917 = vmatmul.mubr.bf16.gmra.mxu0 %v1573
        %v1918 = vpop.f32.mrf.mxu0
        %v1919 = vadd.f32 %v1607, %v1918
        %v1920 = vpop.f32.mrf.mxu0
        %v1921 = vadd.f32 %v1611, %v1920
        %v1922 = vpop.f32.mrf.mxu0
        %v1923 = vadd.f32 %v1607, %v1922
        %v1924 = vpop.f32.mrf.mxu0
        %v1925 = vadd.f32 %v1611, %v1924
        %1926 = vmatprep.mubr.bf16.mxu0 0
        %1927 = vmatmul.mubr.bf16.gmra.mxu0 %v1574
        %v1928 = vpop.f32.mrf.mxu0
        %v1929 = vadd.f32 %v1607, %v1928
        %v1930 = vpop.f32.mrf.mxu0
        %v1931 = vadd.f32 %v1611, %v1930
        %v1932 = vpop.f32.mrf.mxu0
        %v1933 = vadd.f32 %v1607, %v1932
        %v1934 = vpop.f32.mrf.mxu0
        %v1935 = vadd.f32 %v1611, %v1934
        %1936 = vmatprep.mubr.bf16.mxu0 0
        %1937 = vmatmul.mubr.bf16.gmra.mxu0 %v1575
        %v1938 = vpop.f32.mrf.mxu0
        %v1939 = vadd.f32 %v1607, %v1938
        %v1940 = vpop.f32.mrf.mxu0
        %v1941 = vadd.f32 %v1611, %v1940
        %v1942 = vpop.f32.mrf.mxu0
        %v1943 = vadd.f32 %v1607, %v1942
        %v1944 = vpop.f32.mrf.mxu0
        %v1945 = vadd.f32 %v1611, %v1944
        %1946 = vmatprep.mubr.bf16.mxu0 0
        %1947 = vmatmul.mubr.bf16.gmra.mxu0 %v1576
        %v1948 = vpop.f32.mrf.mxu0
        %v1949 = vadd.f32 %v1607, %v1948
        %v1950 = vpop.f32.mrf.mxu0
        %v1951 = vadd.f32 %v1611, %v1950
        %v1952 = vpop.f32.mrf.mxu0
        %v1953 = vadd.f32 %v1607, %v1952
        %v1954 = vpop.f32.mrf.mxu0
        %v1955 = vadd.f32 %v1611, %v1954
        %1956 = vmatprep.mubr.bf16.mxu0 0
        %1957 = vmatmul.mubr.bf16.gmra.mxu0 %v1577
        %v1958 = vpop.f32.mrf.mxu0
        %v1959 = vadd.f32 %v1607, %v1958
        %v1960 = vpop.f32.mrf.mxu0
        %v1961 = vadd.f32 %v1611, %v1960
        %v1962 = vpop.f32.mrf.mxu0
        %v1963 = vadd.f32 %v1607, %v1962
        %v1964 = vpop.f32.mrf.mxu0
        %v1965 = vadd.f32 %v1611, %v1964
        %1966 = vmatprep.mubr.bf16.mxu0 0
        %1967 = vmatmul.mubr.bf16.gmra.mxu0 %v1578
        %v1968 = vpop.f32.mrf.mxu0
        %v1969 = vadd.f32 %v1607, %v1968
        %v1970 = vpop.f32.mrf.mxu0
        %v1971 = vadd.f32 %v1611, %v1970
        %v1972 = vpop.f32.mrf.mxu0
        %v1973 = vadd.f32 %v1607, %v1972
        %v1974 = vpop.f32.mrf.mxu0
        %v1975 = vadd.f32 %v1611, %v1974
        %1976 = vmatprep.mubr.bf16.mxu0 0
        %1977 = vmatmul.mubr.bf16.gmra.mxu0 %v1579
        %v1978 = vpop.f32.mrf.mxu0
        %v1979 = vadd.f32 %v1607, %v1978
        %v1980 = vpop.f32.mrf.mxu0
        %v1981 = vadd.f32 %v1611, %v1980
        %v1982 = vpop.f32.mrf.mxu0
        %v1983 = vadd.f32 %v1607, %v1982
        %v1984 = vpop.f32.mrf.mxu0
        %v1985 = vadd.f32 %v1611, %v1984
        %1986 = vmatprep.mubr.bf16.mxu0 0
        %1987 = vmatmul.mubr.bf16.gmra.mxu0 %v1580
        %v1988 = vpop.f32.mrf.mxu0
        %v1989 = vadd.f32 %v1607, %v1988
        %v1990 = vpop.f32.mrf.mxu0
        %v1991 = vadd.f32 %v1611, %v1990
        %v1992 = vpop.f32.mrf.mxu0
        %v1993 = vadd.f32 %v1607, %v1992
        %v1994 = vpop.f32.mrf.mxu0
        %v1995 = vadd.f32 %v1611, %v1994
        %1996 = vmatprep.mubr.bf16.mxu0 0
        %1997 = vmatmul.mubr.bf16.gmra.mxu0 %v1581
        %v1998 = vpop.f32.mrf.mxu0
        %v1999 = vadd.f32 %v1607, %v1998
        %v2000 = vpop.f32.mrf.mxu0
        %v2001 = vadd.f32 %v1611, %v2000
        %v2002 = vpop.f32.mrf.mxu0
        %v2003 = vadd.f32 %v1607, %v2002
        %v2004 = vpop.f32.mrf.mxu0
        %v2005 = vadd.f32 %v1611, %v2004
        %2006 = vmatprep.mubr.bf16.mxu0 0
        %2007 = vmatmul.mubr.bf16.gmra.mxu0 %v1582
        %v2008 = vpop.f32.mrf.mxu0
        %v2009 = vadd.f32 %v1607, %v2008
        %v2010 = vpop.f32.mrf.mxu0
        %v2011 = vadd.f32 %v1611, %v2010
        %v2012 = vpop.f32.mrf.mxu0
        %v2013 = vadd.f32 %v1607, %v2012
        %v2014 = vpop.f32.mrf.mxu0
        %v2015 = vadd.f32 %v1611, %v2014
        %2016 = vmatprep.mubr.bf16.mxu0 0
        %2017 = vmatmul.mubr.bf16.gmra.mxu0 %v1583
        %v2018 = vpop.f32.mrf.mxu0
        %v2019 = vadd.f32 %v1607, %v2018
        %v2020 = vpop.f32.mrf.mxu0
        %v2021 = vadd.f32 %v1611, %v2020
        %v2022 = vpop.f32.mrf.mxu0
        %v2023 = vadd.f32 %v1607, %v2022
        %v2024 = vpop.f32.mrf.mxu0
        %v2025 = vadd.f32 %v1611, %v2024
        %2026 = vmatprep.mubr.bf16.mxu0 0
        %2027 = vmatmul.mubr.bf16.gmra.mxu0 %v1584
        %v2028 = vpop.f32.mrf.mxu0
        %v2029 = vadd.f32 %v1607, %v2028
        %v2030 = vpop.f32.mrf.mxu0
        %v2031 = vadd.f32 %v1611, %v2030
        %v2032 = vpop.f32.mrf.mxu0
        %v2033 = vadd.f32 %v1607, %v2032
        %v2034 = vpop.f32.mrf.mxu0
        %v2035 = vadd.f32 %v1611, %v2034
        %2036 = vmatprep.mubr.bf16.mxu0 0
        %2037 = vmatmul.mubr.bf16.gmra.mxu0 %v1585
        %v2038 = vpop.f32.mrf.mxu0
        %v2039 = vadd.f32 %v1607, %v2038
        %v2040 = vpop.f32.mrf.mxu0
        %v2041 = vadd.f32 %v1611, %v2040
        %v2042 = vpop.f32.mrf.mxu0
        %v2043 = vadd.f32 %v1607, %v2042
        %v2044 = vpop.f32.mrf.mxu0
        %v2045 = vadd.f32 %v1611, %v2044
        %2046 = vdwg.mxu0
        %v2047 = vmax.f32 %v1729, 0.0
        %v2048 = vmax.f32 %v1731, 0.0
        %v2049 = vmax.f32 %v1733, 0.0
        %v2050 = vmax.f32 %v1735, 0.0
        %v2051 = vmax.f32 %v1739, 0.0
        %v2052 = vmax.f32 %v1741, 0.0
        %v2053 = vmax.f32 %v1743, 0.0
        %v2054 = vmax.f32 %v1745, 0.0
        %v2055 = vmax.f32 %v1749, 0.0
        %v2056 = vmax.f32 %v1751, 0.0
        %v2057 = vmax.f32 %v1753, 0.0
        %v2058 = vmax.f32 %v1755, 0.0
        %v2059 = vmax.f32 %v1759, 0.0
        %v2060 = vmax.f32 %v1761, 0.0
        %v2061 = vmax.f32 %v1763, 0.0
        %v2062 = vmax.f32 %v1765, 0.0
        %v2063 = vmax.f32 %v1769, 0.0
        %v2064 = vmax.f32 %v1771, 0.0
        %v2065 = vmax.f32 %v1773, 0.0
        %v2066 = vmax.f32 %v1775, 0.0
        %v2067 = vmax.f32 %v1779, 0.0
        %v2068 = vmax.f32 %v1781, 0.0
        %v2069 = vmax.f32 %v1783, 0.0
        %v2070 = vmax.f32 %v1785, 0.0
        %v2071 = vmax.f32 %v1789, 0.0
        %v2072 = vmax.f32 %v1791, 0.0
        %v2073 = vmax.f32 %v1793, 0.0
        %v2074 = vmax.f32 %v1795, 0.0
        %v2075 = vmax.f32 %v1799, 0.0
        %v2076 = vmax.f32 %v1801, 0.0
        %v2077 = vmax.f32 %v1803, 0.0
        %v2078 = vmax.f32 %v1805, 0.0
        %v2079 = vmax.f32 %v1809, 0.0
        %v2080 = vmax.f32 %v1811, 0.0
        %v2081 = vmax.f32 %v1813, 0.0
        %v2082 = vmax.f32 %v1815, 0.0
        %v2083 = vmax.f32 %v1819, 0.0
        %v2084 = vmax.f32 %v1821, 0.0
        %v2085 = vmax.f32 %v1823, 0.0
        %v2086 = vmax.f32 %v1825, 0.0
        %v2087 = vmax.f32 %v1829, 0.0
        %v2088 = vmax.f32 %v1831, 0.0
        %v2089 = vmax.f32 %v1833, 0.0
        %v2090 = vmax.f32 %v1835, 0.0
        %v2091 = vmax.f32 %v1839, 0.0
        %v2092 = vmax.f32 %v1841, 0.0
        %v2093 = vmax.f32 %v1843, 0.0
        %v2094 = vmax.f32 %v1845, 0.0
        %v2095 = vmax.f32 %v1849, 0.0
        %v2096 = vmax.f32 %v1851, 0.0
        %v2097 = vmax.f32 %v1853, 0.0
        %v2098 = vmax.f32 %v1855, 0.0
        %v2099 = vmax.f32 %v1859, 0.0
        %v2100 = vmax.f32 %v1861, 0.0
        %v2101 = vmax.f32 %v1863, 0.0
        %v2102 = vmax.f32 %v1865, 0.0
        %v2103 = vmax.f32 %v1869, 0.0
        %v2104 = vmax.f32 %v1871, 0.0
        %v2105 = vmax.f32 %v1873, 0.0
        %v2106 = vmax.f32 %v1875, 0.0
        %v2107 = vmax.f32 %v1879, 0.0
        %v2108 = vmax.f32 %v1881, 0.0
        %v2109 = vmax.f32 %v1883, 0.0
        %v2110 = vmax.f32 %v1885, 0.0
        %v2111 = vmax.f32 %v1889, 0.0
        %v2112 = vmax.f32 %v1891, 0.0
        %v2113 = vmax.f32 %v1893, 0.0
        %v2114 = vmax.f32 %v1895, 0.0
        %v2115 = vmax.f32 %v1899, 0.0
        %v2116 = vmax.f32 %v1901, 0.0
        %v2117 = vmax.f32 %v1903, 0.0
        %v2118 = vmax.f32 %v1905, 0.0
        %v2119 = vmax.f32 %v1909, 0.0
        %v2120 = vmax.f32 %v1911, 0.0
        %v2121 = vmax.f32 %v1913, 0.0
        %v2122 = vmax.f32 %v1915, 0.0
        %v2123 = vmax.f32 %v1919, 0.0
        %v2124 = vmax.f32 %v1921, 0.0
        %v2125 = vmax.f32 %v1923, 0.0
        %v2126 = vmax.f32 %v1925, 0.0
        %v2127 = vmax.f32 %v1929, 0.0
        %v2128 = vmax.f32 %v1931, 0.0
        %v2129 = vmax.f32 %v1933, 0.0
        %v2130 = vmax.f32 %v1935, 0.0
        %v2131 = vmax.f32 %v1939, 0.0
        %v2132 = vmax.f32 %v1941, 0.0
        %v2133 = vmax.f32 %v1943, 0.0
        %v2134 = vmax.f32 %v1945, 0.0
        %v2135 = vmax.f32 %v1949, 0.0
        %v2136 = vmax.f32 %v1951, 0.0
        %v2137 = vmax.f32 %v1953, 0.0
        %v2138 = vmax.f32 %v1955, 0.0
        %v2139 = vmax.f32 %v1959, 0.0
        %v2140 = vmax.f32 %v1961, 0.0
        %v2141 = vmax.f32 %v1963, 0.0
        %v2142 = vmax.f32 %v1965, 0.0
        %v2143 = vmax.f32 %v1969, 0.0
        %v2144 = vmax.f32 %v1971, 0.0
        %v2145 = vmax.f32 %v1973, 0.0
        %v2146 = vmax.f32 %v1975, 0.0
        %v2147 = vmax.f32 %v1979, 0.0
        %v2148 = vmax.f32 %v1981, 0.0
        %v2149 = vmax.f32 %v1983, 0.0
        %v2150 = vmax.f32 %v1985, 0.0
        %v2151 = vmax.f32 %v1989, 0.0
        %v2152 = vmax.f32 %v1991, 0.0
        %v2153 = vmax.f32 %v1993, 0.0
        %v2154 = vmax.f32 %v1995, 0.0
        %v2155 = vmax.f32 %v1999, 0.0
        %v2156 = vmax.f32 %v2001, 0.0
        %v2157 = vmax.f32 %v2003, 0.0
        %v2158 = vmax.f32 %v2005, 0.0
        %v2159 = vmax.f32 %v2009, 0.0
        %v2160 = vmax.f32 %v2011, 0.0
        %v2161 = vmax.f32 %v2013, 0.0
        %v2162 = vmax.f32 %v2015, 0.0
        %v2163 = vmax.f32 %v2019, 0.0
        %v2164 = vmax.f32 %v2021, 0.0
        %v2165 = vmax.f32 %v2023, 0.0
        %v2166 = vmax.f32 %v2025, 0.0
        %v2167 = vmax.f32 %v2029, 0.0
        %v2168 = vmax.f32 %v2031, 0.0
        %v2169 = vmax.f32 %v2033, 0.0
        %v2170 = vmax.f32 %v2035, 0.0
        %v2171 = vmax.f32 %v2039, 0.0
        %v2172 = vmax.f32 %v2041, 0.0
        %v2173 = vmax.f32 %v2043, 0.0
        %v2174 = vmax.f32 %v2045, 0.0
        %v2175 = vpack.c.bf16 %v2049, %v2047
        %v2176 = vpack.c.bf16 %v2050, %v2048
        %v2177 = vpack.c.bf16 %v2053, %v2051
        %v2178 = vpack.c.bf16 %v2054, %v2052
        %v2179 = vpack.c.bf16 %v2057, %v2055
        %v2180 = vpack.c.bf16 %v2058, %v2056
        %v2181 = vpack.c.bf16 %v2061, %v2059
        %v2182 = vpack.c.bf16 %v2062, %v2060
        %v2183 = vpack.c.bf16 %v2065, %v2063
        %v2184 = vpack.c.bf16 %v2066, %v2064
        %v2185 = vpack.c.bf16 %v2069, %v2067
        %v2186 = vpack.c.bf16 %v2070, %v2068
        %v2187 = vpack.c.bf16 %v2073, %v2071
        %v2188 = vpack.c.bf16 %v2074, %v2072
        %v2189 = vpack.c.bf16 %v2077, %v2075
        %v2190 = vpack.c.bf16 %v2078, %v2076
        %v2191 = vpack.c.bf16 %v2081, %v2079
        %v2192 = vpack.c.bf16 %v2082, %v2080
        %v2193 = vpack.c.bf16 %v2085, %v2083
        %v2194 = vpack.c.bf16 %v2086, %v2084
        %v2195 = vpack.c.bf16 %v2089, %v2087
        %v2196 = vpack.c.bf16 %v2090, %v2088
        %v2197 = vpack.c.bf16 %v2093, %v2091
        %v2198 = vpack.c.bf16 %v2094, %v2092
        %v2199 = vpack.c.bf16 %v2097, %v2095
        %v2200 = vpack.c.bf16 %v2098, %v2096
        %v2201 = vpack.c.bf16 %v2101, %v2099
        %v2202 = vpack.c.bf16 %v2102, %v2100
        %v2203 = vpack.c.bf16 %v2105, %v2103
        %v2204 = vpack.c.bf16 %v2106, %v2104
        %v2205 = vpack.c.bf16 %v2109, %v2107
        %v2206 = vpack.c.bf16 %v2110, %v2108
        %v2207 = vpack.c.bf16 %v2113, %v2111
        %v2208 = vpack.c.bf16 %v2114, %v2112
        %v2209 = vpack.c.bf16 %v2117, %v2115
        %v2210 = vpack.c.bf16 %v2118, %v2116
        %v2211 = vpack.c.bf16 %v2121, %v2119
        %v2212 = vpack.c.bf16 %v2122, %v2120
        %v2213 = vpack.c.bf16 %v2125, %v2123
        %v2214 = vpack.c.bf16 %v2126, %v2124
        %v2215 = vpack.c.bf16 %v2129, %v2127
        %v2216 = vpack.c.bf16 %v2130, %v2128
        %v2217 = vpack.c.bf16 %v2133, %v2131
        %v2218 = vpack.c.bf16 %v2134, %v2132
        %v2219 = vpack.c.bf16 %v2137, %v2135
        %v2220 = vpack.c.bf16 %v2138, %v2136
        %v2221 = vpack.c.bf16 %v2141, %v2139
        %v2222 = vpack.c.bf16 %v2142, %v2140
        %v2223 = vpack.c.bf16 %v2145, %v2143
        %v2224 = vpack.c.bf16 %v2146, %v2144
        %v2225 = vpack.c.bf16 %v2149, %v2147
        %v2226 = vpack.c.bf16 %v2150, %v2148
        %v2227 = vpack.c.bf16 %v2153, %v2151
        %v2228 = vpack.c.bf16 %v2154, %v2152
        %v2229 = vpack.c.bf16 %v2157, %v2155
        %v2230 = vpack.c.bf16 %v2158, %v2156
        %v2231 = vpack.c.bf16 %v2161, %v2159
        %v2232 = vpack.c.bf16 %v2162, %v2160
        %v2233 = vpack.c.bf16 %v2165, %v2163
        %v2234 = vpack.c.bf16 %v2166, %v2164
        %v2235 = vpack.c.bf16 %v2169, %v2167
        %v2236 = vpack.c.bf16 %v2170, %v2168
        %v2237 = vpack.c.bf16 %v2173, %v2171
        %v2238 = vpack.c.bf16 %v2174, %v2172
        %v2239 = vld [vmem:[%s7] sm:$0xff]
        %v2240 = vld [vmem:[%s7 + $0x8] sm:$0xff]
        %v2241 = vld [vmem:[%s7 + $0x10] sm:$0xff]
        %v2242 = vld [vmem:[%s7 + $0x18] sm:$0xff]
        %v2243 = vld [vmem:[%s7 + $0x20] sm:$0xff]
        %v2244 = vld [vmem:[%s7 + $0x28] sm:$0xff]
        %v2245 = vld [vmem:[%s7 + $0x30] sm:$0xff]
        %v2246 = vld [vmem:[%s7 + $0x38] sm:$0xff]
        %v2247 = vld [vmem:[%s7 + $0x40] sm:$0xff]
        %v2248 = vld [vmem:[%s7 + $0x48] sm:$0xff]
        %v2249 = vld [vmem:[%s7 + $0x50] sm:$0xff]
        %v2250 = vld [vmem:[%s7 + $0x58] sm:$0xff]
        %v2251 = vld [vmem:[%s7 + $0x60] sm:$0xff]
        %v2252 = vld [vmem:[%s7 + $0x68] sm:$0xff]
        %v2253 = vld [vmem:[%s7 + $0x70] sm:$0xff]
        %v2254 = vld [vmem:[%s7 + $0x78] sm:$0xff]
        %v2255 = vld [vmem:[%s7 + $0x80] sm:$0xff]
        %v2256 = vld [vmem:[%s7 + $0x88] sm:$0xff]
        %v2257 = vld [vmem:[%s7 + $0x90] sm:$0xff]
        %v2258 = vld [vmem:[%s7 + $0x98] sm:$0xff]
        %v2259 = vld [vmem:[%s7 + $0xa0] sm:$0xff]
        %v2260 = vld [vmem:[%s7 + $0xa8] sm:$0xff]
        %v2261 = vld [vmem:[%s7 + $0xb0] sm:$0xff]
        %v2262 = vld [vmem:[%s7 + $0xb8] sm:$0xff]
        %v2263 = vld [vmem:[%s7 + $0xc0] sm:$0xff]
        %v2264 = vld [vmem:[%s7 + $0xc8] sm:$0xff]
        %v2265 = vld [vmem:[%s7 + $0xd0] sm:$0xff]
        %v2266 = vld [vmem:[%s7 + $0xd8] sm:$0xff]
        %v2267 = vld [vmem:[%s7 + $0xe0] sm:$0xff]
        %v2268 = vld [vmem:[%s7 + $0xe8] sm:$0xff]
        %v2269 = vld [vmem:[%s7 + $0xf0] sm:$0xff]
        %v2270 = vld [vmem:[%s7 + $0xf8] sm:$0xff]
        %v2271 = vld [vmem:[%s7 + $0x100] sm:$0xff]
        %v2272 = vld [vmem:[%s7 + $0x108] sm:$0xff]
        %v2273 = vld [vmem:[%s7 + $0x110] sm:$0xff]
        %v2274 = vld [vmem:[%s7 + $0x118] sm:$0xff]
        %v2275 = vld [vmem:[%s7 + $0x120] sm:$0xff]
        %v2276 = vld [vmem:[%s7 + $0x128] sm:$0xff]
        %v2277 = vld [vmem:[%s7 + $0x130] sm:$0xff]
        %v2278 = vld [vmem:[%s7 + $0x138] sm:$0xff]
        %v2279 = vld [vmem:[%s7 + $0x140] sm:$0xff]
        %v2280 = vld [vmem:[%s7 + $0x148] sm:$0xff]
        %v2281 = vld [vmem:[%s7 + $0x150] sm:$0xff]
        %v2282 = vld [vmem:[%s7 + $0x158] sm:$0xff]
        %v2283 = vld [vmem:[%s7 + $0x160] sm:$0xff]
        %v2284 = vld [vmem:[%s7 + $0x168] sm:$0xff]
        %v2285 = vld [vmem:[%s7 + $0x170] sm:$0xff]
        %v2286 = vld [vmem:[%s7 + $0x178] sm:$0xff]
        %v2287 = vld [vmem:[%s7 + $0x180] sm:$0xff]
        %v2288 = vld [vmem:[%s7 + $0x188] sm:$0xff]
        %v2289 = vld [vmem:[%s7 + $0x190] sm:$0xff]
        %v2290 = vld [vmem:[%s7 + $0x198] sm:$0xff]
        %v2291 = vld [vmem:[%s7 + $0x1a0] sm:$0xff]
        %v2292 = vld [vmem:[%s7 + $0x1a8] sm:$0xff]
        %v2293 = vld [vmem:[%s7 + $0x1b0] sm:$0xff]
        %v2294 = vld [vmem:[%s7 + $0x1b8] sm:$0xff]
        %v2295 = vld [vmem:[%s7 + $0x1c0] sm:$0xff]
        %v2296 = vld [vmem:[%s7 + $0x1c8] sm:$0xff]
        %v2297 = vld [vmem:[%s7 + $0x1d0] sm:$0xff]
        %v2298 = vld [vmem:[%s7 + $0x1d8] sm:$0xff]
        %v2299 = vld [vmem:[%s7 + $0x1e0] sm:$0xff]
        %v2300 = vld [vmem:[%s7 + $0x1e8] sm:$0xff]
        %v2301 = vld [vmem:[%s7 + $0x1f0] sm:$0xff]
        %v2302 = vld [vmem:[%s7 + $0x1f8] sm:$0xff]
        %v2303 = vld [vmem:[%s8] sm:$0xf]
        %v2305 = vlaneseq
        %v2306 = vshrl.u32 %v2305, 7
        %v2307 = vsub.s32 0, %v2306
        %v2308 = vrot.slane %v2303, %v2307
        %v2309 = vlaneseq
        %v2310 = vshrl.u32 %v2309, 7
        %v2311 = vsub.s32 1, %v2310
        %v2312 = vrot.slane %v2303, %v2311
        %v2313 = vlaneseq
        %v2314 = vshrl.u32 %v2313, 7
        %v2315 = vsub.s32 2, %v2314
        %v2316 = vrot.slane %v2303, %v2315
        %v2317 = vlaneseq
        %v2318 = vshrl.u32 %v2317, 7
        %v2319 = vsub.s32 3, %v2318
        %v2320 = vrot.slane %v2303, %v2319
        %v2389 = vunpack.c.l.b16 %v2239
        %v2390 = vunpack.c.h.b16 %v2239
        %v2391 = vunpack.c.l.b16 %v2240
        %v2392 = vunpack.c.h.b16 %v2240
        %v2393 = vunpack.c.l.b16 %v2241
        %v2394 = vunpack.c.h.b16 %v2241
        %v2395 = vunpack.c.l.b16 %v2242
        %v2396 = vunpack.c.h.b16 %v2242
        %v2397 = vunpack.c.l.b16 %v2243
        %v2398 = vunpack.c.h.b16 %v2243
        %v2399 = vunpack.c.l.b16 %v2244
        %v2400 = vunpack.c.h.b16 %v2244
        %v2401 = vunpack.c.l.b16 %v2245
        %v2402 = vunpack.c.h.b16 %v2245
        %v2403 = vunpack.c.l.b16 %v2246
        %v2404 = vunpack.c.h.b16 %v2246
        %v2405 = vunpack.c.l.b16 %v2247
        %v2406 = vunpack.c.h.b16 %v2247
        %v2407 = vunpack.c.l.b16 %v2248
        %v2408 = vunpack.c.h.b16 %v2248
        %v2409 = vunpack.c.l.b16 %v2249
        %v2410 = vunpack.c.h.b16 %v2249
        %v2411 = vunpack.c.l.b16 %v2250
        %v2412 = vunpack.c.h.b16 %v2250
        %v2413 = vunpack.c.l.b16 %v2251
        %v2414 = vunpack.c.h.b16 %v2251
        %v2415 = vunpack.c.l.b16 %v2252
        %v2416 = vunpack.c.h.b16 %v2252
        %v2417 = vunpack.c.l.b16 %v2253
        %v2418 = vunpack.c.h.b16 %v2253
        %v2419 = vunpack.c.l.b16 %v2254
        %v2420 = vunpack.c.h.b16 %v2254
        %v2421 = vunpack.c.l.b16 %v2255
        %v2422 = vunpack.c.h.b16 %v2255
        %v2423 = vunpack.c.l.b16 %v2256
        %v2424 = vunpack.c.h.b16 %v2256
        %v2425 = vunpack.c.l.b16 %v2257
        %v2426 = vunpack.c.h.b16 %v2257
        %v2427 = vunpack.c.l.b16 %v2258
        %v2428 = vunpack.c.h.b16 %v2258
        %v2429 = vunpack.c.l.b16 %v2259
        %v2430 = vunpack.c.h.b16 %v2259
        %v2431 = vunpack.c.l.b16 %v2260
        %v2432 = vunpack.c.h.b16 %v2260
        %v2433 = vunpack.c.l.b16 %v2261
        %v2434 = vunpack.c.h.b16 %v2261
        %v2435 = vunpack.c.l.b16 %v2262
        %v2436 = vunpack.c.h.b16 %v2262
        %v2437 = vunpack.c.l.b16 %v2263
        %v2438 = vunpack.c.h.b16 %v2263
        %v2439 = vunpack.c.l.b16 %v2264
        %v2440 = vunpack.c.h.b16 %v2264
        %v2441 = vunpack.c.l.b16 %v2265
        %v2442 = vunpack.c.h.b16 %v2265
        %v2443 = vunpack.c.l.b16 %v2266
        %v2444 = vunpack.c.h.b16 %v2266
        %v2445 = vunpack.c.l.b16 %v2267
        %v2446 = vunpack.c.h.b16 %v2267
        %v2447 = vunpack.c.l.b16 %v2268
        %v2448 = vunpack.c.h.b16 %v2268
        %v2449 = vunpack.c.l.b16 %v2269
        %v2450 = vunpack.c.h.b16 %v2269
        %v2451 = vunpack.c.l.b16 %v2270
        %v2452 = vunpack.c.h.b16 %v2270
        %v2453 = vunpack.c.l.b16 %v2271
        %v2454 = vunpack.c.h.b16 %v2271
        %v2455 = vunpack.c.l.b16 %v2272
        %v2456 = vunpack.c.h.b16 %v2272
        %v2457 = vunpack.c.l.b16 %v2273
        %v2458 = vunpack.c.h.b16 %v2273
        %v2459 = vunpack.c.l.b16 %v2274
        %v2460 = vunpack.c.h.b16 %v2274
        %v2461 = vunpack.c.l.b16 %v2275
        %v2462 = vunpack.c.h.b16 %v2275
        %v2463 = vunpack.c.l.b16 %v2276
        %v2464 = vunpack.c.h.b16 %v2276
        %v2465 = vunpack.c.l.b16 %v2277
        %v2466 = vunpack.c.h.b16 %v2277
        %v2467 = vunpack.c.l.b16 %v2278
        %v2468 = vunpack.c.h.b16 %v2278
        %v2469 = vunpack.c.l.b16 %v2279
        %v2470 = vunpack.c.h.b16 %v2279
        %v2471 = vunpack.c.l.b16 %v2280
        %v2472 = vunpack.c.h.b16 %v2280
        %v2473 = vunpack.c.l.b16 %v2281
        %v2474 = vunpack.c.h.b16 %v2281
        %v2475 = vunpack.c.l.b16 %v2282
        %v2476 = vunpack.c.h.b16 %v2282
        %v2477 = vunpack.c.l.b16 %v2283
        %v2478 = vunpack.c.h.b16 %v2283
        %v2479 = vunpack.c.l.b16 %v2284
        %v2480 = vunpack.c.h.b16 %v2284
        %v2481 = vunpack.c.l.b16 %v2285
        %v2482 = vunpack.c.h.b16 %v2285
        %v2483 = vunpack.c.l.b16 %v2286
        %v2484 = vunpack.c.h.b16 %v2286
        %v2485 = vunpack.c.l.b16 %v2287
        %v2486 = vunpack.c.h.b16 %v2287
        %v2487 = vunpack.c.l.b16 %v2288
        %v2488 = vunpack.c.h.b16 %v2288
        %v2489 = vunpack.c.l.b16 %v2289
        %v2490 = vunpack.c.h.b16 %v2289
        %v2491 = vunpack.c.l.b16 %v2290
        %v2492 = vunpack.c.h.b16 %v2290
        %v2493 = vunpack.c.l.b16 %v2291
        %v2494 = vunpack.c.h.b16 %v2291
        %v2495 = vunpack.c.l.b16 %v2292
        %v2496 = vunpack.c.h.b16 %v2292
        %v2497 = vunpack.c.l.b16 %v2293
        %v2498 = vunpack.c.h.b16 %v2293
        %v2499 = vunpack.c.l.b16 %v2294
        %v2500 = vunpack.c.h.b16 %v2294
        %v2501 = vunpack.c.l.b16 %v2295
        %v2502 = vunpack.c.h.b16 %v2295
        %v2503 = vunpack.c.l.b16 %v2296
        %v2504 = vunpack.c.h.b16 %v2296
        %v2505 = vunpack.c.l.b16 %v2297
        %v2506 = vunpack.c.h.b16 %v2297
        %v2507 = vunpack.c.l.b16 %v2298
        %v2508 = vunpack.c.h.b16 %v2298
        %v2509 = vunpack.c.l.b16 %v2299
        %v2510 = vunpack.c.h.b16 %v2299
        %v2511 = vunpack.c.l.b16 %v2300
        %v2512 = vunpack.c.h.b16 %v2300
        %v2513 = vunpack.c.l.b16 %v2301
        %v2514 = vunpack.c.h.b16 %v2301
        %v2515 = vunpack.c.l.b16 %v2302
        %v2516 = vunpack.c.h.b16 %v2302
        %v2517 = vpack.c.b16 %v2393, %v2389
        %v2518 = vpack.c.b16 %v2394, %v2390
        %v2519 = vpack.c.b16 %v2395, %v2391
        %v2520 = vpack.c.b16 %v2396, %v2392
        %v2521 = vpack.c.b16 %v2401, %v2397
        %v2522 = vpack.c.b16 %v2402, %v2398
        %v2523 = vpack.c.b16 %v2403, %v2399
        %v2524 = vpack.c.b16 %v2404, %v2400
        %v2525 = vpack.c.b16 %v2409, %v2405
        %v2526 = vpack.c.b16 %v2410, %v2406
        %v2527 = vpack.c.b16 %v2411, %v2407
        %v2528 = vpack.c.b16 %v2412, %v2408
        %v2529 = vpack.c.b16 %v2417, %v2413
        %v2530 = vpack.c.b16 %v2418, %v2414
        %v2531 = vpack.c.b16 %v2419, %v2415
        %v2532 = vpack.c.b16 %v2420, %v2416
        %v2533 = vpack.c.b16 %v2425, %v2421
        %v2534 = vpack.c.b16 %v2426, %v2422
        %v2535 = vpack.c.b16 %v2427, %v2423
        %v2536 = vpack.c.b16 %v2428, %v2424
        %v2537 = vpack.c.b16 %v2433, %v2429
        %v2538 = vpack.c.b16 %v2434, %v2430
        %v2539 = vpack.c.b16 %v2435, %v2431
        %v2540 = vpack.c.b16 %v2436, %v2432
        %v2541 = vpack.c.b16 %v2441, %v2437
        %v2542 = vpack.c.b16 %v2442, %v2438
        %v2543 = vpack.c.b16 %v2443, %v2439
        %v2544 = vpack.c.b16 %v2444, %v2440
        %v2545 = vpack.c.b16 %v2449, %v2445
        %v2546 = vpack.c.b16 %v2450, %v2446
        %v2547 = vpack.c.b16 %v2451, %v2447
        %v2548 = vpack.c.b16 %v2452, %v2448
        %v2549 = vpack.c.b16 %v2457, %v2453
        %v2550 = vpack.c.b16 %v2458, %v2454
        %v2551 = vpack.c.b16 %v2459, %v2455
        %v2552 = vpack.c.b16 %v2460, %v2456
        %v2553 = vpack.c.b16 %v2465, %v2461
        %v2554 = vpack.c.b16 %v2466, %v2462
        %v2555 = vpack.c.b16 %v2467, %v2463
        %v2556 = vpack.c.b16 %v2468, %v2464
        %v2557 = vpack.c.b16 %v2473, %v2469
        %v2558 = vpack.c.b16 %v2474, %v2470
        %v2559 = vpack.c.b16 %v2475, %v2471
        %v2560 = vpack.c.b16 %v2476, %v2472
        %v2561 = vpack.c.b16 %v2481, %v2477
        %v2562 = vpack.c.b16 %v2482, %v2478
        %v2563 = vpack.c.b16 %v2483, %v2479
        %v2564 = vpack.c.b16 %v2484, %v2480
        %v2565 = vpack.c.b16 %v2489, %v2485
        %v2566 = vpack.c.b16 %v2490, %v2486
        %v2567 = vpack.c.b16 %v2491, %v2487
        %v2568 = vpack.c.b16 %v2492, %v2488
        %v2569 = vpack.c.b16 %v2497, %v2493
        %v2570 = vpack.c.b16 %v2498, %v2494
        %v2571 = vpack.c.b16 %v2499, %v2495
        %v2572 = vpack.c.b16 %v2500, %v2496
        %v2573 = vpack.c.b16 %v2505, %v2501
        %v2574 = vpack.c.b16 %v2506, %v2502
        %v2575 = vpack.c.b16 %v2507, %v2503
        %v2576 = vpack.c.b16 %v2508, %v2504
        %v2577 = vpack.c.b16 %v2513, %v2509
        %v2578 = vpack.c.b16 %v2514, %v2510
        %v2579 = vpack.c.b16 %v2515, %v2511
        %v2580 = vpack.c.b16 %v2516, %v2512
        %2645 = vmatprep.subr.bf16.mxu0 %v2546
        %2646 = vmatpush1.bf16.msra.mxu0 %v2545
        %2647 = vmatprep.subr.bf16.mxu0 %v2542
        %2648 = vmatpush1.bf16.msra.mxu0 %v2541
        %2649 = vmatprep.subr.bf16.mxu0 %v2538
        %2650 = vmatpush1.bf16.msra.mxu0 %v2537
        %2651 = vmatprep.subr.bf16.mxu0 %v2534
        %2652 = vmatpush1.bf16.msra.mxu0 %v2533
        %2653 = vmatprep.subr.bf16.mxu0 %v2530
        %2654 = vmatpush1.bf16.msra.mxu0 %v2529
        %2655 = vmatprep.subr.bf16.mxu0 %v2526
        %2656 = vmatpush1.bf16.msra.mxu0 %v2525
        %2657 = vmatprep.subr.bf16.mxu0 %v2522
        %2658 = vmatpush1.bf16.msra.mxu0 %v2521
        %2659 = vmatprep.subr.bf16.mxu0 %v2518
        %2660 = vmatpush1.bf16.msra.mxu0 %v2517
        %2661 = vmatprep.subr.bf16.mxu0 %v2578
        %2662 = vmatpush2.bf16.msra.mxu0 %v2577
        %2663 = vmatprep.subr.bf16.mxu0 %v2574
        %2664 = vmatpush2.bf16.msra.mxu0 %v2573
        %2665 = vmatprep.subr.bf16.mxu0 %v2570
        %2666 = vmatpush2.bf16.msra.mxu0 %v2569
        %2667 = vmatprep.subr.bf16.mxu0 %v2566
        %2668 = vmatpush2.bf16.msra.mxu0 %v2565
        %2669 = vmatprep.subr.bf16.mxu0 %v2562
        %2670 = vmatpush2.bf16.msra.mxu0 %v2561
        %2671 = vmatprep.subr.bf16.mxu0 %v2558
        %2672 = vmatpush2.bf16.msra.mxu0 %v2557
        %2673 = vmatprep.subr.bf16.mxu0 %v2554
        %2674 = vmatpush2.bf16.msra.mxu0 %v2553
        %2675 = vmatprep.subr.bf16.mxu0 %v2550
        %2676 = vmatpush2.bf16.msra.mxu0 %v2549
        %2677 = vmatprep.mubr.bf16.mxu0 %v2176
        %2678 = vmatmul.mubr.bf16.gmra.mxu0 %v2175
        %v2679 = vpop.f32.mrf.mxu0
        %v2680 = vadd.f32 %v2308, %v2679
        %v2681 = vpop.f32.mrf.mxu0
        %v2682 = vadd.f32 %v2312, %v2681
        %v2683 = vpop.f32.mrf.mxu0
        %v2684 = vadd.f32 %v2308, %v2683
        %v2685 = vpop.f32.mrf.mxu0
        %v2686 = vadd.f32 %v2312, %v2685
        %2687 = vmatprep.mubr.bf16.mxu0 %v2178
        %2688 = vmatmul.mubr.bf16.gmra.mxu0 %v2177
        %v2689 = vpop.f32.mrf.mxu0
        %v2690 = vadd.f32 %v2308, %v2689
        %v2691 = vpop.f32.mrf.mxu0
        %v2692 = vadd.f32 %v2312, %v2691
        %v2693 = vpop.f32.mrf.mxu0
        %v2694 = vadd.f32 %v2308, %v2693
        %v2695 = vpop.f32.mrf.mxu0
        %v2696 = vadd.f32 %v2312, %v2695
        %2697 = vmatprep.mubr.bf16.mxu0 %v2180
        %2698 = vmatmul.mubr.bf16.gmra.mxu0 %v2179
        %v2699 = vpop.f32.mrf.mxu0
        %v2700 = vadd.f32 %v2308, %v2699
        %v2701 = vpop.f32.mrf.mxu0
        %v2702 = vadd.f32 %v2312, %v2701
        %v2703 = vpop.f32.mrf.mxu0
        %v2704 = vadd.f32 %v2308, %v2703
        %v2705 = vpop.f32.mrf.mxu0
        %v2706 = vadd.f32 %v2312, %v2705
        %2707 = vmatprep.mubr.bf16.mxu0 %v2182
        %2708 = vmatmul.mubr.bf16.gmra.mxu0 %v2181
        %v2709 = vpop.f32.mrf.mxu0
        %v2710 = vadd.f32 %v2308, %v2709
        %v2711 = vpop.f32.mrf.mxu0
        %v2712 = vadd.f32 %v2312, %v2711
        %v2713 = vpop.f32.mrf.mxu0
        %v2714 = vadd.f32 %v2308, %v2713
        %v2715 = vpop.f32.mrf.mxu0
        %v2716 = vadd.f32 %v2312, %v2715
        %2717 = vmatprep.mubr.bf16.mxu0 %v2184
        %2718 = vmatmul.mubr.bf16.gmra.mxu0 %v2183
        %v2719 = vpop.f32.mrf.mxu0
        %v2720 = vadd.f32 %v2308, %v2719
        %v2721 = vpop.f32.mrf.mxu0
        %v2722 = vadd.f32 %v2312, %v2721
        %v2723 = vpop.f32.mrf.mxu0
        %v2724 = vadd.f32 %v2308, %v2723
        %v2725 = vpop.f32.mrf.mxu0
        %v2726 = vadd.f32 %v2312, %v2725
        %2727 = vmatprep.mubr.bf16.mxu0 %v2186
        %2728 = vmatmul.mubr.bf16.gmra.mxu0 %v2185
        %v2729 = vpop.f32.mrf.mxu0
        %v2730 = vadd.f32 %v2308, %v2729
        %v2731 = vpop.f32.mrf.mxu0
        %v2732 = vadd.f32 %v2312, %v2731
        %v2733 = vpop.f32.mrf.mxu0
        %v2734 = vadd.f32 %v2308, %v2733
        %v2735 = vpop.f32.mrf.mxu0
        %v2736 = vadd.f32 %v2312, %v2735
        %2737 = vmatprep.mubr.bf16.mxu0 %v2188
        %2738 = vmatmul.mubr.bf16.gmra.mxu0 %v2187
        %v2739 = vpop.f32.mrf.mxu0
        %v2740 = vadd.f32 %v2308, %v2739
        %v2741 = vpop.f32.mrf.mxu0
        %v2742 = vadd.f32 %v2312, %v2741
        %v2743 = vpop.f32.mrf.mxu0
        %v2744 = vadd.f32 %v2308, %v2743
        %v2745 = vpop.f32.mrf.mxu0
        %v2746 = vadd.f32 %v2312, %v2745
        %2747 = vmatprep.mubr.bf16.mxu0 %v2190
        %2748 = vmatmul.mubr.bf16.gmra.mxu0 %v2189
        %v2749 = vpop.f32.mrf.mxu0
        %v2750 = vadd.f32 %v2308, %v2749
        %v2751 = vpop.f32.mrf.mxu0
        %v2752 = vadd.f32 %v2312, %v2751
        %v2753 = vpop.f32.mrf.mxu0
        %v2754 = vadd.f32 %v2308, %v2753
        %v2755 = vpop.f32.mrf.mxu0
        %v2756 = vadd.f32 %v2312, %v2755
        %2757 = vmatprep.mubr.bf16.mxu0 %v2192
        %2758 = vmatmul.mubr.bf16.gmra.mxu0 %v2191
        %v2759 = vpop.f32.mrf.mxu0
        %v2760 = vadd.f32 %v2308, %v2759
        %v2761 = vpop.f32.mrf.mxu0
        %v2762 = vadd.f32 %v2312, %v2761
        %v2763 = vpop.f32.mrf.mxu0
        %v2764 = vadd.f32 %v2308, %v2763
        %v2765 = vpop.f32.mrf.mxu0
        %v2766 = vadd.f32 %v2312, %v2765
        %2767 = vmatprep.mubr.bf16.mxu0 %v2194
        %2768 = vmatmul.mubr.bf16.gmra.mxu0 %v2193
        %v2769 = vpop.f32.mrf.mxu0
        %v2770 = vadd.f32 %v2308, %v2769
        %v2771 = vpop.f32.mrf.mxu0
        %v2772 = vadd.f32 %v2312, %v2771
        %v2773 = vpop.f32.mrf.mxu0
        %v2774 = vadd.f32 %v2308, %v2773
        %v2775 = vpop.f32.mrf.mxu0
        %v2776 = vadd.f32 %v2312, %v2775
        %2777 = vmatprep.mubr.bf16.mxu0 %v2196
        %2778 = vmatmul.mubr.bf16.gmra.mxu0 %v2195
        %v2779 = vpop.f32.mrf.mxu0
        %v2780 = vadd.f32 %v2308, %v2779
        %v2781 = vpop.f32.mrf.mxu0
        %v2782 = vadd.f32 %v2312, %v2781
        %v2783 = vpop.f32.mrf.mxu0
        %v2784 = vadd.f32 %v2308, %v2783
        %v2785 = vpop.f32.mrf.mxu0
        %v2786 = vadd.f32 %v2312, %v2785
        %2787 = vmatprep.mubr.bf16.mxu0 %v2198
        %2788 = vmatmul.mubr.bf16.gmra.mxu0 %v2197
        %v2789 = vpop.f32.mrf.mxu0
        %v2790 = vadd.f32 %v2308, %v2789
        %v2791 = vpop.f32.mrf.mxu0
        %v2792 = vadd.f32 %v2312, %v2791
        %v2793 = vpop.f32.mrf.mxu0
        %v2794 = vadd.f32 %v2308, %v2793
        %v2795 = vpop.f32.mrf.mxu0
        %v2796 = vadd.f32 %v2312, %v2795
        %2797 = vmatprep.mubr.bf16.mxu0 %v2200
        %2798 = vmatmul.mubr.bf16.gmra.mxu0 %v2199
        %v2799 = vpop.f32.mrf.mxu0
        %v2800 = vadd.f32 %v2308, %v2799
        %v2801 = vpop.f32.mrf.mxu0
        %v2802 = vadd.f32 %v2312, %v2801
        %v2803 = vpop.f32.mrf.mxu0
        %v2804 = vadd.f32 %v2308, %v2803
        %v2805 = vpop.f32.mrf.mxu0
        %v2806 = vadd.f32 %v2312, %v2805
        %2807 = vmatprep.mubr.bf16.mxu0 %v2202
        %2808 = vmatmul.mubr.bf16.gmra.mxu0 %v2201
        %v2809 = vpop.f32.mrf.mxu0
        %v2810 = vadd.f32 %v2308, %v2809
        %v2811 = vpop.f32.mrf.mxu0
        %v2812 = vadd.f32 %v2312, %v2811
        %v2813 = vpop.f32.mrf.mxu0
        %v2814 = vadd.f32 %v2308, %v2813
        %v2815 = vpop.f32.mrf.mxu0
        %v2816 = vadd.f32 %v2312, %v2815
        %2817 = vmatprep.mubr.bf16.mxu0 %v2204
        %2818 = vmatmul.mubr.bf16.gmra.mxu0 %v2203
        %v2819 = vpop.f32.mrf.mxu0
        %v2820 = vadd.f32 %v2308, %v2819
        %v2821 = vpop.f32.mrf.mxu0
        %v2822 = vadd.f32 %v2312, %v2821
        %v2823 = vpop.f32.mrf.mxu0
        %v2824 = vadd.f32 %v2308, %v2823
        %v2825 = vpop.f32.mrf.mxu0
        %v2826 = vadd.f32 %v2312, %v2825
        %2827 = vmatprep.mubr.bf16.mxu0 %v2206
        %2828 = vmatmul.mubr.bf16.gmra.mxu0 %v2205
        %v2829 = vpop.f32.mrf.mxu0
        %v2830 = vadd.f32 %v2308, %v2829
        %v2831 = vpop.f32.mrf.mxu0
        %v2832 = vadd.f32 %v2312, %v2831
        %v2833 = vpop.f32.mrf.mxu0
        %v2834 = vadd.f32 %v2308, %v2833
        %v2835 = vpop.f32.mrf.mxu0
        %v2836 = vadd.f32 %v2312, %v2835
        %2837 = vmatprep.mubr.bf16.mxu0 %v2208
        %2838 = vmatmul.mubr.bf16.gmra.mxu0 %v2207
        %v2839 = vpop.f32.mrf.mxu0
        %v2840 = vadd.f32 %v2308, %v2839
        %v2841 = vpop.f32.mrf.mxu0
        %v2842 = vadd.f32 %v2312, %v2841
        %v2843 = vpop.f32.mrf.mxu0
        %v2844 = vadd.f32 %v2308, %v2843
        %v2845 = vpop.f32.mrf.mxu0
        %v2846 = vadd.f32 %v2312, %v2845
        %2847 = vmatprep.mubr.bf16.mxu0 %v2210
        %2848 = vmatmul.mubr.bf16.gmra.mxu0 %v2209
        %v2849 = vpop.f32.mrf.mxu0
        %v2850 = vadd.f32 %v2308, %v2849
        %v2851 = vpop.f32.mrf.mxu0
        %v2852 = vadd.f32 %v2312, %v2851
        %v2853 = vpop.f32.mrf.mxu0
        %v2854 = vadd.f32 %v2308, %v2853
        %v2855 = vpop.f32.mrf.mxu0
        %v2856 = vadd.f32 %v2312, %v2855
        %2857 = vmatprep.mubr.bf16.mxu0 %v2212
        %2858 = vmatmul.mubr.bf16.gmra.mxu0 %v2211
        %v2859 = vpop.f32.mrf.mxu0
        %v2860 = vadd.f32 %v2308, %v2859
        %v2861 = vpop.f32.mrf.mxu0
        %v2862 = vadd.f32 %v2312, %v2861
        %v2863 = vpop.f32.mrf.mxu0
        %v2864 = vadd.f32 %v2308, %v2863
        %v2865 = vpop.f32.mrf.mxu0
        %v2866 = vadd.f32 %v2312, %v2865
        %2867 = vmatprep.mubr.bf16.mxu0 %v2214
        %2868 = vmatmul.mubr.bf16.gmra.mxu0 %v2213
        %v2869 = vpop.f32.mrf.mxu0
        %v2870 = vadd.f32 %v2308, %v2869
        %v2871 = vpop.f32.mrf.mxu0
        %v2872 = vadd.f32 %v2312, %v2871
        %v2873 = vpop.f32.mrf.mxu0
        %v2874 = vadd.f32 %v2308, %v2873
        %v2875 = vpop.f32.mrf.mxu0
        %v2876 = vadd.f32 %v2312, %v2875
        %2877 = vmatprep.mubr.bf16.mxu0 %v2216
        %2878 = vmatmul.mubr.bf16.gmra.mxu0 %v2215
        %v2879 = vpop.f32.mrf.mxu0
        %v2880 = vadd.f32 %v2308, %v2879
        %v2881 = vpop.f32.mrf.mxu0
        %v2882 = vadd.f32 %v2312, %v2881
        %v2883 = vpop.f32.mrf.mxu0
        %v2884 = vadd.f32 %v2308, %v2883
        %v2885 = vpop.f32.mrf.mxu0
        %v2886 = vadd.f32 %v2312, %v2885
        %2887 = vmatprep.mubr.bf16.mxu0 %v2218
        %2888 = vmatmul.mubr.bf16.gmra.mxu0 %v2217
        %v2889 = vpop.f32.mrf.mxu0
        %v2890 = vadd.f32 %v2308, %v2889
        %v2891 = vpop.f32.mrf.mxu0
        %v2892 = vadd.f32 %v2312, %v2891
        %v2893 = vpop.f32.mrf.mxu0
        %v2894 = vadd.f32 %v2308, %v2893
        %v2895 = vpop.f32.mrf.mxu0
        %v2896 = vadd.f32 %v2312, %v2895
        %2897 = vmatprep.mubr.bf16.mxu0 %v2220
        %2898 = vmatmul.mubr.bf16.gmra.mxu0 %v2219
        %v2899 = vpop.f32.mrf.mxu0
        %v2900 = vadd.f32 %v2308, %v2899
        %v2901 = vpop.f32.mrf.mxu0
        %v2902 = vadd.f32 %v2312, %v2901
        %v2903 = vpop.f32.mrf.mxu0
        %v2904 = vadd.f32 %v2308, %v2903
        %v2905 = vpop.f32.mrf.mxu0
        %v2906 = vadd.f32 %v2312, %v2905
        %2907 = vmatprep.mubr.bf16.mxu0 %v2222
        %2908 = vmatmul.mubr.bf16.gmra.mxu0 %v2221
        %v2909 = vpop.f32.mrf.mxu0
        %v2910 = vadd.f32 %v2308, %v2909
        %v2911 = vpop.f32.mrf.mxu0
        %v2912 = vadd.f32 %v2312, %v2911
        %v2913 = vpop.f32.mrf.mxu0
        %v2914 = vadd.f32 %v2308, %v2913
        %v2915 = vpop.f32.mrf.mxu0
        %v2916 = vadd.f32 %v2312, %v2915
        %2917 = vmatprep.mubr.bf16.mxu0 %v2224
        %2918 = vmatmul.mubr.bf16.gmra.mxu0 %v2223
        %v2919 = vpop.f32.mrf.mxu0
        %v2920 = vadd.f32 %v2308, %v2919
        %v2921 = vpop.f32.mrf.mxu0
        %v2922 = vadd.f32 %v2312, %v2921
        %v2923 = vpop.f32.mrf.mxu0
        %v2924 = vadd.f32 %v2308, %v2923
        %v2925 = vpop.f32.mrf.mxu0
        %v2926 = vadd.f32 %v2312, %v2925
        %2927 = vmatprep.mubr.bf16.mxu0 %v2226
        %2928 = vmatmul.mubr.bf16.gmra.mxu0 %v2225
        %v2929 = vpop.f32.mrf.mxu0
        %v2930 = vadd.f32 %v2308, %v2929
        %v2931 = vpop.f32.mrf.mxu0
        %v2932 = vadd.f32 %v2312, %v2931
        %v2933 = vpop.f32.mrf.mxu0
        %v2934 = vadd.f32 %v2308, %v2933
        %v2935 = vpop.f32.mrf.mxu0
        %v2936 = vadd.f32 %v2312, %v2935
        %2937 = vmatprep.mubr.bf16.mxu0 %v2228
        %2938 = vmatmul.mubr.bf16.gmra.mxu0 %v2227
        %v2939 = vpop.f32.mrf.mxu0
        %v2940 = vadd.f32 %v2308, %v2939
        %v2941 = vpop.f32.mrf.mxu0
        %v2942 = vadd.f32 %v2312, %v2941
        %v2943 = vpop.f32.mrf.mxu0
        %v2944 = vadd.f32 %v2308, %v2943
        %v2945 = vpop.f32.mrf.mxu0
        %v2946 = vadd.f32 %v2312, %v2945
        %2947 = vmatprep.mubr.bf16.mxu0 %v2230
        %2948 = vmatmul.mubr.bf16.gmra.mxu0 %v2229
        %v2949 = vpop.f32.mrf.mxu0
        %v2950 = vadd.f32 %v2308, %v2949
        %v2951 = vpop.f32.mrf.mxu0
        %v2952 = vadd.f32 %v2312, %v2951
        %v2953 = vpop.f32.mrf.mxu0
        %v2954 = vadd.f32 %v2308, %v2953
        %v2955 = vpop.f32.mrf.mxu0
        %v2956 = vadd.f32 %v2312, %v2955
        %2957 = vmatprep.mubr.bf16.mxu0 %v2232
        %2958 = vmatmul.mubr.bf16.gmra.mxu0 %v2231
        %v2959 = vpop.f32.mrf.mxu0
        %v2960 = vadd.f32 %v2308, %v2959
        %v2961 = vpop.f32.mrf.mxu0
        %v2962 = vadd.f32 %v2312, %v2961
        %v2963 = vpop.f32.mrf.mxu0
        %v2964 = vadd.f32 %v2308, %v2963
        %v2965 = vpop.f32.mrf.mxu0
        %v2966 = vadd.f32 %v2312, %v2965
        %2967 = vmatprep.mubr.bf16.mxu0 %v2234
        %2968 = vmatmul.mubr.bf16.gmra.mxu0 %v2233
        %v2969 = vpop.f32.mrf.mxu0
        %v2970 = vadd.f32 %v2308, %v2969
        %v2971 = vpop.f32.mrf.mxu0
        %v2972 = vadd.f32 %v2312, %v2971
        %v2973 = vpop.f32.mrf.mxu0
        %v2974 = vadd.f32 %v2308, %v2973
        %v2975 = vpop.f32.mrf.mxu0
        %v2976 = vadd.f32 %v2312, %v2975
        %2977 = vmatprep.mubr.bf16.mxu0 %v2236
        %2978 = vmatmul.mubr.bf16.gmra.mxu0 %v2235
        %v2979 = vpop.f32.mrf.mxu0
        %v2980 = vadd.f32 %v2308, %v2979
        %v2981 = vpop.f32.mrf.mxu0
        %v2982 = vadd.f32 %v2312, %v2981
        %v2983 = vpop.f32.mrf.mxu0
        %v2984 = vadd.f32 %v2308, %v2983
        %v2985 = vpop.f32.mrf.mxu0
        %v2986 = vadd.f32 %v2312, %v2985
        %2987 = vmatprep.mubr.bf16.mxu0 %v2238
        %2988 = vmatmul.mubr.bf16.gmra.mxu0 %v2237
        %v2989 = vpop.f32.mrf.mxu0
        %v2990 = vadd.f32 %v2308, %v2989
        %v2991 = vpop.f32.mrf.mxu0
        %v2992 = vadd.f32 %v2312, %v2991
        %v2993 = vpop.f32.mrf.mxu0
        %v2994 = vadd.f32 %v2308, %v2993
        %v2995 = vpop.f32.mrf.mxu0
        %v2996 = vadd.f32 %v2312, %v2995
        %2997 = vdwg.mxu0
        %2998 = vmatprep.subr.bf16.mxu0 %v2548
        %2999 = vmatpush1.bf16.msra.mxu0 %v2547
        %3000 = vmatprep.subr.bf16.mxu0 %v2544
        %3001 = vmatpush1.bf16.msra.mxu0 %v2543
        %3002 = vmatprep.subr.bf16.mxu0 %v2540
        %3003 = vmatpush1.bf16.msra.mxu0 %v2539
        %3004 = vmatprep.subr.bf16.mxu0 %v2536
        %3005 = vmatpush1.bf16.msra.mxu0 %v2535
        %3006 = vmatprep.subr.bf16.mxu0 %v2532
        %3007 = vmatpush1.bf16.msra.mxu0 %v2531
        %3008 = vmatprep.subr.bf16.mxu0 %v2528
        %3009 = vmatpush1.bf16.msra.mxu0 %v2527
        %3010 = vmatprep.subr.bf16.mxu0 %v2524
        %3011 = vmatpush1.bf16.msra.mxu0 %v2523
        %3012 = vmatprep.subr.bf16.mxu0 %v2520
        %3013 = vmatpush1.bf16.msra.mxu0 %v2519
        %3014 = vmatprep.subr.bf16.mxu0 %v2580
        %3015 = vmatpush2.bf16.msra.mxu0 %v2579
        %3016 = vmatprep.subr.bf16.mxu0 %v2576
        %3017 = vmatpush2.bf16.msra.mxu0 %v2575
        %3018 = vmatprep.subr.bf16.mxu0 %v2572
        %3019 = vmatpush2.bf16.msra.mxu0 %v2571
        %3020 = vmatprep.subr.bf16.mxu0 %v2568
        %3021 = vmatpush2.bf16.msra.mxu0 %v2567
        %3022 = vmatprep.subr.bf16.mxu0 %v2564
        %3023 = vmatpush2.bf16.msra.mxu0 %v2563
        %3024 = vmatprep.subr.bf16.mxu0 %v2560
        %3025 = vmatpush2.bf16.msra.mxu0 %v2559
        %3026 = vmatprep.subr.bf16.mxu0 %v2556
        %3027 = vmatpush2.bf16.msra.mxu0 %v2555
        %3028 = vmatprep.subr.bf16.mxu0 %v2552
        %3029 = vmatpush2.bf16.msra.mxu0 %v2551
        %3030 = vmatprep.mubr.bf16.mxu0 %v2176
        %3031 = vmatmul.mubr.bf16.gmra.mxu0 %v2175
        %v3032 = vpop.f32.mrf.mxu0
        %v3033 = vadd.f32 %v2316, %v3032
        %v3034 = vpop.f32.mrf.mxu0
        %v3035 = vadd.f32 %v2320, %v3034
        %v3036 = vpop.f32.mrf.mxu0
        %v3037 = vadd.f32 %v2316, %v3036
        %v3038 = vpop.f32.mrf.mxu0
        %v3039 = vadd.f32 %v2320, %v3038
        %3040 = vmatprep.mubr.bf16.mxu0 %v2178
        %3041 = vmatmul.mubr.bf16.gmra.mxu0 %v2177
        %v3042 = vpop.f32.mrf.mxu0
        %v3043 = vadd.f32 %v2316, %v3042
        %v3044 = vpop.f32.mrf.mxu0
        %v3045 = vadd.f32 %v2320, %v3044
        %v3046 = vpop.f32.mrf.mxu0
        %v3047 = vadd.f32 %v2316, %v3046
        %v3048 = vpop.f32.mrf.mxu0
        %v3049 = vadd.f32 %v2320, %v3048
        %3050 = vmatprep.mubr.bf16.mxu0 %v2180
        %3051 = vmatmul.mubr.bf16.gmra.mxu0 %v2179
        %v3052 = vpop.f32.mrf.mxu0
        %v3053 = vadd.f32 %v2316, %v3052
        %v3054 = vpop.f32.mrf.mxu0
        %v3055 = vadd.f32 %v2320, %v3054
        %v3056 = vpop.f32.mrf.mxu0
        %v3057 = vadd.f32 %v2316, %v3056
        %v3058 = vpop.f32.mrf.mxu0
        %v3059 = vadd.f32 %v2320, %v3058
        %3060 = vmatprep.mubr.bf16.mxu0 %v2182
        %3061 = vmatmul.mubr.bf16.gmra.mxu0 %v2181
        %v3062 = vpop.f32.mrf.mxu0
        %v3063 = vadd.f32 %v2316, %v3062
        %v3064 = vpop.f32.mrf.mxu0
        %v3065 = vadd.f32 %v2320, %v3064
        %v3066 = vpop.f32.mrf.mxu0
        %v3067 = vadd.f32 %v2316, %v3066
        %v3068 = vpop.f32.mrf.mxu0
        %v3069 = vadd.f32 %v2320, %v3068
        %3070 = vmatprep.mubr.bf16.mxu0 %v2184
        %3071 = vmatmul.mubr.bf16.gmra.mxu0 %v2183
        %v3072 = vpop.f32.mrf.mxu0
        %v3073 = vadd.f32 %v2316, %v3072
        %v3074 = vpop.f32.mrf.mxu0
        %v3075 = vadd.f32 %v2320, %v3074
        %v3076 = vpop.f32.mrf.mxu0
        %v3077 = vadd.f32 %v2316, %v3076
        %v3078 = vpop.f32.mrf.mxu0
        %v3079 = vadd.f32 %v2320, %v3078
        %3080 = vmatprep.mubr.bf16.mxu0 %v2186
        %3081 = vmatmul.mubr.bf16.gmra.mxu0 %v2185
        %v3082 = vpop.f32.mrf.mxu0
        %v3083 = vadd.f32 %v2316, %v3082
        %v3084 = vpop.f32.mrf.mxu0
        %v3085 = vadd.f32 %v2320, %v3084
        %v3086 = vpop.f32.mrf.mxu0
        %v3087 = vadd.f32 %v2316, %v3086
        %v3088 = vpop.f32.mrf.mxu0
        %v3089 = vadd.f32 %v2320, %v3088
        %3090 = vmatprep.mubr.bf16.mxu0 %v2188
        %3091 = vmatmul.mubr.bf16.gmra.mxu0 %v2187
        %v3092 = vpop.f32.mrf.mxu0
        %v3093 = vadd.f32 %v2316, %v3092
        %v3094 = vpop.f32.mrf.mxu0
        %v3095 = vadd.f32 %v2320, %v3094
        %v3096 = vpop.f32.mrf.mxu0
        %v3097 = vadd.f32 %v2316, %v3096
        %v3098 = vpop.f32.mrf.mxu0
        %v3099 = vadd.f32 %v2320, %v3098
        %3100 = vmatprep.mubr.bf16.mxu0 %v2190
        %3101 = vmatmul.mubr.bf16.gmra.mxu0 %v2189
        %v3102 = vpop.f32.mrf.mxu0
        %v3103 = vadd.f32 %v2316, %v3102
        %v3104 = vpop.f32.mrf.mxu0
        %v3105 = vadd.f32 %v2320, %v3104
        %v3106 = vpop.f32.mrf.mxu0
        %v3107 = vadd.f32 %v2316, %v3106
        %v3108 = vpop.f32.mrf.mxu0
        %v3109 = vadd.f32 %v2320, %v3108
        %3110 = vmatprep.mubr.bf16.mxu0 %v2192
        %3111 = vmatmul.mubr.bf16.gmra.mxu0 %v2191
        %v3112 = vpop.f32.mrf.mxu0
        %v3113 = vadd.f32 %v2316, %v3112
        %v3114 = vpop.f32.mrf.mxu0
        %v3115 = vadd.f32 %v2320, %v3114
        %v3116 = vpop.f32.mrf.mxu0
        %v3117 = vadd.f32 %v2316, %v3116
        %v3118 = vpop.f32.mrf.mxu0
        %v3119 = vadd.f32 %v2320, %v3118
        %3120 = vmatprep.mubr.bf16.mxu0 %v2194
        %3121 = vmatmul.mubr.bf16.gmra.mxu0 %v2193
        %v3122 = vpop.f32.mrf.mxu0
        %v3123 = vadd.f32 %v2316, %v3122
        %v3124 = vpop.f32.mrf.mxu0
        %v3125 = vadd.f32 %v2320, %v3124
        %v3126 = vpop.f32.mrf.mxu0
        %v3127 = vadd.f32 %v2316, %v3126
        %v3128 = vpop.f32.mrf.mxu0
        %v3129 = vadd.f32 %v2320, %v3128
        %3130 = vmatprep.mubr.bf16.mxu0 %v2196
        %3131 = vmatmul.mubr.bf16.gmra.mxu0 %v2195
        %v3132 = vpop.f32.mrf.mxu0
        %v3133 = vadd.f32 %v2316, %v3132
        %v3134 = vpop.f32.mrf.mxu0
        %v3135 = vadd.f32 %v2320, %v3134
        %v3136 = vpop.f32.mrf.mxu0
        %v3137 = vadd.f32 %v2316, %v3136
        %v3138 = vpop.f32.mrf.mxu0
        %v3139 = vadd.f32 %v2320, %v3138
        %3140 = vmatprep.mubr.bf16.mxu0 %v2198
        %3141 = vmatmul.mubr.bf16.gmra.mxu0 %v2197
        %v3142 = vpop.f32.mrf.mxu0
        %v3143 = vadd.f32 %v2316, %v3142
        %v3144 = vpop.f32.mrf.mxu0
        %v3145 = vadd.f32 %v2320, %v3144
        %v3146 = vpop.f32.mrf.mxu0
        %v3147 = vadd.f32 %v2316, %v3146
        %v3148 = vpop.f32.mrf.mxu0
        %v3149 = vadd.f32 %v2320, %v3148
        %3150 = vmatprep.mubr.bf16.mxu0 %v2200
        %3151 = vmatmul.mubr.bf16.gmra.mxu0 %v2199
        %v3152 = vpop.f32.mrf.mxu0
        %v3153 = vadd.f32 %v2316, %v3152
        %v3154 = vpop.f32.mrf.mxu0
        %v3155 = vadd.f32 %v2320, %v3154
        %v3156 = vpop.f32.mrf.mxu0
        %v3157 = vadd.f32 %v2316, %v3156
        %v3158 = vpop.f32.mrf.mxu0
        %v3159 = vadd.f32 %v2320, %v3158
        %3160 = vmatprep.mubr.bf16.mxu0 %v2202
        %3161 = vmatmul.mubr.bf16.gmra.mxu0 %v2201
        %v3162 = vpop.f32.mrf.mxu0
        %v3163 = vadd.f32 %v2316, %v3162
        %v3164 = vpop.f32.mrf.mxu0
        %v3165 = vadd.f32 %v2320, %v3164
        %v3166 = vpop.f32.mrf.mxu0
        %v3167 = vadd.f32 %v2316, %v3166
        %v3168 = vpop.f32.mrf.mxu0
        %v3169 = vadd.f32 %v2320, %v3168
        %3170 = vmatprep.mubr.bf16.mxu0 %v2204
        %3171 = vmatmul.mubr.bf16.gmra.mxu0 %v2203
        %v3172 = vpop.f32.mrf.mxu0
        %v3173 = vadd.f32 %v2316, %v3172
        %v3174 = vpop.f32.mrf.mxu0
        %v3175 = vadd.f32 %v2320, %v3174
        %v3176 = vpop.f32.mrf.mxu0
        %v3177 = vadd.f32 %v2316, %v3176
        %v3178 = vpop.f32.mrf.mxu0
        %v3179 = vadd.f32 %v2320, %v3178
        %3180 = vmatprep.mubr.bf16.mxu0 %v2206
        %3181 = vmatmul.mubr.bf16.gmra.mxu0 %v2205
        %v3182 = vpop.f32.mrf.mxu0
        %v3183 = vadd.f32 %v2316, %v3182
        %v3184 = vpop.f32.mrf.mxu0
        %v3185 = vadd.f32 %v2320, %v3184
        %v3186 = vpop.f32.mrf.mxu0
        %v3187 = vadd.f32 %v2316, %v3186
        %v3188 = vpop.f32.mrf.mxu0
        %v3189 = vadd.f32 %v2320, %v3188
        %3190 = vmatprep.mubr.bf16.mxu0 %v2208
        %3191 = vmatmul.mubr.bf16.gmra.mxu0 %v2207
        %v3192 = vpop.f32.mrf.mxu0
        %v3193 = vadd.f32 %v2316, %v3192
        %v3194 = vpop.f32.mrf.mxu0
        %v3195 = vadd.f32 %v2320, %v3194
        %v3196 = vpop.f32.mrf.mxu0
        %v3197 = vadd.f32 %v2316, %v3196
        %v3198 = vpop.f32.mrf.mxu0
        %v3199 = vadd.f32 %v2320, %v3198
        %3200 = vmatprep.mubr.bf16.mxu0 %v2210
        %3201 = vmatmul.mubr.bf16.gmra.mxu0 %v2209
        %v3202 = vpop.f32.mrf.mxu0
        %v3203 = vadd.f32 %v2316, %v3202
        %v3204 = vpop.f32.mrf.mxu0
        %v3205 = vadd.f32 %v2320, %v3204
        %v3206 = vpop.f32.mrf.mxu0
        %v3207 = vadd.f32 %v2316, %v3206
        %v3208 = vpop.f32.mrf.mxu0
        %v3209 = vadd.f32 %v2320, %v3208
        %3210 = vmatprep.mubr.bf16.mxu0 %v2212
        %3211 = vmatmul.mubr.bf16.gmra.mxu0 %v2211
        %v3212 = vpop.f32.mrf.mxu0
        %v3213 = vadd.f32 %v2316, %v3212
        %v3214 = vpop.f32.mrf.mxu0
        %v3215 = vadd.f32 %v2320, %v3214
        %v3216 = vpop.f32.mrf.mxu0
        %v3217 = vadd.f32 %v2316, %v3216
        %v3218 = vpop.f32.mrf.mxu0
        %v3219 = vadd.f32 %v2320, %v3218
        %3220 = vmatprep.mubr.bf16.mxu0 %v2214
        %3221 = vmatmul.mubr.bf16.gmra.mxu0 %v2213
        %v3222 = vpop.f32.mrf.mxu0
        %v3223 = vadd.f32 %v2316, %v3222
        %v3224 = vpop.f32.mrf.mxu0
        %v3225 = vadd.f32 %v2320, %v3224
        %v3226 = vpop.f32.mrf.mxu0
        %v3227 = vadd.f32 %v2316, %v3226
        %v3228 = vpop.f32.mrf.mxu0
        %v3229 = vadd.f32 %v2320, %v3228
        %3230 = vmatprep.mubr.bf16.mxu0 %v2216
        %3231 = vmatmul.mubr.bf16.gmra.mxu0 %v2215
        %v3232 = vpop.f32.mrf.mxu0
        %v3233 = vadd.f32 %v2316, %v3232
        %v3234 = vpop.f32.mrf.mxu0
        %v3235 = vadd.f32 %v2320, %v3234
        %v3236 = vpop.f32.mrf.mxu0
        %v3237 = vadd.f32 %v2316, %v3236
        %v3238 = vpop.f32.mrf.mxu0
        %v3239 = vadd.f32 %v2320, %v3238
        %3240 = vmatprep.mubr.bf16.mxu0 %v2218
        %3241 = vmatmul.mubr.bf16.gmra.mxu0 %v2217
        %v3242 = vpop.f32.mrf.mxu0
        %v3243 = vadd.f32 %v2316, %v3242
        %v3244 = vpop.f32.mrf.mxu0
        %v3245 = vadd.f32 %v2320, %v3244
        %v3246 = vpop.f32.mrf.mxu0
        %v3247 = vadd.f32 %v2316, %v3246
        %v3248 = vpop.f32.mrf.mxu0
        %v3249 = vadd.f32 %v2320, %v3248
        %3250 = vmatprep.mubr.bf16.mxu0 %v2220
        %3251 = vmatmul.mubr.bf16.gmra.mxu0 %v2219
        %v3252 = vpop.f32.mrf.mxu0
        %v3253 = vadd.f32 %v2316, %v3252
        %v3254 = vpop.f32.mrf.mxu0
        %v3255 = vadd.f32 %v2320, %v3254
        %v3256 = vpop.f32.mrf.mxu0
        %v3257 = vadd.f32 %v2316, %v3256
        %v3258 = vpop.f32.mrf.mxu0
        %v3259 = vadd.f32 %v2320, %v3258
        %3260 = vmatprep.mubr.bf16.mxu0 %v2222
        %3261 = vmatmul.mubr.bf16.gmra.mxu0 %v2221
        %v3262 = vpop.f32.mrf.mxu0
        %v3263 = vadd.f32 %v2316, %v3262
        %v3264 = vpop.f32.mrf.mxu0
        %v3265 = vadd.f32 %v2320, %v3264
        %v3266 = vpop.f32.mrf.mxu0
        %v3267 = vadd.f32 %v2316, %v3266
        %v3268 = vpop.f32.mrf.mxu0
        %v3269 = vadd.f32 %v2320, %v3268
        %3270 = vmatprep.mubr.bf16.mxu0 %v2224
        %3271 = vmatmul.mubr.bf16.gmra.mxu0 %v2223
        %v3272 = vpop.f32.mrf.mxu0
        %v3273 = vadd.f32 %v2316, %v3272
        %v3274 = vpop.f32.mrf.mxu0
        %v3275 = vadd.f32 %v2320, %v3274
        %v3276 = vpop.f32.mrf.mxu0
        %v3277 = vadd.f32 %v2316, %v3276
        %v3278 = vpop.f32.mrf.mxu0
        %v3279 = vadd.f32 %v2320, %v3278
        %3280 = vmatprep.mubr.bf16.mxu0 %v2226
        %3281 = vmatmul.mubr.bf16.gmra.mxu0 %v2225
        %v3282 = vpop.f32.mrf.mxu0
        %v3283 = vadd.f32 %v2316, %v3282
        %v3284 = vpop.f32.mrf.mxu0
        %v3285 = vadd.f32 %v2320, %v3284
        %v3286 = vpop.f32.mrf.mxu0
        %v3287 = vadd.f32 %v2316, %v3286
        %v3288 = vpop.f32.mrf.mxu0
        %v3289 = vadd.f32 %v2320, %v3288
        %3290 = vmatprep.mubr.bf16.mxu0 %v2228
        %3291 = vmatmul.mubr.bf16.gmra.mxu0 %v2227
        %v3292 = vpop.f32.mrf.mxu0
        %v3293 = vadd.f32 %v2316, %v3292
        %v3294 = vpop.f32.mrf.mxu0
        %v3295 = vadd.f32 %v2320, %v3294
        %v3296 = vpop.f32.mrf.mxu0
        %v3297 = vadd.f32 %v2316, %v3296
        %v3298 = vpop.f32.mrf.mxu0
        %v3299 = vadd.f32 %v2320, %v3298
        %3300 = vmatprep.mubr.bf16.mxu0 %v2230
        %3301 = vmatmul.mubr.bf16.gmra.mxu0 %v2229
        %v3302 = vpop.f32.mrf.mxu0
        %v3303 = vadd.f32 %v2316, %v3302
        %v3304 = vpop.f32.mrf.mxu0
        %v3305 = vadd.f32 %v2320, %v3304
        %v3306 = vpop.f32.mrf.mxu0
        %v3307 = vadd.f32 %v2316, %v3306
        %v3308 = vpop.f32.mrf.mxu0
        %v3309 = vadd.f32 %v2320, %v3308
        %3310 = vmatprep.mubr.bf16.mxu0 %v2232
        %3311 = vmatmul.mubr.bf16.gmra.mxu0 %v2231
        %v3312 = vpop.f32.mrf.mxu0
        %v3313 = vadd.f32 %v2316, %v3312
        %v3314 = vpop.f32.mrf.mxu0
        %v3315 = vadd.f32 %v2320, %v3314
        %v3316 = vpop.f32.mrf.mxu0
        %v3317 = vadd.f32 %v2316, %v3316
        %v3318 = vpop.f32.mrf.mxu0
        %v3319 = vadd.f32 %v2320, %v3318
        %3320 = vmatprep.mubr.bf16.mxu0 %v2234
        %3321 = vmatmul.mubr.bf16.gmra.mxu0 %v2233
        %v3322 = vpop.f32.mrf.mxu0
        %v3323 = vadd.f32 %v2316, %v3322
        %v3324 = vpop.f32.mrf.mxu0
        %v3325 = vadd.f32 %v2320, %v3324
        %v3326 = vpop.f32.mrf.mxu0
        %v3327 = vadd.f32 %v2316, %v3326
        %v3328 = vpop.f32.mrf.mxu0
        %v3329 = vadd.f32 %v2320, %v3328
        %3330 = vmatprep.mubr.bf16.mxu0 %v2236
        %3331 = vmatmul.mubr.bf16.gmra.mxu0 %v2235
        %v3332 = vpop.f32.mrf.mxu0
        %v3333 = vadd.f32 %v2316, %v3332
        %v3334 = vpop.f32.mrf.mxu0
        %v3335 = vadd.f32 %v2320, %v3334
        %v3336 = vpop.f32.mrf.mxu0
        %v3337 = vadd.f32 %v2316, %v3336
        %v3338 = vpop.f32.mrf.mxu0
        %v3339 = vadd.f32 %v2320, %v3338
        %3340 = vmatprep.mubr.bf16.mxu0 %v2238
        %3341 = vmatmul.mubr.bf16.gmra.mxu0 %v2237
        %v3342 = vpop.f32.mrf.mxu0
        %v3343 = vadd.f32 %v2316, %v3342
        %v3344 = vpop.f32.mrf.mxu0
        %v3345 = vadd.f32 %v2320, %v3344
        %v3346 = vpop.f32.mrf.mxu0
        %v3347 = vadd.f32 %v2316, %v3346
        %v3348 = vpop.f32.mrf.mxu0
        %v3349 = vadd.f32 %v2320, %v3348
        %3350 = vdwg.mxu0
        %v3351 = vld [vmem:[#allocation2] sm:$0xff]
        %v3352 = vld [vmem:[#allocation2 + $0x8] sm:$0xff]
        %v3353 = vld [vmem:[#allocation2 + $0x10] sm:$0xff]
        %v3354 = vld [vmem:[#allocation2 + $0x18] sm:$0xff]
        %v3355 = vmax.f32 %v2680, %v2684
        %v3356 = vmax.f32 %v3355, %v2690
        %v3357 = vmax.f32 %v3356, %v2694
        %v3358 = vmax.f32 %v3357, %v2700
        %v3359 = vmax.f32 %v3358, %v2704
        %v3360 = vmax.f32 %v3359, %v2710
        %v3361 = vmax.f32 %v3360, %v2714
        %v3362 = vmax.f32 %v3361, %v2720
        %v3363 = vmax.f32 %v3362, %v2724
        %v3364 = vmax.f32 %v3363, %v2730
        %v3365 = vmax.f32 %v3364, %v2734
        %v3366 = vmax.f32 %v3365, %v2740
        %v3367 = vmax.f32 %v3366, %v2744
        %v3368 = vmax.f32 %v3367, %v2750
        %v3369 = vmax.f32 %v3368, %v2754
        %v3370 = vmax.f32 %v3369, %v2760
        %v3371 = vmax.f32 %v3370, %v2764
        %v3372 = vmax.f32 %v3371, %v2770
        %v3373 = vmax.f32 %v3372, %v2774
        %v3374 = vmax.f32 %v3373, %v2780
        %v3375 = vmax.f32 %v3374, %v2784
        %v3376 = vmax.f32 %v3375, %v2790
        %v3377 = vmax.f32 %v3376, %v2794
        %v3378 = vmax.f32 %v3377, %v2800
        %v3379 = vmax.f32 %v3378, %v2804
        %v3380 = vmax.f32 %v3379, %v2810
        %v3381 = vmax.f32 %v3380, %v2814
        %v3382 = vmax.f32 %v3381, %v2820
        %v3383 = vmax.f32 %v3382, %v2824
        %v3384 = vmax.f32 %v3383, %v2830
        %v3385 = vmax.f32 %v3384, %v2834
        %v3386 = vmax.f32 %v3385, %v2840
        %v3387 = vmax.f32 %v3386, %v2844
        %v3388 = vmax.f32 %v3387, %v2850
        %v3389 = vmax.f32 %v3388, %v2854
        %v3390 = vmax.f32 %v3389, %v2860
        %v3391 = vmax.f32 %v3390, %v2864
        %v3392 = vmax.f32 %v3391, %v2870
        %v3393 = vmax.f32 %v3392, %v2874
        %v3394 = vmax.f32 %v3393, %v2880
        %v3395 = vmax.f32 %v3394, %v2884
        %v3396 = vmax.f32 %v3395, %v2890
        %v3397 = vmax.f32 %v3396, %v2894
        %v3398 = vmax.f32 %v3397, %v2900
        %v3399 = vmax.f32 %v3398, %v2904
        %v3400 = vmax.f32 %v3399, %v2910
        %v3401 = vmax.f32 %v3400, %v2914
        %v3402 = vmax.f32 %v3401, %v2920
        %v3403 = vmax.f32 %v3402, %v2924
        %v3404 = vmax.f32 %v3403, %v2930
        %v3405 = vmax.f32 %v3404, %v2934
        %v3406 = vmax.f32 %v3405, %v2940
        %v3407 = vmax.f32 %v3406, %v2944
        %v3408 = vmax.f32 %v3407, %v2950
        %v3409 = vmax.f32 %v3408, %v2954
        %v3410 = vmax.f32 %v3409, %v2960
        %v3411 = vmax.f32 %v3410, %v2964
        %v3412 = vmax.f32 %v3411, %v2970
        %v3413 = vmax.f32 %v3412, %v2974
        %v3414 = vmax.f32 %v3413, %v2980
        %v3415 = vmax.f32 %v3414, %v2984
        %v3416 = vmax.f32 %v3415, %v2990
        %v3417 = vmax.f32 %v3416, %v2994
        %v3418 = vmax.f32 %v2682, %v2686
        %v3419 = vmax.f32 %v3418, %v2692
        %v3420 = vmax.f32 %v3419, %v2696
        %v3421 = vmax.f32 %v3420, %v2702
        %v3422 = vmax.f32 %v3421, %v2706
        %v3423 = vmax.f32 %v3422, %v2712
        %v3424 = vmax.f32 %v3423, %v2716
        %v3425 = vmax.f32 %v3424, %v2722
        %v3426 = vmax.f32 %v3425, %v2726
        %v3427 = vmax.f32 %v3426, %v2732
        %v3428 = vmax.f32 %v3427, %v2736
        %v3429 = vmax.f32 %v3428, %v2742
        %v3430 = vmax.f32 %v3429, %v2746
        %v3431 = vmax.f32 %v3430, %v2752
        %v3432 = vmax.f32 %v3431, %v2756
        %v3433 = vmax.f32 %v3432, %v2762
        %v3434 = vmax.f32 %v3433, %v2766
        %v3435 = vmax.f32 %v3434, %v2772
        %v3436 = vmax.f32 %v3435, %v2776
        %v3437 = vmax.f32 %v3436, %v2782
        %v3438 = vmax.f32 %v3437, %v2786
        %v3439 = vmax.f32 %v3438, %v2792
        %v3440 = vmax.f32 %v3439, %v2796
        %v3441 = vmax.f32 %v3440, %v2802
        %v3442 = vmax.f32 %v3441, %v2806
        %v3443 = vmax.f32 %v3442, %v2812
        %v3444 = vmax.f32 %v3443, %v2816
        %v3445 = vmax.f32 %v3444, %v2822
        %v3446 = vmax.f32 %v3445, %v2826
        %v3447 = vmax.f32 %v3446, %v2832
        %v3448 = vmax.f32 %v3447, %v2836
        %v3449 = vmax.f32 %v3448, %v2842
        %v3450 = vmax.f32 %v3449, %v2846
        %v3451 = vmax.f32 %v3450, %v2852
        %v3452 = vmax.f32 %v3451, %v2856
        %v3453 = vmax.f32 %v3452, %v2862
        %v3454 = vmax.f32 %v3453, %v2866
        %v3455 = vmax.f32 %v3454, %v2872
        %v3456 = vmax.f32 %v3455, %v2876
        %v3457 = vmax.f32 %v3456, %v2882
        %v3458 = vmax.f32 %v3457, %v2886
        %v3459 = vmax.f32 %v3458, %v2892
        %v3460 = vmax.f32 %v3459, %v2896
        %v3461 = vmax.f32 %v3460, %v2902
        %v3462 = vmax.f32 %v3461, %v2906
        %v3463 = vmax.f32 %v3462, %v2912
        %v3464 = vmax.f32 %v3463, %v2916
        %v3465 = vmax.f32 %v3464, %v2922
        %v3466 = vmax.f32 %v3465, %v2926
        %v3467 = vmax.f32 %v3466, %v2932
        %v3468 = vmax.f32 %v3467, %v2936
        %v3469 = vmax.f32 %v3468, %v2942
        %v3470 = vmax.f32 %v3469, %v2946
        %v3471 = vmax.f32 %v3470, %v2952
        %v3472 = vmax.f32 %v3471, %v2956
        %v3473 = vmax.f32 %v3472, %v2962
        %v3474 = vmax.f32 %v3473, %v2966
        %v3475 = vmax.f32 %v3474, %v2972
        %v3476 = vmax.f32 %v3475, %v2976
        %v3477 = vmax.f32 %v3476, %v2982
        %v3478 = vmax.f32 %v3477, %v2986
        %v3479 = vmax.f32 %v3478, %v2992
        %v3480 = vmax.f32 %v3479, %v2996
        %v3481 = vmax.f32 %v3033, %v3037
        %v3482 = vmax.f32 %v3481, %v3043
        %v3483 = vmax.f32 %v3482, %v3047
        %v3484 = vmax.f32 %v3483, %v3053
        %v3485 = vmax.f32 %v3484, %v3057
        %v3486 = vmax.f32 %v3485, %v3063
        %v3487 = vmax.f32 %v3486, %v3067
        %v3488 = vmax.f32 %v3487, %v3073
        %v3489 = vmax.f32 %v3488, %v3077
        %v3490 = vmax.f32 %v3489, %v3083
        %v3491 = vmax.f32 %v3490, %v3087
        %v3492 = vmax.f32 %v3491, %v3093
        %v3493 = vmax.f32 %v3492, %v3097
        %v3494 = vmax.f32 %v3493, %v3103
        %v3495 = vmax.f32 %v3494, %v3107
        %v3496 = vmax.f32 %v3495, %v3113
        %v3497 = vmax.f32 %v3496, %v3117
        %v3498 = vmax.f32 %v3497, %v3123
        %v3499 = vmax.f32 %v3498, %v3127
        %v3500 = vmax.f32 %v3499, %v3133
        %v3501 = vmax.f32 %v3500, %v3137
        %v3502 = vmax.f32 %v3501, %v3143
        %v3503 = vmax.f32 %v3502, %v3147
        %v3504 = vmax.f32 %v3503, %v3153
        %v3505 = vmax.f32 %v3504, %v3157
        %v3506 = vmax.f32 %v3505, %v3163
        %v3507 = vmax.f32 %v3506, %v3167
        %v3508 = vmax.f32 %v3507, %v3173
        %v3509 = vmax.f32 %v3508, %v3177
        %v3510 = vmax.f32 %v3509, %v3183
        %v3511 = vmax.f32 %v3510, %v3187
        %v3512 = vmax.f32 %v3511, %v3193
        %v3513 = vmax.f32 %v3512, %v3197
        %v3514 = vmax.f32 %v3513, %v3203
        %v3515 = vmax.f32 %v3514, %v3207
        %v3516 = vmax.f32 %v3515, %v3213
        %v3517 = vmax.f32 %v3516, %v3217
        %v3518 = vmax.f32 %v3517, %v3223
        %v3519 = vmax.f32 %v3518, %v3227
        %v3520 = vmax.f32 %v3519, %v3233
        %v3521 = vmax.f32 %v3520, %v3237
        %v3522 = vmax.f32 %v3521, %v3243
        %v3523 = vmax.f32 %v3522, %v3247
        %v3524 = vmax.f32 %v3523, %v3253
        %v3525 = vmax.f32 %v3524, %v3257
        %v3526 = vmax.f32 %v3525, %v3263
        %v3527 = vmax.f32 %v3526, %v3267
        %v3528 = vmax.f32 %v3527, %v3273
        %v3529 = vmax.f32 %v3528, %v3277
        %v3530 = vmax.f32 %v3529, %v3283
        %v3531 = vmax.f32 %v3530, %v3287
        %v3532 = vmax.f32 %v3531, %v3293
        %v3533 = vmax.f32 %v3532, %v3297
        %v3534 = vmax.f32 %v3533, %v3303
        %v3535 = vmax.f32 %v3534, %v3307
        %v3536 = vmax.f32 %v3535, %v3313
        %v3537 = vmax.f32 %v3536, %v3317
        %v3538 = vmax.f32 %v3537, %v3323
        %v3539 = vmax.f32 %v3538, %v3327
        %v3540 = vmax.f32 %v3539, %v3333
        %v3541 = vmax.f32 %v3540, %v3337
        %v3542 = vmax.f32 %v3541, %v3343
        %v3543 = vmax.f32 %v3542, %v3347
        %v3544 = vmax.f32 %v3035, %v3039
        %v3545 = vmax.f32 %v3544, %v3045
        %v3546 = vmax.f32 %v3545, %v3049
        %v3547 = vmax.f32 %v3546, %v3055
        %v3548 = vmax.f32 %v3547, %v3059
        %v3549 = vmax.f32 %v3548, %v3065
        %v3550 = vmax.f32 %v3549, %v3069
        %v3551 = vmax.f32 %v3550, %v3075
        %v3552 = vmax.f32 %v3551, %v3079
        %v3553 = vmax.f32 %v3552, %v3085
        %v3554 = vmax.f32 %v3553, %v3089
        %v3555 = vmax.f32 %v3554, %v3095
        %v3556 = vmax.f32 %v3555, %v3099
        %v3557 = vmax.f32 %v3556, %v3105
        %v3558 = vmax.f32 %v3557, %v3109
        %v3559 = vmax.f32 %v3558, %v3115
        %v3560 = vmax.f32 %v3559, %v3119
        %v3561 = vmax.f32 %v3560, %v3125
        %v3562 = vmax.f32 %v3561, %v3129
        %v3563 = vmax.f32 %v3562, %v3135
        %v3564 = vmax.f32 %v3563, %v3139
        %v3565 = vmax.f32 %v3564, %v3145
        %v3566 = vmax.f32 %v3565, %v3149
        %v3567 = vmax.f32 %v3566, %v3155
        %v3568 = vmax.f32 %v3567, %v3159
        %v3569 = vmax.f32 %v3568, %v3165
        %v3570 = vmax.f32 %v3569, %v3169
        %v3571 = vmax.f32 %v3570, %v3175
        %v3572 = vmax.f32 %v3571, %v3179
        %v3573 = vmax.f32 %v3572, %v3185
        %v3574 = vmax.f32 %v3573, %v3189
        %v3575 = vmax.f32 %v3574, %v3195
        %v3576 = vmax.f32 %v3575, %v3199
        %v3577 = vmax.f32 %v3576, %v3205
        %v3578 = vmax.f32 %v3577, %v3209
        %v3579 = vmax.f32 %v3578, %v3215
        %v3580 = vmax.f32 %v3579, %v3219
        %v3581 = vmax.f32 %v3580, %v3225
        %v3582 = vmax.f32 %v3581, %v3229
        %v3583 = vmax.f32 %v3582, %v3235
        %v3584 = vmax.f32 %v3583, %v3239
        %v3585 = vmax.f32 %v3584, %v3245
        %v3586 = vmax.f32 %v3585, %v3249
        %v3587 = vmax.f32 %v3586, %v3255
        %v3588 = vmax.f32 %v3587, %v3259
        %v3589 = vmax.f32 %v3588, %v3265
        %v3590 = vmax.f32 %v3589, %v3269
        %v3591 = vmax.f32 %v3590, %v3275
        %v3592 = vmax.f32 %v3591, %v3279
        %v3593 = vmax.f32 %v3592, %v3285
        %v3594 = vmax.f32 %v3593, %v3289
        %v3595 = vmax.f32 %v3594, %v3295
        %v3596 = vmax.f32 %v3595, %v3299
        %v3597 = vmax.f32 %v3596, %v3305
        %v3598 = vmax.f32 %v3597, %v3309
        %v3599 = vmax.f32 %v3598, %v3315
        %v3600 = vmax.f32 %v3599, %v3319
        %v3601 = vmax.f32 %v3600, %v3325
        %v3602 = vmax.f32 %v3601, %v3329
        %v3603 = vmax.f32 %v3602, %v3335
        %v3604 = vmax.f32 %v3603, %v3339
        %v3605 = vmax.f32 %v3604, %v3345
        %v3606 = vmax.f32 %v3605, %v3349
        %v3607 = vmax.f32 %v3351, %v3417
        %v3608 = vmax.f32 %v3352, %v3480
        %v3609 = vmax.f32 %v3353, %v3543
        %v3610 = vmax.f32 %v3354, %v3606
        %3611 = vst [vmem:[#allocation2] sm:$0xff] %v3607
        %3612 = vst [vmem:[#allocation2 + $0x8] sm:$0xff] %v3608
        %3613 = vst [vmem:[#allocation2 + $0x10] sm:$0xff] %v3609
        %3614 = vst [vmem:[#allocation2 + $0x18] sm:$0xff] %v3610
        // Predicated region
        $region61: #{tpu_custom_call.1} parent=55 // pred_check
          %p3615 = pneg %p376
        $region62: #{tpu_custom_call.1} parent=55 // pred_check_branch
          %3617 = sbr.rel (%p3615) target = $region64
        $region63: #{tpu_custom_call.1} parent=55 // pred_region
          %v3618 = vld [vmem:[#allocation2] sm:$0xff]
          %v3619 = vld [vmem:[#allocation2 + $0x8] sm:$0xff]
          %v3620 = vld [vmem:[#allocation2 + $0x10] sm:$0xff]
          %v3621 = vld [vmem:[#allocation2 + $0x18] sm:$0xff]
          %3622 = vst [vmem:[%s362] sm:$0xff] %v3618
          %3623 = vst [vmem:[%s362 + $0x8] sm:$0xff] %v3619
          %3624 = vst [vmem:[%s362 + $0x10] sm:$0xff] %v3620
          %3625 = vst [vmem:[%s362 + $0x18] sm:$0xff] %v3621
        $region64: #{tpu_custom_call.1} parent=55 // pred_fallthru
          _
        %s3626 = sand.u32 %s250, 1
        %s3627 = scalar_lea.sflag [#allocation4], %s3626
        %s3628 = sand.u32 %s250, 1
        %s3629 = smul.addr %s3628, 32
        %s3630 = scalar_lea.vmem [#allocation3], %s3629
        // Predicated region
        $region65: #{tpu_custom_call.1} parent=55 // pred_check
          %p3631 = pneg %p260
        $region66: #{tpu_custom_call.1} parent=55 // pred_check_branch
          %3633 = sbr.rel (%p3631) target = $region68
        $region67: #{tpu_custom_call.1} parent=55 // pred_region
          %s3635 = ssub.s32 512, 512
          %3636 = vsyncadd %s3627, %s3635
          %s3637 = smul.addr %s29, 4
          %s3638 = smul.addr %s28, 4
          %s3639 = sadd.s32 %s3637, %s3638
          %s3640 = smul.addr %s3639, 128
          %s3641 = scalar_lea.hbm %s9, %s3640
          %s3643 = sshll.u32 %s3630, 4
          %s3644 = int_to_ptr.vmem [resolvable:$true] %s3643
          %3646 = dma.vmem_to_hbm [thread:$0]  %s3644, 512, %s3641, %s3627
        $region68: #{tpu_custom_call.1} parent=55 // pred_fallthru
          _
      $region56: #{tpu_custom_call.1} parent=5 // pred_fallthru
        _
      %p3647 = scmp.le.s32.totalorder 2, %s18
      // Predicated region
      $region69: #{tpu_custom_call.1} parent=5 // pred_check
        %p3648 = pneg %p3647
      $region70: #{tpu_custom_call.1} parent=5 // pred_check_branch
        %3650 = sbr.rel (%p3648) target = $region72
      $region71: #{tpu_custom_call.1} parent=5 // pred_region
        %s3651 = ssub.s32 %s18, 2
        // Predicated region
        $region73: #{tpu_custom_call.1} parent=71 // pred_check
          %p3652 = pneg %p266
        $region74: #{tpu_custom_call.1} parent=71 // pred_check_branch
          %3654 = sbr.rel (%p3652) target = $region76
        $region75: #{tpu_custom_call.1} parent=71 // pred_region
          %s3655 = sand.u32 %s251, 1
          %s3656 = scalar_lea.sflag [#allocation4], %s3655
          %s3657 = sand.u32 %s251, 1
          %s3658 = smul.addr %s3657, 32
          %s3659 = scalar_lea.vmem [#allocation3], %s3658
          %3660 = dma.done %s3656, 512
        $region76: #{tpu_custom_call.1} parent=71 // pred_fallthru
          _
      $region72: #{tpu_custom_call.1} parent=5 // pred_fallthru
        _
    $region6: #{tpu_custom_call.1} parent=1 // loop_footer
      %s22 = sadd.s32 1, %s18
    $region7: #{tpu_custom_call.1} parent=1 // loop_footer_branch
      %17 = sbr.rel target = $region3
    $region8: #{tpu_custom_call.1} parent=1 // loop_exit
      _
    %3661 = vsyncpa [#allocation4], 1
    %s3662 = scalar_lea.sflag [#allocation4], 1
    %3663 = vsyncpa %s3662, 1

// kernel: tpu_custom_call.1
$region0: #{tpu_custom_call.1}
  #allocation0 [shape = 'u32[]', space=smem, size = 0x4, offset = 0x4, fixed_abs, tag = 'smem constant byte address 0x4 - core index']
  #allocation1 [shape = 'u32[144,128]{1,0:T(1,128)}', space=vmem, size = 0x12000, scoped, tag = 'internal scratch']
  #allocation2 [shape = 'f32[8,512]{1,0:T(8,128)}', space=vmem, size = 0x4000, scoped, tag = 'scratch operand']
  %s0 = inlined_call_operand.vmem [shape: f32[2,512,8], index: 0, kind: input, shape index: {}]
  %s1 = inlined_call_operand.vmem [shape: f32[8,128], index: 1, kind: input, shape index: {}]
  %s2 = inlined_call_operand.vmem [shape: f32[1,128], index: 2, kind: input, shape index: {}]
  %s3 = inlined_call_operand.vmem [shape: bf16[128,128], index: 3, kind: input, shape index: {}]
  %s4 = inlined_call_operand.vmem [shape: f32[1,128], index: 4, kind: input, shape index: {}]
  %s5 = inlined_call_operand.vmem [shape: bf16[128,256], index: 5, kind: input, shape index: {}]
  %s6 = inlined_call_operand.vmem [shape: f32[1,256], index: 6, kind: input, shape index: {}]
  %s7 = inlined_call_operand.vmem [shape: bf16[256,512], index: 7, kind: input, shape index: {}]
  %s8 = inlined_call_operand.vmem [shape: f32[1,512], index: 8, kind: input, shape index: {}]
  %s9 = inlined_call_operand.hbm [shape: f32[2,1,8,512], index: 9, kind: output, shape index: {}]
  %s10 = sld [smem:[#allocation0]]
  $region77: #{tpu_custom_call.1} parent=0
    _
  %s12 = ssub.s32 1, %s10
  %s13 = scalar_select 0, %s12, %s10
  $region1: #{tpu_custom_call.1} parent=0
    #allocation3 [shape = 'u8[32768]{0}', space=vmem, size = 0x8000, scoped, tag = 'output window, operand 0']
    #allocation4 [shape = 's32[2]{0}', space=sflag, size = 0x8, scoped, tag = 'scoped memory for tpu_custom_call.1']
    %14 = vsyncpa [#allocation4], 0
    %s15 = scalar_lea.sflag [#allocation4], 1
    %16 = vsyncpa %s15, 0
    loop: start=0, step=1, limit=4
    $region2: #{tpu_custom_call.1} parent=1 // loop_pre_header
      _
    $region3: #{tpu_custom_call.1} parent=1 // loop_header
      %s18 = sphi 0, %s22
      %p19 = scmp.ge.s32.totalorder %s18, 4
      %s25 = sphi 0, %s44
      %s26 = sphi 0, %s40
      %s27 = sphi 0, %s36
      %s28 = sphi 0, %s25
      %s29 = sphi 0, %s26
      %s30 = sphi 0, %s27
      %s31 = sphi 0, %s28
      %s32 = sphi 0, %s29
      %s33 = sphi 0, %s30
      %s51 = sphi 0, %s53
      %s54 = sphi 0, %s51
      %s55 = sphi 0, %s54
      %s71 = sphi 0, %s55
      %s75 = sphi 0, %s75
      %s77 = sphi 0, %s75
      %s78 = sphi 0, %s77
      %s92 = sphi 0, %s78
      %s96 = sphi 0, %s96
      %s98 = sphi 0, %s96
      %s99 = sphi 0, %s98
      %s113 = sphi 0, %s99
      %s117 = sphi 0, %s117
      %s119 = sphi 0, %s117
      %s120 = sphi 0, %s119
      %s134 = sphi 0, %s120
      %s138 = sphi 0, %s138
      %s140 = sphi 0, %s138
      %s141 = sphi 0, %s140
      %s155 = sphi 0, %s141
      %s159 = sphi 0, %s159
      %s161 = sphi 0, %s159
      %s162 = sphi 0, %s161
      %s176 = sphi 0, %s162
      %s180 = sphi 0, %s180
      %s182 = sphi 0, %s180
      %s183 = sphi 0, %s182
      %s197 = sphi 0, %s183
      %s201 = sphi 0, %s201
      %s203 = sphi 0, %s201
      %s204 = sphi 0, %s203
      %s218 = sphi 0, %s204
      %s222 = sphi 0, %s222
      %s224 = sphi 0, %s222
      %s225 = sphi 0, %s224
      %s239 = sphi 0, %s225
      %s247 = sphi 0, %s249
      %s250 = sphi 0, %s247
      %s251 = sphi 0, %s250
      %s267 = sphi 0, %s251
    $region4: #{tpu_custom_call.1} parent=1 // loop_header_branch
      %21 = sbr.rel (%p19) target = $region8
    $region5: #{tpu_custom_call.1} parent=1 // loop_body
      %s23 = ssub.s32 %s18, 1
      %s24 = ssub.s32 %s18, 2
      %s34 = sadd.s32 1, %s27
      %p35 = scmp.ge.s32.totalorder %s34, 1
      %s36 = scalar_select %p35, 0, %s34
      %s37 = sadd.s32 1, %s26
      %s38 = scalar_select %p35, %s37, %s26
      %p39 = scmp.ge.s32.totalorder %s38, 1
      %s40 = scalar_select %p39, 0, %s38
      %s41 = sadd.s32 1, %s25
      %s42 = scalar_select %p39, %s41, %s25
      %p43 = scmp.ge.s32.totalorder %s42, 2
      %s44 = scalar_select %p43, 0, %s42
      %s45 = sadd.s32 %s26, %s27
      %s46 = sadd.s32 %s40, %s36
      %s47 = ssub.s32 %s25, %s44
      %s48 = ssub.s32 %s45, %s46
      %s49 = sor.u32 %s47, %s48
      %p50 = scmp.eq.s32.totalorder %s49, 0
      %s52 = sadd.s32 %s51, 1
      %s53 = scalar_select %p50, %s51, %s52
      %p56 = pneg %p50
      %p57 = scmp.eq.s32.totalorder %s18, 1
      %p58 = por %p56, %p57
      %p59 = scmp.ne.s32.totalorder %s51, %s54
      %p60 = scmp.eq.s32.totalorder %s18, 0
      %p61 = por %p59, %p60
      %p62 = scmp.ne.s32.totalorder %s51, %s54
      %p63 = scmp.eq.s32.totalorder %s23, 1
      %p64 = por %p62, %p63
      %p65 = scmp.ne.s32.totalorder %s54, %s55
      %p66 = scmp.eq.s32.totalorder %s23, 0
      %p67 = por %p65, %p66
      %p68 = scmp.ne.s32.totalorder %s54, %s55
      %p69 = scmp.eq.s32.totalorder %s24, 1
      %p70 = por %p68, %p69
      %p72 = scmp.ne.s32.totalorder %s55, %s71
      %p73 = scmp.eq.s32.totalorder %s24, 0
      %p74 = por %p72, %p73
      %s76 = sadd.s32 %s75, 1
      %p79 = scmp.eq.s32.totalorder %s18, 1
      %p80 = scmp.ne.s32.totalorder %s75, %s77
      %p81 = scmp.eq.s32.totalorder %s18, 0
      %p82 = por %p80, %p81
      %p83 = scmp.ne.s32.totalorder %s75, %s77
      %p84 = scmp.eq.s32.totalorder %s23, 1
      %p85 = por %p83, %p84
      %p86 = scmp.ne.s32.totalorder %s77, %s78
      %p87 = scmp.eq.s32.totalorder %s23, 0
      %p88 = por %p86, %p87
      %p89 = scmp.ne.s32.totalorder %s77, %s78
      %p90 = scmp.eq.s32.totalorder %s24, 1
      %p91 = por %p89, %p90
      %p93 = scmp.ne.s32.totalorder %s78, %s92
      %p94 = scmp.eq.s32.totalorder %s24, 0
      %p95 = por %p93, %p94
      %s97 = sadd.s32 %s96, 1
      %p100 = scmp.eq.s32.totalorder %s18, 1
      %p101 = scmp.ne.s32.totalorder %s96, %s98
      %p102 = scmp.eq.s32.totalorder %s18, 0
      %p103 = por %p101, %p102
      %p104 = scmp.ne.s32.totalorder %s96, %s98
      %p105 = scmp.eq.s32.totalorder %s23, 1
      %p106 = por %p104, %p105
      %p107 = scmp.ne.s32.totalorder %s98, %s99
      %p108 = scmp.eq.s32.totalorder %s23, 0
      %p109 = por %p107, %p108
      %p110 = scmp.ne.s32.totalorder %s98, %s99
      %p111 = scmp.eq.s32.totalorder %s24, 1
      %p112 = por %p110, %p111
      %p114 = scmp.ne.s32.totalorder %s99, %s113
      %p115 = scmp.eq.s32.totalorder %s24, 0
      %p116 = por %p114, %p115
      %s118 = sadd.s32 %s117, 1
      %p121 = scmp.eq.s32.totalorder %s18, 1
      %p122 = scmp.ne.s32.totalorder %s117, %s119
      %p123 = scmp.eq.s32.totalorder %s18, 0
      %p124 = por %p122, %p123
      %p125 = scmp.ne.s32.totalorder %s117, %s119
      %p126 = scmp.eq.s32.totalorder %s23, 1
      %p127 = por %p125, %p126
      %p128 = scmp.ne.s32.totalorder %s119, %s120
      %p129 = scmp.eq.s32.totalorder %s23, 0
      %p130 = por %p128, %p129
      %p131 = scmp.ne.s32.totalorder %s119, %s120
      %p132 = scmp.eq.s32.totalorder %s24, 1
      %p133 = por %p131, %p132
      %p135 = scmp.ne.s32.totalorder %s120, %s134
      %p136 = scmp.eq.s32.totalorder %s24, 0
      %p137 = por %p135, %p136
      %s139 = sadd.s32 %s138, 1
      %p142 = scmp.eq.s32.totalorder %s18, 1
      %p143 = scmp.ne.s32.totalorder %s138, %s140
      %p144 = scmp.eq.s32.totalorder %s18, 0
      %p145 = por %p143, %p144
      %p146 = scmp.ne.s32.totalorder %s138, %s140
      %p147 = scmp.eq.s32.totalorder %s23, 1
      %p148 = por %p146, %p147
      %p149 = scmp.ne.s32.totalorder %s140, %s141
      %p150 = scmp.eq.s32.totalorder %s23, 0
      %p151 = por %p149, %p150
      %p152 = scmp.ne.s32.totalorder %s140, %s141
      %p153 = scmp.eq.s32.totalorder %s24, 1
      %p154 = por %p152, %p153
      %p156 = scmp.ne.s32.totalorder %s141, %s155
      %p157 = scmp.eq.s32.totalorder %s24, 0
      %p158 = por %p156, %p157
      %s160 = sadd.s32 %s159, 1
      %p163 = scmp.eq.s32.totalorder %s18, 1
      %p164 = scmp.ne.s32.totalorder %s159, %s161
      %p165 = scmp.eq.s32.totalorder %s18, 0
      %p166 = por %p164, %p165
      %p167 = scmp.ne.s32.totalorder %s159, %s161
      %p168 = scmp.eq.s32.totalorder %s23, 1
      %p169 = por %p167, %p168
      %p170 = scmp.ne.s32.totalorder %s161, %s162
      %p171 = scmp.eq.s32.totalorder %s23, 0
      %p172 = por %p170, %p171
      %p173 = scmp.ne.s32.totalorder %s161, %s162
      %p174 = scmp.eq.s32.totalorder %s24, 1
      %p175 = por %p173, %p174
      %p177 = scmp.ne.s32.totalorder %s162, %s176
      %p178 = scmp.eq.s32.totalorder %s24, 0
      %p179 = por %p177, %p178
      %s181 = sadd.s32 %s180, 1
      %p184 = scmp.eq.s32.totalorder %s18, 1
      %p185 = scmp.ne.s32.totalorder %s180, %s182
      %p186 = scmp.eq.s32.totalorder %s18, 0
      %p187 = por %p185, %p186
      %p188 = scmp.ne.s32.totalorder %s180, %s182
      %p189 = scmp.eq.s32.totalorder %s23, 1
      %p190 = por %p188, %p189
      %p191 = scmp.ne.s32.totalorder %s182, %s183
      %p192 = scmp.eq.s32.totalorder %s23, 0
      %p193 = por %p191, %p192
      %p194 = scmp.ne.s32.totalorder %s182, %s183
      %p195 = scmp.eq.s32.totalorder %s24, 1
      %p196 = por %p194, %p195
      %p198 = scmp.ne.s32.totalorder %s183, %s197
      %p199 = scmp.eq.s32.totalorder %s24, 0
      %p200 = por %p198, %p199
      %s202 = sadd.s32 %s201, 1
      %p205 = scmp.eq.s32.totalorder %s18, 1
      %p206 = scmp.ne.s32.totalorder %s201, %s203
      %p207 = scmp.eq.s32.totalorder %s18, 0
      %p208 = por %p206, %p207
      %p209 = scmp.ne.s32.totalorder %s201, %s203
      %p210 = scmp.eq.s32.totalorder %s23, 1
      %p211 = por %p209, %p210
      %p212 = scmp.ne.s32.totalorder %s203, %s204
      %p213 = scmp.eq.s32.totalorder %s23, 0
      %p214 = por %p212, %p213
      %p215 = scmp.ne.s32.totalorder %s203, %s204
      %p216 = scmp.eq.s32.totalorder %s24, 1
      %p217 = por %p215, %p216
      %p219 = scmp.ne.s32.totalorder %s204, %s218
      %p220 = scmp.eq.s32.totalorder %s24, 0
      %p221 = por %p219, %p220
      %s223 = sadd.s32 %s222, 1
      %p226 = scmp.eq.s32.totalorder %s18, 1
      %p227 = scmp.ne.s32.totalorder %s222, %s224
      %p228 = scmp.eq.s32.totalorder %s18, 0
      %p229 = por %p227, %p228
      %p230 = scmp.ne.s32.totalorder %s222, %s224
      %p231 = scmp.eq.s32.totalorder %s23, 1
      %p232 = por %p230, %p231
      %p233 = scmp.ne.s32.totalorder %s224, %s225
      %p234 = scmp.eq.s32.totalorder %s23, 0
      %p235 = por %p233, %p234
      %p236 = scmp.ne.s32.totalorder %s224, %s225
      %p237 = scmp.eq.s32.totalorder %s24, 1
      %p238 = por %p236, %p237
      %p240 = scmp.ne.s32.totalorder %s225, %s239
      %p241 = scmp.eq.s32.totalorder %s24, 0
      %p242 = por %p240, %p241
      %s243 = ssub.s32 %s25, %s44
      %s244 = ssub.s32 %s26, %s40
      %s245 = sor.u32 %s243, %s244
      %p246 = scmp.eq.s32.totalorder %s245, 0
      %s248 = sadd.s32 %s247, 1
      %s249 = scalar_select %p246, %s247, %s248
      %p252 = pneg %p246
      %p253 = scmp.eq.s32.totalorder %s18, 1
      %p254 = por %p252, %p253
      %p255 = scmp.ne.s32.totalorder %s247, %s250
      %p256 = scmp.eq.s32.totalorder %s18, 0
      %p257 = por %p255, %p256
      %p258 = scmp.ne.s32.totalorder %s247, %s250
      %p259 = scmp.eq.s32.totalorder %s23, 1
      %p260 = por %p258, %p259
      %p261 = scmp.ne.s32.totalorder %s250, %s251
      %p262 = scmp.eq.s32.totalorder %s23, 0
      %p263 = por %p261, %p262
      %p264 = scmp.ne.s32.totalorder %s250, %s251
      %p265 = scmp.eq.s32.totalorder %s24, 1
      %p266 = por %p264, %p265
      %p268 = scmp.ne.s32.totalorder %s251, %s267
      %p269 = scmp.eq.s32.totalorder %s24, 0
      %p270 = por %p268, %p269
      %p271 = scmp.le.s32.totalorder 1, %s18
      %p272 = scmp.lt.s32.totalorder %s18, 3
      %p273 = pnand %p271, %p272
      %p274 = pneg %p273
      // Predicated region
      $region9: #{tpu_custom_call.1} parent=5 // pred_check
        _
      $region10: #{tpu_custom_call.1} parent=5 // pred_check_branch
        %276 = sbr.rel (%p273) target = $region12
      $region11: #{tpu_custom_call.1} parent=5 // pred_region
        %s277 = ssub.s32 %s18, 1
        // Predicated region
        $region13: #{tpu_custom_call.1} parent=11 // pred_check
          %p278 = pneg %p88
        $region14: #{tpu_custom_call.1} parent=11 // pred_check_branch
          %280 = sbr.rel (%p278) target = $region16
        $region15: #{tpu_custom_call.1} parent=11 // pred_region
          _
        $region16: #{tpu_custom_call.1} parent=11 // pred_fallthru
          _
        // Predicated region
        $region17: #{tpu_custom_call.1} parent=11 // pred_check
          %p281 = pneg %p109
        $region18: #{tpu_custom_call.1} parent=11 // pred_check_branch
          %283 = sbr.rel (%p281) target = $region20
        $region19: #{tpu_custom_call.1} parent=11 // pred_region
          _
        $region20: #{tpu_custom_call.1} parent=11 // pred_fallthru
          _
        // Predicated region
        $region21: #{tpu_custom_call.1} parent=11 // pred_check
          %p284 = pneg %p130
        $region22: #{tpu_custom_call.1} parent=11 // pred_check_branch
          %286 = sbr.rel (%p284) target = $region24
        $region23: #{tpu_custom_call.1} parent=11 // pred_region
          _
        $region24: #{tpu_custom_call.1} parent=11 // pred_fallthru
          _
        // Predicated region
        $region25: #{tpu_custom_call.1} parent=11 // pred_check
          %p287 = pneg %p151
        $region26: #{tpu_custom_call.1} parent=11 // pred_check_branch
          %289 = sbr.rel (%p287) target = $region28
        $region27: #{tpu_custom_call.1} parent=11 // pred_region
          _
        $region28: #{tpu_custom_call.1} parent=11 // pred_fallthru
          _
        // Predicated region
        $region29: #{tpu_custom_call.1} parent=11 // pred_check
          %p290 = pneg %p172
        $region30: #{tpu_custom_call.1} parent=11 // pred_check_branch
          %292 = sbr.rel (%p290) target = $region32
        $region31: #{tpu_custom_call.1} parent=11 // pred_region
          _
        $region32: #{tpu_custom_call.1} parent=11 // pred_fallthru
          _
        // Predicated region
        $region33: #{tpu_custom_call.1} parent=11 // pred_check
          %p293 = pneg %p193
        $region34: #{tpu_custom_call.1} parent=11 // pred_check_branch
          %295 = sbr.rel (%p293) target = $region36
        $region35: #{tpu_custom_call.1} parent=11 // pred_region
          _
        $region36: #{tpu_custom_call.1} parent=11 // pred_fallthru
          _
        // Predicated region
        $region37: #{tpu_custom_call.1} parent=11 // pred_check
          %p296 = pneg %p214
        $region38: #{tpu_custom_call.1} parent=11 // pred_check_branch
          %298 = sbr.rel (%p296) target = $region40
        $region39: #{tpu_custom_call.1} parent=11 // pred_region
          _
        $region40: #{tpu_custom_call.1} parent=11 // pred_fallthru
          _
        // Predicated region
        $region41: #{tpu_custom_call.1} parent=11 // pred_check
          %p299 = pneg %p235
        $region42: #{tpu_custom_call.1} parent=11 // pred_check_branch
          %301 = sbr.rel (%p299) target = $region44
        $region43: #{tpu_custom_call.1} parent=11 // pred_region
          _
        $region44: #{tpu_custom_call.1} parent=11 // pred_fallthru
          _
      $region12: #{tpu_custom_call.1} parent=5 // pred_fallthru
        _
      %p302 = scmp.lt.s32.totalorder %s18, 2
      // Predicated region
      $region45: #{tpu_custom_call.1} parent=5 // pred_check
        %p303 = pneg %p302
      $region46: #{tpu_custom_call.1} parent=5 // pred_check_branch
        %305 = sbr.rel (%p303) target = $region48
      $region47: #{tpu_custom_call.1} parent=5 // pred_region
        // Predicated region
        $region49: #{tpu_custom_call.1} parent=47 // pred_check
          %p306 = pneg %p61
        $region50: #{tpu_custom_call.1} parent=47 // pred_check_branch
          %308 = sbr.rel (%p306) target = $region52
        $region51: #{tpu_custom_call.1} parent=47 // pred_region
          %s309 = sadd.s32 %s26, %s27
          %s310 = smul.u32 64, %s309
          %p311 = scmp.lt.s32.totalorder %s25, 1
          %s312 = scalar_select %p311, %s25, 1
          %p313 = scmp.lt.s32.totalorder %s310, 63
          %s314 = scalar_select %p313, %s310, 63
          %s315 = smul.addr %s312, 64
          %s316 = sadd.s32 %s314, %s315
          %s317 = smul.addr %s316, 8
          %s318 = scalar_lea.vmem %s0, %s317
          %s319 = sadd.s32 %s26, %s27
          %s320 = smul.u32 64, %s319
        $region52: #{tpu_custom_call.1} parent=47 // pred_fallthru
          _
      $region48: #{tpu_custom_call.1} parent=5 // pred_fallthru
        _
      %p321 = scmp.le.s32.totalorder 1, %s18
      %p322 = scmp.lt.s32.totalorder %s18, 3
      %p323 = pnand %p321, %p322
      %p324 = pneg %p323
      // Predicated region
      $region53: #{tpu_custom_call.1} parent=5 // pred_check
        _
      $region54: #{tpu_custom_call.1} parent=5 // pred_check_branch
        %326 = sbr.rel (%p323) target = $region56
      $region55: #{tpu_custom_call.1} parent=5 // pred_region
        %s327 = ssub.s32 %s18, 1
        %s328 = sadd.s32 %s29, %s30
        %s329 = smul.u32 64, %s328
        %p330 = scmp.lt.s32.totalorder %s28, 1
        %s331 = scalar_select %p330, %s28, 1
        %p332 = scmp.lt.s32.totalorder %s329, 63
        %s333 = scalar_select %p332, %s329, 63
        %s334 = smul.addr %s331, 64
        %s335 = sadd.s32 %s333, %s334
        %s336 = smul.addr %s335, 8
        %s337 = scalar_lea.vmem %s0, %s336
        %p338 = pneg %p67
        %p339 = pneg %p64
        %p340 = pneg %p88
        %p341 = pneg %p85
        %p342 = pneg %p109
        %p343 = pneg %p106
        %p344 = pneg %p130
        %p345 = pneg %p127
        %p346 = pneg %p151
        %p347 = pneg %p148
        %p348 = pneg %p172
        %p349 = pneg %p169
        %p350 = pneg %p193
        %p351 = pneg %p190
        %p352 = pneg %p214
        %p353 = pneg %p211
        %p354 = pneg %p235
        %p355 = pneg %p232
        %p356 = pneg %p263
        %p357 = pneg %p260
        %s358 = sand.u32 %s250, 1
        %s359 = scalar_lea.sflag [#allocation4], %s358
        %s360 = sand.u32 %s250, 1
        %s361 = smul.addr %s360, 32
        %s362 = scalar_lea.vmem [#allocation3], %s361
        %s363 = sadd.s32 %s29, %s30
        %s364 = smul.u32 64, %s363
        %p365 = scmp.lt.s32.totalorder %s28, 1
        %s366 = scalar_select %p365, %s28, 1
        %p367 = scmp.lt.s32.totalorder %s364, 63
        %s368 = scalar_select %p367, %s364, 63
        %s369 = smul.addr %s366, 64
        %s370 = sadd.s32 %s368, %s369
        %s371 = smul.addr %s370, 8
        %s372 = scalar_lea.vmem %s0, %s371
        %s373 = sadd.s32 %s29, %s30
        %s374 = smul.u32 64, %s373
        %p376 = scmp.eq.s32.totalorder %s30, 0
        // Predicated region
        $region57: #{tpu_custom_call.1} parent=55 // pred_check
          %p377 = pneg %p376
        $region58: #{tpu_custom_call.1} parent=55 // pred_check_branch
          %379 = sbr.rel (%p377) target = $region60
        $region59: #{tpu_custom_call.1} parent=55 // pred_region
          %380 = vst [vmem:[#allocation2] sm:$0xff] -inf
          %381 = vst [vmem:[#allocation2 + $0x8] sm:$0xff] -inf
          %382 = vst [vmem:[#allocation2 + $0x10] sm:$0xff] -inf
          %383 = vst [vmem:[#allocation2 + $0x18] sm:$0xff] -inf
        $region60: #{tpu_custom_call.1} parent=55 // pred_fallthru
          _
        %v384 = vld [vmem:[%s372] sm:$0xff]
        %v385 = vld [vmem:[%s372 + $0x8] sm:$0xff]
        %v386 = vld [vmem:[%s372 + $0x10] sm:$0xff]
        %v387 = vld [vmem:[%s372 + $0x18] sm:$0xff]
        %v388 = vld [vmem:[%s372 + $0x20] sm:$0xff]
        %v389 = vld [vmem:[%s372 + $0x28] sm:$0xff]
        %v390 = vld [vmem:[%s372 + $0x30] sm:$0xff]
        %v391 = vld [vmem:[%s372 + $0x38] sm:$0xff]
        %v392 = vld [vmem:[%s372 + $0x40] sm:$0xff]
        %v393 = vld [vmem:[%s372 + $0x48] sm:$0xff]
        %v394 = vld [vmem:[%s372 + $0x50] sm:$0xff]
        %v395 = vld [vmem:[%s372 + $0x58] sm:$0xff]
        %v396 = vld [vmem:[%s372 + $0x60] sm:$0xff]
        %v397 = vld [vmem:[%s372 + $0x68] sm:$0xff]
        %v398 = vld [vmem:[%s372 + $0x70] sm:$0xff]
        %v399 = vld [vmem:[%s372 + $0x78] sm:$0xff]
        %v400 = vld [vmem:[%s372 + $0x80] sm:$0xff]
        %v401 = vld [vmem:[%s372 + $0x88] sm:$0xff]
        %v402 = vld [vmem:[%s372 + $0x90] sm:$0xff]
        %v403 = vld [vmem:[%s372 + $0x98] sm:$0xff]
        %v404 = vld [vmem:[%s372 + $0xa0] sm:$0xff]
        %v405 = vld [vmem:[%s372 + $0xa8] sm:$0xff]
        %v406 = vld [vmem:[%s372 + $0xb0] sm:$0xff]
        %v407 = vld [vmem:[%s372 + $0xb8] sm:$0xff]
        %v408 = vld [vmem:[%s372 + $0xc0] sm:$0xff]
        %v409 = vld [vmem:[%s372 + $0xc8] sm:$0xff]
        %v410 = vld [vmem:[%s372 + $0xd0] sm:$0xff]
        %v411 = vld [vmem:[%s372 + $0xd8] sm:$0xff]
        %v412 = vld [vmem:[%s372 + $0xe0] sm:$0xff]
        %v413 = vld [vmem:[%s372 + $0xe8] sm:$0xff]
        %v414 = vld [vmem:[%s372 + $0xf0] sm:$0xff]
        %v415 = vld [vmem:[%s372 + $0xf8] sm:$0xff]
        %v416 = vld [vmem:[%s372 + $0x100] sm:$0xff]
        %v417 = vld [vmem:[%s372 + $0x108] sm:$0xff]
        %v418 = vld [vmem:[%s372 + $0x110] sm:$0xff]
        %v419 = vld [vmem:[%s372 + $0x118] sm:$0xff]
        %v420 = vld [vmem:[%s372 + $0x120] sm:$0xff]
        %v421 = vld [vmem:[%s372 + $0x128] sm:$0xff]
        %v422 = vld [vmem:[%s372 + $0x130] sm:$0xff]
        %v423 = vld [vmem:[%s372 + $0x138] sm:$0xff]
        %v424 = vld [vmem:[%s372 + $0x140] sm:$0xff]
        %v425 = vld [vmem:[%s372 + $0x148] sm:$0xff]
        %v426 = vld [vmem:[%s372 + $0x150] sm:$0xff]
        %v427 = vld [vmem:[%s372 + $0x158] sm:$0xff]
        %v428 = vld [vmem:[%s372 + $0x160] sm:$0xff]
        %v429 = vld [vmem:[%s372 + $0x168] sm:$0xff]
        %v430 = vld [vmem:[%s372 + $0x170] sm:$0xff]
        %v431 = vld [vmem:[%s372 + $0x178] sm:$0xff]
        %v432 = vld [vmem:[%s372 + $0x180] sm:$0xff]
        %v433 = vld [vmem:[%s372 + $0x188] sm:$0xff]
        %v434 = vld [vmem:[%s372 + $0x190] sm:$0xff]
        %v435 = vld [vmem:[%s372 + $0x198] sm:$0xff]
        %v436 = vld [vmem:[%s372 + $0x1a0] sm:$0xff]
        %v437 = vld [vmem:[%s372 + $0x1a8] sm:$0xff]
        %v438 = vld [vmem:[%s372 + $0x1b0] sm:$0xff]
        %v439 = vld [vmem:[%s372 + $0x1b8] sm:$0xff]
        %v440 = vld [vmem:[%s372 + $0x1c0] sm:$0xff]
        %v441 = vld [vmem:[%s372 + $0x1c8] sm:$0xff]
        %v442 = vld [vmem:[%s372 + $0x1d0] sm:$0xff]
        %v443 = vld [vmem:[%s372 + $0x1d8] sm:$0xff]
        %v444 = vld [vmem:[%s372 + $0x1e0] sm:$0xff]
        %v445 = vld [vmem:[%s372 + $0x1e8] sm:$0xff]
        %v446 = vld [vmem:[%s372 + $0x1f0] sm:$0xff]
        %v447 = vld [vmem:[%s372 + $0x1f8] sm:$0xff]
        %v448 = vld [vmem:[%s1] sm:$0xff]
        %v449 = vld [vmem:[%s2] sm:$0x1]
        %v451 = vlaneseq
        %v452 = vshrl.u32 %v451, 7
        %v453 = vsub.s32 0, %v452
        %v454 = vrot.slane %v449, %v453
        %vm456 = vcmask 64512
        %v458 = vsel %vm456, %v384, 0
        %v461 = vsel %vm456, %v385, 0
        %v464 = vsel %vm456, %v386, 0
        %v467 = vsel %vm456, %v387, 0
        %v470 = vsel %vm456, %v388, 0
        %v473 = vsel %vm456, %v389, 0
        %v476 = vsel %vm456, %v390, 0
        %v479 = vsel %vm456, %v391, 0
        %v482 = vsel %vm456, %v392, 0
        %v485 = vsel %vm456, %v393, 0
        %v488 = vsel %vm456, %v394, 0
        %v491 = vsel %vm456, %v395, 0
        %v494 = vsel %vm456, %v396, 0
        %v497 = vsel %vm456, %v397, 0
        %v500 = vsel %vm456, %v398, 0
        %v503 = vsel %vm456, %v399, 0
        %v506 = vsel %vm456, %v400, 0
        %v509 = vsel %vm456, %v401, 0
        %v512 = vsel %vm456, %v402, 0
        %v515 = vsel %vm456, %v403, 0
        %v518 = vsel %vm456, %v404, 0
        %v521 = vsel %vm456, %v405, 0
        %v524 = vsel %vm456, %v406, 0
        %v527 = vsel %vm456, %v407, 0
        %v530 = vsel %vm456, %v408, 0
        %v533 = vsel %vm456, %v409, 0
        %v536 = vsel %vm456, %v410, 0
        %v539 = vsel %vm456, %v411, 0
        %v542 = vsel %vm456, %v412, 0
        %v545 = vsel %vm456, %v413, 0
        %v548 = vsel %vm456, %v414, 0
        %v551 = vsel %vm456, %v415, 0
        %v554 = vsel %vm456, %v416, 0
        %v557 = vsel %vm456, %v417, 0
        %v560 = vsel %vm456, %v418, 0
        %v563 = vsel %vm456, %v419, 0
        %v566 = vsel %vm456, %v420, 0
        %v569 = vsel %vm456, %v421, 0
        %v572 = vsel %vm456, %v422, 0
        %v575 = vsel %vm456, %v423, 0
        %v578 = vsel %vm456, %v424, 0
        %v581 = vsel %vm456, %v425, 0
        %v584 = vsel %vm456, %v426, 0
        %v587 = vsel %vm456, %v427, 0
        %v590 = vsel %vm456, %v428, 0
        %v593 = vsel %vm456, %v429, 0
        %v596 = vsel %vm456, %v430, 0
        %v599 = vsel %vm456, %v431, 0
        %v602 = vsel %vm456, %v432, 0
        %v605 = vsel %vm456, %v433, 0
        %v608 = vsel %vm456, %v434, 0
        %v611 = vsel %vm456, %v435, 0
        %v614 = vsel %vm456, %v436, 0
        %v617 = vsel %vm456, %v437, 0
        %v620 = vsel %vm456, %v438, 0
        %v623 = vsel %vm456, %v439, 0
        %v626 = vsel %vm456, %v440, 0
        %v629 = vsel %vm456, %v441, 0
        %v632 = vsel %vm456, %v442, 0
        %v635 = vsel %vm456, %v443, 0
        %v638 = vsel %vm456, %v444, 0
        %v641 = vsel %vm456, %v445, 0
        %v644 = vsel %vm456, %v446, 0
        %v647 = vsel %vm456, %v447, 0
        %649 = vmatprep.subr.mxu0 0.0
        %650 = vmatpush1.msra.mxu0 0.0
        %651 = vmatprep.subr.mxu0 0.0
        %652 = vmatpush1.msra.mxu0 0.0
        %653 = vmatprep.subr.mxu0 0.0
        %654 = vmatpush1.msra.mxu0 0.0
        %655 = vmatprep.subr.mxu0 0.0
        %656 = vmatpush1.msra.mxu0 0.0
        %657 = vmatprep.subr.mxu0 0.0
        %658 = vmatpush1.msra.mxu0 0.0
        %659 = vmatprep.subr.mxu0 0.0
        %660 = vmatpush1.msra.mxu0 0.0
        %661 = vmatprep.subr.mxu0 0.0
        %662 = vmatpush1.msra.mxu0 0.0
        %663 = vmatprep.subr.mxu0 0.0
        %664 = vmatpush1.msra.mxu0 0.0
        %665 = vmatprep.subr.mxu0 0.0
        %666 = vmatpush1.msra.mxu0 0.0
        %667 = vmatprep.subr.mxu0 0.0
        %668 = vmatpush1.msra.mxu0 0.0
        %669 = vmatprep.subr.mxu0 0.0
        %670 = vmatpush1.msra.mxu0 0.0
        %671 = vmatprep.subr.mxu0 0.0
        %672 = vmatpush1.msra.mxu0 0.0
        %673 = vmatprep.subr.mxu0 0.0
        %674 = vmatpush1.msra.mxu0 0.0
        %675 = vmatprep.subr.mxu0 0.0
        %676 = vmatpush1.msra.mxu0 0.0
        %677 = vmatprep.subr.mxu0 0.0
        %678 = vmatpush1.msra.mxu0 0.0
        %679 = vmatprep.subr.mxu0 0.0
        %680 = vmatpush1.msra.mxu0 %v448
        %681 = vmatprep.subr.mxu0 0.0
        %682 = vmatpush2.msra.mxu0 0.0
        %683 = vmatprep.subr.mxu0 0.0
        %684 = vmatpush2.msra.mxu0 0.0
        %685 = vmatprep.subr.mxu0 0.0
        %686 = vmatpush2.msra.mxu0 0.0
        %687 = vmatprep.subr.mxu0 0.0
        %688 = vmatpush2.msra.mxu0 0.0
        %689 = vmatprep.subr.mxu0 0.0
        %690 = vmatpush2.msra.mxu0 0.0
        %691 = vmatprep.subr.mxu0 0.0
        %692 = vmatpush2.msra.mxu0 0.0
        %693 = vmatprep.subr.mxu0 0.0
        %694 = vmatpush2.msra.mxu0 0.0
        %695 = vmatprep.subr.mxu0 0.0
        %696 = vmatpush2.msra.mxu0 0.0
        %697 = vmatprep.subr.mxu0 0.0
        %698 = vmatpush2.msra.mxu0 0.0
        %699 = vmatprep.subr.mxu0 0.0
        %700 = vmatpush2.msra.mxu0 0.0
        %701 = vmatprep.subr.mxu0 0.0
        %702 = vmatpush2.msra.mxu0 0.0
        %703 = vmatprep.subr.mxu0 0.0
        %704 = vmatpush2.msra.mxu0 0.0
        %705 = vmatprep.subr.mxu0 0.0
        %706 = vmatpush2.msra.mxu0 0.0
        %707 = vmatprep.subr.mxu0 0.0
        %708 = vmatpush2.msra.mxu0 0.0
        %709 = vmatprep.subr.mxu0 0.0
        %710 = vmatpush2.msra.mxu0 0.0
        %711 = vmatprep.subr.mxu0 0.0
        %712 = vmatpush2.msra.mxu0 0.0
        %713 = vmatprep.mubr.f32.mxu0 0.0
        %714 = vmatmul.mubr.f32.gmra.mxu0 %v458
        %v715 = vpop.f32.mrf.mxu0
        %v716 = vadd.f32 %v454, %v715
        %v717 = vpop.f32.mrf.mxu0
        %718 = vmatprep.mubr.f32.mxu0 0.0
        %719 = vmatmul.mubr.f32.gmra.mxu0 %v461
        %v720 = vpop.f32.mrf.mxu0
        %v721 = vadd.f32 %v454, %v720
        %v722 = vpop.f32.mrf.mxu0
        %723 = vmatprep.mubr.f32.mxu0 0.0
        %724 = vmatmul.mubr.f32.gmra.mxu0 %v464
        %v725 = vpop.f32.mrf.mxu0
        %v726 = vadd.f32 %v454, %v725
        %v727 = vpop.f32.mrf.mxu0
        %728 = vmatprep.mubr.f32.mxu0 0.0
        %729 = vmatmul.mubr.f32.gmra.mxu0 %v467
        %v730 = vpop.f32.mrf.mxu0
        %v731 = vadd.f32 %v454, %v730
        %v732 = vpop.f32.mrf.mxu0
        %733 = vmatprep.mubr.f32.mxu0 0.0
        %734 = vmatmul.mubr.f32.gmra.mxu0 %v470
        %v735 = vpop.f32.mrf.mxu0
        %v736 = vadd.f32 %v454, %v735
        %v737 = vpop.f32.mrf.mxu0
        %738 = vmatprep.mubr.f32.mxu0 0.0
        %739 = vmatmul.mubr.f32.gmra.mxu0 %v473
        %v740 = vpop.f32.mrf.mxu0
        %v741 = vadd.f32 %v454, %v740
        %v742 = vpop.f32.mrf.mxu0
        %743 = vmatprep.mubr.f32.mxu0 0.0
        %744 = vmatmul.mubr.f32.gmra.mxu0 %v476
        %v745 = vpop.f32.mrf.mxu0
        %v746 = vadd.f32 %v454, %v745
        %v747 = vpop.f32.mrf.mxu0
        %748 = vmatprep.mubr.f32.mxu0 0.0
        %749 = vmatmul.mubr.f32.gmra.mxu0 %v479
        %v750 = vpop.f32.mrf.mxu0
        %v751 = vadd.f32 %v454, %v750
        %v752 = vpop.f32.mrf.mxu0
        %753 = vmatprep.mubr.f32.mxu0 0.0
        %754 = vmatmul.mubr.f32.gmra.mxu0 %v482
        %v755 = vpop.f32.mrf.mxu0
        %v756 = vadd.f32 %v454, %v755
        %v757 = vpop.f32.mrf.mxu0
        %758 = vmatprep.mubr.f32.mxu0 0.0
        %759 = vmatmul.mubr.f32.gmra.mxu0 %v485
        %v760 = vpop.f32.mrf.mxu0
        %v761 = vadd.f32 %v454, %v760
        %v762 = vpop.f32.mrf.mxu0
        %763 = vmatprep.mubr.f32.mxu0 0.0
        %764 = vmatmul.mubr.f32.gmra.mxu0 %v488
        %v765 = vpop.f32.mrf.mxu0
        %v766 = vadd.f32 %v454, %v765
        %v767 = vpop.f32.mrf.mxu0
        %768 = vmatprep.mubr.f32.mxu0 0.0
        %769 = vmatmul.mubr.f32.gmra.mxu0 %v491
        %v770 = vpop.f32.mrf.mxu0
        %v771 = vadd.f32 %v454, %v770
        %v772 = vpop.f32.mrf.mxu0
        %773 = vmatprep.mubr.f32.mxu0 0.0
        %774 = vmatmul.mubr.f32.gmra.mxu0 %v494
        %v775 = vpop.f32.mrf.mxu0
        %v776 = vadd.f32 %v454, %v775
        %v777 = vpop.f32.mrf.mxu0
        %778 = vmatprep.mubr.f32.mxu0 0.0
        %779 = vmatmul.mubr.f32.gmra.mxu0 %v497
        %v780 = vpop.f32.mrf.mxu0
        %v781 = vadd.f32 %v454, %v780
        %v782 = vpop.f32.mrf.mxu0
        %783 = vmatprep.mubr.f32.mxu0 0.0
        %784 = vmatmul.mubr.f32.gmra.mxu0 %v500
        %v785 = vpop.f32.mrf.mxu0
        %v786 = vadd.f32 %v454, %v785
        %v787 = vpop.f32.mrf.mxu0
        %788 = vmatprep.mubr.f32.mxu0 0.0
        %789 = vmatmul.mubr.f32.gmra.mxu0 %v503
        %v790 = vpop.f32.mrf.mxu0
        %v791 = vadd.f32 %v454, %v790
        %v792 = vpop.f32.mrf.mxu0
        %793 = vmatprep.mubr.f32.mxu0 0.0
        %794 = vmatmul.mubr.f32.gmra.mxu0 %v506
        %v795 = vpop.f32.mrf.mxu0
        %v796 = vadd.f32 %v454, %v795
        %v797 = vpop.f32.mrf.mxu0
        %798 = vmatprep.mubr.f32.mxu0 0.0
        %799 = vmatmul.mubr.f32.gmra.mxu0 %v509
        %v800 = vpop.f32.mrf.mxu0
        %v801 = vadd.f32 %v454, %v800
        %v802 = vpop.f32.mrf.mxu0
        %803 = vmatprep.mubr.f32.mxu0 0.0
        %804 = vmatmul.mubr.f32.gmra.mxu0 %v512
        %v805 = vpop.f32.mrf.mxu0
        %v806 = vadd.f32 %v454, %v805
        %v807 = vpop.f32.mrf.mxu0
        %808 = vmatprep.mubr.f32.mxu0 0.0
        %809 = vmatmul.mubr.f32.gmra.mxu0 %v515
        %v810 = vpop.f32.mrf.mxu0
        %v811 = vadd.f32 %v454, %v810
        %v812 = vpop.f32.mrf.mxu0
        %813 = vmatprep.mubr.f32.mxu0 0.0
        %814 = vmatmul.mubr.f32.gmra.mxu0 %v518
        %v815 = vpop.f32.mrf.mxu0
        %v816 = vadd.f32 %v454, %v815
        %v817 = vpop.f32.mrf.mxu0
        %818 = vmatprep.mubr.f32.mxu0 0.0
        %819 = vmatmul.mubr.f32.gmra.mxu0 %v521
        %v820 = vpop.f32.mrf.mxu0
        %v821 = vadd.f32 %v454, %v820
        %v822 = vpop.f32.mrf.mxu0
        %823 = vmatprep.mubr.f32.mxu0 0.0
        %824 = vmatmul.mubr.f32.gmra.mxu0 %v524
        %v825 = vpop.f32.mrf.mxu0
        %v826 = vadd.f32 %v454, %v825
        %v827 = vpop.f32.mrf.mxu0
        %828 = vmatprep.mubr.f32.mxu0 0.0
        %829 = vmatmul.mubr.f32.gmra.mxu0 %v527
        %v830 = vpop.f32.mrf.mxu0
        %v831 = vadd.f32 %v454, %v830
        %v832 = vpop.f32.mrf.mxu0
        %833 = vmatprep.mubr.f32.mxu0 0.0
        %834 = vmatmul.mubr.f32.gmra.mxu0 %v530
        %v835 = vpop.f32.mrf.mxu0
        %v836 = vadd.f32 %v454, %v835
        %v837 = vpop.f32.mrf.mxu0
        %838 = vmatprep.mubr.f32.mxu0 0.0
        %839 = vmatmul.mubr.f32.gmra.mxu0 %v533
        %v840 = vpop.f32.mrf.mxu0
        %v841 = vadd.f32 %v454, %v840
        %v842 = vpop.f32.mrf.mxu0
        %843 = vmatprep.mubr.f32.mxu0 0.0
        %844 = vmatmul.mubr.f32.gmra.mxu0 %v536
        %v845 = vpop.f32.mrf.mxu0
        %v846 = vadd.f32 %v454, %v845
        %v847 = vpop.f32.mrf.mxu0
        %848 = vmatprep.mubr.f32.mxu0 0.0
        %849 = vmatmul.mubr.f32.gmra.mxu0 %v539
        %v850 = vpop.f32.mrf.mxu0
        %v851 = vadd.f32 %v454, %v850
        %v852 = vpop.f32.mrf.mxu0
        %853 = vmatprep.mubr.f32.mxu0 0.0
        %854 = vmatmul.mubr.f32.gmra.mxu0 %v542
        %v855 = vpop.f32.mrf.mxu0
        %v856 = vadd.f32 %v454, %v855
        %v857 = vpop.f32.mrf.mxu0
        %858 = vmatprep.mubr.f32.mxu0 0.0
        %859 = vmatmul.mubr.f32.gmra.mxu0 %v545
        %v860 = vpop.f32.mrf.mxu0
        %v861 = vadd.f32 %v454, %v860
        %v862 = vpop.f32.mrf.mxu0
        %863 = vmatprep.mubr.f32.mxu0 0.0
        %864 = vmatmul.mubr.f32.gmra.mxu0 %v548
        %v865 = vpop.f32.mrf.mxu0
        %v866 = vadd.f32 %v454, %v865
        %v867 = vpop.f32.mrf.mxu0
        %868 = vmatprep.mubr.f32.mxu0 0.0
        %869 = vmatmul.mubr.f32.gmra.mxu0 %v551
        %v870 = vpop.f32.mrf.mxu0
        %v871 = vadd.f32 %v454, %v870
        %v872 = vpop.f32.mrf.mxu0
        %873 = vmatprep.mubr.f32.mxu0 0.0
        %874 = vmatmul.mubr.f32.gmra.mxu0 %v554
        %v875 = vpop.f32.mrf.mxu0
        %v876 = vadd.f32 %v454, %v875
        %v877 = vpop.f32.mrf.mxu0
        %878 = vmatprep.mubr.f32.mxu0 0.0
        %879 = vmatmul.mubr.f32.gmra.mxu0 %v557
        %v880 = vpop.f32.mrf.mxu0
        %v881 = vadd.f32 %v454, %v880
        %v882 = vpop.f32.mrf.mxu0
        %883 = vmatprep.mubr.f32.mxu0 0.0
        %884 = vmatmul.mubr.f32.gmra.mxu0 %v560
        %v885 = vpop.f32.mrf.mxu0
        %v886 = vadd.f32 %v454, %v885
        %v887 = vpop.f32.mrf.mxu0
        %888 = vmatprep.mubr.f32.mxu0 0.0
        %889 = vmatmul.mubr.f32.gmra.mxu0 %v563
        %v890 = vpop.f32.mrf.mxu0
        %v891 = vadd.f32 %v454, %v890
        %v892 = vpop.f32.mrf.mxu0
        %893 = vmatprep.mubr.f32.mxu0 0.0
        %894 = vmatmul.mubr.f32.gmra.mxu0 %v566
        %v895 = vpop.f32.mrf.mxu0
        %v896 = vadd.f32 %v454, %v895
        %v897 = vpop.f32.mrf.mxu0
        %898 = vmatprep.mubr.f32.mxu0 0.0
        %899 = vmatmul.mubr.f32.gmra.mxu0 %v569
        %v900 = vpop.f32.mrf.mxu0
        %v901 = vadd.f32 %v454, %v900
        %v902 = vpop.f32.mrf.mxu0
        %903 = vmatprep.mubr.f32.mxu0 0.0
        %904 = vmatmul.mubr.f32.gmra.mxu0 %v572
        %v905 = vpop.f32.mrf.mxu0
        %v906 = vadd.f32 %v454, %v905
        %v907 = vpop.f32.mrf.mxu0
        %908 = vmatprep.mubr.f32.mxu0 0.0
        %909 = vmatmul.mubr.f32.gmra.mxu0 %v575
        %v910 = vpop.f32.mrf.mxu0
        %v911 = vadd.f32 %v454, %v910
        %v912 = vpop.f32.mrf.mxu0
        %913 = vmatprep.mubr.f32.mxu0 0.0
        %914 = vmatmul.mubr.f32.gmra.mxu0 %v578
        %v915 = vpop.f32.mrf.mxu0
        %v916 = vadd.f32 %v454, %v915
        %v917 = vpop.f32.mrf.mxu0
        %918 = vmatprep.mubr.f32.mxu0 0.0
        %919 = vmatmul.mubr.f32.gmra.mxu0 %v581
        %v920 = vpop.f32.mrf.mxu0
        %v921 = vadd.f32 %v454, %v920
        %v922 = vpop.f32.mrf.mxu0
        %923 = vmatprep.mubr.f32.mxu0 0.0
        %924 = vmatmul.mubr.f32.gmra.mxu0 %v584
        %v925 = vpop.f32.mrf.mxu0
        %v926 = vadd.f32 %v454, %v925
        %v927 = vpop.f32.mrf.mxu0
        %928 = vmatprep.mubr.f32.mxu0 0.0
        %929 = vmatmul.mubr.f32.gmra.mxu0 %v587
        %v930 = vpop.f32.mrf.mxu0
        %v931 = vadd.f32 %v454, %v930
        %v932 = vpop.f32.mrf.mxu0
        %933 = vmatprep.mubr.f32.mxu0 0.0
        %934 = vmatmul.mubr.f32.gmra.mxu0 %v590
        %v935 = vpop.f32.mrf.mxu0
        %v936 = vadd.f32 %v454, %v935
        %v937 = vpop.f32.mrf.mxu0
        %938 = vmatprep.mubr.f32.mxu0 0.0
        %939 = vmatmul.mubr.f32.gmra.mxu0 %v593
        %v940 = vpop.f32.mrf.mxu0
        %v941 = vadd.f32 %v454, %v940
        %v942 = vpop.f32.mrf.mxu0
        %943 = vmatprep.mubr.f32.mxu0 0.0
        %944 = vmatmul.mubr.f32.gmra.mxu0 %v596
        %v945 = vpop.f32.mrf.mxu0
        %v946 = vadd.f32 %v454, %v945
        %v947 = vpop.f32.mrf.mxu0
        %948 = vmatprep.mubr.f32.mxu0 0.0
        %949 = vmatmul.mubr.f32.gmra.mxu0 %v599
        %v950 = vpop.f32.mrf.mxu0
        %v951 = vadd.f32 %v454, %v950
        %v952 = vpop.f32.mrf.mxu0
        %953 = vmatprep.mubr.f32.mxu0 0.0
        %954 = vmatmul.mubr.f32.gmra.mxu0 %v602
        %v955 = vpop.f32.mrf.mxu0
        %v956 = vadd.f32 %v454, %v955
        %v957 = vpop.f32.mrf.mxu0
        %958 = vmatprep.mubr.f32.mxu0 0.0
        %959 = vmatmul.mubr.f32.gmra.mxu0 %v605
        %v960 = vpop.f32.mrf.mxu0
        %v961 = vadd.f32 %v454, %v960
        %v962 = vpop.f32.mrf.mxu0
        %963 = vmatprep.mubr.f32.mxu0 0.0
        %964 = vmatmul.mubr.f32.gmra.mxu0 %v608
        %v965 = vpop.f32.mrf.mxu0
        %v966 = vadd.f32 %v454, %v965
        %v967 = vpop.f32.mrf.mxu0
        %968 = vmatprep.mubr.f32.mxu0 0.0
        %969 = vmatmul.mubr.f32.gmra.mxu0 %v611
        %v970 = vpop.f32.mrf.mxu0
        %v971 = vadd.f32 %v454, %v970
        %v972 = vpop.f32.mrf.mxu0
        %973 = vmatprep.mubr.f32.mxu0 0.0
        %974 = vmatmul.mubr.f32.gmra.mxu0 %v614
        %v975 = vpop.f32.mrf.mxu0
        %v976 = vadd.f32 %v454, %v975
        %v977 = vpop.f32.mrf.mxu0
        %978 = vmatprep.mubr.f32.mxu0 0.0
        %979 = vmatmul.mubr.f32.gmra.mxu0 %v617
        %v980 = vpop.f32.mrf.mxu0
        %v981 = vadd.f32 %v454, %v980
        %v982 = vpop.f32.mrf.mxu0
        %983 = vmatprep.mubr.f32.mxu0 0.0
        %984 = vmatmul.mubr.f32.gmra.mxu0 %v620
        %v985 = vpop.f32.mrf.mxu0
        %v986 = vadd.f32 %v454, %v985
        %v987 = vpop.f32.mrf.mxu0
        %988 = vmatprep.mubr.f32.mxu0 0.0
        %989 = vmatmul.mubr.f32.gmra.mxu0 %v623
        %v990 = vpop.f32.mrf.mxu0
        %v991 = vadd.f32 %v454, %v990
        %v992 = vpop.f32.mrf.mxu0
        %993 = vmatprep.mubr.f32.mxu0 0.0
        %994 = vmatmul.mubr.f32.gmra.mxu0 %v626
        %v995 = vpop.f32.mrf.mxu0
        %v996 = vadd.f32 %v454, %v995
        %v997 = vpop.f32.mrf.mxu0
        %998 = vmatprep.mubr.f32.mxu0 0.0
        %999 = vmatmul.mubr.f32.gmra.mxu0 %v629
        %v1000 = vpop.f32.mrf.mxu0
        %v1001 = vadd.f32 %v454, %v1000
        %v1002 = vpop.f32.mrf.mxu0
        %1003 = vmatprep.mubr.f32.mxu0 0.0
        %1004 = vmatmul.mubr.f32.gmra.mxu0 %v632
        %v1005 = vpop.f32.mrf.mxu0
        %v1006 = vadd.f32 %v454, %v1005
        %v1007 = vpop.f32.mrf.mxu0
        %1008 = vmatprep.mubr.f32.mxu0 0.0
        %1009 = vmatmul.mubr.f32.gmra.mxu0 %v635
        %v1010 = vpop.f32.mrf.mxu0
        %v1011 = vadd.f32 %v454, %v1010
        %v1012 = vpop.f32.mrf.mxu0
        %1013 = vmatprep.mubr.f32.mxu0 0.0
        %1014 = vmatmul.mubr.f32.gmra.mxu0 %v638
        %v1015 = vpop.f32.mrf.mxu0
        %v1016 = vadd.f32 %v454, %v1015
        %v1017 = vpop.f32.mrf.mxu0
        %1018 = vmatprep.mubr.f32.mxu0 0.0
        %1019 = vmatmul.mubr.f32.gmra.mxu0 %v641
        %v1020 = vpop.f32.mrf.mxu0
        %v1021 = vadd.f32 %v454, %v1020
        %v1022 = vpop.f32.mrf.mxu0
        %1023 = vmatprep.mubr.f32.mxu0 0.0
        %1024 = vmatmul.mubr.f32.gmra.mxu0 %v644
        %v1025 = vpop.f32.mrf.mxu0
        %v1026 = vadd.f32 %v454, %v1025
        %v1027 = vpop.f32.mrf.mxu0
        %1028 = vmatprep.mubr.f32.mxu0 0.0
        %1029 = vmatmul.mubr.f32.gmra.mxu0 %v647
        %v1030 = vpop.f32.mrf.mxu0
        %v1031 = vadd.f32 %v454, %v1030
        %v1032 = vpop.f32.mrf.mxu0
        %1033 = vdwg.mxu0
        %v1034 = vmax.f32 %v716, 0.0
        %v1035 = vmax.f32 %v721, 0.0
        %v1036 = vmax.f32 %v726, 0.0
        %v1037 = vmax.f32 %v731, 0.0
        %v1038 = vmax.f32 %v736, 0.0
        %v1039 = vmax.f32 %v741, 0.0
        %v1040 = vmax.f32 %v746, 0.0
        %v1041 = vmax.f32 %v751, 0.0
        %v1042 = vmax.f32 %v756, 0.0
        %v1043 = vmax.f32 %v761, 0.0
        %v1044 = vmax.f32 %v766, 0.0
        %v1045 = vmax.f32 %v771, 0.0
        %v1046 = vmax.f32 %v776, 0.0
        %v1047 = vmax.f32 %v781, 0.0
        %v1048 = vmax.f32 %v786, 0.0
        %v1049 = vmax.f32 %v791, 0.0
        %v1050 = vmax.f32 %v796, 0.0
        %v1051 = vmax.f32 %v801, 0.0
        %v1052 = vmax.f32 %v806, 0.0
        %v1053 = vmax.f32 %v811, 0.0
        %v1054 = vmax.f32 %v816, 0.0
        %v1055 = vmax.f32 %v821, 0.0
        %v1056 = vmax.f32 %v826, 0.0
        %v1057 = vmax.f32 %v831, 0.0
        %v1058 = vmax.f32 %v836, 0.0
        %v1059 = vmax.f32 %v841, 0.0
        %v1060 = vmax.f32 %v846, 0.0
        %v1061 = vmax.f32 %v851, 0.0
        %v1062 = vmax.f32 %v856, 0.0
        %v1063 = vmax.f32 %v861, 0.0
        %v1064 = vmax.f32 %v866, 0.0
        %v1065 = vmax.f32 %v871, 0.0
        %v1066 = vmax.f32 %v876, 0.0
        %v1067 = vmax.f32 %v881, 0.0
        %v1068 = vmax.f32 %v886, 0.0
        %v1069 = vmax.f32 %v891, 0.0
        %v1070 = vmax.f32 %v896, 0.0
        %v1071 = vmax.f32 %v901, 0.0
        %v1072 = vmax.f32 %v906, 0.0
        %v1073 = vmax.f32 %v911, 0.0
        %v1074 = vmax.f32 %v916, 0.0
        %v1075 = vmax.f32 %v921, 0.0
        %v1076 = vmax.f32 %v926, 0.0
        %v1077 = vmax.f32 %v931, 0.0
        %v1078 = vmax.f32 %v936, 0.0
        %v1079 = vmax.f32 %v941, 0.0
        %v1080 = vmax.f32 %v946, 0.0
        %v1081 = vmax.f32 %v951, 0.0
        %v1082 = vmax.f32 %v956, 0.0
        %v1083 = vmax.f32 %v961, 0.0
        %v1084 = vmax.f32 %v966, 0.0
        %v1085 = vmax.f32 %v971, 0.0
        %v1086 = vmax.f32 %v976, 0.0
        %v1087 = vmax.f32 %v981, 0.0
        %v1088 = vmax.f32 %v986, 0.0
        %v1089 = vmax.f32 %v991, 0.0
        %v1090 = vmax.f32 %v996, 0.0
        %v1091 = vmax.f32 %v1001, 0.0
        %v1092 = vmax.f32 %v1006, 0.0
        %v1093 = vmax.f32 %v1011, 0.0
        %v1094 = vmax.f32 %v1016, 0.0
        %v1095 = vmax.f32 %v1021, 0.0
        %v1096 = vmax.f32 %v1026, 0.0
        %v1097 = vmax.f32 %v1031, 0.0
        %v1098 = vpack.c.bf16 %v1035, %v1034
        %v1099 = vpack.c.bf16 %v1037, %v1036
        %v1100 = vpack.c.bf16 %v1039, %v1038
        %v1101 = vpack.c.bf16 %v1041, %v1040
        %v1102 = vpack.c.bf16 %v1043, %v1042
        %v1103 = vpack.c.bf16 %v1045, %v1044
        %v1104 = vpack.c.bf16 %v1047, %v1046
        %v1105 = vpack.c.bf16 %v1049, %v1048
        %v1106 = vpack.c.bf16 %v1051, %v1050
        %v1107 = vpack.c.bf16 %v1053, %v1052
        %v1108 = vpack.c.bf16 %v1055, %v1054
        %v1109 = vpack.c.bf16 %v1057, %v1056
        %v1110 = vpack.c.bf16 %v1059, %v1058
        %v1111 = vpack.c.bf16 %v1061, %v1060
        %v1112 = vpack.c.bf16 %v1063, %v1062
        %v1113 = vpack.c.bf16 %v1065, %v1064
        %v1114 = vpack.c.bf16 %v1067, %v1066
        %v1115 = vpack.c.bf16 %v1069, %v1068
        %v1116 = vpack.c.bf16 %v1071, %v1070
        %v1117 = vpack.c.bf16 %v1073, %v1072
        %v1118 = vpack.c.bf16 %v1075, %v1074
        %v1119 = vpack.c.bf16 %v1077, %v1076
        %v1120 = vpack.c.bf16 %v1079, %v1078
        %v1121 = vpack.c.bf16 %v1081, %v1080
        %v1122 = vpack.c.bf16 %v1083, %v1082
        %v1123 = vpack.c.bf16 %v1085, %v1084
        %v1124 = vpack.c.bf16 %v1087, %v1086
        %v1125 = vpack.c.bf16 %v1089, %v1088
        %v1126 = vpack.c.bf16 %v1091, %v1090
        %v1127 = vpack.c.bf16 %v1093, %v1092
        %v1128 = vpack.c.bf16 %v1095, %v1094
        %v1129 = vpack.c.bf16 %v1097, %v1096
        %v1130 = vld [vmem:[%s3] sm:$0xf]
        %v1131 = vld [vmem:[%s3 + $0x4] sm:$0xf]
        %v1132 = vld [vmem:[%s3 + $0x8] sm:$0xf]
        %v1133 = vld [vmem:[%s3 + $0xc] sm:$0xf]
        %v1134 = vld [vmem:[%s3 + $0x10] sm:$0xf]
        %v1135 = vld [vmem:[%s3 + $0x14] sm:$0xf]
        %v1136 = vld [vmem:[%s3 + $0x18] sm:$0xf]
        %v1137 = vld [vmem:[%s3 + $0x1c] sm:$0xf]
        %v1138 = vld [vmem:[%s3 + $0x20] sm:$0xf]
        %v1139 = vld [vmem:[%s3 + $0x24] sm:$0xf]
        %v1140 = vld [vmem:[%s3 + $0x28] sm:$0xf]
        %v1141 = vld [vmem:[%s3 + $0x2c] sm:$0xf]
        %v1142 = vld [vmem:[%s3 + $0x30] sm:$0xf]
        %v1143 = vld [vmem:[%s3 + $0x34] sm:$0xf]
        %v1144 = vld [vmem:[%s3 + $0x38] sm:$0xf]
        %v1145 = vld [vmem:[%s3 + $0x3c] sm:$0xf]
        %v1146 = vld [vmem:[%s4] sm:$0x1]
        %v1148 = vlaneseq
        %v1149 = vshrl.u32 %v1148, 7
        %v1150 = vsub.s32 0, %v1149
        %v1151 = vrot.slane %v1146, %v1150
        %v1169 = vunpack.c.l.b16 %v1130
        %v1170 = vunpack.c.l.b16 %v1131
        %v1171 = vunpack.c.l.b16 %v1132
        %v1172 = vunpack.c.l.b16 %v1133
        %v1173 = vunpack.c.l.b16 %v1134
        %v1174 = vunpack.c.l.b16 %v1135
        %v1175 = vunpack.c.l.b16 %v1136
        %v1176 = vunpack.c.l.b16 %v1137
        %v1177 = vunpack.c.l.b16 %v1138
        %v1178 = vunpack.c.l.b16 %v1139
        %v1179 = vunpack.c.l.b16 %v1140
        %v1180 = vunpack.c.l.b16 %v1141
        %v1181 = vunpack.c.l.b16 %v1142
        %v1182 = vunpack.c.l.b16 %v1143
        %v1183 = vunpack.c.l.b16 %v1144
        %v1184 = vunpack.c.l.b16 %v1145
        %v1185 = vpack.c.b16 %v1170, %v1169
        %v1186 = vpack.c.b16 %v1172, %v1171
        %v1187 = vpack.c.b16 %v1174, %v1173
        %v1188 = vpack.c.b16 %v1176, %v1175
        %v1189 = vpack.c.b16 %v1178, %v1177
        %v1190 = vpack.c.b16 %v1180, %v1179
        %v1191 = vpack.c.b16 %v1182, %v1181
        %v1192 = vpack.c.b16 %v1184, %v1183
        %1201 = vmatprep.subr.bf16.mxu0 0
        %1202 = vmatpush1.bf16.msra.mxu0 %v1192
        %1203 = vmatprep.subr.bf16.mxu0 0
        %1204 = vmatpush1.bf16.msra.mxu0 %v1191
        %1205 = vmatprep.subr.bf16.mxu0 0
        %1206 = vmatpush1.bf16.msra.mxu0 %v1190
        %1207 = vmatprep.subr.bf16.mxu0 0
        %1208 = vmatpush1.bf16.msra.mxu0 %v1189
        %1209 = vmatprep.subr.bf16.mxu0 0
        %1210 = vmatpush1.bf16.msra.mxu0 %v1188
        %1211 = vmatprep.subr.bf16.mxu0 0
        %1212 = vmatpush1.bf16.msra.mxu0 %v1187
        %1213 = vmatprep.subr.bf16.mxu0 0
        %1214 = vmatpush1.bf16.msra.mxu0 %v1186
        %1215 = vmatprep.subr.bf16.mxu0 0
        %1216 = vmatpush1.bf16.msra.mxu0 %v1185
        %1217 = vmatprep.subr.bf16.mxu0 0
        %1218 = vmatpush2.bf16.msra.mxu0 0
        %1219 = vmatprep.subr.bf16.mxu0 0
        %1220 = vmatpush2.bf16.msra.mxu0 0
        %1221 = vmatprep.subr.bf16.mxu0 0
        %1222 = vmatpush2.bf16.msra.mxu0 0
        %1223 = vmatprep.subr.bf16.mxu0 0
        %1224 = vmatpush2.bf16.msra.mxu0 0
        %1225 = vmatprep.subr.bf16.mxu0 0
        %1226 = vmatpush2.bf16.msra.mxu0 0
        %1227 = vmatprep.subr.bf16.mxu0 0
        %1228 = vmatpush2.bf16.msra.mxu0 0
        %1229 = vmatprep.subr.bf16.mxu0 0
        %1230 = vmatpush2.bf16.msra.mxu0 0
        %1231 = vmatprep.subr.bf16.mxu0 0
        %1232 = vmatpush2.bf16.msra.mxu0 0
        %1233 = vmatprep.mubr.bf16.mxu0 0
        %1234 = vmatmul.mubr.bf16.gmra.mxu0 %v1098
        %v1235 = vpop.f32.mrf.mxu0
        %v1236 = vadd.f32 %v1151, %v1235
        %v1237 = vpop.f32.mrf.mxu0
        %v1238 = vpop.f32.mrf.mxu0
        %v1239 = vadd.f32 %v1151, %v1238
        %v1240 = vpop.f32.mrf.mxu0
        %1241 = vmatprep.mubr.bf16.mxu0 0
        %1242 = vmatmul.mubr.bf16.gmra.mxu0 %v1099
        %v1243 = vpop.f32.mrf.mxu0
        %v1244 = vadd.f32 %v1151, %v1243
        %v1245 = vpop.f32.mrf.mxu0
        %v1246 = vpop.f32.mrf.mxu0
        %v1247 = vadd.f32 %v1151, %v1246
        %v1248 = vpop.f32.mrf.mxu0
        %1249 = vmatprep.mubr.bf16.mxu0 0
        %1250 = vmatmul.mubr.bf16.gmra.mxu0 %v1100
        %v1251 = vpop.f32.mrf.mxu0
        %v1252 = vadd.f32 %v1151, %v1251
        %v1253 = vpop.f32.mrf.mxu0
        %v1254 = vpop.f32.mrf.mxu0
        %v1255 = vadd.f32 %v1151, %v1254
        %v1256 = vpop.f32.mrf.mxu0
        %1257 = vmatprep.mubr.bf16.mxu0 0
        %1258 = vmatmul.mubr.bf16.gmra.mxu0 %v1101
        %v1259 = vpop.f32.mrf.mxu0
        %v1260 = vadd.f32 %v1151, %v1259
        %v1261 = vpop.f32.mrf.mxu0
        %v1262 = vpop.f32.mrf.mxu0
        %v1263 = vadd.f32 %v1151, %v1262
        %v1264 = vpop.f32.mrf.mxu0
        %1265 = vmatprep.mubr.bf16.mxu0 0
        %1266 = vmatmul.mubr.bf16.gmra.mxu0 %v1102
        %v1267 = vpop.f32.mrf.mxu0
        %v1268 = vadd.f32 %v1151, %v1267
        %v1269 = vpop.f32.mrf.mxu0
        %v1270 = vpop.f32.mrf.mxu0
        %v1271 = vadd.f32 %v1151, %v1270
        %v1272 = vpop.f32.mrf.mxu0
        %1273 = vmatprep.mubr.bf16.mxu0 0
        %1274 = vmatmul.mubr.bf16.gmra.mxu0 %v1103
        %v1275 = vpop.f32.mrf.mxu0
        %v1276 = vadd.f32 %v1151, %v1275
        %v1277 = vpop.f32.mrf.mxu0
        %v1278 = vpop.f32.mrf.mxu0
        %v1279 = vadd.f32 %v1151, %v1278
        %v1280 = vpop.f32.mrf.mxu0
        %1281 = vmatprep.mubr.bf16.mxu0 0
        %1282 = vmatmul.mubr.bf16.gmra.mxu0 %v1104
        %v1283 = vpop.f32.mrf.mxu0
        %v1284 = vadd.f32 %v1151, %v1283
        %v1285 = vpop.f32.mrf.mxu0
        %v1286 = vpop.f32.mrf.mxu0
        %v1287 = vadd.f32 %v1151, %v1286
        %v1288 = vpop.f32.mrf.mxu0
        %1289 = vmatprep.mubr.bf16.mxu0 0
        %1290 = vmatmul.mubr.bf16.gmra.mxu0 %v1105
        %v1291 = vpop.f32.mrf.mxu0
        %v1292 = vadd.f32 %v1151, %v1291
        %v1293 = vpop.f32.mrf.mxu0
        %v1294 = vpop.f32.mrf.mxu0
        %v1295 = vadd.f32 %v1151, %v1294
        %v1296 = vpop.f32.mrf.mxu0
        %1297 = vmatprep.mubr.bf16.mxu0 0
        %1298 = vmatmul.mubr.bf16.gmra.mxu0 %v1106
        %v1299 = vpop.f32.mrf.mxu0
        %v1300 = vadd.f32 %v1151, %v1299
        %v1301 = vpop.f32.mrf.mxu0
        %v1302 = vpop.f32.mrf.mxu0
        %v1303 = vadd.f32 %v1151, %v1302
        %v1304 = vpop.f32.mrf.mxu0
        %1305 = vmatprep.mubr.bf16.mxu0 0
        %1306 = vmatmul.mubr.bf16.gmra.mxu0 %v1107
        %v1307 = vpop.f32.mrf.mxu0
        %v1308 = vadd.f32 %v1151, %v1307
        %v1309 = vpop.f32.mrf.mxu0
        %v1310 = vpop.f32.mrf.mxu0
        %v1311 = vadd.f32 %v1151, %v1310
        %v1312 = vpop.f32.mrf.mxu0
        %1313 = vmatprep.mubr.bf16.mxu0 0
        %1314 = vmatmul.mubr.bf16.gmra.mxu0 %v1108
        %v1315 = vpop.f32.mrf.mxu0
        %v1316 = vadd.f32 %v1151, %v1315
        %v1317 = vpop.f32.mrf.mxu0
        %v1318 = vpop.f32.mrf.mxu0
        %v1319 = vadd.f32 %v1151, %v1318
        %v1320 = vpop.f32.mrf.mxu0
        %1321 = vmatprep.mubr.bf16.mxu0 0
        %1322 = vmatmul.mubr.bf16.gmra.mxu0 %v1109
        %v1323 = vpop.f32.mrf.mxu0
        %v1324 = vadd.f32 %v1151, %v1323
        %v1325 = vpop.f32.mrf.mxu0
        %v1326 = vpop.f32.mrf.mxu0
        %v1327 = vadd.f32 %v1151, %v1326
        %v1328 = vpop.f32.mrf.mxu0
        %1329 = vmatprep.mubr.bf16.mxu0 0
        %1330 = vmatmul.mubr.bf16.gmra.mxu0 %v1110
        %v1331 = vpop.f32.mrf.mxu0
        %v1332 = vadd.f32 %v1151, %v1331
        %v1333 = vpop.f32.mrf.mxu0
        %v1334 = vpop.f32.mrf.mxu0
        %v1335 = vadd.f32 %v1151, %v1334
        %v1336 = vpop.f32.mrf.mxu0
        %1337 = vmatprep.mubr.bf16.mxu0 0
        %1338 = vmatmul.mubr.bf16.gmra.mxu0 %v1111
        %v1339 = vpop.f32.mrf.mxu0
        %v1340 = vadd.f32 %v1151, %v1339
        %v1341 = vpop.f32.mrf.mxu0
        %v1342 = vpop.f32.mrf.mxu0
        %v1343 = vadd.f32 %v1151, %v1342
        %v1344 = vpop.f32.mrf.mxu0
        %1345 = vmatprep.mubr.bf16.mxu0 0
        %1346 = vmatmul.mubr.bf16.gmra.mxu0 %v1112
        %v1347 = vpop.f32.mrf.mxu0
        %v1348 = vadd.f32 %v1151, %v1347
        %v1349 = vpop.f32.mrf.mxu0
        %v1350 = vpop.f32.mrf.mxu0
        %v1351 = vadd.f32 %v1151, %v1350
        %v1352 = vpop.f32.mrf.mxu0
        %1353 = vmatprep.mubr.bf16.mxu0 0
        %1354 = vmatmul.mubr.bf16.gmra.mxu0 %v1113
        %v1355 = vpop.f32.mrf.mxu0
        %v1356 = vadd.f32 %v1151, %v1355
        %v1357 = vpop.f32.mrf.mxu0
        %v1358 = vpop.f32.mrf.mxu0
        %v1359 = vadd.f32 %v1151, %v1358
        %v1360 = vpop.f32.mrf.mxu0
        %1361 = vmatprep.mubr.bf16.mxu0 0
        %1362 = vmatmul.mubr.bf16.gmra.mxu0 %v1114
        %v1363 = vpop.f32.mrf.mxu0
        %v1364 = vadd.f32 %v1151, %v1363
        %v1365 = vpop.f32.mrf.mxu0
        %v1366 = vpop.f32.mrf.mxu0
        %v1367 = vadd.f32 %v1151, %v1366
        %v1368 = vpop.f32.mrf.mxu0
        %1369 = vmatprep.mubr.bf16.mxu0 0
        %1370 = vmatmul.mubr.bf16.gmra.mxu0 %v1115
        %v1371 = vpop.f32.mrf.mxu0
        %v1372 = vadd.f32 %v1151, %v1371
        %v1373 = vpop.f32.mrf.mxu0
        %v1374 = vpop.f32.mrf.mxu0
        %v1375 = vadd.f32 %v1151, %v1374
        %v1376 = vpop.f32.mrf.mxu0
        %1377 = vmatprep.mubr.bf16.mxu0 0
        %1378 = vmatmul.mubr.bf16.gmra.mxu0 %v1116
        %v1379 = vpop.f32.mrf.mxu0
        %v1380 = vadd.f32 %v1151, %v1379
        %v1381 = vpop.f32.mrf.mxu0
        %v1382 = vpop.f32.mrf.mxu0
        %v1383 = vadd.f32 %v1151, %v1382
        %v1384 = vpop.f32.mrf.mxu0
        %1385 = vmatprep.mubr.bf16.mxu0 0
        %1386 = vmatmul.mubr.bf16.gmra.mxu0 %v1117
        %v1387 = vpop.f32.mrf.mxu0
        %v1388 = vadd.f32 %v1151, %v1387
        %v1389 = vpop.f32.mrf.mxu0
        %v1390 = vpop.f32.mrf.mxu0
        %v1391 = vadd.f32 %v1151, %v1390
        %v1392 = vpop.f32.mrf.mxu0
        %1393 = vmatprep.mubr.bf16.mxu0 0
        %1394 = vmatmul.mubr.bf16.gmra.mxu0 %v1118
        %v1395 = vpop.f32.mrf.mxu0
        %v1396 = vadd.f32 %v1151, %v1395
        %v1397 = vpop.f32.mrf.mxu0
        %v1398 = vpop.f32.mrf.mxu0
        %v1399 = vadd.f32 %v1151, %v1398
        %v1400 = vpop.f32.mrf.mxu0
        %1401 = vmatprep.mubr.bf16.mxu0 0
        %1402 = vmatmul.mubr.bf16.gmra.mxu0 %v1119
        %v1403 = vpop.f32.mrf.mxu0
        %v1404 = vadd.f32 %v1151, %v1403
        %v1405 = vpop.f32.mrf.mxu0
        %v1406 = vpop.f32.mrf.mxu0
        %v1407 = vadd.f32 %v1151, %v1406
        %v1408 = vpop.f32.mrf.mxu0
        %1409 = vmatprep.mubr.bf16.mxu0 0
        %1410 = vmatmul.mubr.bf16.gmra.mxu0 %v1120
        %v1411 = vpop.f32.mrf.mxu0
        %v1412 = vadd.f32 %v1151, %v1411
        %v1413 = vpop.f32.mrf.mxu0
        %v1414 = vpop.f32.mrf.mxu0
        %v1415 = vadd.f32 %v1151, %v1414
        %v1416 = vpop.f32.mrf.mxu0
        %1417 = vmatprep.mubr.bf16.mxu0 0
        %1418 = vmatmul.mubr.bf16.gmra.mxu0 %v1121
        %v1419 = vpop.f32.mrf.mxu0
        %v1420 = vadd.f32 %v1151, %v1419
        %v1421 = vpop.f32.mrf.mxu0
        %v1422 = vpop.f32.mrf.mxu0
        %v1423 = vadd.f32 %v1151, %v1422
        %v1424 = vpop.f32.mrf.mxu0
        %1425 = vmatprep.mubr.bf16.mxu0 0
        %1426 = vmatmul.mubr.bf16.gmra.mxu0 %v1122
        %v1427 = vpop.f32.mrf.mxu0
        %v1428 = vadd.f32 %v1151, %v1427
        %v1429 = vpop.f32.mrf.mxu0
        %v1430 = vpop.f32.mrf.mxu0
        %v1431 = vadd.f32 %v1151, %v1430
        %v1432 = vpop.f32.mrf.mxu0
        %1433 = vmatprep.mubr.bf16.mxu0 0
        %1434 = vmatmul.mubr.bf16.gmra.mxu0 %v1123
        %v1435 = vpop.f32.mrf.mxu0
        %v1436 = vadd.f32 %v1151, %v1435
        %v1437 = vpop.f32.mrf.mxu0
        %v1438 = vpop.f32.mrf.mxu0
        %v1439 = vadd.f32 %v1151, %v1438
        %v1440 = vpop.f32.mrf.mxu0
        %1441 = vmatprep.mubr.bf16.mxu0 0
        %1442 = vmatmul.mubr.bf16.gmra.mxu0 %v1124
        %v1443 = vpop.f32.mrf.mxu0
        %v1444 = vadd.f32 %v1151, %v1443
        %v1445 = vpop.f32.mrf.mxu0
        %v1446 = vpop.f32.mrf.mxu0
        %v1447 = vadd.f32 %v1151, %v1446
        %v1448 = vpop.f32.mrf.mxu0
        %1449 = vmatprep.mubr.bf16.mxu0 0
        %1450 = vmatmul.mubr.bf16.gmra.mxu0 %v1125
        %v1451 = vpop.f32.mrf.mxu0
        %v1452 = vadd.f32 %v1151, %v1451
        %v1453 = vpop.f32.mrf.mxu0
        %v1454 = vpop.f32.mrf.mxu0
        %v1455 = vadd.f32 %v1151, %v1454
        %v1456 = vpop.f32.mrf.mxu0
        %1457 = vmatprep.mubr.bf16.mxu0 0
        %1458 = vmatmul.mubr.bf16.gmra.mxu0 %v1126
        %v1459 = vpop.f32.mrf.mxu0
        %v1460 = vadd.f32 %v1151, %v1459
        %v1461 = vpop.f32.mrf.mxu0
        %v1462 = vpop.f32.mrf.mxu0
        %v1463 = vadd.f32 %v1151, %v1462
        %v1464 = vpop.f32.mrf.mxu0
        %1465 = vmatprep.mubr.bf16.mxu0 0
        %1466 = vmatmul.mubr.bf16.gmra.mxu0 %v1127
        %v1467 = vpop.f32.mrf.mxu0
        %v1468 = vadd.f32 %v1151, %v1467
        %v1469 = vpop.f32.mrf.mxu0
        %v1470 = vpop.f32.mrf.mxu0
        %v1471 = vadd.f32 %v1151, %v1470
        %v1472 = vpop.f32.mrf.mxu0
        %1473 = vmatprep.mubr.bf16.mxu0 0
        %1474 = vmatmul.mubr.bf16.gmra.mxu0 %v1128
        %v1475 = vpop.f32.mrf.mxu0
        %v1476 = vadd.f32 %v1151, %v1475
        %v1477 = vpop.f32.mrf.mxu0
        %v1478 = vpop.f32.mrf.mxu0
        %v1479 = vadd.f32 %v1151, %v1478
        %v1480 = vpop.f32.mrf.mxu0
        %1481 = vmatprep.mubr.bf16.mxu0 0
        %1482 = vmatmul.mubr.bf16.gmra.mxu0 %v1129
        %v1483 = vpop.f32.mrf.mxu0
        %v1484 = vadd.f32 %v1151, %v1483
        %v1485 = vpop.f32.mrf.mxu0
        %v1486 = vpop.f32.mrf.mxu0
        %v1487 = vadd.f32 %v1151, %v1486
        %v1488 = vpop.f32.mrf.mxu0
        %1489 = vdwg.mxu0
        %v1490 = vmax.f32 %v1236, 0.0
        %v1491 = vmax.f32 %v1239, 0.0
        %v1492 = vmax.f32 %v1244, 0.0
        %v1493 = vmax.f32 %v1247, 0.0
        %v1494 = vmax.f32 %v1252, 0.0
        %v1495 = vmax.f32 %v1255, 0.0
        %v1496 = vmax.f32 %v1260, 0.0
        %v1497 = vmax.f32 %v1263, 0.0
        %v1498 = vmax.f32 %v1268, 0.0
        %v1499 = vmax.f32 %v1271, 0.0
        %v1500 = vmax.f32 %v1276, 0.0
        %v1501 = vmax.f32 %v1279, 0.0
        %v1502 = vmax.f32 %v1284, 0.0
        %v1503 = vmax.f32 %v1287, 0.0
        %v1504 = vmax.f32 %v1292, 0.0
        %v1505 = vmax.f32 %v1295, 0.0
        %v1506 = vmax.f32 %v1300, 0.0
        %v1507 = vmax.f32 %v1303, 0.0
        %v1508 = vmax.f32 %v1308, 0.0
        %v1509 = vmax.f32 %v1311, 0.0
        %v1510 = vmax.f32 %v1316, 0.0
        %v1511 = vmax.f32 %v1319, 0.0
        %v1512 = vmax.f32 %v1324, 0.0
        %v1513 = vmax.f32 %v1327, 0.0
        %v1514 = vmax.f32 %v1332, 0.0
        %v1515 = vmax.f32 %v1335, 0.0
        %v1516 = vmax.f32 %v1340, 0.0
        %v1517 = vmax.f32 %v1343, 0.0
        %v1518 = vmax.f32 %v1348, 0.0
        %v1519 = vmax.f32 %v1351, 0.0
        %v1520 = vmax.f32 %v1356, 0.0
        %v1521 = vmax.f32 %v1359, 0.0
        %v1522 = vmax.f32 %v1364, 0.0
        %v1523 = vmax.f32 %v1367, 0.0
        %v1524 = vmax.f32 %v1372, 0.0
        %v1525 = vmax.f32 %v1375, 0.0
        %v1526 = vmax.f32 %v1380, 0.0
        %v1527 = vmax.f32 %v1383, 0.0
        %v1528 = vmax.f32 %v1388, 0.0
        %v1529 = vmax.f32 %v1391, 0.0
        %v1530 = vmax.f32 %v1396, 0.0
        %v1531 = vmax.f32 %v1399, 0.0
        %v1532 = vmax.f32 %v1404, 0.0
        %v1533 = vmax.f32 %v1407, 0.0
        %v1534 = vmax.f32 %v1412, 0.0
        %v1535 = vmax.f32 %v1415, 0.0
        %v1536 = vmax.f32 %v1420, 0.0
        %v1537 = vmax.f32 %v1423, 0.0
        %v1538 = vmax.f32 %v1428, 0.0
        %v1539 = vmax.f32 %v1431, 0.0
        %v1540 = vmax.f32 %v1436, 0.0
        %v1541 = vmax.f32 %v1439, 0.0
        %v1542 = vmax.f32 %v1444, 0.0
        %v1543 = vmax.f32 %v1447, 0.0
        %v1544 = vmax.f32 %v1452, 0.0
        %v1545 = vmax.f32 %v1455, 0.0
        %v1546 = vmax.f32 %v1460, 0.0
        %v1547 = vmax.f32 %v1463, 0.0
        %v1548 = vmax.f32 %v1468, 0.0
        %v1549 = vmax.f32 %v1471, 0.0
        %v1550 = vmax.f32 %v1476, 0.0
        %v1551 = vmax.f32 %v1479, 0.0
        %v1552 = vmax.f32 %v1484, 0.0
        %v1553 = vmax.f32 %v1487, 0.0
        %v1554 = vpack.c.bf16 %v1491, %v1490
        %v1555 = vpack.c.bf16 %v1493, %v1492
        %v1556 = vpack.c.bf16 %v1495, %v1494
        %v1557 = vpack.c.bf16 %v1497, %v1496
        %v1558 = vpack.c.bf16 %v1499, %v1498
        %v1559 = vpack.c.bf16 %v1501, %v1500
        %v1560 = vpack.c.bf16 %v1503, %v1502
        %v1561 = vpack.c.bf16 %v1505, %v1504
        %v1562 = vpack.c.bf16 %v1507, %v1506
        %v1563 = vpack.c.bf16 %v1509, %v1508
        %v1564 = vpack.c.bf16 %v1511, %v1510
        %v1565 = vpack.c.bf16 %v1513, %v1512
        %v1566 = vpack.c.bf16 %v1515, %v1514
        %v1567 = vpack.c.bf16 %v1517, %v1516
        %v1568 = vpack.c.bf16 %v1519, %v1518
        %v1569 = vpack.c.bf16 %v1521, %v1520
        %v1570 = vpack.c.bf16 %v1523, %v1522
        %v1571 = vpack.c.bf16 %v1525, %v1524
        %v1572 = vpack.c.bf16 %v1527, %v1526
        %v1573 = vpack.c.bf16 %v1529, %v1528
        %v1574 = vpack.c.bf16 %v1531, %v1530
        %v1575 = vpack.c.bf16 %v1533, %v1532
        %v1576 = vpack.c.bf16 %v1535, %v1534
        %v1577 = vpack.c.bf16 %v1537, %v1536
        %v1578 = vpack.c.bf16 %v1539, %v1538
        %v1579 = vpack.c.bf16 %v1541, %v1540
        %v1580 = vpack.c.bf16 %v1543, %v1542
        %v1581 = vpack.c.bf16 %v1545, %v1544
        %v1582 = vpack.c.bf16 %v1547, %v1546
        %v1583 = vpack.c.bf16 %v1549, %v1548
        %v1584 = vpack.c.bf16 %v1551, %v1550
        %v1585 = vpack.c.bf16 %v1553, %v1552
        %v1586 = vld [vmem:[%s5] sm:$0xff]
        %v1587 = vld [vmem:[%s5 + $0x8] sm:$0xff]
        %v1588 = vld [vmem:[%s5 + $0x10] sm:$0xff]
        %v1589 = vld [vmem:[%s5 + $0x18] sm:$0xff]
        %v1590 = vld [vmem:[%s5 + $0x20] sm:$0xff]
        %v1591 = vld [vmem:[%s5 + $0x28] sm:$0xff]
        %v1592 = vld [vmem:[%s5 + $0x30] sm:$0xff]
        %v1593 = vld [vmem:[%s5 + $0x38] sm:$0xff]
        %v1594 = vld [vmem:[%s5 + $0x40] sm:$0xff]
        %v1595 = vld [vmem:[%s5 + $0x48] sm:$0xff]
        %v1596 = vld [vmem:[%s5 + $0x50] sm:$0xff]
        %v1597 = vld [vmem:[%s5 + $0x58] sm:$0xff]
        %v1598 = vld [vmem:[%s5 + $0x60] sm:$0xff]
        %v1599 = vld [vmem:[%s5 + $0x68] sm:$0xff]
        %v1600 = vld [vmem:[%s5 + $0x70] sm:$0xff]
        %v1601 = vld [vmem:[%s5 + $0x78] sm:$0xff]
        %v1602 = vld [vmem:[%s6] sm:$0x3]
        %v1604 = vlaneseq
        %v1605 = vshrl.u32 %v1604, 7
        %v1606 = vsub.s32 0, %v1605
        %v1607 = vrot.slane %v1602, %v1606
        %v1608 = vlaneseq
        %v1609 = vshrl.u32 %v1608, 7
        %v1610 = vsub.s32 1, %v1609
        %v1611 = vrot.slane %v1602, %v1610
        %v1630 = vunpack.c.l.b16 %v1586
        %v1631 = vunpack.c.h.b16 %v1586
        %v1632 = vunpack.c.l.b16 %v1587
        %v1633 = vunpack.c.h.b16 %v1587
        %v1634 = vunpack.c.l.b16 %v1588
        %v1635 = vunpack.c.h.b16 %v1588
        %v1636 = vunpack.c.l.b16 %v1589
        %v1637 = vunpack.c.h.b16 %v1589
        %v1638 = vunpack.c.l.b16 %v1590
        %v1639 = vunpack.c.h.b16 %v1590
        %v1640 = vunpack.c.l.b16 %v1591
        %v1641 = vunpack.c.h.b16 %v1591
        %v1642 = vunpack.c.l.b16 %v1592
        %v1643 = vunpack.c.h.b16 %v1592
        %v1644 = vunpack.c.l.b16 %v1593
        %v1645 = vunpack.c.h.b16 %v1593
        %v1646 = vunpack.c.l.b16 %v1594
        %v1647 = vunpack.c.h.b16 %v1594
        %v1648 = vunpack.c.l.b16 %v1595
        %v1649 = vunpack.c.h.b16 %v1595
        %v1650 = vunpack.c.l.b16 %v1596
        %v1651 = vunpack.c.h.b16 %v1596
        %v1652 = vunpack.c.l.b16 %v1597
        %v1653 = vunpack.c.h.b16 %v1597
        %v1654 = vunpack.c.l.b16 %v1598
        %v1655 = vunpack.c.h.b16 %v1598
        %v1656 = vunpack.c.l.b16 %v1599
        %v1657 = vunpack.c.h.b16 %v1599
        %v1658 = vunpack.c.l.b16 %v1600
        %v1659 = vunpack.c.h.b16 %v1600
        %v1660 = vunpack.c.l.b16 %v1601
        %v1661 = vunpack.c.h.b16 %v1601
        %v1662 = vpack.c.b16 %v1632, %v1630
        %v1663 = vpack.c.b16 %v1633, %v1631
        %v1664 = vpack.c.b16 %v1636, %v1634
        %v1665 = vpack.c.b16 %v1637, %v1635
        %v1666 = vpack.c.b16 %v1640, %v1638
        %v1667 = vpack.c.b16 %v1641, %v1639
        %v1668 = vpack.c.b16 %v1644, %v1642
        %v1669 = vpack.c.b16 %v1645, %v1643
        %v1670 = vpack.c.b16 %v1648, %v1646
        %v1671 = vpack.c.b16 %v1649, %v1647
        %v1672 = vpack.c.b16 %v1652, %v1650
        %v1673 = vpack.c.b16 %v1653, %v1651
        %v1674 = vpack.c.b16 %v1656, %v1654
        %v1675 = vpack.c.b16 %v1657, %v1655
        %v1676 = vpack.c.b16 %v1660, %v1658
        %v1677 = vpack.c.b16 %v1661, %v1659
        %1694 = vmatprep.subr.bf16.mxu0 %v1677
        %1695 = vmatpush1.bf16.msra.mxu0 %v1676
        %1696 = vmatprep.subr.bf16.mxu0 %v1675
        %1697 = vmatpush1.bf16.msra.mxu0 %v1674
        %1698 = vmatprep.subr.bf16.mxu0 %v1673
        %1699 = vmatpush1.bf16.msra.mxu0 %v1672
        %1700 = vmatprep.subr.bf16.mxu0 %v1671
        %1701 = vmatpush1.bf16.msra.mxu0 %v1670
        %1702 = vmatprep.subr.bf16.mxu0 %v1669
        %1703 = vmatpush1.bf16.msra.mxu0 %v1668
        %1704 = vmatprep.subr.bf16.mxu0 %v1667
        %1705 = vmatpush1.bf16.msra.mxu0 %v1666
        %1706 = vmatprep.subr.bf16.mxu0 %v1665
        %1707 = vmatpush1.bf16.msra.mxu0 %v1664
        %1708 = vmatprep.subr.bf16.mxu0 %v1663
        %1709 = vmatpush1.bf16.msra.mxu0 %v1662
        %1710 = vmatprep.subr.bf16.mxu0 0
        %1711 = vmatpush2.bf16.msra.mxu0 0
        %1712 = vmatprep.subr.bf16.mxu0 0
        %1713 = vmatpush2.bf16.msra.mxu0 0
        %1714 = vmatprep.subr.bf16.mxu0 0
        %1715 = vmatpush2.bf16.msra.mxu0 0
        %1716 = vmatprep.subr.bf16.mxu0 0
        %1717 = vmatpush2.bf16.msra.mxu0 0
        %1718 = vmatprep.subr.bf16.mxu0 0
        %1719 = vmatpush2.bf16.msra.mxu0 0
        %1720 = vmatprep.subr.bf16.mxu0 0
        %1721 = vmatpush2.bf16.msra.mxu0 0
        %1722 = vmatprep.subr.bf16.mxu0 0
        %1723 = vmatpush2.bf16.msra.mxu0 0
        %1724 = vmatprep.subr.bf16.mxu0 0
        %1725 = vmatpush2.bf16.msra.mxu0 0
        %1726 = vmatprep.mubr.bf16.mxu0 0
        %1727 = vmatmul.mubr.bf16.gmra.mxu0 %v1554
        %v1728 = vpop.f32.mrf.mxu0
        %v1729 = vadd.f32 %v1607, %v1728
        %v1730 = vpop.f32.mrf.mxu0
        %v1731 = vadd.f32 %v1611, %v1730
        %v1732 = vpop.f32.mrf.mxu0
        %v1733 = vadd.f32 %v1607, %v1732
        %v1734 = vpop.f32.mrf.mxu0
        %v1735 = vadd.f32 %v1611, %v1734
        %1736 = vmatprep.mubr.bf16.mxu0 0
        %1737 = vmatmul.mubr.bf16.gmra.mxu0 %v1555
        %v1738 = vpop.f32.mrf.mxu0
        %v1739 = vadd.f32 %v1607, %v1738
        %v1740 = vpop.f32.mrf.mxu0
        %v1741 = vadd.f32 %v1611, %v1740
        %v1742 = vpop.f32.mrf.mxu0
        %v1743 = vadd.f32 %v1607, %v1742
        %v1744 = vpop.f32.mrf.mxu0
        %v1745 = vadd.f32 %v1611, %v1744
        %1746 = vmatprep.mubr.bf16.mxu0 0
        %1747 = vmatmul.mubr.bf16.gmra.mxu0 %v1556
        %v1748 = vpop.f32.mrf.mxu0
        %v1749 = vadd.f32 %v1607, %v1748
        %v1750 = vpop.f32.mrf.mxu0
        %v1751 = vadd.f32 %v1611, %v1750
        %v1752 = vpop.f32.mrf.mxu0
        %v1753 = vadd.f32 %v1607, %v1752
        %v1754 = vpop.f32.mrf.mxu0
        %v1755 = vadd.f32 %v1611, %v1754
        %1756 = vmatprep.mubr.bf16.mxu0 0
        %1757 = vmatmul.mubr.bf16.gmra.mxu0 %v1557
        %v1758 = vpop.f32.mrf.mxu0
        %v1759 = vadd.f32 %v1607, %v1758
        %v1760 = vpop.f32.mrf.mxu0
        %v1761 = vadd.f32 %v1611, %v1760
        %v1762 = vpop.f32.mrf.mxu0
        %v1763 = vadd.f32 %v1607, %v1762
        %v1764 = vpop.f32.mrf.mxu0
        %v1765 = vadd.f32 %v1611, %v1764
        %1766 = vmatprep.mubr.bf16.mxu0 0
        %1767 = vmatmul.mubr.bf16.gmra.mxu0 %v1558
        %v1768 = vpop.f32.mrf.mxu0
        %v1769 = vadd.f32 %v1607, %v1768
        %v1770 = vpop.f32.mrf.mxu0
        %v1771 = vadd.f32 %v1611, %v1770
        %v1772 = vpop.f32.mrf.mxu0
        %v1773 = vadd.f32 %v1607, %v1772
        %v1774 = vpop.f32.mrf.mxu0
        %v1775 = vadd.f32 %v1611, %v1774
        %1776 = vmatprep.mubr.bf16.mxu0 0
        %1777 = vmatmul.mubr.bf16.gmra.mxu0 %v1559
        %v1778 = vpop.f32.mrf.mxu0
        %v1779 = vadd.f32 %v1607, %v1778
        %v1780 = vpop.f32.mrf.mxu0
        %v1781 = vadd.f32 %v1611, %v1780
        %v1782 = vpop.f32.mrf.mxu0
        %v1783 = vadd.f32 %v1607, %v1782
        %v1784 = vpop.f32.mrf.mxu0
        %v1785 = vadd.f32 %v1611, %v1784
        %1786 = vmatprep.mubr.bf16.mxu0 0
        %1787 = vmatmul.mubr.bf16.gmra.mxu0 %v1560
        %v1788 = vpop.f32.mrf.mxu0
        %v1789 = vadd.f32 %v1607, %v1788
        %v1790 = vpop.f32.mrf.mxu0
        %v1791 = vadd.f32 %v1611, %v1790
        %v1792 = vpop.f32.mrf.mxu0
        %v1793 = vadd.f32 %v1607, %v1792
        %v1794 = vpop.f32.mrf.mxu0
        %v1795 = vadd.f32 %v1611, %v1794
        %1796 = vmatprep.mubr.bf16.mxu0 0
        %1797 = vmatmul.mubr.bf16.gmra.mxu0 %v1561
        %v1798 = vpop.f32.mrf.mxu0
        %v1799 = vadd.f32 %v1607, %v1798
        %v1800 = vpop.f32.mrf.mxu0
        %v1801 = vadd.f32 %v1611, %v1800
        %v1802 = vpop.f32.mrf.mxu0
        %v1803 = vadd.f32 %v1607, %v1802
        %v1804 = vpop.f32.mrf.mxu0
        %v1805 = vadd.f32 %v1611, %v1804
        %1806 = vmatprep.mubr.bf16.mxu0 0
        %1807 = vmatmul.mubr.bf16.gmra.mxu0 %v1562
        %v1808 = vpop.f32.mrf.mxu0
        %v1809 = vadd.f32 %v1607, %v1808
        %v1810 = vpop.f32.mrf.mxu0
        %v1811 = vadd.f32 %v1611, %v1810
        %v1812 = vpop.f32.mrf.mxu0
        %v1813 = vadd.f32 %v1607, %v1812
        %v1814 = vpop.f32.mrf.mxu0
        %v1815 = vadd.f32 %v1611, %v1814
        %1816 = vmatprep.mubr.bf16.mxu0 0
        %1817 = vmatmul.mubr.bf16.gmra.mxu0 %v1563
        %v1818 = vpop.f32.mrf.mxu0
        %v1819 = vadd.f32 %v1607, %v1818
        %v1820 = vpop.f32.mrf.mxu0
        %v1821 = vadd.f32 %v1611, %v1820
        %v1822 = vpop.f32.mrf.mxu0
        %v1823 = vadd.f32 %v1607, %v1822
        %v1824 = vpop.f32.mrf.mxu0
        %v1825 = vadd.f32 %v1611, %v1824
        %1826 = vmatprep.mubr.bf16.mxu0 0
        %1827 = vmatmul.mubr.bf16.gmra.mxu0 %v1564
        %v1828 = vpop.f32.mrf.mxu0
        %v1829 = vadd.f32 %v1607, %v1828
        %v1830 = vpop.f32.mrf.mxu0
        %v1831 = vadd.f32 %v1611, %v1830
        %v1832 = vpop.f32.mrf.mxu0
        %v1833 = vadd.f32 %v1607, %v1832
        %v1834 = vpop.f32.mrf.mxu0
        %v1835 = vadd.f32 %v1611, %v1834
        %1836 = vmatprep.mubr.bf16.mxu0 0
        %1837 = vmatmul.mubr.bf16.gmra.mxu0 %v1565
        %v1838 = vpop.f32.mrf.mxu0
        %v1839 = vadd.f32 %v1607, %v1838
        %v1840 = vpop.f32.mrf.mxu0
        %v1841 = vadd.f32 %v1611, %v1840
        %v1842 = vpop.f32.mrf.mxu0
        %v1843 = vadd.f32 %v1607, %v1842
        %v1844 = vpop.f32.mrf.mxu0
        %v1845 = vadd.f32 %v1611, %v1844
        %1846 = vmatprep.mubr.bf16.mxu0 0
        %1847 = vmatmul.mubr.bf16.gmra.mxu0 %v1566
        %v1848 = vpop.f32.mrf.mxu0
        %v1849 = vadd.f32 %v1607, %v1848
        %v1850 = vpop.f32.mrf.mxu0
        %v1851 = vadd.f32 %v1611, %v1850
        %v1852 = vpop.f32.mrf.mxu0
        %v1853 = vadd.f32 %v1607, %v1852
        %v1854 = vpop.f32.mrf.mxu0
        %v1855 = vadd.f32 %v1611, %v1854
        %1856 = vmatprep.mubr.bf16.mxu0 0
        %1857 = vmatmul.mubr.bf16.gmra.mxu0 %v1567
        %v1858 = vpop.f32.mrf.mxu0
        %v1859 = vadd.f32 %v1607, %v1858
        %v1860 = vpop.f32.mrf.mxu0
        %v1861 = vadd.f32 %v1611, %v1860
        %v1862 = vpop.f32.mrf.mxu0
        %v1863 = vadd.f32 %v1607, %v1862
        %v1864 = vpop.f32.mrf.mxu0
        %v1865 = vadd.f32 %v1611, %v1864
        %1866 = vmatprep.mubr.bf16.mxu0 0
        %1867 = vmatmul.mubr.bf16.gmra.mxu0 %v1568
        %v1868 = vpop.f32.mrf.mxu0
        %v1869 = vadd.f32 %v1607, %v1868
        %v1870 = vpop.f32.mrf.mxu0
        %v1871 = vadd.f32 %v1611, %v1870
        %v1872 = vpop.f32.mrf.mxu0
        %v1873 = vadd.f32 %v1607, %v1872
        %v1874 = vpop.f32.mrf.mxu0
        %v1875 = vadd.f32 %v1611, %v1874
        %1876 = vmatprep.mubr.bf16.mxu0 0
        %1877 = vmatmul.mubr.bf16.gmra.mxu0 %v1569
        %v1878 = vpop.f32.mrf.mxu0
        %v1879 = vadd.f32 %v1607, %v1878
        %v1880 = vpop.f32.mrf.mxu0
        %v1881 = vadd.f32 %v1611, %v1880
        %v1882 = vpop.f32.mrf.mxu0
        %v1883 = vadd.f32 %v1607, %v1882
        %v1884 = vpop.f32.mrf.mxu0
        %v1885 = vadd.f32 %v1611, %v1884
        %1886 = vmatprep.mubr.bf16.mxu0 0
        %1887 = vmatmul.mubr.bf16.gmra.mxu0 %v1570
        %v1888 = vpop.f32.mrf.mxu0
        %v1889 = vadd.f32 %v1607, %v1888
        %v1890 = vpop.f32.mrf.mxu0
        %v1891 = vadd.f32 %v1611, %v1890
        %v1892 = vpop.f32.mrf.mxu0
        %v1893 = vadd.f32 %v1607, %v1892
        %v1894 = vpop.f32.mrf.mxu0
        %v1895 = vadd.f32 %v1611, %v1894
        %1896 = vmatprep.mubr.bf16.mxu0 0
        %1897 = vmatmul.mubr.bf16.gmra.mxu0 %v1571
        %v1898 = vpop.f32.mrf.mxu0
        %v1899 = vadd.f32 %v1607, %v1898
        %v1900 = vpop.f32.mrf.mxu0
        %v1901 = vadd.f32 %v1611, %v1900
        %v1902 = vpop.f32.mrf.mxu0
        %v1903 = vadd.f32 %v1607, %v1902
        %v1904 = vpop.f32.mrf.mxu0
        %v1905 = vadd.f32 %v1611, %v1904
        %1906 = vmatprep.mubr.bf16.mxu0 0
        %1907 = vmatmul.mubr.bf16.gmra.mxu0 %v1572
        %v1908 = vpop.f32.mrf.mxu0
        %v1909 = vadd.f32 %v1607, %v1908
        %v1910 = vpop.f32.mrf.mxu0
        %v1911 = vadd.f32 %v1611, %v1910
        %v1912 = vpop.f32.mrf.mxu0
        %v1913 = vadd.f32 %v1607, %v1912
        %v1914 = vpop.f32.mrf.mxu0
        %v1915 = vadd.f32 %v1611, %v1914
        %1916 = vmatprep.mubr.bf16.mxu0 0
        %1917 = vmatmul.mubr.bf16.gmra.mxu0 %v1573
        %v1918 = vpop.f32.mrf.mxu0
        %v1919 = vadd.f32 %v1607, %v1918
        %v1920 = vpop.f32.mrf.mxu0
        %v1921 = vadd.f32 %v1611, %v1920
        %v1922 = vpop.f32.mrf.mxu0
        %v1923 = vadd.f32 %v1607, %v1922
        %v1924 = vpop.f32.mrf.mxu0
        %v1925 = vadd.f32 %v1611, %v1924
        %1926 = vmatprep.mubr.bf16.mxu0 0
        %1927 = vmatmul.mubr.bf16.gmra.mxu0 %v1574
        %v1928 = vpop.f32.mrf.mxu0
        %v1929 = vadd.f32 %v1607, %v1928
        %v1930 = vpop.f32.mrf.mxu0
        %v1931 = vadd.f32 %v1611, %v1930
        %v1932 = vpop.f32.mrf.mxu0
        %v1933 = vadd.f32 %v1607, %v1932
        %v1934 = vpop.f32.mrf.mxu0
        %v1935 = vadd.f32 %v1611, %v1934
        %1936 = vmatprep.mubr.bf16.mxu0 0
        %1937 = vmatmul.mubr.bf16.gmra.mxu0 %v1575
        %v1938 = vpop.f32.mrf.mxu0
        %v1939 = vadd.f32 %v1607, %v1938
        %v1940 = vpop.f32.mrf.mxu0
        %v1941 = vadd.f32 %v1611, %v1940
        %v1942 = vpop.f32.mrf.mxu0
        %v1943 = vadd.f32 %v1607, %v1942
        %v1944 = vpop.f32.mrf.mxu0
        %v1945 = vadd.f32 %v1611, %v1944
        %1946 = vmatprep.mubr.bf16.mxu0 0
        %1947 = vmatmul.mubr.bf16.gmra.mxu0 %v1576
        %v1948 = vpop.f32.mrf.mxu0
        %v1949 = vadd.f32 %v1607, %v1948
        %v1950 = vpop.f32.mrf.mxu0
        %v1951 = vadd.f32 %v1611, %v1950
        %v1952 = vpop.f32.mrf.mxu0
        %v1953 = vadd.f32 %v1607, %v1952
        %v1954 = vpop.f32.mrf.mxu0
        %v1955 = vadd.f32 %v1611, %v1954
        %1956 = vmatprep.mubr.bf16.mxu0 0
        %1957 = vmatmul.mubr.bf16.gmra.mxu0 %v1577
        %v1958 = vpop.f32.mrf.mxu0
        %v1959 = vadd.f32 %v1607, %v1958
        %v1960 = vpop.f32.mrf.mxu0
        %v1961 = vadd.f32 %v1611, %v1960
        %v1962 = vpop.f32.mrf.mxu0
        %v1963 = vadd.f32 %v1607, %v1962
        %v1964 = vpop.f32.mrf.mxu0
        %v1965 = vadd.f32 %v1611, %v1964
        %1966 = vmatprep.mubr.bf16.mxu0 0
        %1967 = vmatmul.mubr.bf16.gmra.mxu0 %v1578
        %v1968 = vpop.f32.mrf.mxu0
        %v1969 = vadd.f32 %v1607, %v1968
        %v1970 = vpop.f32.mrf.mxu0
        %v1971 = vadd.f32 %v1611, %v1970
        %v1972 = vpop.f32.mrf.mxu0
        %v1973 = vadd.f32 %v1607, %v1972
        %v1974 = vpop.f32.mrf.mxu0
        %v1975 = vadd.f32 %v1611, %v1974
        %1976 = vmatprep.mubr.bf16.mxu0 0
        %1977 = vmatmul.mubr.bf16.gmra.mxu0 %v1579
        %v1978 = vpop.f32.mrf.mxu0
        %v1979 = vadd.f32 %v1607, %v1978
        %v1980 = vpop.f32.mrf.mxu0
        %v1981 = vadd.f32 %v1611, %v1980
        %v1982 = vpop.f32.mrf.mxu0
        %v1983 = vadd.f32 %v1607, %v1982
        %v1984 = vpop.f32.mrf.mxu0
        %v1985 = vadd.f32 %v1611, %v1984
        %1986 = vmatprep.mubr.bf16.mxu0 0
        %1987 = vmatmul.mubr.bf16.gmra.mxu0 %v1580
        %v1988 = vpop.f32.mrf.mxu0
        %v1989 = vadd.f32 %v1607, %v1988
        %v1990 = vpop.f32.mrf.mxu0
        %v1991 = vadd.f32 %v1611, %v1990
        %v1992 = vpop.f32.mrf.mxu0
        %v1993 = vadd.f32 %v1607, %v1992
        %v1994 = vpop.f32.mrf.mxu0
        %v1995 = vadd.f32 %v1611, %v1994
        %1996 = vmatprep.mubr.bf16.mxu0 0
        %1997 = vmatmul.mubr.bf16.gmra.mxu0 %v1581
        %v1998 = vpop.f32.mrf.mxu0
        %v1999 = vadd.f32 %v1607, %v1998
        %v2000 = vpop.f32.mrf.mxu0
        %v2001 = vadd.f32 %v1611, %v2000
        %v2002 = vpop.f32.mrf.mxu0
        %v2003 = vadd.f32 %v1607, %v2002
        %v2004 = vpop.f32.mrf.mxu0
        %v2005 = vadd.f32 %v1611, %v2004
        %2006 = vmatprep.mubr.bf16.mxu0 0
        %2007 = vmatmul.mubr.bf16.gmra.mxu0 %v1582
        %v2008 = vpop.f32.mrf.mxu0
        %v2009 = vadd.f32 %v1607, %v2008
        %v2010 = vpop.f32.mrf.mxu0
        %v2011 = vadd.f32 %v1611, %v2010
        %v2012 = vpop.f32.mrf.mxu0
        %v2013 = vadd.f32 %v1607, %v2012
        %v2014 = vpop.f32.mrf.mxu0
        %v2015 = vadd.f32 %v1611, %v2014
        %2016 = vmatprep.mubr.bf16.mxu0 0
        %2017 = vmatmul.mubr.bf16.gmra.mxu0 %v1583
        %v2018 = vpop.f32.mrf.mxu0
        %v2019 = vadd.f32 %v1607, %v2018
        %v2020 = vpop.f32.mrf.mxu0
        %v2021 = vadd.f32 %v1611, %v2020
        %v2022 = vpop.f32.mrf.mxu0
        %v2023 = vadd.f32 %v1607, %v2022
        %v2024 = vpop.f32.mrf.mxu0
        %v2025 = vadd.f32 %v1611, %v2024
        %2026 = vmatprep.mubr.bf16.mxu0 0
        %2027 = vmatmul.mubr.bf16.gmra.mxu0 %v1584
        %v2028 = vpop.f32.mrf.mxu0
        %v2029 = vadd.f32 %v1607, %v2028
        %v2030 = vpop.f32.mrf.mxu0
        %v2031 = vadd.f32 %v1611, %v2030
        %v2032 = vpop.f32.mrf.mxu0
        %v2033 = vadd.f32 %v1607, %v2032
        %v2034 = vpop.f32.mrf.mxu0
        %v2035 = vadd.f32 %v1611, %v2034
        %2036 = vmatprep.mubr.bf16.mxu0 0
        %2037 = vmatmul.mubr.bf16.gmra.mxu0 %v1585
        %v2038 = vpop.f32.mrf.mxu0
        %v2039 = vadd.f32 %v1607, %v2038
        %v2040 = vpop.f32.mrf.mxu0
        %v2041 = vadd.f32 %v1611, %v2040
        %v2042 = vpop.f32.mrf.mxu0
        %v2043 = vadd.f32 %v1607, %v2042
        %v2044 = vpop.f32.mrf.mxu0
        %v2045 = vadd.f32 %v1611, %v2044
        %2046 = vdwg.mxu0
        %v2047 = vmax.f32 %v1729, 0.0
        %v2048 = vmax.f32 %v1731, 0.0
        %v2049 = vmax.f32 %v1733, 0.0
        %v2050 = vmax.f32 %v1735, 0.0
        %v2051 = vmax.f32 %v1739, 0.0
        %v2052 = vmax.f32 %v1741, 0.0
        %v2053 = vmax.f32 %v1743, 0.0
        %v2054 = vmax.f32 %v1745, 0.0
        %v2055 = vmax.f32 %v1749, 0.0
        %v2056 = vmax.f32 %v1751, 0.0
        %v2057 = vmax.f32 %v1753, 0.0
        %v2058 = vmax.f32 %v1755, 0.0
        %v2059 = vmax.f32 %v1759, 0.0
        %v2060 = vmax.f32 %v1761, 0.0
        %v2061 = vmax.f32 %v1763, 0.0
        %v2062 = vmax.f32 %v1765, 0.0
        %v2063 = vmax.f32 %v1769, 0.0
        %v2064 = vmax.f32 %v1771, 0.0
        %v2065 = vmax.f32 %v1773, 0.0
        %v2066 = vmax.f32 %v1775, 0.0
        %v2067 = vmax.f32 %v1779, 0.0
        %v2068 = vmax.f32 %v1781, 0.0
        %v2069 = vmax.f32 %v1783, 0.0
        %v2070 = vmax.f32 %v1785, 0.0
        %v2071 = vmax.f32 %v1789, 0.0
        %v2072 = vmax.f32 %v1791, 0.0
        %v2073 = vmax.f32 %v1793, 0.0
        %v2074 = vmax.f32 %v1795, 0.0
        %v2075 = vmax.f32 %v1799, 0.0
        %v2076 = vmax.f32 %v1801, 0.0
        %v2077 = vmax.f32 %v1803, 0.0
        %v2078 = vmax.f32 %v1805, 0.0
        %v2079 = vmax.f32 %v1809, 0.0
        %v2080 = vmax.f32 %v1811, 0.0
        %v2081 = vmax.f32 %v1813, 0.0
        %v2082 = vmax.f32 %v1815, 0.0
        %v2083 = vmax.f32 %v1819, 0.0
        %v2084 = vmax.f32 %v1821, 0.0
        %v2085 = vmax.f32 %v1823, 0.0
        %v2086 = vmax.f32 %v1825, 0.0
        %v2087 = vmax.f32 %v1829, 0.0
        %v2088 = vmax.f32 %v1831, 0.0
        %v2089 = vmax.f32 %v1833, 0.0
        %v2090 = vmax.f32 %v1835, 0.0
        %v2091 = vmax.f32 %v1839, 0.0
        %v2092 = vmax.f32 %v1841, 0.0
        %v2093 = vmax.f32 %v1843, 0.0
        %v2094 = vmax.f32 %v1845, 0.0
        %v2095 = vmax.f32 %v1849, 0.0
        %v2096 = vmax.f32 %v1851, 0.0
        %v2097 = vmax.f32 %v1853, 0.0
        %v2098 = vmax.f32 %v1855, 0.0
        %v2099 = vmax.f32 %v1859, 0.0
        %v2100 = vmax.f32 %v1861, 0.0
        %v2101 = vmax.f32 %v1863, 0.0
        %v2102 = vmax.f32 %v1865, 0.0
        %v2103 = vmax.f32 %v1869, 0.0
        %v2104 = vmax.f32 %v1871, 0.0
        %v2105 = vmax.f32 %v1873, 0.0
        %v2106 = vmax.f32 %v1875, 0.0
        %v2107 = vmax.f32 %v1879, 0.0
        %v2108 = vmax.f32 %v1881, 0.0
        %v2109 = vmax.f32 %v1883, 0.0
        %v2110 = vmax.f32 %v1885, 0.0
        %v2111 = vmax.f32 %v1889, 0.0
        %v2112 = vmax.f32 %v1891, 0.0
        %v2113 = vmax.f32 %v1893, 0.0
        %v2114 = vmax.f32 %v1895, 0.0
        %v2115 = vmax.f32 %v1899, 0.0
        %v2116 = vmax.f32 %v1901, 0.0
        %v2117 = vmax.f32 %v1903, 0.0
        %v2118 = vmax.f32 %v1905, 0.0
        %v2119 = vmax.f32 %v1909, 0.0
        %v2120 = vmax.f32 %v1911, 0.0
        %v2121 = vmax.f32 %v1913, 0.0
        %v2122 = vmax.f32 %v1915, 0.0
        %v2123 = vmax.f32 %v1919, 0.0
        %v2124 = vmax.f32 %v1921, 0.0
        %v2125 = vmax.f32 %v1923, 0.0
        %v2126 = vmax.f32 %v1925, 0.0
        %v2127 = vmax.f32 %v1929, 0.0
        %v2128 = vmax.f32 %v1931, 0.0
        %v2129 = vmax.f32 %v1933, 0.0
        %v2130 = vmax.f32 %v1935, 0.0
        %v2131 = vmax.f32 %v1939, 0.0
        %v2132 = vmax.f32 %v1941, 0.0
        %v2133 = vmax.f32 %v1943, 0.0
        %v2134 = vmax.f32 %v1945, 0.0
        %v2135 = vmax.f32 %v1949, 0.0
        %v2136 = vmax.f32 %v1951, 0.0
        %v2137 = vmax.f32 %v1953, 0.0
        %v2138 = vmax.f32 %v1955, 0.0
        %v2139 = vmax.f32 %v1959, 0.0
        %v2140 = vmax.f32 %v1961, 0.0
        %v2141 = vmax.f32 %v1963, 0.0
        %v2142 = vmax.f32 %v1965, 0.0
        %v2143 = vmax.f32 %v1969, 0.0
        %v2144 = vmax.f32 %v1971, 0.0
        %v2145 = vmax.f32 %v1973, 0.0
        %v2146 = vmax.f32 %v1975, 0.0
        %v2147 = vmax.f32 %v1979, 0.0
        %v2148 = vmax.f32 %v1981, 0.0
        %v2149 = vmax.f32 %v1983, 0.0
        %v2150 = vmax.f32 %v1985, 0.0
        %v2151 = vmax.f32 %v1989, 0.0
        %v2152 = vmax.f32 %v1991, 0.0
        %v2153 = vmax.f32 %v1993, 0.0
        %v2154 = vmax.f32 %v1995, 0.0
        %v2155 = vmax.f32 %v1999, 0.0
        %v2156 = vmax.f32 %v2001, 0.0
        %v2157 = vmax.f32 %v2003, 0.0
        %v2158 = vmax.f32 %v2005, 0.0
        %v2159 = vmax.f32 %v2009, 0.0
        %v2160 = vmax.f32 %v2011, 0.0
        %v2161 = vmax.f32 %v2013, 0.0
        %v2162 = vmax.f32 %v2015, 0.0
        %v2163 = vmax.f32 %v2019, 0.0
        %v2164 = vmax.f32 %v2021, 0.0
        %v2165 = vmax.f32 %v2023, 0.0
        %v2166 = vmax.f32 %v2025, 0.0
        %v2167 = vmax.f32 %v2029, 0.0
        %v2168 = vmax.f32 %v2031, 0.0
        %v2169 = vmax.f32 %v2033, 0.0
        %v2170 = vmax.f32 %v2035, 0.0
        %v2171 = vmax.f32 %v2039, 0.0
        %v2172 = vmax.f32 %v2041, 0.0
        %v2173 = vmax.f32 %v2043, 0.0
        %v2174 = vmax.f32 %v2045, 0.0
        %v2175 = vpack.c.bf16 %v2049, %v2047
        %v2176 = vpack.c.bf16 %v2050, %v2048
        %v2177 = vpack.c.bf16 %v2053, %v2051
        %v2178 = vpack.c.bf16 %v2054, %v2052
        %v2179 = vpack.c.bf16 %v2057, %v2055
        %v2180 = vpack.c.bf16 %v2058, %v2056
        %v2181 = vpack.c.bf16 %v2061, %v2059
        %v2182 = vpack.c.bf16 %v2062, %v2060
        %v2183 = vpack.c.bf16 %v2065, %v2063
        %v2184 = vpack.c.bf16 %v2066, %v2064
        %v2185 = vpack.c.bf16 %v2069, %v2067
        %v2186 = vpack.c.bf16 %v2070, %v2068
        %v2187 = vpack.c.bf16 %v2073, %v2071
        %v2188 = vpack.c.bf16 %v2074, %v2072
        %v2189 = vpack.c.bf16 %v2077, %v2075
        %v2190 = vpack.c.bf16 %v2078, %v2076
        %v2191 = vpack.c.bf16 %v2081, %v2079
        %v2192 = vpack.c.bf16 %v2082, %v2080
        %v2193 = vpack.c.bf16 %v2085, %v2083
        %v2194 = vpack.c.bf16 %v2086, %v2084
        %v2195 = vpack.c.bf16 %v2089, %v2087
        %v2196 = vpack.c.bf16 %v2090, %v2088
        %v2197 = vpack.c.bf16 %v2093, %v2091
        %v2198 = vpack.c.bf16 %v2094, %v2092
        %v2199 = vpack.c.bf16 %v2097, %v2095
        %v2200 = vpack.c.bf16 %v2098, %v2096
        %v2201 = vpack.c.bf16 %v2101, %v2099
        %v2202 = vpack.c.bf16 %v2102, %v2100
        %v2203 = vpack.c.bf16 %v2105, %v2103
        %v2204 = vpack.c.bf16 %v2106, %v2104
        %v2205 = vpack.c.bf16 %v2109, %v2107
        %v2206 = vpack.c.bf16 %v2110, %v2108
        %v2207 = vpack.c.bf16 %v2113, %v2111
        %v2208 = vpack.c.bf16 %v2114, %v2112
        %v2209 = vpack.c.bf16 %v2117, %v2115
        %v2210 = vpack.c.bf16 %v2118, %v2116
        %v2211 = vpack.c.bf16 %v2121, %v2119
        %v2212 = vpack.c.bf16 %v2122, %v2120
        %v2213 = vpack.c.bf16 %v2125, %v2123
        %v2214 = vpack.c.bf16 %v2126, %v2124
        %v2215 = vpack.c.bf16 %v2129, %v2127
        %v2216 = vpack.c.bf16 %v2130, %v2128
        %v2217 = vpack.c.bf16 %v2133, %v2131
        %v2218 = vpack.c.bf16 %v2134, %v2132
        %v2219 = vpack.c.bf16 %v2137, %v2135
        %v2220 = vpack.c.bf16 %v2138, %v2136
        %v2221 = vpack.c.bf16 %v2141, %v2139
        %v2222 = vpack.c.bf16 %v2142, %v2140
        %v2223 = vpack.c.bf16 %v2145, %v2143
        %v2224 = vpack.c.bf16 %v2146, %v2144
        %v2225 = vpack.c.bf16 %v2149, %v2147
        %v2226 = vpack.c.bf16 %v2150, %v2148
        %v2227 = vpack.c.bf16 %v2153, %v2151
        %v2228 = vpack.c.bf16 %v2154, %v2152
        %v2229 = vpack.c.bf16 %v2157, %v2155
        %v2230 = vpack.c.bf16 %v2158, %v2156
        %v2231 = vpack.c.bf16 %v2161, %v2159
        %v2232 = vpack.c.bf16 %v2162, %v2160
        %v2233 = vpack.c.bf16 %v2165, %v2163
        %v2234 = vpack.c.bf16 %v2166, %v2164
        %v2235 = vpack.c.bf16 %v2169, %v2167
        %v2236 = vpack.c.bf16 %v2170, %v2168
        %v2237 = vpack.c.bf16 %v2173, %v2171
        %v2238 = vpack.c.bf16 %v2174, %v2172
        %v2239 = vld [vmem:[%s7] sm:$0xff]
        %v2240 = vld [vmem:[%s7 + $0x8] sm:$0xff]
        %v2241 = vld [vmem:[%s7 + $0x10] sm:$0xff]
        %v2242 = vld [vmem:[%s7 + $0x18] sm:$0xff]
        %v2243 = vld [vmem:[%s7 + $0x20] sm:$0xff]
        %v2244 = vld [vmem:[%s7 + $0x28] sm:$0xff]
        %v2245 = vld [vmem:[%s7 + $0x30] sm:$0xff]
        %v2246 = vld [vmem:[%s7 + $0x38] sm:$0xff]
        %v2247 = vld [vmem:[%s7 + $0x40] sm:$0xff]
        %v2248 = vld [vmem:[%s7 + $0x48] sm:$0xff]
        %v2249 = vld [vmem:[%s7 + $0x50] sm:$0xff]
        %v2250 = vld [vmem:[%s7 + $0x58] sm:$0xff]
        %v2251 = vld [vmem:[%s7 + $0x60] sm:$0xff]
        %v2252 = vld [vmem:[%s7 + $0x68] sm:$0xff]
        %v2253 = vld [vmem:[%s7 + $0x70] sm:$0xff]
        %v2254 = vld [vmem:[%s7 + $0x78] sm:$0xff]
        %v2255 = vld [vmem:[%s7 + $0x80] sm:$0xff]
        %v2256 = vld [vmem:[%s7 + $0x88] sm:$0xff]
        %v2257 = vld [vmem:[%s7 + $0x90] sm:$0xff]
        %v2258 = vld [vmem:[%s7 + $0x98] sm:$0xff]
        %v2259 = vld [vmem:[%s7 + $0xa0] sm:$0xff]
        %v2260 = vld [vmem:[%s7 + $0xa8] sm:$0xff]
        %v2261 = vld [vmem:[%s7 + $0xb0] sm:$0xff]
        %v2262 = vld [vmem:[%s7 + $0xb8] sm:$0xff]
        %v2263 = vld [vmem:[%s7 + $0xc0] sm:$0xff]
        %v2264 = vld [vmem:[%s7 + $0xc8] sm:$0xff]
        %v2265 = vld [vmem:[%s7 + $0xd0] sm:$0xff]
        %v2266 = vld [vmem:[%s7 + $0xd8] sm:$0xff]
        %v2267 = vld [vmem:[%s7 + $0xe0] sm:$0xff]
        %v2268 = vld [vmem:[%s7 + $0xe8] sm:$0xff]
        %v2269 = vld [vmem:[%s7 + $0xf0] sm:$0xff]
        %v2270 = vld [vmem:[%s7 + $0xf8] sm:$0xff]
        %v2271 = vld [vmem:[%s7 + $0x100] sm:$0xff]
        %v2272 = vld [vmem:[%s7 + $0x108] sm:$0xff]
        %v2273 = vld [vmem:[%s7 + $0x110] sm:$0xff]
        %v2274 = vld [vmem:[%s7 + $0x118] sm:$0xff]
        %v2275 = vld [vmem:[%s7 + $0x120] sm:$0xff]
        %v2276 = vld [vmem:[%s7 + $0x128] sm:$0xff]
        %v2277 = vld [vmem:[%s7 + $0x130] sm:$0xff]
        %v2278 = vld [vmem:[%s7 + $0x138] sm:$0xff]
        %v2279 = vld [vmem:[%s7 + $0x140] sm:$0xff]
        %v2280 = vld [vmem:[%s7 + $0x148] sm:$0xff]
        %v2281 = vld [vmem:[%s7 + $0x150] sm:$0xff]
        %v2282 = vld [vmem:[%s7 + $0x158] sm:$0xff]
        %v2283 = vld [vmem:[%s7 + $0x160] sm:$0xff]
        %v2284 = vld [vmem:[%s7 + $0x168] sm:$0xff]
        %v2285 = vld [vmem:[%s7 + $0x170] sm:$0xff]
        %v2286 = vld [vmem:[%s7 + $0x178] sm:$0xff]
        %v2287 = vld [vmem:[%s7 + $0x180] sm:$0xff]
        %v2288 = vld [vmem:[%s7 + $0x188] sm:$0xff]
        %v2289 = vld [vmem:[%s7 + $0x190] sm:$0xff]
        %v2290 = vld [vmem:[%s7 + $0x198] sm:$0xff]
        %v2291 = vld [vmem:[%s7 + $0x1a0] sm:$0xff]
        %v2292 = vld [vmem:[%s7 + $0x1a8] sm:$0xff]
        %v2293 = vld [vmem:[%s7 + $0x1b0] sm:$0xff]
        %v2294 = vld [vmem:[%s7 + $0x1b8] sm:$0xff]
        %v2295 = vld [vmem:[%s7 + $0x1c0] sm:$0xff]
        %v2296 = vld [vmem:[%s7 + $0x1c8] sm:$0xff]
        %v2297 = vld [vmem:[%s7 + $0x1d0] sm:$0xff]
        %v2298 = vld [vmem:[%s7 + $0x1d8] sm:$0xff]
        %v2299 = vld [vmem:[%s7 + $0x1e0] sm:$0xff]
        %v2300 = vld [vmem:[%s7 + $0x1e8] sm:$0xff]
        %v2301 = vld [vmem:[%s7 + $0x1f0] sm:$0xff]
        %v2302 = vld [vmem:[%s7 + $0x1f8] sm:$0xff]
        %v2303 = vld [vmem:[%s8] sm:$0xf]
        %v2305 = vlaneseq
        %v2306 = vshrl.u32 %v2305, 7
        %v2307 = vsub.s32 0, %v2306
        %v2308 = vrot.slane %v2303, %v2307
        %v2309 = vlaneseq
        %v2310 = vshrl.u32 %v2309, 7
        %v2311 = vsub.s32 1, %v2310
        %v2312 = vrot.slane %v2303, %v2311
        %v2313 = vlaneseq
        %v2314 = vshrl.u32 %v2313, 7
        %v2315 = vsub.s32 2, %v2314
        %v2316 = vrot.slane %v2303, %v2315
        %v2317 = vlaneseq
        %v2318 = vshrl.u32 %v2317, 7
        %v2319 = vsub.s32 3, %v2318
        %v2320 = vrot.slane %v2303, %v2319
        %v2389 = vunpack.c.l.b16 %v2239
        %v2390 = vunpack.c.h.b16 %v2239
        %v2391 = vunpack.c.l.b16 %v2240
        %v2392 = vunpack.c.h.b16 %v2240
        %v2393 = vunpack.c.l.b16 %v2241
        %v2394 = vunpack.c.h.b16 %v2241
        %v2395 = vunpack.c.l.b16 %v2242
        %v2396 = vunpack.c.h.b16 %v2242
        %v2397 = vunpack.c.l.b16 %v2243
        %v2398 = vunpack.c.h.b16 %v2243
        %v2399 = vunpack.c.l.b16 %v2244
        %v2400 = vunpack.c.h.b16 %v2244
        %v2401 = vunpack.c.l.b16 %v2245
        %v2402 = vunpack.c.h.b16 %v2245
        %v2403 = vunpack.c.l.b16 %v2246
        %v2404 = vunpack.c.h.b16 %v2246
        %v2405 = vunpack.c.l.b16 %v2247
        %v2406 = vunpack.c.h.b16 %v2247
        %v2407 = vunpack.c.l.b16 %v2248
        %v2408 = vunpack.c.h.b16 %v2248
        %v2409 = vunpack.c.l.b16 %v2249
        %v2410 = vunpack.c.h.b16 %v2249
        %v2411 = vunpack.c.l.b16 %v2250
        %v2412 = vunpack.c.h.b16 %v2250
        %v2413 = vunpack.c.l.b16 %v2251
        %v2414 = vunpack.c.h.b16 %v2251
        %v2415 = vunpack.c.l.b16 %v2252
        %v2416 = vunpack.c.h.b16 %v2252
        %v2417 = vunpack.c.l.b16 %v2253
        %v2418 = vunpack.c.h.b16 %v2253
        %v2419 = vunpack.c.l.b16 %v2254
        %v2420 = vunpack.c.h.b16 %v2254
        %v2421 = vunpack.c.l.b16 %v2255
        %v2422 = vunpack.c.h.b16 %v2255
        %v2423 = vunpack.c.l.b16 %v2256
        %v2424 = vunpack.c.h.b16 %v2256
        %v2425 = vunpack.c.l.b16 %v2257
        %v2426 = vunpack.c.h.b16 %v2257
        %v2427 = vunpack.c.l.b16 %v2258
        %v2428 = vunpack.c.h.b16 %v2258
        %v2429 = vunpack.c.l.b16 %v2259
        %v2430 = vunpack.c.h.b16 %v2259
        %v2431 = vunpack.c.l.b16 %v2260
        %v2432 = vunpack.c.h.b16 %v2260
        %v2433 = vunpack.c.l.b16 %v2261
        %v2434 = vunpack.c.h.b16 %v2261
        %v2435 = vunpack.c.l.b16 %v2262
        %v2436 = vunpack.c.h.b16 %v2262
        %v2437 = vunpack.c.l.b16 %v2263
        %v2438 = vunpack.c.h.b16 %v2263
        %v2439 = vunpack.c.l.b16 %v2264
        %v2440 = vunpack.c.h.b16 %v2264
        %v2441 = vunpack.c.l.b16 %v2265
        %v2442 = vunpack.c.h.b16 %v2265
        %v2443 = vunpack.c.l.b16 %v2266
        %v2444 = vunpack.c.h.b16 %v2266
        %v2445 = vunpack.c.l.b16 %v2267
        %v2446 = vunpack.c.h.b16 %v2267
        %v2447 = vunpack.c.l.b16 %v2268
        %v2448 = vunpack.c.h.b16 %v2268
        %v2449 = vunpack.c.l.b16 %v2269
        %v2450 = vunpack.c.h.b16 %v2269
        %v2451 = vunpack.c.l.b16 %v2270
        %v2452 = vunpack.c.h.b16 %v2270
        %v2453 = vunpack.c.l.b16 %v2271
        %v2454 = vunpack.c.h.b16 %v2271
        %v2455 = vunpack.c.l.b16 %v2272
        %v2456 = vunpack.c.h.b16 %v2272
        %v2457 = vunpack.c.l.b16 %v2273
        %v2458 = vunpack.c.h.b16 %v2273
        %v2459 = vunpack.c.l.b16 %v2274
        %v2460 = vunpack.c.h.b16 %v2274
        %v2461 = vunpack.c.l.b16 %v2275
        %v2462 = vunpack.c.h.b16 %v2275
        %v2463 = vunpack.c.l.b16 %v2276
        %v2464 = vunpack.c.h.b16 %v2276
        %v2465 = vunpack.c.l.b16 %v2277
        %v2466 = vunpack.c.h.b16 %v2277
        %v2467 = vunpack.c.l.b16 %v2278
        %v2468 = vunpack.c.h.b16 %v2278
        %v2469 = vunpack.c.l.b16 %v2279
        %v2470 = vunpack.c.h.b16 %v2279
        %v2471 = vunpack.c.l.b16 %v2280
        %v2472 = vunpack.c.h.b16 %v2280
        %v2473 = vunpack.c.l.b16 %v2281
        %v2474 = vunpack.c.h.b16 %v2281
        %v2475 = vunpack.c.l.b16 %v2282
        %v2476 = vunpack.c.h.b16 %v2282
        %v2477 = vunpack.c.l.b16 %v2283
        %v2478 = vunpack.c.h.b16 %v2283
        %v2479 = vunpack.c.l.b16 %v2284
        %v2480 = vunpack.c.h.b16 %v2284
        %v2481 = vunpack.c.l.b16 %v2285
        %v2482 = vunpack.c.h.b16 %v2285
        %v2483 = vunpack.c.l.b16 %v2286
        %v2484 = vunpack.c.h.b16 %v2286
        %v2485 = vunpack.c.l.b16 %v2287
        %v2486 = vunpack.c.h.b16 %v2287
        %v2487 = vunpack.c.l.b16 %v2288
        %v2488 = vunpack.c.h.b16 %v2288
        %v2489 = vunpack.c.l.b16 %v2289
        %v2490 = vunpack.c.h.b16 %v2289
        %v2491 = vunpack.c.l.b16 %v2290
        %v2492 = vunpack.c.h.b16 %v2290
        %v2493 = vunpack.c.l.b16 %v2291
        %v2494 = vunpack.c.h.b16 %v2291
        %v2495 = vunpack.c.l.b16 %v2292
        %v2496 = vunpack.c.h.b16 %v2292
        %v2497 = vunpack.c.l.b16 %v2293
        %v2498 = vunpack.c.h.b16 %v2293
        %v2499 = vunpack.c.l.b16 %v2294
        %v2500 = vunpack.c.h.b16 %v2294
        %v2501 = vunpack.c.l.b16 %v2295
        %v2502 = vunpack.c.h.b16 %v2295
        %v2503 = vunpack.c.l.b16 %v2296
        %v2504 = vunpack.c.h.b16 %v2296
        %v2505 = vunpack.c.l.b16 %v2297
        %v2506 = vunpack.c.h.b16 %v2297
        %v2507 = vunpack.c.l.b16 %v2298
        %v2508 = vunpack.c.h.b16 %v2298
        %v2509 = vunpack.c.l.b16 %v2299
        %v2510 = vunpack.c.h.b16 %v2299
        %v2511 = vunpack.c.l.b16 %v2300
        %v2512 = vunpack.c.h.b16 %v2300
        %v2513 = vunpack.c.l.b16 %v2301
        %v2514 = vunpack.c.h.b16 %v2301
        %v2515 = vunpack.c.l.b16 %v2302
        %v2516 = vunpack.c.h.b16 %v2302
        %v2517 = vpack.c.b16 %v2393, %v2389
        %v2518 = vpack.c.b16 %v2394, %v2390
        %v2519 = vpack.c.b16 %v2395, %v2391
        %v2520 = vpack.c.b16 %v2396, %v2392
        %v2521 = vpack.c.b16 %v2401, %v2397
        %v2522 = vpack.c.b16 %v2402, %v2398
        %v2523 = vpack.c.b16 %v2403, %v2399
        %v2524 = vpack.c.b16 %v2404, %v2400
        %v2525 = vpack.c.b16 %v2409, %v2405
        %v2526 = vpack.c.b16 %v2410, %v2406
        %v2527 = vpack.c.b16 %v2411, %v2407
        %v2528 = vpack.c.b16 %v2412, %v2408
        %v2529 = vpack.c.b16 %v2417, %v2413
        %v2530 = vpack.c.b16 %v2418, %v2414
        %v2531 = vpack.c.b16 %v2419, %v2415
        %v2532 = vpack.c.b16 %v2420, %v2416
        %v2533 = vpack.c.b16 %v2425, %v2421
        %v2534 = vpack.c.b16 %v2426, %v2422
        %v2535 = vpack.c.b16 %v2427, %v2423
        %v2536 = vpack.c.b16 %v2428, %v2424
        %v2537 = vpack.c.b16 %v2433, %v2429
        %v2538 = vpack.c.b16 %v2434, %v2430
        %v2539 = vpack.c.b16 %v2435, %v2431
        %v2540 = vpack.c.b16 %v2436, %v2432
        %v2541 = vpack.c.b16 %v2441, %v2437
        %v2542 = vpack.c.b16 %v2442, %v2438
        %v2543 = vpack.c.b16 %v2443, %v2439
        %v2544 = vpack.c.b16 %v2444, %v2440
        %v2545 = vpack.c.b16 %v2449, %v2445
        %v2546 = vpack.c.b16 %v2450, %v2446
        %v2547 = vpack.c.b16 %v2451, %v2447
        %v2548 = vpack.c.b16 %v2452, %v2448
        %v2549 = vpack.c.b16 %v2457, %v2453
        %v2550 = vpack.c.b16 %v2458, %v2454
        %v2551 = vpack.c.b16 %v2459, %v2455
        %v2552 = vpack.c.b16 %v2460, %v2456
        %v2553 = vpack.c.b16 %v2465, %v2461
        %v2554 = vpack.c.b16 %v2466, %v2462
        %v2555 = vpack.c.b16 %v2467, %v2463
        %v2556 = vpack.c.b16 %v2468, %v2464
        %v2557 = vpack.c.b16 %v2473, %v2469
        %v2558 = vpack.c.b16 %v2474, %v2470
        %v2559 = vpack.c.b16 %v2475, %v2471
        %v2560 = vpack.c.b16 %v2476, %v2472
        %v2561 = vpack.c.b16 %v2481, %v2477
        %v2562 = vpack.c.b16 %v2482, %v2478
        %v2563 = vpack.c.b16 %v2483, %v2479
        %v2564 = vpack.c.b16 %v2484, %v2480
        %v2565 = vpack.c.b16 %v2489, %v2485
        %v2566 = vpack.c.b16 %v2490, %v2486
        %v2567 = vpack.c.b16 %v2491, %v2487
        %v2568 = vpack.c.b16 %v2492, %v2488
        %v2569 = vpack.c.b16 %v2497, %v2493
        %v2570 = vpack.c.b16 %v2498, %v2494
        %v2571 = vpack.c.b16 %v2499, %v2495
        %v2572 = vpack.c.b16 %v2500, %v2496
        %v2573 = vpack.c.b16 %v2505, %v2501
        %v2574 = vpack.c.b16 %v2506, %v2502
        %v2575 = vpack.c.b16 %v2507, %v2503
        %v2576 = vpack.c.b16 %v2508, %v2504
        %v2577 = vpack.c.b16 %v2513, %v2509
        %v2578 = vpack.c.b16 %v2514, %v2510
        %v2579 = vpack.c.b16 %v2515, %v2511
        %v2580 = vpack.c.b16 %v2516, %v2512
        %2645 = vmatprep.subr.bf16.mxu0 %v2546
        %2646 = vmatpush1.bf16.msra.mxu0 %v2545
        %2647 = vmatprep.subr.bf16.mxu0 %v2542
        %2648 = vmatpush1.bf16.msra.mxu0 %v2541
        %2649 = vmatprep.subr.bf16.mxu0 %v2538
        %2650 = vmatpush1.bf16.msra.mxu0 %v2537
        %2651 = vmatprep.subr.bf16.mxu0 %v2534
        %2652 = vmatpush1.bf16.msra.mxu0 %v2533
        %2653 = vmatprep.subr.bf16.mxu0 %v2530
        %2654 = vmatpush1.bf16.msra.mxu0 %v2529
        %2655 = vmatprep.subr.bf16.mxu0 %v2526
        %2656 = vmatpush1.bf16.msra.mxu0 %v2525
        %2657 = vmatprep.subr.bf16.mxu0 %v2522
        %2658 = vmatpush1.bf16.msra.mxu0 %v2521
        %2659 = vmatprep.subr.bf16.mxu0 %v2518
        %2660 = vmatpush1.bf16.msra.mxu0 %v2517
        %2661 = vmatprep.subr.bf16.mxu0 %v2578
        %2662 = vmatpush2.bf16.msra.mxu0 %v2577
        %2663 = vmatprep.subr.bf16.mxu0 %v2574
        %2664 = vmatpush2.bf16.msra.mxu0 %v2573
        %2665 = vmatprep.subr.bf16.mxu0 %v2570
        %2666 = vmatpush2.bf16.msra.mxu0 %v2569
        %2667 = vmatprep.subr.bf16.mxu0 %v2566
        %2668 = vmatpush2.bf16.msra.mxu0 %v2565
        %2669 = vmatprep.subr.bf16.mxu0 %v2562
        %2670 = vmatpush2.bf16.msra.mxu0 %v2561
        %2671 = vmatprep.subr.bf16.mxu0 %v2558
        %2672 = vmatpush2.bf16.msra.mxu0 %v2557
        %2673 = vmatprep.subr.bf16.mxu0 %v2554
        %2674 = vmatpush2.bf16.msra.mxu0 %v2553
        %2675 = vmatprep.subr.bf16.mxu0 %v2550
        %2676 = vmatpush2.bf16.msra.mxu0 %v2549
        %2677 = vmatprep.mubr.bf16.mxu0 %v2176
        %2678 = vmatmul.mubr.bf16.gmra.mxu0 %v2175
        %v2679 = vpop.f32.mrf.mxu0
        %v2680 = vadd.f32 %v2308, %v2679
        %v2681 = vpop.f32.mrf.mxu0
        %v2682 = vadd.f32 %v2312, %v2681
        %v2683 = vpop.f32.mrf.mxu0
        %v2684 = vadd.f32 %v2308, %v2683
        %v2685 = vpop.f32.mrf.mxu0
        %v2686 = vadd.f32 %v2312, %v2685
        %2687 = vmatprep.mubr.bf16.mxu0 %v2178
        %2688 = vmatmul.mubr.bf16.gmra.mxu0 %v2177
        %v2689 = vpop.f32.mrf.mxu0
        %v2690 = vadd.f32 %v2308, %v2689
        %v2691 = vpop.f32.mrf.mxu0
        %v2692 = vadd.f32 %v2312, %v2691
        %v2693 = vpop.f32.mrf.mxu0
        %v2694 = vadd.f32 %v2308, %v2693
        %v2695 = vpop.f32.mrf.mxu0
        %v2696 = vadd.f32 %v2312, %v2695
        %2697 = vmatprep.mubr.bf16.mxu0 %v2180
        %2698 = vmatmul.mubr.bf16.gmra.mxu0 %v2179
        %v2699 = vpop.f32.mrf.mxu0
        %v2700 = vadd.f32 %v2308, %v2699
        %v2701 = vpop.f32.mrf.mxu0
        %v2702 = vadd.f32 %v2312, %v2701
        %v2703 = vpop.f32.mrf.mxu0
        %v2704 = vadd.f32 %v2308, %v2703
        %v2705 = vpop.f32.mrf.mxu0
        %v2706 = vadd.f32 %v2312, %v2705
        %2707 = vmatprep.mubr.bf16.mxu0 %v2182
        %2708 = vmatmul.mubr.bf16.gmra.mxu0 %v2181
        %v2709 = vpop.f32.mrf.mxu0
        %v2710 = vadd.f32 %v2308, %v2709
        %v2711 = vpop.f32.mrf.mxu0
        %v2712 = vadd.f32 %v2312, %v2711
        %v2713 = vpop.f32.mrf.mxu0
        %v2714 = vadd.f32 %v2308, %v2713
        %v2715 = vpop.f32.mrf.mxu0
        %v2716 = vadd.f32 %v2312, %v2715
        %2717 = vmatprep.mubr.bf16.mxu0 %v2184
        %2718 = vmatmul.mubr.bf16.gmra.mxu0 %v2183
        %v2719 = vpop.f32.mrf.mxu0
        %v2720 = vadd.f32 %v2308, %v2719
        %v2721 = vpop.f32.mrf.mxu0
        %v2722 = vadd.f32 %v2312, %v2721
        %v2723 = vpop.f32.mrf.mxu0
        %v2724 = vadd.f32 %v2308, %v2723
        %v2725 = vpop.f32.mrf.mxu0
        %v2726 = vadd.f32 %v2312, %v2725
        %2727 = vmatprep.mubr.bf16.mxu0 %v2186
        %2728 = vmatmul.mubr.bf16.gmra.mxu0 %v2185
        %v2729 = vpop.f32.mrf.mxu0
        %v2730 = vadd.f32 %v2308, %v2729
        %v2731 = vpop.f32.mrf.mxu0
        %v2732 = vadd.f32 %v2312, %v2731
        %v2733 = vpop.f32.mrf.mxu0
        %v2734 = vadd.f32 %v2308, %v2733
        %v2735 = vpop.f32.mrf.mxu0
        %v2736 = vadd.f32 %v2312, %v2735
        %2737 = vmatprep.mubr.bf16.mxu0 %v2188
        %2738 = vmatmul.mubr.bf16.gmra.mxu0 %v2187
        %v2739 = vpop.f32.mrf.mxu0
        %v2740 = vadd.f32 %v2308, %v2739
        %v2741 = vpop.f32.mrf.mxu0
        %v2742 = vadd.f32 %v2312, %v2741
        %v2743 = vpop.f32.mrf.mxu0
        %v2744 = vadd.f32 %v2308, %v2743
        %v2745 = vpop.f32.mrf.mxu0
        %v2746 = vadd.f32 %v2312, %v2745
        %2747 = vmatprep.mubr.bf16.mxu0 %v2190
        %2748 = vmatmul.mubr.bf16.gmra.mxu0 %v2189
        %v2749 = vpop.f32.mrf.mxu0
        %v2750 = vadd.f32 %v2308, %v2749
        %v2751 = vpop.f32.mrf.mxu0
        %v2752 = vadd.f32 %v2312, %v2751
        %v2753 = vpop.f32.mrf.mxu0
        %v2754 = vadd.f32 %v2308, %v2753
        %v2755 = vpop.f32.mrf.mxu0
        %v2756 = vadd.f32 %v2312, %v2755
        %2757 = vmatprep.mubr.bf16.mxu0 %v2192
        %2758 = vmatmul.mubr.bf16.gmra.mxu0 %v2191
        %v2759 = vpop.f32.mrf.mxu0
        %v2760 = vadd.f32 %v2308, %v2759
        %v2761 = vpop.f32.mrf.mxu0
        %v2762 = vadd.f32 %v2312, %v2761
        %v2763 = vpop.f32.mrf.mxu0
        %v2764 = vadd.f32 %v2308, %v2763
        %v2765 = vpop.f32.mrf.mxu0
        %v2766 = vadd.f32 %v2312, %v2765
        %2767 = vmatprep.mubr.bf16.mxu0 %v2194
        %2768 = vmatmul.mubr.bf16.gmra.mxu0 %v2193
        %v2769 = vpop.f32.mrf.mxu0
        %v2770 = vadd.f32 %v2308, %v2769
        %v2771 = vpop.f32.mrf.mxu0
        %v2772 = vadd.f32 %v2312, %v2771
        %v2773 = vpop.f32.mrf.mxu0
        %v2774 = vadd.f32 %v2308, %v2773
        %v2775 = vpop.f32.mrf.mxu0
        %v2776 = vadd.f32 %v2312, %v2775
        %2777 = vmatprep.mubr.bf16.mxu0 %v2196
        %2778 = vmatmul.mubr.bf16.gmra.mxu0 %v2195
        %v2779 = vpop.f32.mrf.mxu0
        %v2780 = vadd.f32 %v2308, %v2779
        %v2781 = vpop.f32.mrf.mxu0
        %v2782 = vadd.f32 %v2312, %v2781
        %v2783 = vpop.f32.mrf.mxu0
        %v2784 = vadd.f32 %v2308, %v2783
        %v2785 = vpop.f32.mrf.mxu0
        %v2786 = vadd.f32 %v2312, %v2785
        %2787 = vmatprep.mubr.bf16.mxu0 %v2198
        %2788 = vmatmul.mubr.bf16.gmra.mxu0 %v2197
        %v2789 = vpop.f32.mrf.mxu0
        %v2790 = vadd.f32 %v2308, %v2789
        %v2791 = vpop.f32.mrf.mxu0
        %v2792 = vadd.f32 %v2312, %v2791
        %v2793 = vpop.f32.mrf.mxu0
        %v2794 = vadd.f32 %v2308, %v2793
        %v2795 = vpop.f32.mrf.mxu0
        %v2796 = vadd.f32 %v2312, %v2795
        %2797 = vmatprep.mubr.bf16.mxu0 %v2200
        %2798 = vmatmul.mubr.bf16.gmra.mxu0 %v2199
        %v2799 = vpop.f32.mrf.mxu0
        %v2800 = vadd.f32 %v2308, %v2799
        %v2801 = vpop.f32.mrf.mxu0
        %v2802 = vadd.f32 %v2312, %v2801
        %v2803 = vpop.f32.mrf.mxu0
        %v2804 = vadd.f32 %v2308, %v2803
        %v2805 = vpop.f32.mrf.mxu0
        %v2806 = vadd.f32 %v2312, %v2805
        %2807 = vmatprep.mubr.bf16.mxu0 %v2202
        %2808 = vmatmul.mubr.bf16.gmra.mxu0 %v2201
        %v2809 = vpop.f32.mrf.mxu0
        %v2810 = vadd.f32 %v2308, %v2809
        %v2811 = vpop.f32.mrf.mxu0
        %v2812 = vadd.f32 %v2312, %v2811
        %v2813 = vpop.f32.mrf.mxu0
        %v2814 = vadd.f32 %v2308, %v2813
        %v2815 = vpop.f32.mrf.mxu0
        %v2816 = vadd.f32 %v2312, %v2815
        %2817 = vmatprep.mubr.bf16.mxu0 %v2204
        %2818 = vmatmul.mubr.bf16.gmra.mxu0 %v2203
        %v2819 = vpop.f32.mrf.mxu0
        %v2820 = vadd.f32 %v2308, %v2819
        %v2821 = vpop.f32.mrf.mxu0
        %v2822 = vadd.f32 %v2312, %v2821
        %v2823 = vpop.f32.mrf.mxu0
        %v2824 = vadd.f32 %v2308, %v2823
        %v2825 = vpop.f32.mrf.mxu0
        %v2826 = vadd.f32 %v2312, %v2825
        %2827 = vmatprep.mubr.bf16.mxu0 %v2206
        %2828 = vmatmul.mubr.bf16.gmra.mxu0 %v2205
        %v2829 = vpop.f32.mrf.mxu0
        %v2830 = vadd.f32 %v2308, %v2829
        %v2831 = vpop.f32.mrf.mxu0
        %v2832 = vadd.f32 %v2312, %v2831
        %v2833 = vpop.f32.mrf.mxu0
        %v2834 = vadd.f32 %v2308, %v2833
        %v2835 = vpop.f32.mrf.mxu0
        %v2836 = vadd.f32 %v2312, %v2835
        %2837 = vmatprep.mubr.bf16.mxu0 %v2208
        %2838 = vmatmul.mubr.bf16.gmra.mxu0 %v2207
        %v2839 = vpop.f32.mrf.mxu0
        %v2840 = vadd.f32 %v2308, %v2839
        %v2841 = vpop.f32.mrf.mxu0
        %v2842 = vadd.f32 %v2312, %v2841
        %v2843 = vpop.f32.mrf.mxu0
        %v2844 = vadd.f32 %v2308, %v2843
        %v2845 = vpop.f32.mrf.mxu0
        %v2846 = vadd.f32 %v2312, %v2845
        %2847 = vmatprep.mubr.bf16.mxu0 %v2210
        %2848 = vmatmul.mubr.bf16.gmra.mxu0 %v2209
        %v2849 = vpop.f32.mrf.mxu0
        %v2850 = vadd.f32 %v2308, %v2849
        %v2851 = vpop.f32.mrf.mxu0
        %v2852 = vadd.f32 %v2312, %v2851
        %v2853 = vpop.f32.mrf.mxu0
        %v2854 = vadd.f32 %v2308, %v2853
        %v2855 = vpop.f32.mrf.mxu0
        %v2856 = vadd.f32 %v2312, %v2855
        %2857 = vmatprep.mubr.bf16.mxu0 %v2212
        %2858 = vmatmul.mubr.bf16.gmra.mxu0 %v2211
        %v2859 = vpop.f32.mrf.mxu0
        %v2860 = vadd.f32 %v2308, %v2859
        %v2861 = vpop.f32.mrf.mxu0
        %v2862 = vadd.f32 %v2312, %v2861
        %v2863 = vpop.f32.mrf.mxu0
        %v2864 = vadd.f32 %v2308, %v2863
        %v2865 = vpop.f32.mrf.mxu0
        %v2866 = vadd.f32 %v2312, %v2865
        %2867 = vmatprep.mubr.bf16.mxu0 %v2214
        %2868 = vmatmul.mubr.bf16.gmra.mxu0 %v2213
        %v2869 = vpop.f32.mrf.mxu0
        %v2870 = vadd.f32 %v2308, %v2869
        %v2871 = vpop.f32.mrf.mxu0
        %v2872 = vadd.f32 %v2312, %v2871
        %v2873 = vpop.f32.mrf.mxu0
        %v2874 = vadd.f32 %v2308, %v2873
        %v2875 = vpop.f32.mrf.mxu0
        %v2876 = vadd.f32 %v2312, %v2875
        %2877 = vmatprep.mubr.bf16.mxu0 %v2216
        %2878 = vmatmul.mubr.bf16.gmra.mxu0 %v2215
        %v2879 = vpop.f32.mrf.mxu0
        %v2880 = vadd.f32 %v2308, %v2879
        %v2881 = vpop.f32.mrf.mxu0
        %v2882 = vadd.f32 %v2312, %v2881
        %v2883 = vpop.f32.mrf.mxu0
        %v2884 = vadd.f32 %v2308, %v2883
        %v2885 = vpop.f32.mrf.mxu0
        %v2886 = vadd.f32 %v2312, %v2885
        %2887 = vmatprep.mubr.bf16.mxu0 %v2218
        %2888 = vmatmul.mubr.bf16.gmra.mxu0 %v2217
        %v2889 = vpop.f32.mrf.mxu0
        %v2890 = vadd.f32 %v2308, %v2889
        %v2891 = vpop.f32.mrf.mxu0
        %v2892 = vadd.f32 %v2312, %v2891
        %v2893 = vpop.f32.mrf.mxu0
        %v2894 = vadd.f32 %v2308, %v2893
        %v2895 = vpop.f32.mrf.mxu0
        %v2896 = vadd.f32 %v2312, %v2895
        %2897 = vmatprep.mubr.bf16.mxu0 %v2220
        %2898 = vmatmul.mubr.bf16.gmra.mxu0 %v2219
        %v2899 = vpop.f32.mrf.mxu0
        %v2900 = vadd.f32 %v2308, %v2899
        %v2901 = vpop.f32.mrf.mxu0
        %v2902 = vadd.f32 %v2312, %v2901
        %v2903 = vpop.f32.mrf.mxu0
        %v2904 = vadd.f32 %v2308, %v2903
        %v2905 = vpop.f32.mrf.mxu0
        %v2906 = vadd.f32 %v2312, %v2905
        %2907 = vmatprep.mubr.bf16.mxu0 %v2222
        %2908 = vmatmul.mubr.bf16.gmra.mxu0 %v2221
        %v2909 = vpop.f32.mrf.mxu0
        %v2910 = vadd.f32 %v2308, %v2909
        %v2911 = vpop.f32.mrf.mxu0
        %v2912 = vadd.f32 %v2312, %v2911
        %v2913 = vpop.f32.mrf.mxu0
        %v2914 = vadd.f32 %v2308, %v2913
        %v2915 = vpop.f32.mrf.mxu0
        %v2916 = vadd.f32 %v2312, %v2915
        %2917 = vmatprep.mubr.bf16.mxu0 %v2224
        %2918 = vmatmul.mubr.bf16.gmra.mxu0 %v2223
        %v2919 = vpop.f32.mrf.mxu0
        %v2920 = vadd.f32 %v2308, %v2919
        %v2921 = vpop.f32.mrf.mxu0
        %v2922 = vadd.f32 %v2312, %v2921
        %v2923 = vpop.f32.mrf.mxu0
        %v2924 = vadd.f32 %v2308, %v2923
        %v2925 = vpop.f32.mrf.mxu0
        %v2926 = vadd.f32 %v2312, %v2925
        %2927 = vmatprep.mubr.bf16.mxu0 %v2226
        %2928 = vmatmul.mubr.bf16.gmra.mxu0 %v2225
        %v2929 = vpop.f32.mrf.mxu0
        %v2930 = vadd.f32 %v2308, %v2929
        %v2931 = vpop.f32.mrf.mxu0
        %v2932 = vadd.f32 %v2312, %v2931
        %v2933 = vpop.f32.mrf.mxu0
        %v2934 = vadd.f32 %v2308, %v2933
        %v2935 = vpop.f32.mrf.mxu0
        %v2936 = vadd.f32 %v2312, %v2935
        %2937 = vmatprep.mubr.bf16.mxu0 %v2228
        %2938 = vmatmul.mubr.bf16.gmra.mxu0 %v2227
        %v2939 = vpop.f32.mrf.mxu0
        %v2940 = vadd.f32 %v2308, %v2939
        %v2941 = vpop.f32.mrf.mxu0
        %v2942 = vadd.f32 %v2312, %v2941
        %v2943 = vpop.f32.mrf.mxu0
        %v2944 = vadd.f32 %v2308, %v2943
        %v2945 = vpop.f32.mrf.mxu0
        %v2946 = vadd.f32 %v2312, %v2945
        %2947 = vmatprep.mubr.bf16.mxu0 %v2230
        %2948 = vmatmul.mubr.bf16.gmra.mxu0 %v2229
        %v2949 = vpop.f32.mrf.mxu0
        %v2950 = vadd.f32 %v2308, %v2949
        %v2951 = vpop.f32.mrf.mxu0
        %v2952 = vadd.f32 %v2312, %v2951
        %v2953 = vpop.f32.mrf.mxu0
        %v2954 = vadd.f32 %v2308, %v2953
        %v2955 = vpop.f32.mrf.mxu0
        %v2956 = vadd.f32 %v2312, %v2955
        %2957 = vmatprep.mubr.bf16.mxu0 %v2232
        %2958 = vmatmul.mubr.bf16.gmra.mxu0 %v2231
        %v2959 = vpop.f32.mrf.mxu0
        %v2960 = vadd.f32 %v2308, %v2959
        %v2961 = vpop.f32.mrf.mxu0
        %v2962 = vadd.f32 %v2312, %v2961
        %v2963 = vpop.f32.mrf.mxu0
        %v2964 = vadd.f32 %v2308, %v2963
        %v2965 = vpop.f32.mrf.mxu0
        %v2966 = vadd.f32 %v2312, %v2965
        %2967 = vmatprep.mubr.bf16.mxu0 %v2234
        %2968 = vmatmul.mubr.bf16.gmra.mxu0 %v2233
        %v2969 = vpop.f32.mrf.mxu0
        %v2970 = vadd.f32 %v2308, %v2969
        %v2971 = vpop.f32.mrf.mxu0
        %v2972 = vadd.f32 %v2312, %v2971
        %v2973 = vpop.f32.mrf.mxu0
        %v2974 = vadd.f32 %v2308, %v2973
        %v2975 = vpop.f32.mrf.mxu0
        %v2976 = vadd.f32 %v2312, %v2975
        %2977 = vmatprep.mubr.bf16.mxu0 %v2236
        %2978 = vmatmul.mubr.bf16.gmra.mxu0 %v2235
        %v2979 = vpop.f32.mrf.mxu0
        %v2980 = vadd.f32 %v2308, %v2979
        %v2981 = vpop.f32.mrf.mxu0
        %v2982 = vadd.f32 %v2312, %v2981
        %v2983 = vpop.f32.mrf.mxu0
        %v2984 = vadd.f32 %v2308, %v2983
        %v2985 = vpop.f32.mrf.mxu0
        %v2986 = vadd.f32 %v2312, %v2985
        %2987 = vmatprep.mubr.bf16.mxu0 %v2238
        %2988 = vmatmul.mubr.bf16.gmra.mxu0 %v2237
        %v2989 = vpop.f32.mrf.mxu0
        %v2990 = vadd.f32 %v2308, %v2989
        %v2991 = vpop.f32.mrf.mxu0
        %v2992 = vadd.f32 %v2312, %v2991
        %v2993 = vpop.f32.mrf.mxu0
        %v2994 = vadd.f32 %v2308, %v2993
        %v2995 = vpop.f32.mrf.mxu0
        %v2996 = vadd.f32 %v2312, %v2995
        %2997 = vdwg.mxu0
        %2998 = vmatprep.subr.bf16.mxu0 %v2548
        %2999 = vmatpush1.bf16.msra.mxu0 %v2547
        %3000 = vmatprep.subr.bf16.mxu0 %v2544
        %3001 = vmatpush1.bf16.msra.mxu0 %v2543
        %3002 = vmatprep.subr.bf16.mxu0 %v2540
        %3003 = vmatpush1.bf16.msra.mxu0 %v2539
        %3004 = vmatprep.subr.bf16.mxu0 %v2536
        %3005 = vmatpush1.bf16.msra.mxu0 %v2535
        %3006 = vmatprep.subr.bf16.mxu0 %v2532
        %3007 = vmatpush1.bf16.msra.mxu0 %v2531
        %3008 = vmatprep.subr.bf16.mxu0 %v2528
        %3009 = vmatpush1.bf16.msra.mxu0 %v2527
        %3010 = vmatprep.subr.bf16.mxu0 %v2524
        %3011 = vmatpush1.bf16.msra.mxu0 %v2523
        %3012 = vmatprep.subr.bf16.mxu0 %v2520
        %3013 = vmatpush1.bf16.msra.mxu0 %v2519
        %3014 = vmatprep.subr.bf16.mxu0 %v2580
        %3015 = vmatpush2.bf16.msra.mxu0 %v2579
        %3016 = vmatprep.subr.bf16.mxu0 %v2576
        %3017 = vmatpush2.bf16.msra.mxu0 %v2575
        %3018 = vmatprep.subr.bf16.mxu0 %v2572
        %3019 = vmatpush2.bf16.msra.mxu0 %v2571
        %3020 = vmatprep.subr.bf16.mxu0 %v2568
        %3021 = vmatpush2.bf16.msra.mxu0 %v2567
        %3022 = vmatprep.subr.bf16.mxu0 %v2564
        %3023 = vmatpush2.bf16.msra.mxu0 %v2563
        %3024 = vmatprep.subr.bf16.mxu0 %v2560
        %3025 = vmatpush2.bf16.msra.mxu0 %v2559
        %3026 = vmatprep.subr.bf16.mxu0 %v2556
        %3027 = vmatpush2.bf16.msra.mxu0 %v2555
        %3028 = vmatprep.subr.bf16.mxu0 %v2552
        %3029 = vmatpush2.bf16.msra.mxu0 %v2551
        %3030 = vmatprep.mubr.bf16.mxu0 %v2176
        %3031 = vmatmul.mubr.bf16.gmra.mxu0 %v2175
        %v3032 = vpop.f32.mrf.mxu0
        %v3033 = vadd.f32 %v2316, %v3032
        %v3034 = vpop.f32.mrf.mxu0
        %v3035 = vadd.f32 %v2320, %v3034
        %v3036 = vpop.f32.mrf.mxu0
        %v3037 = vadd.f32 %v2316, %v3036
        %v3038 = vpop.f32.mrf.mxu0
        %v3039 = vadd.f32 %v2320, %v3038
        %3040 = vmatprep.mubr.bf16.mxu0 %v2178
        %3041 = vmatmul.mubr.bf16.gmra.mxu0 %v2177
        %v3042 = vpop.f32.mrf.mxu0
        %v3043 = vadd.f32 %v2316, %v3042
        %v3044 = vpop.f32.mrf.mxu0
        %v3045 = vadd.f32 %v2320, %v3044
        %v3046 = vpop.f32.mrf.mxu0
        %v3047 = vadd.f32 %v2316, %v3046
        %v3048 = vpop.f32.mrf.mxu0
        %v3049 = vadd.f32 %v2320, %v3048
        %3050 = vmatprep.mubr.bf16.mxu0 %v2180
        %3051 = vmatmul.mubr.bf16.gmra.mxu0 %v2179
        %v3052 = vpop.f32.mrf.mxu0
        %v3053 = vadd.f32 %v2316, %v3052
        %v3054 = vpop.f32.mrf.mxu0
        %v3055 = vadd.f32 %v2320, %v3054
        %v3056 = vpop.f32.mrf.mxu0
        %v3057 = vadd.f32 %v2316, %v3056
        %v3058 = vpop.f32.mrf.mxu0
        %v3059 = vadd.f32 %v2320, %v3058
        %3060 = vmatprep.mubr.bf16.mxu0 %v2182
        %3061 = vmatmul.mubr.bf16.gmra.mxu0 %v2181
        %v3062 = vpop.f32.mrf.mxu0
        %v3063 = vadd.f32 %v2316, %v3062
        %v3064 = vpop.f32.mrf.mxu0
        %v3065 = vadd.f32 %v2320, %v3064
        %v3066 = vpop.f32.mrf.mxu0
        %v3067 = vadd.f32 %v2316, %v3066
        %v3068 = vpop.f32.mrf.mxu0
        %v3069 = vadd.f32 %v2320, %v3068
        %3070 = vmatprep.mubr.bf16.mxu0 %v2184
        %3071 = vmatmul.mubr.bf16.gmra.mxu0 %v2183
        %v3072 = vpop.f32.mrf.mxu0
        %v3073 = vadd.f32 %v2316, %v3072
        %v3074 = vpop.f32.mrf.mxu0
        %v3075 = vadd.f32 %v2320, %v3074
        %v3076 = vpop.f32.mrf.mxu0
        %v3077 = vadd.f32 %v2316, %v3076
        %v3078 = vpop.f32.mrf.mxu0
        %v3079 = vadd.f32 %v2320, %v3078
        %3080 = vmatprep.mubr.bf16.mxu0 %v2186
        %3081 = vmatmul.mubr.bf16.gmra.mxu0 %v2185
        %v3082 = vpop.f32.mrf.mxu0
        %v3083 = vadd.f32 %v2316, %v3082
        %v3084 = vpop.f32.mrf.mxu0
        %v3085 = vadd.f32 %v2320, %v3084
        %v3086 = vpop.f32.mrf.mxu0
        %v3087 = vadd.f32 %v2316, %v3086
        %v3088 = vpop.f32.mrf.mxu0
        %v3089 = vadd.f32 %v2320, %v3088
        %3090 = vmatprep.mubr.bf16.mxu0 %v2188
        %3091 = vmatmul.mubr.bf16.gmra.mxu0 %v2187
        %v3092 = vpop.f32.mrf.mxu0
        %v3093 = vadd.f32 %v2316, %v3092
        %v3094 = vpop.f32.mrf.mxu0
        %v3095 = vadd.f32 %v2320, %v3094
        %v3096 = vpop.f32.mrf.mxu0
        %v3097 = vadd.f32 %v2316, %v3096
        %v3098 = vpop.f32.mrf.mxu0
        %v3099 = vadd.f32 %v2320, %v3098
        %3100 = vmatprep.mubr.bf16.mxu0 %v2190
        %3101 = vmatmul.mubr.bf16.gmra.mxu0 %v2189
        %v3102 = vpop.f32.mrf.mxu0
        %v3103 = vadd.f32 %v2316, %v3102
        %v3104 = vpop.f32.mrf.mxu0
        %v3105 = vadd.f32 %v2320, %v3104
        %v3106 = vpop.f32.mrf.mxu0
        %v3107 = vadd.f32 %v2316, %v3106
        %v3108 = vpop.f32.mrf.mxu0
        %v3109 = vadd.f32 %v2320, %v3108
        %3110 = vmatprep.mubr.bf16.mxu0 %v2192
        %3111 = vmatmul.mubr.bf16.gmra.mxu0 %v2191
        %v3112 = vpop.f32.mrf.mxu0
        %v3113 = vadd.f32 %v2316, %v3112
        %v3114 = vpop.f32.mrf.mxu0
        %v3115 = vadd.f32 %v2320, %v3114
        %v3116 = vpop.f32.mrf.mxu0
        %v3117 = vadd.f32 %v2316, %v3116
        %v3118 = vpop.f32.mrf.mxu0
        %v3119 = vadd.f32 %v2320, %v3118
        %3120 = vmatprep.mubr.bf16.mxu0 %v2194
        %3121 = vmatmul.mubr.bf16.gmra.mxu0 %v2193
        %v3122 = vpop.f32.mrf.mxu0
        %v3123 = vadd.f32 %v2316, %v3122
        %v3124 = vpop.f32.mrf.mxu0
        %v3125 = vadd.f32 %v2320, %v3124
        %v3126 = vpop.f32.mrf.mxu0
        %v3127 = vadd.f32 %v2316, %v3126
        %v3128 = vpop.f32.mrf.mxu0
        %v3129 = vadd.f32 %v2320, %v3128
        %3130 = vmatprep.mubr.bf16.mxu0 %v2196
        %3131 = vmatmul.mubr.bf16.gmra.mxu0 %v2195
        %v3132 = vpop.f32.mrf.mxu0
        %v3133 = vadd.f32 %v2316, %v3132
        %v3134 = vpop.f32.mrf.mxu0
        %v3135 = vadd.f32 %v2320, %v3134
        %v3136 = vpop.f32.mrf.mxu0
        %v3137 = vadd.f32 %v2316, %v3136
        %v3138 = vpop.f32.mrf.mxu0
        %v3139 = vadd.f32 %v2320, %v3138
        %3140 = vmatprep.mubr.bf16.mxu0 %v2198
        %3141 = vmatmul.mubr.bf16.gmra.mxu0 %v2197
        %v3142 = vpop.f32.mrf.mxu0
        %v3143 = vadd.f32 %v2316, %v3142
        %v3144 = vpop.f32.mrf.mxu0
        %v3145 = vadd.f32 %v2320, %v3144
        %v3146 = vpop.f32.mrf.mxu0
        %v3147 = vadd.f32 %v2316, %v3146
        %v3148 = vpop.f32.mrf.mxu0
        %v3149 = vadd.f32 %v2320, %v3148
        %3150 = vmatprep.mubr.bf16.mxu0 %v2200
        %3151 = vmatmul.mubr.bf16.gmra.mxu0 %v2199
        %v3152 = vpop.f32.mrf.mxu0
        %v3153 = vadd.f32 %v2316, %v3152
        %v3154 = vpop.f32.mrf.mxu0
        %v3155 = vadd.f32 %v2320, %v3154
        %v3156 = vpop.f32.mrf.mxu0
        %v3157 = vadd.f32 %v2316, %v3156
        %v3158 = vpop.f32.mrf.mxu0
        %v3159 = vadd.f32 %v2320, %v3158
        %3160 = vmatprep.mubr.bf16.mxu0 %v2202
        %3161 = vmatmul.mubr.bf16.gmra.mxu0 %v2201
        %v3162 = vpop.f32.mrf.mxu0
        %v3163 = vadd.f32 %v2316, %v3162
        %v3164 = vpop.f32.mrf.mxu0
        %v3165 = vadd.f32 %v2320, %v3164
        %v3166 = vpop.f32.mrf.mxu0
        %v3167 = vadd.f32 %v2316, %v3166
        %v3168 = vpop.f32.mrf.mxu0
        %v3169 = vadd.f32 %v2320, %v3168
        %3170 = vmatprep.mubr.bf16.mxu0 %v2204
        %3171 = vmatmul.mubr.bf16.gmra.mxu0 %v2203
        %v3172 = vpop.f32.mrf.mxu0
        %v3173 = vadd.f32 %v2316, %v3172
        %v3174 = vpop.f32.mrf.mxu0
        %v3175 = vadd.f32 %v2320, %v3174
        %v3176 = vpop.f32.mrf.mxu0
        %v3177 = vadd.f32 %v2316, %v3176
        %v3178 = vpop.f32.mrf.mxu0
        %v3179 = vadd.f32 %v2320, %v3178
        %3180 = vmatprep.mubr.bf16.mxu0 %v2206
        %3181 = vmatmul.mubr.bf16.gmra.mxu0 %v2205
        %v3182 = vpop.f32.mrf.mxu0
        %v3183 = vadd.f32 %v2316, %v3182
        %v3184 = vpop.f32.mrf.mxu0
        %v3185 = vadd.f32 %v2320, %v3184
        %v3186 = vpop.f32.mrf.mxu0
        %v3187 = vadd.f32 %v2316, %v3186
        %v3188 = vpop.f32.mrf.mxu0
        %v3189 = vadd.f32 %v2320, %v3188
        %3190 = vmatprep.mubr.bf16.mxu0 %v2208
        %3191 = vmatmul.mubr.bf16.gmra.mxu0 %v2207
        %v3192 = vpop.f32.mrf.mxu0
        %v3193 = vadd.f32 %v2316, %v3192
        %v3194 = vpop.f32.mrf.mxu0
        %v3195 = vadd.f32 %v2320, %v3194
        %v3196 = vpop.f32.mrf.mxu0
        %v3197 = vadd.f32 %v2316, %v3196
        %v3198 = vpop.f32.mrf.mxu0
        %v3199 = vadd.f32 %v2320, %v3198
        %3200 = vmatprep.mubr.bf16.mxu0 %v2210
        %3201 = vmatmul.mubr.bf16.gmra.mxu0 %v2209
        %v3202 = vpop.f32.mrf.mxu0
        %v3203 = vadd.f32 %v2316, %v3202
        %v3204 = vpop.f32.mrf.mxu0
        %v3205 = vadd.f32 %v2320, %v3204
        %v3206 = vpop.f32.mrf.mxu0
        %v3207 = vadd.f32 %v2316, %v3206
        %v3208 = vpop.f32.mrf.mxu0
        %v3209 = vadd.f32 %v2320, %v3208
        %3210 = vmatprep.mubr.bf16.mxu0 %v2212
        %3211 = vmatmul.mubr.bf16.gmra.mxu0 %v2211
        %v3212 = vpop.f32.mrf.mxu0
        %v3213 = vadd.f32 %v2316, %v3212
        %v3214 = vpop.f32.mrf.mxu0
        %v3215 = vadd.f32 %v2320, %v3214
        %v3216 = vpop.f32.mrf.mxu0
        %v3217 = vadd.f32 %v2316, %v3216
        %v3218 = vpop.f32.mrf.mxu0
        %v3219 = vadd.f32 %v2320, %v3218
        %3220 = vmatprep.mubr.bf16.mxu0 %v2214
        %3221 = vmatmul.mubr.bf16.gmra.mxu0 %v2213
        %v3222 = vpop.f32.mrf.mxu0
        %v3223 = vadd.f32 %v2316, %v3222
        %v3224 = vpop.f32.mrf.mxu0
        %v3225 = vadd.f32 %v2320, %v3224
        %v3226 = vpop.f32.mrf.mxu0
        %v3227 = vadd.f32 %v2316, %v3226
        %v3228 = vpop.f32.mrf.mxu0
        %v3229 = vadd.f32 %v2320, %v3228
        %3230 = vmatprep.mubr.bf16.mxu0 %v2216
        %3231 = vmatmul.mubr.bf16.gmra.mxu0 %v2215
        %v3232 = vpop.f32.mrf.mxu0
        %v3233 = vadd.f32 %v2316, %v3232
        %v3234 = vpop.f32.mrf.mxu0
        %v3235 = vadd.f32 %v2320, %v3234
        %v3236 = vpop.f32.mrf.mxu0
        %v3237 = vadd.f32 %v2316, %v3236
        %v3238 = vpop.f32.mrf.mxu0
        %v3239 = vadd.f32 %v2320, %v3238
        %3240 = vmatprep.mubr.bf16.mxu0 %v2218
        %3241 = vmatmul.mubr.bf16.gmra.mxu0 %v2217
        %v3242 = vpop.f32.mrf.mxu0
        %v3243 = vadd.f32 %v2316, %v3242
        %v3244 = vpop.f32.mrf.mxu0
        %v3245 = vadd.f32 %v2320, %v3244
        %v3246 = vpop.f32.mrf.mxu0
        %v3247 = vadd.f32 %v2316, %v3246
        %v3248 = vpop.f32.mrf.mxu0
        %v3249 = vadd.f32 %v2320, %v3248
        %3250 = vmatprep.mubr.bf16.mxu0 %v2220
        %3251 = vmatmul.mubr.bf16.gmra.mxu0 %v2219
        %v3252 = vpop.f32.mrf.mxu0
        %v3253 = vadd.f32 %v2316, %v3252
        %v3254 = vpop.f32.mrf.mxu0
        %v3255 = vadd.f32 %v2320, %v3254
        %v3256 = vpop.f32.mrf.mxu0
        %v3257 = vadd.f32 %v2316, %v3256
        %v3258 = vpop.f32.mrf.mxu0
        %v3259 = vadd.f32 %v2320, %v3258
        %3260 = vmatprep.mubr.bf16.mxu0 %v2222
        %3261 = vmatmul.mubr.bf16.gmra.mxu0 %v2221
        %v3262 = vpop.f32.mrf.mxu0
        %v3263 = vadd.f32 %v2316, %v3262
        %v3264 = vpop.f32.mrf.mxu0
        %v3265 = vadd.f32 %v2320, %v3264
        %v3266 = vpop.f32.mrf.mxu0
        %v3267 = vadd.f32 %v2316, %v3266
        %v3268 = vpop.f32.mrf.mxu0
        %v3269 = vadd.f32 %v2320, %v3268
        %3270 = vmatprep.mubr.bf16.mxu0 %v2224
        %3271 = vmatmul.mubr.bf16.gmra.mxu0 %v2223
        %v3272 = vpop.f32.mrf.mxu0
        %v3273 = vadd.f32 %v2316, %v3272
        %v3274 = vpop.f32.mrf.mxu0
        %v3275 = vadd.f32 %v2320, %v3274
        %v3276 = vpop.f32.mrf.mxu0
        %v3277 = vadd.f32 %v2316, %v3276
        %v3278 = vpop.f32.mrf.mxu0
        %v3279 = vadd.f32 %v2320, %v3278
        %3280 = vmatprep.mubr.bf16.mxu0 %v2226
        %3281 = vmatmul.mubr.bf16.gmra.mxu0 %v2225
        %v3282 = vpop.f32.mrf.mxu0
        %v3283 = vadd.f32 %v2316, %v3282
        %v3284 = vpop.f32.mrf.mxu0
        %v3285 = vadd.f32 %v2320, %v3284
        %v3286 = vpop.f32.mrf.mxu0
        %v3287 = vadd.f32 %v2316, %v3286
        %v3288 = vpop.f32.mrf.mxu0
        %v3289 = vadd.f32 %v2320, %v3288
        %3290 = vmatprep.mubr.bf16.mxu0 %v2228
        %3291 = vmatmul.mubr.bf16.gmra.mxu0 %v2227
        %v3292 = vpop.f32.mrf.mxu0
        %v3293 = vadd.f32 %v2316, %v3292
        %v3294 = vpop.f32.mrf.mxu0
        %v3295 = vadd.f32 %v2320, %v3294
        %v3296 = vpop.f32.mrf.mxu0
        %v3297 = vadd.f32 %v2316, %v3296
        %v3298 = vpop.f32.mrf.mxu0
        %v3299 = vadd.f32 %v2320, %v3298
        %3300 = vmatprep.mubr.bf16.mxu0 %v2230
        %3301 = vmatmul.mubr.bf16.gmra.mxu0 %v2229
        %v3302 = vpop.f32.mrf.mxu0
        %v3303 = vadd.f32 %v2316, %v3302
        %v3304 = vpop.f32.mrf.mxu0
        %v3305 = vadd.f32 %v2320, %v3304
        %v3306 = vpop.f32.mrf.mxu0
        %v3307 = vadd.f32 %v2316, %v3306
        %v3308 = vpop.f32.mrf.mxu0
        %v3309 = vadd.f32 %v2320, %v3308
        %3310 = vmatprep.mubr.bf16.mxu0 %v2232
        %3311 = vmatmul.mubr.bf16.gmra.mxu0 %v2231
        %v3312 = vpop.f32.mrf.mxu0
        %v3313 = vadd.f32 %v2316, %v3312
        %v3314 = vpop.f32.mrf.mxu0
        %v3315 = vadd.f32 %v2320, %v3314
        %v3316 = vpop.f32.mrf.mxu0
        %v3317 = vadd.f32 %v2316, %v3316
        %v3318 = vpop.f32.mrf.mxu0
        %v3319 = vadd.f32 %v2320, %v3318
        %3320 = vmatprep.mubr.bf16.mxu0 %v2234
        %3321 = vmatmul.mubr.bf16.gmra.mxu0 %v2233
        %v3322 = vpop.f32.mrf.mxu0
        %v3323 = vadd.f32 %v2316, %v3322
        %v3324 = vpop.f32.mrf.mxu0
        %v3325 = vadd.f32 %v2320, %v3324
        %v3326 = vpop.f32.mrf.mxu0
        %v3327 = vadd.f32 %v2316, %v3326
        %v3328 = vpop.f32.mrf.mxu0
        %v3329 = vadd.f32 %v2320, %v3328
        %3330 = vmatprep.mubr.bf16.mxu0 %v2236
        %3331 = vmatmul.mubr.bf16.gmra.mxu0 %v2235
        %v3332 = vpop.f32.mrf.mxu0
        %v3333 = vadd.f32 %v2316, %v3332
        %v3334 = vpop.f32.mrf.mxu0
        %v3335 = vadd.f32 %v2320, %v3334
        %v3336 = vpop.f32.mrf.mxu0
        %v3337 = vadd.f32 %v2316, %v3336
        %v3338 = vpop.f32.mrf.mxu0
        %v3339 = vadd.f32 %v2320, %v3338
        %3340 = vmatprep.mubr.bf16.mxu0 %v2238
        %3341 = vmatmul.mubr.bf16.gmra.mxu0 %v2237
        %v3342 = vpop.f32.mrf.mxu0
        %v3343 = vadd.f32 %v2316, %v3342
        %v3344 = vpop.f32.mrf.mxu0
        %v3345 = vadd.f32 %v2320, %v3344
        %v3346 = vpop.f32.mrf.mxu0
        %v3347 = vadd.f32 %v2316, %v3346
        %v3348 = vpop.f32.mrf.mxu0
        %v3349 = vadd.f32 %v2320, %v3348
        %3350 = vdwg.mxu0
        %v3351 = vld [vmem:[#allocation2] sm:$0xff]
        %v3352 = vld [vmem:[#allocation2 + $0x8] sm:$0xff]
        %v3353 = vld [vmem:[#allocation2 + $0x10] sm:$0xff]
        %v3354 = vld [vmem:[#allocation2 + $0x18] sm:$0xff]
        %v3355 = vmax.f32 %v2680, %v2684
        %v3356 = vmax.f32 %v3355, %v2690
        %v3357 = vmax.f32 %v3356, %v2694
        %v3358 = vmax.f32 %v3357, %v2700
        %v3359 = vmax.f32 %v3358, %v2704
        %v3360 = vmax.f32 %v3359, %v2710
        %v3361 = vmax.f32 %v3360, %v2714
        %v3362 = vmax.f32 %v3361, %v2720
        %v3363 = vmax.f32 %v3362, %v2724
        %v3364 = vmax.f32 %v3363, %v2730
        %v3365 = vmax.f32 %v3364, %v2734
        %v3366 = vmax.f32 %v3365, %v2740
        %v3367 = vmax.f32 %v3366, %v2744
        %v3368 = vmax.f32 %v3367, %v2750
        %v3369 = vmax.f32 %v3368, %v2754
        %v3370 = vmax.f32 %v3369, %v2760
        %v3371 = vmax.f32 %v3370, %v2764
        %v3372 = vmax.f32 %v3371, %v2770
        %v3373 = vmax.f32 %v3372, %v2774
        %v3374 = vmax.f32 %v3373, %v2780
        %v3375 = vmax.f32 %v3374, %v2784
        %v3376 = vmax.f32 %v3375, %v2790
        %v3377 = vmax.f32 %v3376, %v2794
        %v3378 = vmax.f32 %v3377, %v2800
        %v3379 = vmax.f32 %v3378, %v2804
        %v3380 = vmax.f32 %v3379, %v2810
        %v3381 = vmax.f32 %v3380, %v2814
        %v3382 = vmax.f32 %v3381, %v2820
        %v3383 = vmax.f32 %v3382, %v2824
        %v3384 = vmax.f32 %v3383, %v2830
        %v3385 = vmax.f32 %v3384, %v2834
        %v3386 = vmax.f32 %v3385, %v2840
        %v3387 = vmax.f32 %v3386, %v2844
        %v3388 = vmax.f32 %v3387, %v2850
        %v3389 = vmax.f32 %v3388, %v2854
        %v3390 = vmax.f32 %v3389, %v2860
        %v3391 = vmax.f32 %v3390, %v2864
        %v3392 = vmax.f32 %v3391, %v2870
        %v3393 = vmax.f32 %v3392, %v2874
        %v3394 = vmax.f32 %v3393, %v2880
        %v3395 = vmax.f32 %v3394, %v2884
        %v3396 = vmax.f32 %v3395, %v2890
        %v3397 = vmax.f32 %v3396, %v2894
        %v3398 = vmax.f32 %v3397, %v2900
        %v3399 = vmax.f32 %v3398, %v2904
        %v3400 = vmax.f32 %v3399, %v2910
        %v3401 = vmax.f32 %v3400, %v2914
        %v3402 = vmax.f32 %v3401, %v2920
        %v3403 = vmax.f32 %v3402, %v2924
        %v3404 = vmax.f32 %v3403, %v2930
        %v3405 = vmax.f32 %v3404, %v2934
        %v3406 = vmax.f32 %v3405, %v2940
        %v3407 = vmax.f32 %v3406, %v2944
        %v3408 = vmax.f32 %v3407, %v2950
        %v3409 = vmax.f32 %v3408, %v2954
        %v3410 = vmax.f32 %v3409, %v2960
        %v3411 = vmax.f32 %v3410, %v2964
        %v3412 = vmax.f32 %v3411, %v2970
        %v3413 = vmax.f32 %v3412, %v2974
        %v3414 = vmax.f32 %v3413, %v2980
        %v3415 = vmax.f32 %v3414, %v2984
        %v3416 = vmax.f32 %v3415, %v2990
        %v3417 = vmax.f32 %v3416, %v2994
        %v3418 = vmax.f32 %v2682, %v2686
        %v3419 = vmax.f32 %v3418, %v2692
        %v3420 = vmax.f32 %v3419, %v2696
        %v3421 = vmax.f32 %v3420, %v2702
        %v3422 = vmax.f32 %v3421, %v2706
        %v3423 = vmax.f32 %v3422, %v2712
        %v3424 = vmax.f32 %v3423, %v2716
        %v3425 = vmax.f32 %v3424, %v2722
        %v3426 = vmax.f32 %v3425, %v2726
        %v3427 = vmax.f32 %v3426, %v2732
        %v3428 = vmax.f32 %v3427, %v2736
        %v3429 = vmax.f32 %v3428, %v2742
        %v3430 = vmax.f32 %v3429, %v2746
        %v3431 = vmax.f32 %v3430, %v2752
        %v3432 = vmax.f32 %v3431, %v2756
        %v3433 = vmax.f32 %v3432, %v2762
        %v3434 = vmax.f32 %v3433, %v2766
        %v3435 = vmax.f32 %v3434, %v2772
        %v3436 = vmax.f32 %v3435, %v2776
        %v3437 = vmax.f32 %v3436, %v2782
        %v3438 = vmax.f32 %v3437, %v2786
        %v3439 = vmax.f32 %v3438, %v2792
        %v3440 = vmax.f32 %v3439, %v2796
        %v3441 = vmax.f32 %v3440, %v2802
        %v3442 = vmax.f32 %v3441, %v2806
        %v3443 = vmax.f32 %v3442, %v2812
        %v3444 = vmax.f32 %v3443, %v2816
        %v3445 = vmax.f32 %v3444, %v2822
        %v3446 = vmax.f32 %v3445, %v2826
        %v3447 = vmax.f32 %v3446, %v2832
        %v3448 = vmax.f32 %v3447, %v2836
        %v3449 = vmax.f32 %v3448, %v2842
        %v3450 = vmax.f32 %v3449, %v2846
        %v3451 = vmax.f32 %v3450, %v2852
        %v3452 = vmax.f32 %v3451, %v2856
        %v3453 = vmax.f32 %v3452, %v2862
        %v3454 = vmax.f32 %v3453, %v2866
        %v3455 = vmax.f32 %v3454, %v2872
        %v3456 = vmax.f32 %v3455, %v2876
        %v3457 = vmax.f32 %v3456, %v2882
        %v3458 = vmax.f32 %v3457, %v2886
        %v3459 = vmax.f32 %v3458, %v2892
        %v3460 = vmax.f32 %v3459, %v2896
        %v3461 = vmax.f32 %v3460, %v2902
        %v3462 = vmax.f32 %v3461, %v2906
        %v3463 = vmax.f32 %v3462, %v2912
        %v3464 = vmax.f32 %v3463, %v2916
        %v3465 = vmax.f32 %v3464, %v2922
        %v3466 = vmax.f32 %v3465, %v2926
        %v3467 = vmax.f32 %v3466, %v2932
        %v3468 = vmax.f32 %v3467, %v2936
        %v3469 = vmax.f32 %v3468, %v2942
        %v3470 = vmax.f32 %v3469, %v2946
        %v3471 = vmax.f32 %v3470, %v2952
        %v3472 = vmax.f32 %v3471, %v2956
        %v3473 = vmax.f32 %v3472, %v2962
        %v3474 = vmax.f32 %v3473, %v2966
        %v3475 = vmax.f32 %v3474, %v2972
        %v3476 = vmax.f32 %v3475, %v2976
        %v3477 = vmax.f32 %v3476, %v2982
        %v3478 = vmax.f32 %v3477, %v2986
        %v3479 = vmax.f32 %v3478, %v2992
        %v3480 = vmax.f32 %v3479, %v2996
        %v3481 = vmax.f32 %v3033, %v3037
        %v3482 = vmax.f32 %v3481, %v3043
        %v3483 = vmax.f32 %v3482, %v3047
        %v3484 = vmax.f32 %v3483, %v3053
        %v3485 = vmax.f32 %v3484, %v3057
        %v3486 = vmax.f32 %v3485, %v3063
        %v3487 = vmax.f32 %v3486, %v3067
        %v3488 = vmax.f32 %v3487, %v3073
        %v3489 = vmax.f32 %v3488, %v3077
        %v3490 = vmax.f32 %v3489, %v3083
        %v3491 = vmax.f32 %v3490, %v3087
        %v3492 = vmax.f32 %v3491, %v3093
        %v3493 = vmax.f32 %v3492, %v3097
        %v3494 = vmax.f32 %v3493, %v3103
        %v3495 = vmax.f32 %v3494, %v3107
        %v3496 = vmax.f32 %v3495, %v3113
        %v3497 = vmax.f32 %v3496, %v3117
        %v3498 = vmax.f32 %v3497, %v3123
        %v3499 = vmax.f32 %v3498, %v3127
        %v3500 = vmax.f32 %v3499, %v3133
        %v3501 = vmax.f32 %v3500, %v3137
        %v3502 = vmax.f32 %v3501, %v3143
        %v3503 = vmax.f32 %v3502, %v3147
        %v3504 = vmax.f32 %v3503, %v3153
        %v3505 = vmax.f32 %v3504, %v3157
        %v3506 = vmax.f32 %v3505, %v3163
        %v3507 = vmax.f32 %v3506, %v3167
        %v3508 = vmax.f32 %v3507, %v3173
        %v3509 = vmax.f32 %v3508, %v3177
        %v3510 = vmax.f32 %v3509, %v3183
        %v3511 = vmax.f32 %v3510, %v3187
        %v3512 = vmax.f32 %v3511, %v3193
        %v3513 = vmax.f32 %v3512, %v3197
        %v3514 = vmax.f32 %v3513, %v3203
        %v3515 = vmax.f32 %v3514, %v3207
        %v3516 = vmax.f32 %v3515, %v3213
        %v3517 = vmax.f32 %v3516, %v3217
        %v3518 = vmax.f32 %v3517, %v3223
        %v3519 = vmax.f32 %v3518, %v3227
        %v3520 = vmax.f32 %v3519, %v3233
        %v3521 = vmax.f32 %v3520, %v3237
        %v3522 = vmax.f32 %v3521, %v3243
        %v3523 = vmax.f32 %v3522, %v3247
        %v3524 = vmax.f32 %v3523, %v3253
        %v3525 = vmax.f32 %v3524, %v3257
        %v3526 = vmax.f32 %v3525, %v3263
        %v3527 = vmax.f32 %v3526, %v3267
        %v3528 = vmax.f32 %v3527, %v3273
        %v3529 = vmax.f32 %v3528, %v3277
        %v3530 = vmax.f32 %v3529, %v3283
        %v3531 = vmax.f32 %v3530, %v3287
        %v3532 = vmax.f32 %v3531, %v3293
        %v3533 = vmax.f32 %v3532, %v3297
        %v3534 = vmax.f32 %v3533, %v3303
        %v3535 = vmax.f32 %v3534, %v3307
        %v3536 = vmax.f32 %v3535, %v3313
        %v3537 = vmax.f32 %v3536, %v3317
        %v3538 = vmax.f32 %v3537, %v3323
        %v3539 = vmax.f32 %v3538, %v3327
        %v3540 = vmax.f32 %v3539, %v3333
        %v3541 = vmax.f32 %v3540, %v3337
        %v3542 = vmax.f32 %v3541, %v3343
        %v3543 = vmax.f32 %v3542, %v3347
        %v3544 = vmax.f32 %v3035, %v3039
        %v3545 = vmax.f32 %v3544, %v3045
        %v3546 = vmax.f32 %v3545, %v3049
        %v3547 = vmax.f32 %v3546, %v3055
        %v3548 = vmax.f32 %v3547, %v3059
        %v3549 = vmax.f32 %v3548, %v3065
        %v3550 = vmax.f32 %v3549, %v3069
        %v3551 = vmax.f32 %v3550, %v3075
        %v3552 = vmax.f32 %v3551, %v3079
        %v3553 = vmax.f32 %v3552, %v3085
        %v3554 = vmax.f32 %v3553, %v3089
        %v3555 = vmax.f32 %v3554, %v3095
        %v3556 = vmax.f32 %v3555, %v3099
        %v3557 = vmax.f32 %v3556, %v3105
        %v3558 = vmax.f32 %v3557, %v3109
        %v3559 = vmax.f32 %v3558, %v3115
        %v3560 = vmax.f32 %v3559, %v3119
        %v3561 = vmax.f32 %v3560, %v3125
        %v3562 = vmax.f32 %v3561, %v3129
        %v3563 = vmax.f32 %v3562, %v3135
        %v3564 = vmax.f32 %v3563, %v3139
        %v3565 = vmax.f32 %v3564, %v3145
        %v3566 = vmax.f32 %v3565, %v3149
        %v3567 = vmax.f32 %v3566, %v3155
        %v3568 = vmax.f32 %v3567, %v3159
        %v3569 = vmax.f32 %v3568, %v3165
        %v3570 = vmax.f32 %v3569, %v3169
        %v3571 = vmax.f32 %v3570, %v3175
        %v3572 = vmax.f32 %v3571, %v3179
        %v3573 = vmax.f32 %v3572, %v3185
        %v3574 = vmax.f32 %v3573, %v3189
        %v3575 = vmax.f32 %v3574, %v3195
        %v3576 = vmax.f32 %v3575, %v3199
        %v3577 = vmax.f32 %v3576, %v3205
        %v3578 = vmax.f32 %v3577, %v3209
        %v3579 = vmax.f32 %v3578, %v3215
        %v3580 = vmax.f32 %v3579, %v3219
        %v3581 = vmax.f32 %v3580, %v3225
        %v3582 = vmax.f32 %v3581, %v3229
        %v3583 = vmax.f32 %v3582, %v3235
        %v3584 = vmax.f32 %v3583, %v3239
        %v3585 = vmax.f32 %v3584, %v3245
        %v3586 = vmax.f32 %v3585, %v3249
        %v3587 = vmax.f32 %v3586, %v3255
        %v3588 = vmax.f32 %v3587, %v3259
        %v3589 = vmax.f32 %v3588, %v3265
        %v3590 = vmax.f32 %v3589, %v3269
        %v3591 = vmax.f32 %v3590, %v3275
        %v3592 = vmax.f32 %v3591, %v3279
        %v3593 = vmax.f32 %v3592, %v3285
        %v3594 = vmax.f32 %v3593, %v3289
        %v3595 = vmax.f32 %v3594, %v3295
        %v3596 = vmax.f32 %v3595, %v3299
        %v3597 = vmax.f32 %v3596, %v3305
        %v3598 = vmax.f32 %v3597, %v3309
        %v3599 = vmax.f32 %v3598, %v3315
        %v3600 = vmax.f32 %v3599, %v3319
        %v3601 = vmax.f32 %v3600, %v3325
        %v3602 = vmax.f32 %v3601, %v3329
        %v3603 = vmax.f32 %v3602, %v3335
        %v3604 = vmax.f32 %v3603, %v3339
        %v3605 = vmax.f32 %v3604, %v3345
        %v3606 = vmax.f32 %v3605, %v3349
        %v3607 = vmax.f32 %v3351, %v3417
        %v3608 = vmax.f32 %v3352, %v3480
        %v3609 = vmax.f32 %v3353, %v3543
        %v3610 = vmax.f32 %v3354, %v3606
        %3611 = vst [vmem:[#allocation2] sm:$0xff] %v3607
        %3612 = vst [vmem:[#allocation2 + $0x8] sm:$0xff] %v3608
        %3613 = vst [vmem:[#allocation2 + $0x10] sm:$0xff] %v3609
        %3614 = vst [vmem:[#allocation2 + $0x18] sm:$0xff] %v3610
        // Predicated region
        $region61: #{tpu_custom_call.1} parent=55 // pred_check
          %p3615 = pneg %p376
        $region62: #{tpu_custom_call.1} parent=55 // pred_check_branch
          %3617 = sbr.rel (%p3615) target = $region64
        $region63: #{tpu_custom_call.1} parent=55 // pred_region
          %v3618 = vld [vmem:[#allocation2] sm:$0xff]
          %v3619 = vld [vmem:[#allocation2 + $0x8] sm:$0xff]
          %v3620 = vld [vmem:[#allocation2 + $0x10] sm:$0xff]
          %v3621 = vld [vmem:[#allocation2 + $0x18] sm:$0xff]
          %3622 = vst [vmem:[%s362] sm:$0xff] %v3618
          %3623 = vst [vmem:[%s362 + $0x8] sm:$0xff] %v3619
          %3624 = vst [vmem:[%s362 + $0x10] sm:$0xff] %v3620
          %3625 = vst [vmem:[%s362 + $0x18] sm:$0xff] %v3621
        $region64: #{tpu_custom_call.1} parent=55 // pred_fallthru
          _
        %s3626 = sand.u32 %s250, 1
        %s3627 = scalar_lea.sflag [#allocation4], %s3626
        %s3628 = sand.u32 %s250, 1
        %s3629 = smul.addr %s3628, 32
        %s3630 = scalar_lea.vmem [#allocation3], %s3629
        // Predicated region
        $region65: #{tpu_custom_call.1} parent=55 // pred_check
          %p3631 = pneg %p260
        $region66: #{tpu_custom_call.1} parent=55 // pred_check_branch
          %3633 = sbr.rel (%p3631) target = $region68
        $region67: #{tpu_custom_call.1} parent=55 // pred_region
          %s3635 = ssub.s32 512, 512
          %3636 = vsyncadd %s3627, %s3635
          %s3637 = smul.addr %s29, 4
          %s3638 = smul.addr %s28, 4
          %s3639 = sadd.s32 %s3637, %s3638
          %s3640 = smul.addr %s3639, 128
          %s3641 = scalar_lea.hbm %s9, %s3640
          %s3643 = sshll.u32 %s3630, 4
          %s3644 = int_to_ptr.vmem [resolvable:$true] %s3643
          %3646 = dma.vmem_to_hbm [thread:$0]  %s3644, 512, %s3641, %s3627
        $region68: #{tpu_custom_call.1} parent=55 // pred_fallthru
          _
      $region56: #{tpu_custom_call.1} parent=5 // pred_fallthru
        _
      %p3647 = scmp.le.s32.totalorder 2, %s18
      // Predicated region
      $region69: #{tpu_custom_call.1} parent=5 // pred_check
        %p3648 = pneg %p3647
      $region70: #{tpu_custom_call.1} parent=5 // pred_check_branch
        %3650 = sbr.rel (%p3648) target = $region72
      $region71: #{tpu_custom_call.1} parent=5 // pred_region
        %s3651 = ssub.s32 %s18, 2
        // Predicated region
        $region73: #{tpu_custom_call.1} parent=71 // pred_check
          %p3652 = pneg %p266
        $region74: #{tpu_custom_call.1} parent=71 // pred_check_branch
          %3654 = sbr.rel (%p3652) target = $region76
        $region75: #{tpu_custom_call.1} parent=71 // pred_region
          %s3655 = sand.u32 %s251, 1
          %s3656 = scalar_lea.sflag [#allocation4], %s3655
          %s3657 = sand.u32 %s251, 1
          %s3658 = smul.addr %s3657, 32
          %s3659 = scalar_lea.vmem [#allocation3], %s3658
          %3660 = dma.done %s3656, 512
        $region76: #{tpu_custom_call.1} parent=71 // pred_fallthru
          _
      $region72: #{tpu_custom_call.1} parent=5 // pred_fallthru
        _
    $region6: #{tpu_custom_call.1} parent=1 // loop_footer
      %s22 = sadd.s32 1, %s18
    $region7: #{tpu_custom_call.1} parent=1 // loop_footer_branch
      %17 = sbr.rel target = $region3
    $region8: #{tpu_custom_call.1} parent=1 // loop_exit
      _
    %3661 = vsyncpa [#allocation4], 1
    %s3662 = scalar_lea.sflag [#allocation4], 1
    %3663 = vsyncpa %s3662, 1

</llo_original>
